<compile_context>
chip_gen: v7x
topology: tpu7x:2x2x1
jax: 0.10.0
libtpu: 0.0.40
codegen_flags: <defaults>
</compile_context>

<pallas_src>
import functools
import math

import jax
import jax.numpy as jnp
from jax.experimental import pallas as pl
from jax.experimental.pallas import tpu as pltpu


def _round_up(x, m):
    return (x + m - 1) // m * m


def _fcos_cls_head_kernel(x_ref, w_hid_ref, b_hid_ref, w_out_ref, b_out_ref,
                          o_ref, pad_ref, *, H, W, C, num_hidden):
    """Fused conv tower for one image.

    x_ref:     (1, H, W, C)            input activation tile (NHWC)
    w_hid_ref: (num_hidden, 9*C, C)    hidden conv weights, im2col layout
    b_hid_ref: (num_hidden, 1, C)      hidden biases
    w_out_ref: (9*C, Cout_p)           final conv weight, Cout padded to 128
    b_out_ref: (1, Cout_p)             final bias (padded)
    o_ref:     (1, H*W, Cout_p)        lane-dense output slab
    pad_ref:   VMEM scratch (H+2, W+2, C) with zero halo
    """

    def im2col():
        # Build the (H*W, 9*C) patch matrix from the zero-padded activation.
        p = pad_ref[...]                                    # (H+2, W+2, C)
        cols = []
        for dy in range(3):
            for dx in range(3):
                cols.append(p[dy:dy + H, dx:dx + W, :].reshape(H * W, C))
        return jnp.concatenate(cols, axis=-1)               # (H*W, 9*C)

    # Zero the halo once, then write the interior with the layer-0 input.
    pad_ref[...] = jnp.zeros_like(pad_ref)
    pad_ref[pl.ds(1, H), pl.ds(1, W), :] = x_ref[0]

    # Hidden layers: conv3x3 + bias + ReLU, result written back into the
    # interior of the padded scratch (halo stays zero).
    for l in range(num_hidden):
        patches = im2col()
        acc = jnp.dot(patches, w_hid_ref[l],
                      preferred_element_type=jnp.float32)   # (H*W, C)
        acc = jnp.maximum(acc + b_hid_ref[l], 0.0)
        pad_ref[pl.ds(1, H), pl.ds(1, W), :] = (
            acc.reshape(H, W, C).astype(pad_ref.dtype))

    # Final layer: conv3x3 + bias (no activation), lane-dense store.
    patches = im2col()
    out = jnp.dot(patches, w_out_ref[...],
                  preferred_element_type=jnp.float32)       # (H*W, Cout_p)
    out = out + b_out_ref[...]
    o_ref[0] = out.astype(o_ref.dtype)


def fcos_cls_head_forward(x_nchw, params):
    """Input NCHW (PyTorch convention) -> output NCHW (N, num_classes, H, W).

    params: list of (weight_HWIO, bias) tuples; the last entry is the
    classification conv (3, 3, C, num_classes).
    """
    hidden = params[:-1]
    w_last, b_last = params[-1]

    N, C, H, W = x_nchw.shape
    num_classes = w_last.shape[-1]
    num_hidden = len(hidden)
    Cout_p = max(128, _round_up(num_classes, 128))   # lane-dense output

    # Pack weights into im2col layout once (tiny XLA ops, fused under jit).
    w_hid = jnp.stack([w.reshape(9 * C, C) for w, _ in hidden], axis=0)
    b_hid = jnp.stack([b for _, b in hidden], axis=0).reshape(num_hidden, 1, C)
    w_out = jnp.pad(w_last.reshape(9 * C, num_classes),
                    ((0, 0), (0, Cout_p - num_classes)))
    b_out = jnp.pad(b_last.reshape(1, num_classes),
                    ((0, 0), (0, Cout_p - num_classes)))

    # NCHW -> NHWC so channels map to TPU lanes.
    # TODO(synk): in an NHWC end-to-end model these two transposes disappear.
    x_nhwc = jnp.transpose(x_nchw, (0, 2, 3, 1))

    kernel = functools.partial(_fcos_cls_head_kernel,
                               H=H, W=W, C=C, num_hidden=num_hidden)

    # TODO(synk): for large FPN levels (H,W >= 100, C=256) add spatial
    # row-tiling with a 1-row halo and an explicit vmem_limit_bytes so the
    # working set fits v7x's 64 MiB VMEM.
    out = pl.pallas_call(
        kernel,
        out_shape=jax.ShapeDtypeStruct((N, H * W, Cout_p), x_nhwc.dtype),
        grid_spec=pltpu.PrefetchScalarGridSpec(
            num_scalar_prefetch=0,
            grid=(N,),
            in_specs=[
                pl.BlockSpec((1, H, W, C), lambda n: (n, 0, 0, 0)),
                pl.BlockSpec((num_hidden, 9 * C, C), lambda n: (0, 0, 0)),
                pl.BlockSpec((num_hidden, 1, C), lambda n: (0, 0, 0)),
                pl.BlockSpec((9 * C, Cout_p), lambda n: (0, 0)),
                pl.BlockSpec((1, Cout_p), lambda n: (0, 0)),
            ],
            out_specs=pl.BlockSpec((1, H * W, Cout_p), lambda n: (n, 0, 0)),
            scratch_shapes=[pltpu.VMEM((H + 2, W + 2, C), jnp.float32)],
        ),
        compiler_params=pltpu.CompilerParams(
            dimension_semantics=("parallel",)),   # batch split across v7x TCs
    )(x_nhwc, w_hid, b_hid, w_out, b_out)

    out = out[:, :, :num_classes].reshape(N, H, W, num_classes)
    return jnp.transpose(out, (0, 3, 1, 2))


def init_fcos_cls_head_params(key, inplanes, num_classes, num_layers=4,
                              prior=0.01):
    """Matches nn.init.normal_(w, std=0.01), hidden bias=0,
    final bias = -log((1-prior)/prior). Weights stored HWIO."""
    params = []
    for _ in range(num_layers):
        key, sub = jax.random.split(key)
        w = 0.01 * jax.random.normal(sub, (3, 3, inplanes, inplanes),
                                     dtype=jnp.float32)
        b = jnp.zeros((inplanes,), jnp.float32)
        params.append((w, b))
    key, sub = jax.random.split(key)
    w = 0.01 * jax.random.normal(sub, (3, 3, inplanes, num_classes),
                                 dtype=jnp.float32)
    bias_val = -math.log((1.0 - prior) / prior)
    b = jnp.full((num_classes,), bias_val, jnp.float32)
    params.append((w, b))
    return params


def _reference_forward(x_nchw, params):
    """Pure-JAX reference (lax conv) for correctness checking."""
    x = x_nchw
    n_layers = len(params)
    for i, (w, b) in enumerate(params):
        y = jax.lax.conv_general_dilated(
            x, w, window_strides=(1, 1), padding="SAME",
            dimension_numbers=("NCHW", "HWIO", "NCHW"))
        y = y + b.reshape(1, -1, 1, 1)
        if i != n_layers - 1:
            y = jnp.maximum(y, 0.0)
        x = y
    return x


if __name__ == "__main__":
    key = jax.random.PRNGKey(0)

    # Small but TPU-natural shapes for an FCOS cls head: 128 channels keeps
    # every lane-dim slice/concat tile-aligned; 80 classes like COCO.
    batch, inplanes, H, W = 2, 128, 16, 16
    num_classes = 80

    key, kx, kp = jax.random.split(key, 3)
    x = jax.random.normal(kx, (batch, inplanes, H, W), dtype=jnp.float32)
    params = init_fcos_cls_head_params(kp, inplanes, num_classes,
                                       num_layers=4, prior=0.01)

    fwd = jax.jit(fcos_cls_head_forward)
    out = jax.block_until_ready(fwd(x, params))
    assert out.shape == (batch, num_classes, H, W), out.shape

    ref = jax.block_until_ready(_reference_forward(x, params))
    max_err = float(jnp.max(jnp.abs(out - ref)))
    assert jnp.allclose(out, ref, rtol=1e-4, atol=1e-4), max_err

    print("KERNEL_OK")
</pallas_src>

<mosaic_0001>
module attributes {stable_mosaic.version = 11 : i64} {
  func.func @_fcos_cls_head_kernel(%arg0: i32, %arg1: memref<1x16x16x128xf32, #tpu.memory_space<vmem>>, %arg2: memref<4x1152x128xf32, #tpu.memory_space<vmem>>, %arg3: memref<4x1x128xf32, #tpu.memory_space<vmem>>, %arg4: memref<1152x128xf32, #tpu.memory_space<vmem>>, %arg5: memref<1x128xf32, #tpu.memory_space<vmem>>, %arg6: memref<1x256x128xf32, #tpu.memory_space<vmem>>, %arg7: memref<18x18x128xf32, #tpu.memory_space<vmem>>) attributes {dimension_semantics = [#tpu.dimension_semantics<parallel>], iteration_bounds = array<i64: 2>, scalar_prefetch = 0 : i64, scratch_operands = 1 : i64, tpu.core_type = #tpu.core_type<tc>, window_params = [{transform_indices = @transform_0, window_bounds = array<i64: 1, 16, 16, 128>}, {pipeline_mode = #tpu.pipeline_mode<synchronous>, transform_indices = @transform_1, window_bounds = array<i64: 4, 1152, 128>}, {pipeline_mode = #tpu.pipeline_mode<synchronous>, transform_indices = @transform_2, window_bounds = array<i64: 4, 1, 128>}, {pipeline_mode = #tpu.pipeline_mode<synchronous>, transform_indices = @transform_3, window_bounds = array<i64: 1152, 128>}, {pipeline_mode = #tpu.pipeline_mode<synchronous>, transform_indices = @transform_4, window_bounds = array<i64: 1, 128>}, {transform_indices = @transform_5, window_bounds = array<i64: 1, 256, 128>}]} {
    %cst = arith.constant 0.000000e+00 : f32
    %0 = vector.broadcast %cst : f32 to vector<18x18x128xf32>
    %c0 = arith.constant 0 : index
    %c0_0 = arith.constant 0 : index
    %c0_1 = arith.constant 0 : index
    %1 = vector.load %arg7[%c0, %c0_0, %c0_1] : memref<18x18x128xf32, #tpu.memory_space<vmem>>, vector<18x18x128xf32>
    tpu.vector_store %arg7[%c0, %c0_0, %c0_1], %0 {strides = array<i32>} : memref<18x18x128xf32, #tpu.memory_space<vmem>>, vector<18x18x128xf32>,
    %c0_2 = arith.constant 0 : index
    %c0_3 = arith.constant 0 : index
    %c0_4 = arith.constant 0 : index
    %c0_5 = arith.constant 0 : index
    %2 = vector.load %arg1[%c0_2, %c0_3, %c0_4, %c0_5] : memref<1x16x16x128xf32, #tpu.memory_space<vmem>>, vector<1x16x16x128xf32>
    %3 = vector.shape_cast %2 : vector<1x16x16x128xf32> to vector<16x16x128xf32>
    %c1 = arith.constant 1 : index
    %c1_6 = arith.constant 1 : index
    %c0_7 = arith.constant 0 : index
    %4 = vector.load %arg7[%c1, %c1_6, %c0_7] : memref<18x18x128xf32, #tpu.memory_space<vmem>>, vector<16x16x128xf32>
    tpu.vector_store %arg7[%c1, %c1_6, %c0_7], %3 {strides = array<i32>} : memref<18x18x128xf32, #tpu.memory_space<vmem>>, vector<16x16x128xf32>,
    %c0_8 = arith.constant 0 : index
    %c0_9 = arith.constant 0 : index
    %c0_10 = arith.constant 0 : index
    %5 = vector.load %arg7[%c0_8, %c0_9, %c0_10] : memref<18x18x128xf32, #tpu.memory_space<vmem>>, vector<18x18x128xf32>
    %6 = vector.extract_strided_slice %5 {offsets = [0, 0, 0], sizes = [16, 16, 128], strides = [1, 1, 1]} : vector<18x18x128xf32> to vector<16x16x128xf32>
    %7 = vector.shape_cast %6 : vector<16x16x128xf32> to vector<256x128xf32>
    %8 = vector.extract_strided_slice %5 {offsets = [0, 1, 0], sizes = [16, 16, 128], strides = [1, 1, 1]} : vector<18x18x128xf32> to vector<16x16x128xf32>
    %9 = vector.shape_cast %8 : vector<16x16x128xf32> to vector<256x128xf32>
    %10 = vector.extract_strided_slice %5 {offsets = [0, 2, 0], sizes = [16, 16, 128], strides = [1, 1, 1]} : vector<18x18x128xf32> to vector<16x16x128xf32>
    %11 = vector.shape_cast %10 : vector<16x16x128xf32> to vector<256x128xf32>
    %12 = vector.extract_strided_slice %5 {offsets = [1, 0, 0], sizes = [16, 16, 128], strides = [1, 1, 1]} : vector<18x18x128xf32> to vector<16x16x128xf32>
    %13 = vector.shape_cast %12 : vector<16x16x128xf32> to vector<256x128xf32>
    %14 = vector.extract_strided_slice %5 {offsets = [1, 1, 0], sizes = [16, 16, 128], strides = [1, 1, 1]} : vector<18x18x128xf32> to vector<16x16x128xf32>
    %15 = vector.shape_cast %14 : vector<16x16x128xf32> to vector<256x128xf32>
    %16 = vector.extract_strided_slice %5 {offsets = [1, 2, 0], sizes = [16, 16, 128], strides = [1, 1, 1]} : vector<18x18x128xf32> to vector<16x16x128xf32>
    %17 = vector.shape_cast %16 : vector<16x16x128xf32> to vector<256x128xf32>
    %18 = vector.extract_strided_slice %5 {offsets = [2, 0, 0], sizes = [16, 16, 128], strides = [1, 1, 1]} : vector<18x18x128xf32> to vector<16x16x128xf32>
    %19 = vector.shape_cast %18 : vector<16x16x128xf32> to vector<256x128xf32>
    %20 = vector.extract_strided_slice %5 {offsets = [2, 1, 0], sizes = [16, 16, 128], strides = [1, 1, 1]} : vector<18x18x128xf32> to vector<16x16x128xf32>
    %21 = vector.shape_cast %20 : vector<16x16x128xf32> to vector<256x128xf32>
    %22 = vector.extract_strided_slice %5 {offsets = [2, 2, 0], sizes = [16, 16, 128], strides = [1, 1, 1]} : vector<18x18x128xf32> to vector<16x16x128xf32>
    %23 = vector.shape_cast %22 : vector<16x16x128xf32> to vector<256x128xf32>
    %24 = tpu.concatenate %7, %9, %11, %13, %15, %17, %19, %21, %23 in 1 : vector<256x128xf32>, vector<256x128xf32>, vector<256x128xf32>, vector<256x128xf32>, vector<256x128xf32>, vector<256x128xf32>, vector<256x128xf32>, vector<256x128xf32>, vector<256x128xf32> -> vector<256x1152xf32>
    %c0_11 = arith.constant 0 : index
    %c0_12 = arith.constant 0 : index
    %c0_13 = arith.constant 0 : index
    %25 = vector.load %arg2[%c0_11, %c0_12, %c0_13] : memref<4x1152x128xf32, #tpu.memory_space<vmem>>, vector<1x1152x128xf32>
    %26 = vector.shape_cast %25 : vector<1x1152x128xf32> to vector<1152x128xf32>
    %cst_14 = arith.constant dense<0.000000e+00> : vector<256x128xf32>
    %27 = tpu.matmul %24, %26, %cst_14 {dimension_numbers = #tpu.dot_dimension_numbers<[1], [0], [0], [1], [0, 0, 1, 1], [], []>} : vector<256x1152xf32>, vector<1152x128xf32>, vector<256x128xf32> -> vector<256x128xf32>
    %c0_15 = arith.constant 0 : index
    %c0_16 = arith.constant 0 : index
    %c0_17 = arith.constant 0 : index
    %28 = vector.load %arg3[%c0_15, %c0_16, %c0_17] : memref<4x1x128xf32, #tpu.memory_space<vmem>>, vector<1x1x128xf32>
    %29 = vector.shape_cast %28 : vector<1x1x128xf32> to vector<1x128xf32>
    %30 = vector.broadcast %29 : vector<1x128xf32> to vector<256x128xf32>
    %31 = arith.addf %27, %30 : vector<256x128xf32>
    %cst_18 = arith.constant 0.000000e+00 : f32
    %32 = vector.broadcast %cst_18 : f32 to vector<256x128xf32>
    %33 = arith.maximumf %31, %32 : vector<256x128xf32>
    %34 = vector.shape_cast %33 : vector<256x128xf32> to vector<16x16x128xf32>
    %c1_19 = arith.constant 1 : index
    %c1_20 = arith.constant 1 : index
    %c0_21 = arith.constant 0 : index
    %35 = vector.load %arg7[%c1_19, %c1_20, %c0_21] : memref<18x18x128xf32, #tpu.memory_space<vmem>>, vector<16x16x128xf32>
    tpu.vector_store %arg7[%c1_19, %c1_20, %c0_21], %34 {strides = array<i32>} : memref<18x18x128xf32, #tpu.memory_space<vmem>>, vector<16x16x128xf32>,
    %c0_22 = arith.constant 0 : index
    %c0_23 = arith.constant 0 : index
    %c0_24 = arith.constant 0 : index
    %36 = vector.load %arg7[%c0_22, %c0_23, %c0_24] : memref<18x18x128xf32, #tpu.memory_space<vmem>>, vector<18x18x128xf32>
    %37 = vector.extract_strided_slice %36 {offsets = [0, 0, 0], sizes = [16, 16, 128], strides = [1, 1, 1]} : vector<18x18x128xf32> to vector<16x16x128xf32>
    %38 = vector.shape_cast %37 : vector<16x16x128xf32> to vector<256x128xf32>
    %39 = vector.extract_strided_slice %36 {offsets = [0, 1, 0], sizes = [16, 16, 128], strides = [1, 1, 1]} : vector<18x18x128xf32> to vector<16x16x128xf32>
    %40 = vector.shape_cast %39 : vector<16x16x128xf32> to vector<256x128xf32>
    %41 = vector.extract_strided_slice %36 {offsets = [0, 2, 0], sizes = [16, 16, 128], strides = [1, 1, 1]} : vector<18x18x128xf32> to vector<16x16x128xf32>
    %42 = vector.shape_cast %41 : vector<16x16x128xf32> to vector<256x128xf32>
    %43 = vector.extract_strided_slice %36 {offsets = [1, 0, 0], sizes = [16, 16, 128], strides = [1, 1, 1]} : vector<18x18x128xf32> to vector<16x16x128xf32>
    %44 = vector.shape_cast %43 : vector<16x16x128xf32> to vector<256x128xf32>
    %45 = vector.extract_strided_slice %36 {offsets = [1, 1, 0], sizes = [16, 16, 128], strides = [1, 1, 1]} : vector<18x18x128xf32> to vector<16x16x128xf32>
    %46 = vector.shape_cast %45 : vector<16x16x128xf32> to vector<256x128xf32>
    %47 = vector.extract_strided_slice %36 {offsets = [1, 2, 0], sizes = [16, 16, 128], strides = [1, 1, 1]} : vector<18x18x128xf32> to vector<16x16x128xf32>
    %48 = vector.shape_cast %47 : vector<16x16x128xf32> to vector<256x128xf32>
    %49 = vector.extract_strided_slice %36 {offsets = [2, 0, 0], sizes = [16, 16, 128], strides = [1, 1, 1]} : vector<18x18x128xf32> to vector<16x16x128xf32>
    %50 = vector.shape_cast %49 : vector<16x16x128xf32> to vector<256x128xf32>
    %51 = vector.extract_strided_slice %36 {offsets = [2, 1, 0], sizes = [16, 16, 128], strides = [1, 1, 1]} : vector<18x18x128xf32> to vector<16x16x128xf32>
    %52 = vector.shape_cast %51 : vector<16x16x128xf32> to vector<256x128xf32>
    %53 = vector.extract_strided_slice %36 {offsets = [2, 2, 0], sizes = [16, 16, 128], strides = [1, 1, 1]} : vector<18x18x128xf32> to vector<16x16x128xf32>
    %54 = vector.shape_cast %53 : vector<16x16x128xf32> to vector<256x128xf32>
    %55 = tpu.concatenate %38, %40, %42, %44, %46, %48, %50, %52, %54 in 1 : vector<256x128xf32>, vector<256x128xf32>, vector<256x128xf32>, vector<256x128xf32>, vector<256x128xf32>, vector<256x128xf32>, vector<256x128xf32>, vector<256x128xf32>, vector<256x128xf32> -> vector<256x1152xf32>
    %c1_25 = arith.constant 1 : index
    %c0_26 = arith.constant 0 : index
    %c0_27 = arith.constant 0 : index
    %56 = vector.load %arg2[%c1_25, %c0_26, %c0_27] : memref<4x1152x128xf32, #tpu.memory_space<vmem>>, vector<1x1152x128xf32>
    %57 = vector.shape_cast %56 : vector<1x1152x128xf32> to vector<1152x128xf32>
    %cst_28 = arith.constant dense<0.000000e+00> : vector<256x128xf32>
    %58 = tpu.matmul %55, %57, %cst_28 {dimension_numbers = #tpu.dot_dimension_numbers<[1], [0], [0], [1], [0, 0, 1, 1], [], []>} : vector<256x1152xf32>, vector<1152x128xf32>, vector<256x128xf32> -> vector<256x128xf32>
    %c1_29 = arith.constant 1 : index
    %c0_30 = arith.constant 0 : index
    %c0_31 = arith.constant 0 : index
    %59 = vector.load %arg3[%c1_29, %c0_30, %c0_31] : memref<4x1x128xf32, #tpu.memory_space<vmem>>, vector<1x1x128xf32>
    %60 = vector.shape_cast %59 : vector<1x1x128xf32> to vector<1x128xf32>
    %61 = vector.broadcast %60 : vector<1x128xf32> to vector<256x128xf32>
    %62 = arith.addf %58, %61 : vector<256x128xf32>
    %cst_32 = arith.constant 0.000000e+00 : f32
    %63 = vector.broadcast %cst_32 : f32 to vector<256x128xf32>
    %64 = arith.maximumf %62, %63 : vector<256x128xf32>
    %65 = vector.shape_cast %64 : vector<256x128xf32> to vector<16x16x128xf32>
    %c1_33 = arith.constant 1 : index
    %c1_34 = arith.constant 1 : index
    %c0_35 = arith.constant 0 : index
    %66 = vector.load %arg7[%c1_33, %c1_34, %c0_35] : memref<18x18x128xf32, #tpu.memory_space<vmem>>, vector<16x16x128xf32>
    tpu.vector_store %arg7[%c1_33, %c1_34, %c0_35], %65 {strides = array<i32>} : memref<18x18x128xf32, #tpu.memory_space<vmem>>, vector<16x16x128xf32>,
    %c0_36 = arith.constant 0 : index
    %c0_37 = arith.constant 0 : index
    %c0_38 = arith.constant 0 : index
    %67 = vector.load %arg7[%c0_36, %c0_37, %c0_38] : memref<18x18x128xf32, #tpu.memory_space<vmem>>, vector<18x18x128xf32>
    %68 = vector.extract_strided_slice %67 {offsets = [0, 0, 0], sizes = [16, 16, 128], strides = [1, 1, 1]} : vector<18x18x128xf32> to vector<16x16x128xf32>
    %69 = vector.shape_cast %68 : vector<16x16x128xf32> to vector<256x128xf32>
    %70 = vector.extract_strided_slice %67 {offsets = [0, 1, 0], sizes = [16, 16, 128], strides = [1, 1, 1]} : vector<18x18x128xf32> to vector<16x16x128xf32>
    %71 = vector.shape_cast %70 : vector<16x16x128xf32> to vector<256x128xf32>
    %72 = vector.extract_strided_slice %67 {offsets = [0, 2, 0], sizes = [16, 16, 128], strides = [1, 1, 1]} : vector<18x18x128xf32> to vector<16x16x128xf32>
    %73 = vector.shape_cast %72 : vector<16x16x128xf32> to vector<256x128xf32>
    %74 = vector.extract_strided_slice %67 {offsets = [1, 0, 0], sizes = [16, 16, 128], strides = [1, 1, 1]} : vector<18x18x128xf32> to vector<16x16x128xf32>
    %75 = vector.shape_cast %74 : vector<16x16x128xf32> to vector<256x128xf32>
    %76 = vector.extract_strided_slice %67 {offsets = [1, 1, 0], sizes = [16, 16, 128], strides = [1, 1, 1]} : vector<18x18x128xf32> to vector<16x16x128xf32>
    %77 = vector.shape_cast %76 : vector<16x16x128xf32> to vector<256x128xf32>
    %78 = vector.extract_strided_slice %67 {offsets = [1, 2, 0], sizes = [16, 16, 128], strides = [1, 1, 1]} : vector<18x18x128xf32> to vector<16x16x128xf32>
    %79 = vector.shape_cast %78 : vector<16x16x128xf32> to vector<256x128xf32>
    %80 = vector.extract_strided_slice %67 {offsets = [2, 0, 0], sizes = [16, 16, 128], strides = [1, 1, 1]} : vector<18x18x128xf32> to vector<16x16x128xf32>
    %81 = vector.shape_cast %80 : vector<16x16x128xf32> to vector<256x128xf32>
    %82 = vector.extract_strided_slice %67 {offsets = [2, 1, 0], sizes = [16, 16, 128], strides = [1, 1, 1]} : vector<18x18x128xf32> to vector<16x16x128xf32>
    %83 = vector.shape_cast %82 : vector<16x16x128xf32> to vector<256x128xf32>
    %84 = vector.extract_strided_slice %67 {offsets = [2, 2, 0], sizes = [16, 16, 128], strides = [1, 1, 1]} : vector<18x18x128xf32> to vector<16x16x128xf32>
    %85 = vector.shape_cast %84 : vector<16x16x128xf32> to vector<256x128xf32>
    %86 = tpu.concatenate %69, %71, %73, %75, %77, %79, %81, %83, %85 in 1 : vector<256x128xf32>, vector<256x128xf32>, vector<256x128xf32>, vector<256x128xf32>, vector<256x128xf32>, vector<256x128xf32>, vector<256x128xf32>, vector<256x128xf32>, vector<256x128xf32> -> vector<256x1152xf32>
    %c2 = arith.constant 2 : index
    %c0_39 = arith.constant 0 : index
    %c0_40 = arith.constant 0 : index
    %87 = vector.load %arg2[%c2, %c0_39, %c0_40] : memref<4x1152x128xf32, #tpu.memory_space<vmem>>, vector<1x1152x128xf32>
    %88 = vector.shape_cast %87 : vector<1x1152x128xf32> to vector<1152x128xf32>
    %cst_41 = arith.constant dense<0.000000e+00> : vector<256x128xf32>
    %89 = tpu.matmul %86, %88, %cst_41 {dimension_numbers = #tpu.dot_dimension_numbers<[1], [0], [0], [1], [0, 0, 1, 1], [], []>} : vector<256x1152xf32>, vector<1152x128xf32>, vector<256x128xf32> -> vector<256x128xf32>
    %c2_42 = arith.constant 2 : index
    %c0_43 = arith.constant 0 : index
    %c0_44 = arith.constant 0 : index
    %90 = vector.load %arg3[%c2_42, %c0_43, %c0_44] : memref<4x1x128xf32, #tpu.memory_space<vmem>>, vector<1x1x128xf32>
    %91 = vector.shape_cast %90 : vector<1x1x128xf32> to vector<1x128xf32>
    %92 = vector.broadcast %91 : vector<1x128xf32> to vector<256x128xf32>
    %93 = arith.addf %89, %92 : vector<256x128xf32>
    %cst_45 = arith.constant 0.000000e+00 : f32
    %94 = vector.broadcast %cst_45 : f32 to vector<256x128xf32>
    %95 = arith.maximumf %93, %94 : vector<256x128xf32>
    %96 = vector.shape_cast %95 : vector<256x128xf32> to vector<16x16x128xf32>
    %c1_46 = arith.constant 1 : index
    %c1_47 = arith.constant 1 : index
    %c0_48 = arith.constant 0 : index
    %97 = vector.load %arg7[%c1_46, %c1_47, %c0_48] : memref<18x18x128xf32, #tpu.memory_space<vmem>>, vector<16x16x128xf32>
    tpu.vector_store %arg7[%c1_46, %c1_47, %c0_48], %96 {strides = array<i32>} : memref<18x18x128xf32, #tpu.memory_space<vmem>>, vector<16x16x128xf32>,
    %c0_49 = arith.constant 0 : index
    %c0_50 = arith.constant 0 : index
    %c0_51 = arith.constant 0 : index
    %98 = vector.load %arg7[%c0_49, %c0_50, %c0_51] : memref<18x18x128xf32, #tpu.memory_space<vmem>>, vector<18x18x128xf32>
    %99 = vector.extract_strided_slice %98 {offsets = [0, 0, 0], sizes = [16, 16, 128], strides = [1, 1, 1]} : vector<18x18x128xf32> to vector<16x16x128xf32>
    %100 = vector.shape_cast %99 : vector<16x16x128xf32> to vector<256x128xf32>
    %101 = vector.extract_strided_slice %98 {offsets = [0, 1, 0], sizes = [16, 16, 128], strides = [1, 1, 1]} : vector<18x18x128xf32> to vector<16x16x128xf32>
    %102 = vector.shape_cast %101 : vector<16x16x128xf32> to vector<256x128xf32>
    %103 = vector.extract_strided_slice %98 {offsets = [0, 2, 0], sizes = [16, 16, 128], strides = [1, 1, 1]} : vector<18x18x128xf32> to vector<16x16x128xf32>
    %104 = vector.shape_cast %103 : vector<16x16x128xf32> to vector<256x128xf32>
    %105 = vector.extract_strided_slice %98 {offsets = [1, 0, 0], sizes = [16, 16, 128], strides = [1, 1, 1]} : vector<18x18x128xf32> to vector<16x16x128xf32>
    %106 = vector.shape_cast %105 : vector<16x16x128xf32> to vector<256x128xf32>
    %107 = vector.extract_strided_slice %98 {offsets = [1, 1, 0], sizes = [16, 16, 128], strides = [1, 1, 1]} : vector<18x18x128xf32> to vector<16x16x128xf32>
    %108 = vector.shape_cast %107 : vector<16x16x128xf32> to vector<256x128xf32>
    %109 = vector.extract_strided_slice %98 {offsets = [1, 2, 0], sizes = [16, 16, 128], strides = [1, 1, 1]} : vector<18x18x128xf32> to vector<16x16x128xf32>
    %110 = vector.shape_cast %109 : vector<16x16x128xf32> to vector<256x128xf32>
    %111 = vector.extract_strided_slice %98 {offsets = [2, 0, 0], sizes = [16, 16, 128], strides = [1, 1, 1]} : vector<18x18x128xf32> to vector<16x16x128xf32>
    %112 = vector.shape_cast %111 : vector<16x16x128xf32> to vector<256x128xf32>
    %113 = vector.extract_strided_slice %98 {offsets = [2, 1, 0], sizes = [16, 16, 128], strides = [1, 1, 1]} : vector<18x18x128xf32> to vector<16x16x128xf32>
    %114 = vector.shape_cast %113 : vector<16x16x128xf32> to vector<256x128xf32>
    %115 = vector.extract_strided_slice %98 {offsets = [2, 2, 0], sizes = [16, 16, 128], strides = [1, 1, 1]} : vector<18x18x128xf32> to vector<16x16x128xf32>
    %116 = vector.shape_cast %115 : vector<16x16x128xf32> to vector<256x128xf32>
    %117 = tpu.concatenate %100, %102, %104, %106, %108, %110, %112, %114, %116 in 1 : vector<256x128xf32>, vector<256x128xf32>, vector<256x128xf32>, vector<256x128xf32>, vector<256x128xf32>, vector<256x128xf32>, vector<256x128xf32>, vector<256x128xf32>, vector<256x128xf32> -> vector<256x1152xf32>
    %c3 = arith.constant 3 : index
    %c0_52 = arith.constant 0 : index
    %c0_53 = arith.constant 0 : index
    %118 = vector.load %arg2[%c3, %c0_52, %c0_53] : memref<4x1152x128xf32, #tpu.memory_space<vmem>>, vector<1x1152x128xf32>
    %119 = vector.shape_cast %118 : vector<1x1152x128xf32> to vector<1152x128xf32>
    %cst_54 = arith.constant dense<0.000000e+00> : vector<256x128xf32>
    %120 = tpu.matmul %117, %119, %cst_54 {dimension_numbers = #tpu.dot_dimension_numbers<[1], [0], [0], [1], [0, 0, 1, 1], [], []>} : vector<256x1152xf32>, vector<1152x128xf32>, vector<256x128xf32> -> vector<256x128xf32>
    %c3_55 = arith.constant 3 : index
    %c0_56 = arith.constant 0 : index
    %c0_57 = arith.constant 0 : index
    %121 = vector.load %arg3[%c3_55, %c0_56, %c0_57] : memref<4x1x128xf32, #tpu.memory_space<vmem>>, vector<1x1x128xf32>
    %122 = vector.shape_cast %121 : vector<1x1x128xf32> to vector<1x128xf32>
    %123 = vector.broadcast %122 : vector<1x128xf32> to vector<256x128xf32>
    %124 = arith.addf %120, %123 : vector<256x128xf32>
    %cst_58 = arith.constant 0.000000e+00 : f32
    %125 = vector.broadcast %cst_58 : f32 to vector<256x128xf32>
    %126 = arith.maximumf %124, %125 : vector<256x128xf32>
    %127 = vector.shape_cast %126 : vector<256x128xf32> to vector<16x16x128xf32>
    %c1_59 = arith.constant 1 : index
    %c1_60 = arith.constant 1 : index
    %c0_61 = arith.constant 0 : index
    %128 = vector.load %arg7[%c1_59, %c1_60, %c0_61] : memref<18x18x128xf32, #tpu.memory_space<vmem>>, vector<16x16x128xf32>
    tpu.vector_store %arg7[%c1_59, %c1_60, %c0_61], %127 {strides = array<i32>} : memref<18x18x128xf32, #tpu.memory_space<vmem>>, vector<16x16x128xf32>,
    %c0_62 = arith.constant 0 : index
    %c0_63 = arith.constant 0 : index
    %c0_64 = arith.constant 0 : index
    %129 = vector.load %arg7[%c0_62, %c0_63, %c0_64] : memref<18x18x128xf32, #tpu.memory_space<vmem>>, vector<18x18x128xf32>
    %130 = vector.extract_strided_slice %129 {offsets = [0, 0, 0], sizes = [16, 16, 128], strides = [1, 1, 1]} : vector<18x18x128xf32> to vector<16x16x128xf32>
    %131 = vector.shape_cast %130 : vector<16x16x128xf32> to vector<256x128xf32>
    %132 = vector.extract_strided_slice %129 {offsets = [0, 1, 0], sizes = [16, 16, 128], strides = [1, 1, 1]} : vector<18x18x128xf32> to vector<16x16x128xf32>
    %133 = vector.shape_cast %132 : vector<16x16x128xf32> to vector<256x128xf32>
    %134 = vector.extract_strided_slice %129 {offsets = [0, 2, 0], sizes = [16, 16, 128], strides = [1, 1, 1]} : vector<18x18x128xf32> to vector<16x16x128xf32>
    %135 = vector.shape_cast %134 : vector<16x16x128xf32> to vector<256x128xf32>
    %136 = vector.extract_strided_slice %129 {offsets = [1, 0, 0], sizes = [16, 16, 128], strides = [1, 1, 1]} : vector<18x18x128xf32> to vector<16x16x128xf32>
    %137 = vector.shape_cast %136 : vector<16x16x128xf32> to vector<256x128xf32>
    %138 = vector.extract_strided_slice %129 {offsets = [1, 1, 0], sizes = [16, 16, 128], strides = [1, 1, 1]} : vector<18x18x128xf32> to vector<16x16x128xf32>
    %139 = vector.shape_cast %138 : vector<16x16x128xf32> to vector<256x128xf32>
    %140 = vector.extract_strided_slice %129 {offsets = [1, 2, 0], sizes = [16, 16, 128], strides = [1, 1, 1]} : vector<18x18x128xf32> to vector<16x16x128xf32>
    %141 = vector.shape_cast %140 : vector<16x16x128xf32> to vector<256x128xf32>
    %142 = vector.extract_strided_slice %129 {offsets = [2, 0, 0], sizes = [16, 16, 128], strides = [1, 1, 1]} : vector<18x18x128xf32> to vector<16x16x128xf32>
    %143 = vector.shape_cast %142 : vector<16x16x128xf32> to vector<256x128xf32>
    %144 = vector.extract_strided_slice %129 {offsets = [2, 1, 0], sizes = [16, 16, 128], strides = [1, 1, 1]} : vector<18x18x128xf32> to vector<16x16x128xf32>
    %145 = vector.shape_cast %144 : vector<16x16x128xf32> to vector<256x128xf32>
    %146 = vector.extract_strided_slice %129 {offsets = [2, 2, 0], sizes = [16, 16, 128], strides = [1, 1, 1]} : vector<18x18x128xf32> to vector<16x16x128xf32>
    %147 = vector.shape_cast %146 : vector<16x16x128xf32> to vector<256x128xf32>
    %148 = tpu.concatenate %131, %133, %135, %137, %139, %141, %143, %145, %147 in 1 : vector<256x128xf32>, vector<256x128xf32>, vector<256x128xf32>, vector<256x128xf32>, vector<256x128xf32>, vector<256x128xf32>, vector<256x128xf32>, vector<256x128xf32>, vector<256x128xf32> -> vector<256x1152xf32>
    %c0_65 = arith.constant 0 : index
    %c0_66 = arith.constant 0 : index
    %149 = vector.load %arg4[%c0_65, %c0_66] : memref<1152x128xf32, #tpu.memory_space<vmem>>, vector<1152x128xf32>
    %cst_67 = arith.constant dense<0.000000e+00> : vector<256x128xf32>
    %150 = tpu.matmul %148, %149, %cst_67 {dimension_numbers = #tpu.dot_dimension_numbers<[1], [0], [0], [1], [0, 0, 1, 1], [], []>} : vector<256x1152xf32>, vector<1152x128xf32>, vector<256x128xf32> -> vector<256x128xf32>
    %c0_68 = arith.constant 0 : index
    %c0_69 = arith.constant 0 : index
    %151 = vector.load %arg5[%c0_68, %c0_69] : memref<1x128xf32, #tpu.memory_space<vmem>>, vector<1x128xf32>
    %152 = vector.broadcast %151 : vector<1x128xf32> to vector<256x128xf32>
    %153 = arith.addf %150, %152 : vector<256x128xf32>
    %c0_70 = arith.constant 0 : index
    %c0_71 = arith.constant 0 : index
    %c0_72 = arith.constant 0 : index
    %154 = vector.load %arg6[%c0_70, %c0_71, %c0_72] : memref<1x256x128xf32, #tpu.memory_space<vmem>>, vector<1x256x128xf32>
    %155 = vector.shape_cast %154 : vector<1x256x128xf32> to vector<256x128xf32>
    %156 = vector.shape_cast %153 : vector<256x128xf32> to vector<1x256x128xf32>
    tpu.vector_store %arg6[%c0_70, %c0_71, %c0_72], %156 {strides = array<i32>} : memref<1x256x128xf32, #tpu.memory_space<vmem>>, vector<1x256x128xf32>,
    return
  }
  func.func @transform_0(%arg0: i32) -> (i32, i32, i32, i32) {
    %c0_i32 = arith.constant 0 : i32
    %c0_i32_0 = arith.constant 0 : i32
    %c0_i32_1 = arith.constant 0 : i32
    %c0_i32_2 = arith.constant 0 : i32
    return %arg0, %c0_i32, %c0_i32_0, %c0_i32_1 : i32, i32, i32, i32
  }
  func.func @transform_1(%arg0: i32) -> (i32, i32, i32) {
    %c0_i32 = arith.constant 0 : i32
    %c0_i32_0 = arith.constant 0 : i32
    %c0_i32_1 = arith.constant 0 : i32
    %c0_i32_2 = arith.constant 0 : i32
    return %c0_i32, %c0_i32_0, %c0_i32_1 : i32, i32, i32
  }
  func.func @transform_2(%arg0: i32) -> (i32, i32, i32) {
    %c0_i32 = arith.constant 0 : i32
    %c0_i32_0 = arith.constant 0 : i32
    %c0_i32_1 = arith.constant 0 : i32
    %c0_i32_2 = arith.constant 0 : i32
    return %c0_i32, %c0_i32_0, %c0_i32_1 : i32, i32, i32
  }
  func.func @transform_3(%arg0: i32) -> (i32, i32) {
    %c0_i32 = arith.constant 0 : i32
    %c0_i32_0 = arith.constant 0 : i32
    %c0_i32_1 = arith.constant 0 : i32
    return %c0_i32, %c0_i32_0 : i32, i32
  }
  func.func @transform_4(%arg0: i32) -> (i32, i32) {
    %c0_i32 = arith.constant 0 : i32
    %c0_i32_0 = arith.constant 0 : i32
    %c0_i32_1 = arith.constant 0 : i32
    return %c0_i32, %c0_i32_0 : i32, i32
  }
  func.func @transform_5(%arg0: i32) -> (i32, i32, i32) {
    %c0_i32 = arith.constant 0 : i32
    %c0_i32_0 = arith.constant 0 : i32
    %c0_i32_1 = arith.constant 0 : i32
    return %arg0, %c0_i32, %c0_i32_0 : i32, i32, i32
  }
}

</mosaic_0001>

<llo_original>
// kernel: fcos_cls_head_forward.1
$region0: #{fcos_cls_head_forward.1}
  #allocation0 [shape = 'u32[]', space=smem, size = 0x4, offset = 0x4, fixed_abs, tag = 'smem constant byte address 0x4 - core index']
  #allocation1 [shape = 'u32[144,128]{1,0:T(1,128)}', space=vmem, size = 0x12000, scoped, tag = 'internal scratch']
  #allocation2 [shape = 'f32[18,18,128]{2,1,0:T(8,128)}', space=vmem, size = 0x36000, scoped, tag = 'scratch operand']
  %s0 = inlined_call_operand.vmem [shape: f32[2,16,16,128], index: 0, kind: input, shape index: {}]
  %s1 = inlined_call_operand.vmem [shape: f32[4,1152,128], index: 1, kind: input, shape index: {}]
  %s2 = inlined_call_operand.vmem [shape: f32[4,1,128], index: 2, kind: input, shape index: {}]
  %s3 = inlined_call_operand.vmem [shape: f32[1152,128], index: 3, kind: input, shape index: {}]
  %s4 = inlined_call_operand.vmem [shape: f32[1,128], index: 4, kind: input, shape index: {}]
  %s5 = inlined_call_operand.hbm [shape: f32[2,256,128], index: 5, kind: output, shape index: {}]
  %s6 = sld [smem:[#allocation0]]
  $region53: #{fcos_cls_head_forward.1} parent=0
    _
  %s8 = ssub.s32 1, %s6
  %s9 = scalar_select 0, %s8, %s6
  $region1: #{fcos_cls_head_forward.1} parent=0
    #allocation3 [shape = 'u8[262144]{0}', space=vmem, size = 0x40000, scoped, tag = 'output window, operand 0']
    #allocation4 [shape = 's32[2]{0}', space=sflag, size = 0x8, scoped, tag = 'scoped memory for fcos_cls_head_forward.1']
    %10 = vsyncpa [#allocation4], 0
    %s11 = scalar_lea.sflag [#allocation4], 1
    %12 = vsyncpa %s11, 0
    loop: start=0, step=1, limit=4
    $region2: #{fcos_cls_head_forward.1} parent=1 // loop_pre_header
      _
    $region3: #{fcos_cls_head_forward.1} parent=1 // loop_header
      %s14 = sphi 0, %s18
      %p15 = scmp.ge.s32.totalorder %s14, 4
      %s24 = sphi 0, %s26
      %s27 = sphi 0, %s24
      %s28 = sphi 0, %s27
      %s44 = sphi 0, %s28
      %s48 = sphi 0, %s48
      %s50 = sphi 0, %s48
      %s51 = sphi 0, %s50
      %s65 = sphi 0, %s51
      %s69 = sphi 0, %s69
      %s71 = sphi 0, %s69
      %s72 = sphi 0, %s71
      %s86 = sphi 0, %s72
      %s90 = sphi 0, %s90
      %s92 = sphi 0, %s90
      %s93 = sphi 0, %s92
      %s107 = sphi 0, %s93
      %s111 = sphi 0, %s111
      %s113 = sphi 0, %s111
      %s114 = sphi 0, %s113
      %s128 = sphi 0, %s114
      %s134 = sphi 0, %s136
      %s137 = sphi 0, %s134
      %s138 = sphi 0, %s137
      %s154 = sphi 0, %s138
    $region4: #{fcos_cls_head_forward.1} parent=1 // loop_header_branch
      %17 = sbr.rel (%p15) target = $region8
    $region5: #{fcos_cls_head_forward.1} parent=1 // loop_body
      %s19 = ssub.s32 %s14, 1
      %s20 = ssub.s32 %s14, 2
      %s21 = sadd.s32 %s14, 1
      %s22 = ssub.s32 %s14, %s21
      %p23 = scmp.eq.s32.totalorder %s22, 0
      %s25 = sadd.s32 %s24, 1
      %s26 = scalar_select %p23, %s24, %s25
      %p29 = pneg %p23
      %p30 = scmp.eq.s32.totalorder %s14, 1
      %p31 = por %p29, %p30
      %p32 = scmp.ne.s32.totalorder %s24, %s27
      %p33 = scmp.eq.s32.totalorder %s14, 0
      %p34 = por %p32, %p33
      %p35 = scmp.ne.s32.totalorder %s24, %s27
      %p36 = scmp.eq.s32.totalorder %s19, 1
      %p37 = por %p35, %p36
      %p38 = scmp.ne.s32.totalorder %s27, %s28
      %p39 = scmp.eq.s32.totalorder %s19, 0
      %p40 = por %p38, %p39
      %p41 = scmp.ne.s32.totalorder %s27, %s28
      %p42 = scmp.eq.s32.totalorder %s20, 1
      %p43 = por %p41, %p42
      %p45 = scmp.ne.s32.totalorder %s28, %s44
      %p46 = scmp.eq.s32.totalorder %s20, 0
      %p47 = por %p45, %p46
      %s49 = sadd.s32 %s48, 1
      %p52 = scmp.eq.s32.totalorder %s14, 1
      %p53 = scmp.ne.s32.totalorder %s48, %s50
      %p54 = scmp.eq.s32.totalorder %s14, 0
      %p55 = por %p53, %p54
      %p56 = scmp.ne.s32.totalorder %s48, %s50
      %p57 = scmp.eq.s32.totalorder %s19, 1
      %p58 = por %p56, %p57
      %p59 = scmp.ne.s32.totalorder %s50, %s51
      %p60 = scmp.eq.s32.totalorder %s19, 0
      %p61 = por %p59, %p60
      %p62 = scmp.ne.s32.totalorder %s50, %s51
      %p63 = scmp.eq.s32.totalorder %s20, 1
      %p64 = por %p62, %p63
      %p66 = scmp.ne.s32.totalorder %s51, %s65
      %p67 = scmp.eq.s32.totalorder %s20, 0
      %p68 = por %p66, %p67
      %s70 = sadd.s32 %s69, 1
      %p73 = scmp.eq.s32.totalorder %s14, 1
      %p74 = scmp.ne.s32.totalorder %s69, %s71
      %p75 = scmp.eq.s32.totalorder %s14, 0
      %p76 = por %p74, %p75
      %p77 = scmp.ne.s32.totalorder %s69, %s71
      %p78 = scmp.eq.s32.totalorder %s19, 1
      %p79 = por %p77, %p78
      %p80 = scmp.ne.s32.totalorder %s71, %s72
      %p81 = scmp.eq.s32.totalorder %s19, 0
      %p82 = por %p80, %p81
      %p83 = scmp.ne.s32.totalorder %s71, %s72
      %p84 = scmp.eq.s32.totalorder %s20, 1
      %p85 = por %p83, %p84
      %p87 = scmp.ne.s32.totalorder %s72, %s86
      %p88 = scmp.eq.s32.totalorder %s20, 0
      %p89 = por %p87, %p88
      %s91 = sadd.s32 %s90, 1
      %p94 = scmp.eq.s32.totalorder %s14, 1
      %p95 = scmp.ne.s32.totalorder %s90, %s92
      %p96 = scmp.eq.s32.totalorder %s14, 0
      %p97 = por %p95, %p96
      %p98 = scmp.ne.s32.totalorder %s90, %s92
      %p99 = scmp.eq.s32.totalorder %s19, 1
      %p100 = por %p98, %p99
      %p101 = scmp.ne.s32.totalorder %s92, %s93
      %p102 = scmp.eq.s32.totalorder %s19, 0
      %p103 = por %p101, %p102
      %p104 = scmp.ne.s32.totalorder %s92, %s93
      %p105 = scmp.eq.s32.totalorder %s20, 1
      %p106 = por %p104, %p105
      %p108 = scmp.ne.s32.totalorder %s93, %s107
      %p109 = scmp.eq.s32.totalorder %s20, 0
      %p110 = por %p108, %p109
      %s112 = sadd.s32 %s111, 1
      %p115 = scmp.eq.s32.totalorder %s14, 1
      %p116 = scmp.ne.s32.totalorder %s111, %s113
      %p117 = scmp.eq.s32.totalorder %s14, 0
      %p118 = por %p116, %p117
      %p119 = scmp.ne.s32.totalorder %s111, %s113
      %p120 = scmp.eq.s32.totalorder %s19, 1
      %p121 = por %p119, %p120
      %p122 = scmp.ne.s32.totalorder %s113, %s114
      %p123 = scmp.eq.s32.totalorder %s19, 0
      %p124 = por %p122, %p123
      %p125 = scmp.ne.s32.totalorder %s113, %s114
      %p126 = scmp.eq.s32.totalorder %s20, 1
      %p127 = por %p125, %p126
      %p129 = scmp.ne.s32.totalorder %s114, %s128
      %p130 = scmp.eq.s32.totalorder %s20, 0
      %p131 = por %p129, %p130
      %s132 = ssub.s32 %s14, %s21
      %p133 = scmp.eq.s32.totalorder %s132, 0
      %s135 = sadd.s32 %s134, 1
      %s136 = scalar_select %p133, %s134, %s135
      %p139 = pneg %p133
      %p140 = scmp.eq.s32.totalorder %s14, 1
      %p141 = por %p139, %p140
      %p142 = scmp.ne.s32.totalorder %s134, %s137
      %p143 = scmp.eq.s32.totalorder %s14, 0
      %p144 = por %p142, %p143
      %p145 = scmp.ne.s32.totalorder %s134, %s137
      %p146 = scmp.eq.s32.totalorder %s19, 1
      %p147 = por %p145, %p146
      %p148 = scmp.ne.s32.totalorder %s137, %s138
      %p149 = scmp.eq.s32.totalorder %s19, 0
      %p150 = por %p148, %p149
      %p151 = scmp.ne.s32.totalorder %s137, %s138
      %p152 = scmp.eq.s32.totalorder %s20, 1
      %p153 = por %p151, %p152
      %p155 = scmp.ne.s32.totalorder %s138, %s154
      %p156 = scmp.eq.s32.totalorder %s20, 0
      %p157 = por %p155, %p156
      %p158 = scmp.le.s32.totalorder 1, %s14
      %p159 = scmp.lt.s32.totalorder %s14, 3
      %p160 = pnand %p158, %p159
      %p161 = pneg %p160
      // Predicated region
      $region9: #{fcos_cls_head_forward.1} parent=5 // pred_check
        _
      $region10: #{fcos_cls_head_forward.1} parent=5 // pred_check_branch
        %163 = sbr.rel (%p160) target = $region12
      $region11: #{fcos_cls_head_forward.1} parent=5 // pred_region
        %s164 = ssub.s32 %s14, 1
        // Predicated region
        $region13: #{fcos_cls_head_forward.1} parent=11 // pred_check
          %p165 = pneg %p61
        $region14: #{fcos_cls_head_forward.1} parent=11 // pred_check_branch
          %167 = sbr.rel (%p165) target = $region16
        $region15: #{fcos_cls_head_forward.1} parent=11 // pred_region
          _
        $region16: #{fcos_cls_head_forward.1} parent=11 // pred_fallthru
          _
        // Predicated region
        $region17: #{fcos_cls_head_forward.1} parent=11 // pred_check
          %p168 = pneg %p82
        $region18: #{fcos_cls_head_forward.1} parent=11 // pred_check_branch
          %170 = sbr.rel (%p168) target = $region20
        $region19: #{fcos_cls_head_forward.1} parent=11 // pred_region
          _
        $region20: #{fcos_cls_head_forward.1} parent=11 // pred_fallthru
          _
        // Predicated region
        $region21: #{fcos_cls_head_forward.1} parent=11 // pred_check
          %p171 = pneg %p103
        $region22: #{fcos_cls_head_forward.1} parent=11 // pred_check_branch
          %173 = sbr.rel (%p171) target = $region24
        $region23: #{fcos_cls_head_forward.1} parent=11 // pred_region
          _
        $region24: #{fcos_cls_head_forward.1} parent=11 // pred_fallthru
          _
        // Predicated region
        $region25: #{fcos_cls_head_forward.1} parent=11 // pred_check
          %p174 = pneg %p124
        $region26: #{fcos_cls_head_forward.1} parent=11 // pred_check_branch
          %176 = sbr.rel (%p174) target = $region28
        $region27: #{fcos_cls_head_forward.1} parent=11 // pred_region
          _
        $region28: #{fcos_cls_head_forward.1} parent=11 // pred_fallthru
          _
      $region12: #{fcos_cls_head_forward.1} parent=5 // pred_fallthru
        _
      %p177 = scmp.lt.s32.totalorder %s14, 2
      // Predicated region
      $region29: #{fcos_cls_head_forward.1} parent=5 // pred_check
        %p178 = pneg %p177
      $region30: #{fcos_cls_head_forward.1} parent=5 // pred_check_branch
        %180 = sbr.rel (%p178) target = $region32
      $region31: #{fcos_cls_head_forward.1} parent=5 // pred_region
        // Predicated region
        $region33: #{fcos_cls_head_forward.1} parent=31 // pred_check
          %p181 = pneg %p34
        $region34: #{fcos_cls_head_forward.1} parent=31 // pred_check_branch
          %183 = sbr.rel (%p181) target = $region36
        $region35: #{fcos_cls_head_forward.1} parent=31 // pred_region
          %p184 = scmp.lt.s32.totalorder %s14, 1
          %s185 = scalar_select %p184, %s14, 1
          %s186 = smul.addr %s185, 32
          %s187 = smul.addr %s186, 8
          %s188 = scalar_lea.vmem %s0, %s187
        $region36: #{fcos_cls_head_forward.1} parent=31 // pred_fallthru
          _
      $region32: #{fcos_cls_head_forward.1} parent=5 // pred_fallthru
        _
      %p189 = scmp.le.s32.totalorder 1, %s14
      %p190 = scmp.lt.s32.totalorder %s14, 3
      %p191 = pnand %p189, %p190
      %p192 = pneg %p191
      // Predicated region
      $region37: #{fcos_cls_head_forward.1} parent=5 // pred_check
        _
      $region38: #{fcos_cls_head_forward.1} parent=5 // pred_check_branch
        %194 = sbr.rel (%p191) target = $region40
      $region39: #{fcos_cls_head_forward.1} parent=5 // pred_region
        %s195 = ssub.s32 %s14, 1
        %p196 = scmp.lt.s32.totalorder %s19, 1
        %s197 = scalar_select %p196, %s19, 1
        %s198 = smul.addr %s197, 32
        %s199 = smul.addr %s198, 8
        %s200 = scalar_lea.vmem %s0, %s199
        %p201 = pneg %p40
        %p202 = pneg %p37
        %p203 = pneg %p61
        %p204 = pneg %p58
        %p205 = pneg %p82
        %p206 = pneg %p79
        %p207 = pneg %p103
        %p208 = pneg %p100
        %p209 = pneg %p124
        %p210 = pneg %p121
        %p211 = pneg %p150
        %p212 = pneg %p147
        %s213 = sand.u32 %s137, 1
        %s214 = scalar_lea.sflag [#allocation4], %s213
        %s215 = sand.u32 %s137, 1
        %s216 = smul.addr %s215, 256
        %s217 = scalar_lea.vmem [#allocation3], %s216
        %p218 = scmp.lt.s32.totalorder %s19, 1
        %s219 = scalar_select %p218, %s19, 1
        %s220 = smul.addr %s219, 32
        %s221 = smul.addr %s220, 8
        %s222 = scalar_lea.vmem %s0, %s221
        %223 = vst [vmem:[#allocation2] sm:$0xff] 0.0
        %224 = vst [vmem:[#allocation2 + $0x8] sm:$0xff] 0.0
        %225 = vst [vmem:[#allocation2 + $0x10] sm:$0x3] 0.0
        %226 = vst [vmem:[#allocation2 + $0x18] sm:$0xff] 0.0
        %227 = vst [vmem:[#allocation2 + $0x20] sm:$0xff] 0.0
        %228 = vst [vmem:[#allocation2 + $0x28] sm:$0x3] 0.0
        %229 = vst [vmem:[#allocation2 + $0x30] sm:$0xff] 0.0
        %230 = vst [vmem:[#allocation2 + $0x38] sm:$0xff] 0.0
        %231 = vst [vmem:[#allocation2 + $0x40] sm:$0x3] 0.0
        %232 = vst [vmem:[#allocation2 + $0x48] sm:$0xff] 0.0
        %233 = vst [vmem:[#allocation2 + $0x50] sm:$0xff] 0.0
        %234 = vst [vmem:[#allocation2 + $0x58] sm:$0x3] 0.0
        %235 = vst [vmem:[#allocation2 + $0x60] sm:$0xff] 0.0
        %236 = vst [vmem:[#allocation2 + $0x68] sm:$0xff] 0.0
        %237 = vst [vmem:[#allocation2 + $0x70] sm:$0x3] 0.0
        %238 = vst [vmem:[#allocation2 + $0x78] sm:$0xff] 0.0
        %239 = vst [vmem:[#allocation2 + $0x80] sm:$0xff] 0.0
        %240 = vst [vmem:[#allocation2 + $0x88] sm:$0x3] 0.0
        %241 = vst [vmem:[#allocation2 + $0x90] sm:$0xff] 0.0
        %242 = vst [vmem:[#allocation2 + $0x98] sm:$0xff] 0.0
        %243 = vst [vmem:[#allocation2 + $0xa0] sm:$0x3] 0.0
        %244 = vst [vmem:[#allocation2 + $0xa8] sm:$0xff] 0.0
        %245 = vst [vmem:[#allocation2 + $0xb0] sm:$0xff] 0.0
        %246 = vst [vmem:[#allocation2 + $0xb8] sm:$0x3] 0.0
        %247 = vst [vmem:[#allocation2 + $0xc0] sm:$0xff] 0.0
        %248 = vst [vmem:[#allocation2 + $0xc8] sm:$0xff] 0.0
        %249 = vst [vmem:[#allocation2 + $0xd0] sm:$0x3] 0.0
        %250 = vst [vmem:[#allocation2 + $0xd8] sm:$0xff] 0.0
        %251 = vst [vmem:[#allocation2 + $0xe0] sm:$0xff] 0.0
        %252 = vst [vmem:[#allocation2 + $0xe8] sm:$0x3] 0.0
        %253 = vst [vmem:[#allocation2 + $0xf0] sm:$0xff] 0.0
        %254 = vst [vmem:[#allocation2 + $0xf8] sm:$0xff] 0.0
        %255 = vst [vmem:[#allocation2 + $0x100] sm:$0x3] 0.0
        %256 = vst [vmem:[#allocation2 + $0x108] sm:$0xff] 0.0
        %257 = vst [vmem:[#allocation2 + $0x110] sm:$0xff] 0.0
        %258 = vst [vmem:[#allocation2 + $0x118] sm:$0x3] 0.0
        %259 = vst [vmem:[#allocation2 + $0x120] sm:$0xff] 0.0
        %260 = vst [vmem:[#allocation2 + $0x128] sm:$0xff] 0.0
        %261 = vst [vmem:[#allocation2 + $0x130] sm:$0x3] 0.0
        %262 = vst [vmem:[#allocation2 + $0x138] sm:$0xff] 0.0
        %263 = vst [vmem:[#allocation2 + $0x140] sm:$0xff] 0.0
        %264 = vst [vmem:[#allocation2 + $0x148] sm:$0x3] 0.0
        %265 = vst [vmem:[#allocation2 + $0x150] sm:$0xff] 0.0
        %266 = vst [vmem:[#allocation2 + $0x158] sm:$0xff] 0.0
        %267 = vst [vmem:[#allocation2 + $0x160] sm:$0x3] 0.0
        %268 = vst [vmem:[#allocation2 + $0x168] sm:$0xff] 0.0
        %269 = vst [vmem:[#allocation2 + $0x170] sm:$0xff] 0.0
        %270 = vst [vmem:[#allocation2 + $0x178] sm:$0x3] 0.0
        %271 = vst [vmem:[#allocation2 + $0x180] sm:$0xff] 0.0
        %272 = vst [vmem:[#allocation2 + $0x188] sm:$0xff] 0.0
        %273 = vst [vmem:[#allocation2 + $0x190] sm:$0x3] 0.0
        %274 = vst [vmem:[#allocation2 + $0x198] sm:$0xff] 0.0
        %275 = vst [vmem:[#allocation2 + $0x1a0] sm:$0xff] 0.0
        %276 = vst [vmem:[#allocation2 + $0x1a8] sm:$0x3] 0.0
        %v277 = vld [vmem:[%s222] sm:$0xff]
        %v278 = vld [vmem:[%s222 + $0x8] sm:$0xff]
        %v279 = vld [vmem:[%s222 + $0x10] sm:$0xff]
        %v280 = vld [vmem:[%s222 + $0x18] sm:$0xff]
        %v281 = vld [vmem:[%s222 + $0x20] sm:$0xff]
        %v282 = vld [vmem:[%s222 + $0x28] sm:$0xff]
        %v283 = vld [vmem:[%s222 + $0x30] sm:$0xff]
        %v284 = vld [vmem:[%s222 + $0x38] sm:$0xff]
        %v285 = vld [vmem:[%s222 + $0x40] sm:$0xff]
        %v286 = vld [vmem:[%s222 + $0x48] sm:$0xff]
        %v287 = vld [vmem:[%s222 + $0x50] sm:$0xff]
        %v288 = vld [vmem:[%s222 + $0x58] sm:$0xff]
        %v289 = vld [vmem:[%s222 + $0x60] sm:$0xff]
        %v290 = vld [vmem:[%s222 + $0x68] sm:$0xff]
        %v291 = vld [vmem:[%s222 + $0x70] sm:$0xff]
        %v292 = vld [vmem:[%s222 + $0x78] sm:$0xff]
        %v293 = vld [vmem:[%s222 + $0x80] sm:$0xff]
        %v294 = vld [vmem:[%s222 + $0x88] sm:$0xff]
        %v295 = vld [vmem:[%s222 + $0x90] sm:$0xff]
        %v296 = vld [vmem:[%s222 + $0x98] sm:$0xff]
        %v297 = vld [vmem:[%s222 + $0xa0] sm:$0xff]
        %v298 = vld [vmem:[%s222 + $0xa8] sm:$0xff]
        %v299 = vld [vmem:[%s222 + $0xb0] sm:$0xff]
        %v300 = vld [vmem:[%s222 + $0xb8] sm:$0xff]
        %v301 = vld [vmem:[%s222 + $0xc0] sm:$0xff]
        %v302 = vld [vmem:[%s222 + $0xc8] sm:$0xff]
        %v303 = vld [vmem:[%s222 + $0xd0] sm:$0xff]
        %v304 = vld [vmem:[%s222 + $0xd8] sm:$0xff]
        %v305 = vld [vmem:[%s222 + $0xe0] sm:$0xff]
        %v306 = vld [vmem:[%s222 + $0xe8] sm:$0xff]
        %v307 = vld [vmem:[%s222 + $0xf0] sm:$0xff]
        %v308 = vld [vmem:[%s222 + $0xf8] sm:$0xff]
        %s309 = scalar_lea.vmem [#allocation2], 24
        %310 = vst [vmem:[%s309 + $0x1] sm:$0xff] %v277
        %311 = vst [vmem:[%s309 + $0x9] sm:$0xff] %v278
        %312 = vst [vmem:[%s309 + $0x19] sm:$0xff] %v279
        %313 = vst [vmem:[%s309 + $0x21] sm:$0xff] %v280
        %314 = vst [vmem:[%s309 + $0x31] sm:$0xff] %v281
        %315 = vst [vmem:[%s309 + $0x39] sm:$0xff] %v282
        %316 = vst [vmem:[%s309 + $0x49] sm:$0xff] %v283
        %317 = vst [vmem:[%s309 + $0x51] sm:$0xff] %v284
        %318 = vst [vmem:[%s309 + $0x61] sm:$0xff] %v285
        %319 = vst [vmem:[%s309 + $0x69] sm:$0xff] %v286
        %320 = vst [vmem:[%s309 + $0x79] sm:$0xff] %v287
        %321 = vst [vmem:[%s309 + $0x81] sm:$0xff] %v288
        %322 = vst [vmem:[%s309 + $0x91] sm:$0xff] %v289
        %323 = vst [vmem:[%s309 + $0x99] sm:$0xff] %v290
        %324 = vst [vmem:[%s309 + $0xa9] sm:$0xff] %v291
        %325 = vst [vmem:[%s309 + $0xb1] sm:$0xff] %v292
        %326 = vst [vmem:[%s309 + $0xc1] sm:$0xff] %v293
        %327 = vst [vmem:[%s309 + $0xc9] sm:$0xff] %v294
        %328 = vst [vmem:[%s309 + $0xd9] sm:$0xff] %v295
        %329 = vst [vmem:[%s309 + $0xe1] sm:$0xff] %v296
        %330 = vst [vmem:[%s309 + $0xf1] sm:$0xff] %v297
        %331 = vst [vmem:[%s309 + $0xf9] sm:$0xff] %v298
        %332 = vst [vmem:[%s309 + $0x109] sm:$0xff] %v299
        %333 = vst [vmem:[%s309 + $0x111] sm:$0xff] %v300
        %334 = vst [vmem:[%s309 + $0x121] sm:$0xff] %v301
        %335 = vst [vmem:[%s309 + $0x129] sm:$0xff] %v302
        %336 = vst [vmem:[%s309 + $0x139] sm:$0xff] %v303
        %337 = vst [vmem:[%s309 + $0x141] sm:$0xff] %v304
        %338 = vst [vmem:[%s309 + $0x151] sm:$0xff] %v305
        %339 = vst [vmem:[%s309 + $0x159] sm:$0xff] %v306
        %340 = vst [vmem:[%s309 + $0x169] sm:$0xff] %v307
        %341 = vst [vmem:[%s309 + $0x171] sm:$0xff] %v308
        %v342 = vld [vmem:[#allocation2] sm:$0xff]
        %v343 = vld [vmem:[#allocation2 + $0x8] sm:$0xff]
        %v344 = vld [vmem:[#allocation2 + $0x10] sm:$0x3]
        %v345 = vld [vmem:[#allocation2 + $0x18] sm:$0xff]
        %v346 = vld [vmem:[#allocation2 + $0x20] sm:$0xff]
        %v347 = vld [vmem:[#allocation2 + $0x28] sm:$0x3]
        %v348 = vld [vmem:[#allocation2 + $0x30] sm:$0xff]
        %v349 = vld [vmem:[#allocation2 + $0x38] sm:$0xff]
        %v350 = vld [vmem:[#allocation2 + $0x40] sm:$0x3]
        %v351 = vld [vmem:[#allocation2 + $0x48] sm:$0xff]
        %v352 = vld [vmem:[#allocation2 + $0x50] sm:$0xff]
        %v353 = vld [vmem:[#allocation2 + $0x58] sm:$0x3]
        %v354 = vld [vmem:[#allocation2 + $0x60] sm:$0xff]
        %v355 = vld [vmem:[#allocation2 + $0x68] sm:$0xff]
        %v356 = vld [vmem:[#allocation2 + $0x70] sm:$0x3]
        %v357 = vld [vmem:[#allocation2 + $0x78] sm:$0xff]
        %v358 = vld [vmem:[#allocation2 + $0x80] sm:$0xff]
        %v359 = vld [vmem:[#allocation2 + $0x88] sm:$0x3]
        %v360 = vld [vmem:[#allocation2 + $0x90] sm:$0xff]
        %v361 = vld [vmem:[#allocation2 + $0x98] sm:$0xff]
        %v362 = vld [vmem:[#allocation2 + $0xa0] sm:$0x3]
        %v363 = vld [vmem:[#allocation2 + $0xa8] sm:$0xff]
        %v364 = vld [vmem:[#allocation2 + $0xb0] sm:$0xff]
        %v365 = vld [vmem:[#allocation2 + $0xb8] sm:$0x3]
        %v366 = vld [vmem:[#allocation2 + $0xc0] sm:$0xff]
        %v367 = vld [vmem:[#allocation2 + $0xc8] sm:$0xff]
        %v368 = vld [vmem:[#allocation2 + $0xd0] sm:$0x3]
        %v369 = vld [vmem:[#allocation2 + $0xd8] sm:$0xff]
        %v370 = vld [vmem:[#allocation2 + $0xe0] sm:$0xff]
        %v371 = vld [vmem:[#allocation2 + $0xe8] sm:$0x3]
        %v372 = vld [vmem:[#allocation2 + $0xf0] sm:$0xff]
        %v373 = vld [vmem:[#allocation2 + $0xf8] sm:$0xff]
        %v374 = vld [vmem:[#allocation2 + $0x100] sm:$0x3]
        %v375 = vld [vmem:[#allocation2 + $0x108] sm:$0xff]
        %v376 = vld [vmem:[#allocation2 + $0x110] sm:$0xff]
        %v377 = vld [vmem:[#allocation2 + $0x118] sm:$0x3]
        %v378 = vld [vmem:[#allocation2 + $0x120] sm:$0xff]
        %v379 = vld [vmem:[#allocation2 + $0x128] sm:$0xff]
        %v380 = vld [vmem:[#allocation2 + $0x130] sm:$0x3]
        %v381 = vld [vmem:[#allocation2 + $0x138] sm:$0xff]
        %v382 = vld [vmem:[#allocation2 + $0x140] sm:$0xff]
        %v383 = vld [vmem:[#allocation2 + $0x148] sm:$0x3]
        %v384 = vld [vmem:[#allocation2 + $0x150] sm:$0xff]
        %v385 = vld [vmem:[#allocation2 + $0x158] sm:$0xff]
        %v386 = vld [vmem:[#allocation2 + $0x160] sm:$0x3]
        %v387 = vld [vmem:[#allocation2 + $0x168] sm:$0xff]
        %v388 = vld [vmem:[#allocation2 + $0x170] sm:$0xff]
        %v389 = vld [vmem:[#allocation2 + $0x178] sm:$0x3]
        %v390 = vld [vmem:[#allocation2 + $0x180] sm:$0xff]
        %v391 = vld [vmem:[#allocation2 + $0x188] sm:$0xff]
        %v392 = vld [vmem:[#allocation2 + $0x190] sm:$0x3]
        %v393 = vld [vmem:[#allocation2 + $0x198] sm:$0xff]
        %v394 = vld [vmem:[#allocation2 + $0x1a0] sm:$0xff]
        %v395 = vld [vmem:[#allocation2 + $0x1a8] sm:$0x3]
        %vm444 = vcmask 1046528
        %v445 = vrot.slane %v342, 1
        %v446 = vrot.slane %v343, 1
        %v447 = vsel %vm444, %v445, %v446
        %v448 = vrot.slane %v344, 1
        %v449 = vsel %vm444, %v446, %v448
        %v450 = vrot.slane %v345, 1
        %v451 = vrot.slane %v346, 1
        %v452 = vsel %vm444, %v450, %v451
        %v453 = vrot.slane %v347, 1
        %v454 = vsel %vm444, %v451, %v453
        %v455 = vrot.slane %v348, 1
        %v456 = vrot.slane %v349, 1
        %v457 = vsel %vm444, %v455, %v456
        %v458 = vrot.slane %v350, 1
        %v459 = vsel %vm444, %v456, %v458
        %v460 = vrot.slane %v351, 1
        %v461 = vrot.slane %v352, 1
        %v462 = vsel %vm444, %v460, %v461
        %v463 = vrot.slane %v353, 1
        %v464 = vsel %vm444, %v461, %v463
        %v465 = vrot.slane %v354, 1
        %v466 = vrot.slane %v355, 1
        %v467 = vsel %vm444, %v465, %v466
        %v468 = vrot.slane %v356, 1
        %v469 = vsel %vm444, %v466, %v468
        %v470 = vrot.slane %v357, 1
        %v471 = vrot.slane %v358, 1
        %v472 = vsel %vm444, %v470, %v471
        %v473 = vrot.slane %v359, 1
        %v474 = vsel %vm444, %v471, %v473
        %v475 = vrot.slane %v360, 1
        %v476 = vrot.slane %v361, 1
        %v477 = vsel %vm444, %v475, %v476
        %v478 = vrot.slane %v362, 1
        %v479 = vsel %vm444, %v476, %v478
        %v480 = vrot.slane %v363, 1
        %v481 = vrot.slane %v364, 1
        %v482 = vsel %vm444, %v480, %v481
        %v483 = vrot.slane %v365, 1
        %v484 = vsel %vm444, %v481, %v483
        %v485 = vrot.slane %v366, 1
        %v486 = vrot.slane %v367, 1
        %v487 = vsel %vm444, %v485, %v486
        %v488 = vrot.slane %v368, 1
        %v489 = vsel %vm444, %v486, %v488
        %v490 = vrot.slane %v369, 1
        %v491 = vrot.slane %v370, 1
        %v492 = vsel %vm444, %v490, %v491
        %v493 = vrot.slane %v371, 1
        %v494 = vsel %vm444, %v491, %v493
        %v495 = vrot.slane %v372, 1
        %v496 = vrot.slane %v373, 1
        %v497 = vsel %vm444, %v495, %v496
        %v498 = vrot.slane %v374, 1
        %v499 = vsel %vm444, %v496, %v498
        %v500 = vrot.slane %v375, 1
        %v501 = vrot.slane %v376, 1
        %v502 = vsel %vm444, %v500, %v501
        %v503 = vrot.slane %v377, 1
        %v504 = vsel %vm444, %v501, %v503
        %v505 = vrot.slane %v378, 1
        %v506 = vrot.slane %v379, 1
        %v507 = vsel %vm444, %v505, %v506
        %v508 = vrot.slane %v380, 1
        %v509 = vsel %vm444, %v506, %v508
        %v510 = vrot.slane %v381, 1
        %v511 = vrot.slane %v382, 1
        %v512 = vsel %vm444, %v510, %v511
        %v513 = vrot.slane %v383, 1
        %v514 = vsel %vm444, %v511, %v513
        %v515 = vrot.slane %v384, 1
        %v516 = vrot.slane %v385, 1
        %v517 = vsel %vm444, %v515, %v516
        %v518 = vrot.slane %v386, 1
        %v519 = vsel %vm444, %v516, %v518
        %v520 = vrot.slane %v387, 1
        %v521 = vrot.slane %v388, 1
        %v522 = vsel %vm444, %v520, %v521
        %v523 = vrot.slane %v389, 1
        %v524 = vsel %vm444, %v521, %v523
        %vm557 = vcmask 1045504
        %v558 = vrot.slane %v342, 2
        %v559 = vrot.slane %v343, 2
        %v560 = vsel %vm557, %v558, %v559
        %v561 = vrot.slane %v344, 2
        %v562 = vsel %vm557, %v559, %v561
        %v563 = vrot.slane %v345, 2
        %v564 = vrot.slane %v346, 2
        %v565 = vsel %vm557, %v563, %v564
        %v566 = vrot.slane %v347, 2
        %v567 = vsel %vm557, %v564, %v566
        %v568 = vrot.slane %v348, 2
        %v569 = vrot.slane %v349, 2
        %v570 = vsel %vm557, %v568, %v569
        %v571 = vrot.slane %v350, 2
        %v572 = vsel %vm557, %v569, %v571
        %v573 = vrot.slane %v351, 2
        %v574 = vrot.slane %v352, 2
        %v575 = vsel %vm557, %v573, %v574
        %v576 = vrot.slane %v353, 2
        %v577 = vsel %vm557, %v574, %v576
        %v578 = vrot.slane %v354, 2
        %v579 = vrot.slane %v355, 2
        %v580 = vsel %vm557, %v578, %v579
        %v581 = vrot.slane %v356, 2
        %v582 = vsel %vm557, %v579, %v581
        %v583 = vrot.slane %v357, 2
        %v584 = vrot.slane %v358, 2
        %v585 = vsel %vm557, %v583, %v584
        %v586 = vrot.slane %v359, 2
        %v587 = vsel %vm557, %v584, %v586
        %v588 = vrot.slane %v360, 2
        %v589 = vrot.slane %v361, 2
        %v590 = vsel %vm557, %v588, %v589
        %v591 = vrot.slane %v362, 2
        %v592 = vsel %vm557, %v589, %v591
        %v593 = vrot.slane %v363, 2
        %v594 = vrot.slane %v364, 2
        %v595 = vsel %vm557, %v593, %v594
        %v596 = vrot.slane %v365, 2
        %v597 = vsel %vm557, %v594, %v596
        %v598 = vrot.slane %v366, 2
        %v599 = vrot.slane %v367, 2
        %v600 = vsel %vm557, %v598, %v599
        %v601 = vrot.slane %v368, 2
        %v602 = vsel %vm557, %v599, %v601
        %v603 = vrot.slane %v369, 2
        %v604 = vrot.slane %v370, 2
        %v605 = vsel %vm557, %v603, %v604
        %v606 = vrot.slane %v371, 2
        %v607 = vsel %vm557, %v604, %v606
        %v608 = vrot.slane %v372, 2
        %v609 = vrot.slane %v373, 2
        %v610 = vsel %vm557, %v608, %v609
        %v611 = vrot.slane %v374, 2
        %v612 = vsel %vm557, %v609, %v611
        %v613 = vrot.slane %v375, 2
        %v614 = vrot.slane %v376, 2
        %v615 = vsel %vm557, %v613, %v614
        %v616 = vrot.slane %v377, 2
        %v617 = vsel %vm557, %v614, %v616
        %v618 = vrot.slane %v378, 2
        %v619 = vrot.slane %v379, 2
        %v620 = vsel %vm557, %v618, %v619
        %v621 = vrot.slane %v380, 2
        %v622 = vsel %vm557, %v619, %v621
        %v623 = vrot.slane %v381, 2
        %v624 = vrot.slane %v382, 2
        %v625 = vsel %vm557, %v623, %v624
        %v626 = vrot.slane %v383, 2
        %v627 = vsel %vm557, %v624, %v626
        %v628 = vrot.slane %v384, 2
        %v629 = vrot.slane %v385, 2
        %v630 = vsel %vm557, %v628, %v629
        %v631 = vrot.slane %v386, 2
        %v632 = vsel %vm557, %v629, %v631
        %v633 = vrot.slane %v387, 2
        %v634 = vrot.slane %v388, 2
        %v635 = vsel %vm557, %v633, %v634
        %v636 = vrot.slane %v389, 2
        %v637 = vsel %vm557, %v634, %v636
        %v673 = vrot.slane %v390, 1
        %v674 = vrot.slane %v391, 1
        %v675 = vsel %vm444, %v673, %v674
        %v676 = vrot.slane %v392, 1
        %v677 = vsel %vm444, %v674, %v676
        %v680 = vrot.slane %v390, 2
        %v681 = vrot.slane %v391, 2
        %v682 = vsel %vm557, %v680, %v681
        %v683 = vrot.slane %v392, 2
        %v684 = vsel %vm557, %v681, %v683
        %v690 = vrot.slane %v393, 1
        %v691 = vrot.slane %v394, 1
        %v692 = vsel %vm444, %v690, %v691
        %v693 = vrot.slane %v395, 1
        %v694 = vsel %vm444, %v691, %v693
        %v697 = vrot.slane %v393, 2
        %v698 = vrot.slane %v394, 2
        %v699 = vsel %vm557, %v697, %v698
        %v700 = vrot.slane %v395, 2
        %v701 = vsel %vm557, %v698, %v700
        %v704 = vld [vmem:[%s1] sm:$0xff]
        %v705 = vld [vmem:[%s1 + $0x8] sm:$0xff]
        %v706 = vld [vmem:[%s1 + $0x10] sm:$0xff]
        %v707 = vld [vmem:[%s1 + $0x18] sm:$0xff]
        %v708 = vld [vmem:[%s1 + $0x20] sm:$0xff]
        %v709 = vld [vmem:[%s1 + $0x28] sm:$0xff]
        %v710 = vld [vmem:[%s1 + $0x30] sm:$0xff]
        %v711 = vld [vmem:[%s1 + $0x38] sm:$0xff]
        %v712 = vld [vmem:[%s1 + $0x40] sm:$0xff]
        %v713 = vld [vmem:[%s1 + $0x48] sm:$0xff]
        %v714 = vld [vmem:[%s1 + $0x50] sm:$0xff]
        %v715 = vld [vmem:[%s1 + $0x58] sm:$0xff]
        %v716 = vld [vmem:[%s1 + $0x60] sm:$0xff]
        %v717 = vld [vmem:[%s1 + $0x68] sm:$0xff]
        %v718 = vld [vmem:[%s1 + $0x70] sm:$0xff]
        %v719 = vld [vmem:[%s1 + $0x78] sm:$0xff]
        %v720 = vld [vmem:[%s1 + $0x80] sm:$0xff]
        %v721 = vld [vmem:[%s1 + $0x88] sm:$0xff]
        %v722 = vld [vmem:[%s1 + $0x90] sm:$0xff]
        %v723 = vld [vmem:[%s1 + $0x98] sm:$0xff]
        %v724 = vld [vmem:[%s1 + $0xa0] sm:$0xff]
        %v725 = vld [vmem:[%s1 + $0xa8] sm:$0xff]
        %v726 = vld [vmem:[%s1 + $0xb0] sm:$0xff]
        %v727 = vld [vmem:[%s1 + $0xb8] sm:$0xff]
        %v728 = vld [vmem:[%s1 + $0xc0] sm:$0xff]
        %v729 = vld [vmem:[%s1 + $0xc8] sm:$0xff]
        %v730 = vld [vmem:[%s1 + $0xd0] sm:$0xff]
        %v731 = vld [vmem:[%s1 + $0xd8] sm:$0xff]
        %v732 = vld [vmem:[%s1 + $0xe0] sm:$0xff]
        %v733 = vld [vmem:[%s1 + $0xe8] sm:$0xff]
        %v734 = vld [vmem:[%s1 + $0xf0] sm:$0xff]
        %v735 = vld [vmem:[%s1 + $0xf8] sm:$0xff]
        %v736 = vld [vmem:[%s1 + $0x100] sm:$0xff]
        %v737 = vld [vmem:[%s1 + $0x108] sm:$0xff]
        %v738 = vld [vmem:[%s1 + $0x110] sm:$0xff]
        %v739 = vld [vmem:[%s1 + $0x118] sm:$0xff]
        %v740 = vld [vmem:[%s1 + $0x120] sm:$0xff]
        %v741 = vld [vmem:[%s1 + $0x128] sm:$0xff]
        %v742 = vld [vmem:[%s1 + $0x130] sm:$0xff]
        %v743 = vld [vmem:[%s1 + $0x138] sm:$0xff]
        %v744 = vld [vmem:[%s1 + $0x140] sm:$0xff]
        %v745 = vld [vmem:[%s1 + $0x148] sm:$0xff]
        %v746 = vld [vmem:[%s1 + $0x150] sm:$0xff]
        %v747 = vld [vmem:[%s1 + $0x158] sm:$0xff]
        %v748 = vld [vmem:[%s1 + $0x160] sm:$0xff]
        %v749 = vld [vmem:[%s1 + $0x168] sm:$0xff]
        %v750 = vld [vmem:[%s1 + $0x170] sm:$0xff]
        %v751 = vld [vmem:[%s1 + $0x178] sm:$0xff]
        %v752 = vld [vmem:[%s1 + $0x180] sm:$0xff]
        %v753 = vld [vmem:[%s1 + $0x188] sm:$0xff]
        %v754 = vld [vmem:[%s1 + $0x190] sm:$0xff]
        %v755 = vld [vmem:[%s1 + $0x198] sm:$0xff]
        %v756 = vld [vmem:[%s1 + $0x1a0] sm:$0xff]
        %v757 = vld [vmem:[%s1 + $0x1a8] sm:$0xff]
        %v758 = vld [vmem:[%s1 + $0x1b0] sm:$0xff]
        %v759 = vld [vmem:[%s1 + $0x1b8] sm:$0xff]
        %v760 = vld [vmem:[%s1 + $0x1c0] sm:$0xff]
        %v761 = vld [vmem:[%s1 + $0x1c8] sm:$0xff]
        %v762 = vld [vmem:[%s1 + $0x1d0] sm:$0xff]
        %v763 = vld [vmem:[%s1 + $0x1d8] sm:$0xff]
        %v764 = vld [vmem:[%s1 + $0x1e0] sm:$0xff]
        %v765 = vld [vmem:[%s1 + $0x1e8] sm:$0xff]
        %v766 = vld [vmem:[%s1 + $0x1f0] sm:$0xff]
        %v767 = vld [vmem:[%s1 + $0x1f8] sm:$0xff]
        %v768 = vld [vmem:[%s1 + $0x200] sm:$0xff]
        %v769 = vld [vmem:[%s1 + $0x208] sm:$0xff]
        %v770 = vld [vmem:[%s1 + $0x210] sm:$0xff]
        %v771 = vld [vmem:[%s1 + $0x218] sm:$0xff]
        %v772 = vld [vmem:[%s1 + $0x220] sm:$0xff]
        %v773 = vld [vmem:[%s1 + $0x228] sm:$0xff]
        %v774 = vld [vmem:[%s1 + $0x230] sm:$0xff]
        %v775 = vld [vmem:[%s1 + $0x238] sm:$0xff]
        %v776 = vld [vmem:[%s1 + $0x240] sm:$0xff]
        %v777 = vld [vmem:[%s1 + $0x248] sm:$0xff]
        %v778 = vld [vmem:[%s1 + $0x250] sm:$0xff]
        %v779 = vld [vmem:[%s1 + $0x258] sm:$0xff]
        %v780 = vld [vmem:[%s1 + $0x260] sm:$0xff]
        %v781 = vld [vmem:[%s1 + $0x268] sm:$0xff]
        %v782 = vld [vmem:[%s1 + $0x270] sm:$0xff]
        %v783 = vld [vmem:[%s1 + $0x278] sm:$0xff]
        %v784 = vld [vmem:[%s1 + $0x280] sm:$0xff]
        %v785 = vld [vmem:[%s1 + $0x288] sm:$0xff]
        %v786 = vld [vmem:[%s1 + $0x290] sm:$0xff]
        %v787 = vld [vmem:[%s1 + $0x298] sm:$0xff]
        %v788 = vld [vmem:[%s1 + $0x2a0] sm:$0xff]
        %v789 = vld [vmem:[%s1 + $0x2a8] sm:$0xff]
        %v790 = vld [vmem:[%s1 + $0x2b0] sm:$0xff]
        %v791 = vld [vmem:[%s1 + $0x2b8] sm:$0xff]
        %v792 = vld [vmem:[%s1 + $0x2c0] sm:$0xff]
        %v793 = vld [vmem:[%s1 + $0x2c8] sm:$0xff]
        %v794 = vld [vmem:[%s1 + $0x2d0] sm:$0xff]
        %v795 = vld [vmem:[%s1 + $0x2d8] sm:$0xff]
        %v796 = vld [vmem:[%s1 + $0x2e0] sm:$0xff]
        %v797 = vld [vmem:[%s1 + $0x2e8] sm:$0xff]
        %v798 = vld [vmem:[%s1 + $0x2f0] sm:$0xff]
        %v799 = vld [vmem:[%s1 + $0x2f8] sm:$0xff]
        %v800 = vld [vmem:[%s1 + $0x300] sm:$0xff]
        %v801 = vld [vmem:[%s1 + $0x308] sm:$0xff]
        %v802 = vld [vmem:[%s1 + $0x310] sm:$0xff]
        %v803 = vld [vmem:[%s1 + $0x318] sm:$0xff]
        %v804 = vld [vmem:[%s1 + $0x320] sm:$0xff]
        %v805 = vld [vmem:[%s1 + $0x328] sm:$0xff]
        %v806 = vld [vmem:[%s1 + $0x330] sm:$0xff]
        %v807 = vld [vmem:[%s1 + $0x338] sm:$0xff]
        %v808 = vld [vmem:[%s1 + $0x340] sm:$0xff]
        %v809 = vld [vmem:[%s1 + $0x348] sm:$0xff]
        %v810 = vld [vmem:[%s1 + $0x350] sm:$0xff]
        %v811 = vld [vmem:[%s1 + $0x358] sm:$0xff]
        %v812 = vld [vmem:[%s1 + $0x360] sm:$0xff]
        %v813 = vld [vmem:[%s1 + $0x368] sm:$0xff]
        %v814 = vld [vmem:[%s1 + $0x370] sm:$0xff]
        %v815 = vld [vmem:[%s1 + $0x378] sm:$0xff]
        %v816 = vld [vmem:[%s1 + $0x380] sm:$0xff]
        %v817 = vld [vmem:[%s1 + $0x388] sm:$0xff]
        %v818 = vld [vmem:[%s1 + $0x390] sm:$0xff]
        %v819 = vld [vmem:[%s1 + $0x398] sm:$0xff]
        %v820 = vld [vmem:[%s1 + $0x3a0] sm:$0xff]
        %v821 = vld [vmem:[%s1 + $0x3a8] sm:$0xff]
        %v822 = vld [vmem:[%s1 + $0x3b0] sm:$0xff]
        %v823 = vld [vmem:[%s1 + $0x3b8] sm:$0xff]
        %v824 = vld [vmem:[%s1 + $0x3c0] sm:$0xff]
        %v825 = vld [vmem:[%s1 + $0x3c8] sm:$0xff]
        %v826 = vld [vmem:[%s1 + $0x3d0] sm:$0xff]
        %v827 = vld [vmem:[%s1 + $0x3d8] sm:$0xff]
        %v828 = vld [vmem:[%s1 + $0x3e0] sm:$0xff]
        %v829 = vld [vmem:[%s1 + $0x3e8] sm:$0xff]
        %v830 = vld [vmem:[%s1 + $0x3f0] sm:$0xff]
        %v831 = vld [vmem:[%s1 + $0x3f8] sm:$0xff]
        %v832 = vld [vmem:[%s1 + $0x400] sm:$0xff]
        %v833 = vld [vmem:[%s1 + $0x408] sm:$0xff]
        %v834 = vld [vmem:[%s1 + $0x410] sm:$0xff]
        %v835 = vld [vmem:[%s1 + $0x418] sm:$0xff]
        %v836 = vld [vmem:[%s1 + $0x420] sm:$0xff]
        %v837 = vld [vmem:[%s1 + $0x428] sm:$0xff]
        %v838 = vld [vmem:[%s1 + $0x430] sm:$0xff]
        %v839 = vld [vmem:[%s1 + $0x438] sm:$0xff]
        %v840 = vld [vmem:[%s1 + $0x440] sm:$0xff]
        %v841 = vld [vmem:[%s1 + $0x448] sm:$0xff]
        %v842 = vld [vmem:[%s1 + $0x450] sm:$0xff]
        %v843 = vld [vmem:[%s1 + $0x458] sm:$0xff]
        %v844 = vld [vmem:[%s1 + $0x460] sm:$0xff]
        %v845 = vld [vmem:[%s1 + $0x468] sm:$0xff]
        %v846 = vld [vmem:[%s1 + $0x470] sm:$0xff]
        %v847 = vld [vmem:[%s1 + $0x478] sm:$0xff]
        %v848 = vld [vmem:[%s2] sm:$0x1]
        %v850 = vlaneseq
        %v851 = vshrl.u32 %v850, 7
        %v852 = vsub.s32 0, %v851
        %v853 = vrot.slane %v848, %v852
        %855 = vmatprep.subr.mxu0 0.0
        %856 = vmatpush1.msra.mxu0 %v704
        %857 = vmatprep.subr.mxu0 0.0
        %858 = vmatpush1.msra.mxu0 %v705
        %859 = vmatprep.subr.mxu0 0.0
        %860 = vmatpush1.msra.mxu0 %v706
        %861 = vmatprep.subr.mxu0 0.0
        %862 = vmatpush1.msra.mxu0 %v707
        %863 = vmatprep.subr.mxu0 0.0
        %864 = vmatpush1.msra.mxu0 %v708
        %865 = vmatprep.subr.mxu0 0.0
        %866 = vmatpush1.msra.mxu0 %v709
        %867 = vmatprep.subr.mxu0 0.0
        %868 = vmatpush1.msra.mxu0 %v710
        %869 = vmatprep.subr.mxu0 0.0
        %870 = vmatpush1.msra.mxu0 %v711
        %871 = vmatprep.subr.mxu0 0.0
        %872 = vmatpush1.msra.mxu0 %v712
        %873 = vmatprep.subr.mxu0 0.0
        %874 = vmatpush1.msra.mxu0 %v713
        %875 = vmatprep.subr.mxu0 0.0
        %876 = vmatpush1.msra.mxu0 %v714
        %877 = vmatprep.subr.mxu0 0.0
        %878 = vmatpush1.msra.mxu0 %v715
        %879 = vmatprep.subr.mxu0 0.0
        %880 = vmatpush1.msra.mxu0 %v716
        %881 = vmatprep.subr.mxu0 0.0
        %882 = vmatpush1.msra.mxu0 %v717
        %883 = vmatprep.subr.mxu0 0.0
        %884 = vmatpush1.msra.mxu0 %v718
        %885 = vmatprep.subr.mxu0 0.0
        %886 = vmatpush1.msra.mxu0 %v719
        %887 = vmatprep.subr.mxu0 0.0
        %888 = vmatpush1.msra.mxu0 %v720
        %889 = vmatprep.subr.mxu0 0.0
        %890 = vmatpush1.msra.mxu0 %v721
        %891 = vmatprep.subr.mxu0 0.0
        %892 = vmatpush1.msra.mxu0 %v722
        %893 = vmatprep.subr.mxu0 0.0
        %894 = vmatpush1.msra.mxu0 %v723
        %895 = vmatprep.subr.mxu0 0.0
        %896 = vmatpush1.msra.mxu0 %v724
        %897 = vmatprep.subr.mxu0 0.0
        %898 = vmatpush1.msra.mxu0 %v725
        %899 = vmatprep.subr.mxu0 0.0
        %900 = vmatpush1.msra.mxu0 %v726
        %901 = vmatprep.subr.mxu0 0.0
        %902 = vmatpush1.msra.mxu0 %v727
        %903 = vmatprep.subr.mxu0 0.0
        %904 = vmatpush1.msra.mxu0 %v728
        %905 = vmatprep.subr.mxu0 0.0
        %906 = vmatpush1.msra.mxu0 %v729
        %907 = vmatprep.subr.mxu0 0.0
        %908 = vmatpush1.msra.mxu0 %v730
        %909 = vmatprep.subr.mxu0 0.0
        %910 = vmatpush1.msra.mxu0 %v731
        %911 = vmatprep.subr.mxu0 0.0
        %912 = vmatpush1.msra.mxu0 %v732
        %913 = vmatprep.subr.mxu0 0.0
        %914 = vmatpush1.msra.mxu0 %v733
        %915 = vmatprep.subr.mxu0 0.0
        %916 = vmatpush1.msra.mxu0 %v734
        %917 = vmatprep.subr.mxu0 0.0
        %918 = vmatpush1.msra.mxu0 %v735
        %919 = vmatprep.mubr.f32.mxu0 %v447
        %920 = vmatmul.mubr.f32.gmra.mrb[0].mxu0 %v342
        %v921 = vpop.f32.mrb[0].mxu0
        %v922 = vadd.f32 %v853, %v921
        %v923 = vpop.f32.mrb[0].mxu0
        %924 = vmatprep.mubr.f32.mxu0 %v449
        %925 = vmatmul.mubr.f32.gmra.mrb[0].mxu0 %v343
        %v926 = vpop.f32.mrb[0].mxu0
        %v927 = vadd.f32 %v853, %v926
        %v928 = vpop.f32.mrb[0].mxu0
        %929 = vmatprep.mubr.f32.mxu0 %v452
        %930 = vmatmul.mubr.f32.gmra.mrb[0].mxu0 %v345
        %v931 = vpop.f32.mrb[0].mxu0
        %v932 = vadd.f32 %v853, %v931
        %v933 = vpop.f32.mrb[0].mxu0
        %934 = vmatprep.mubr.f32.mxu0 %v454
        %935 = vmatmul.mubr.f32.gmra.mrb[0].mxu0 %v346
        %v936 = vpop.f32.mrb[0].mxu0
        %v937 = vadd.f32 %v853, %v936
        %v938 = vpop.f32.mrb[0].mxu0
        %939 = vmatprep.mubr.f32.mxu0 %v457
        %940 = vmatmul.mubr.f32.gmra.mrb[0].mxu0 %v348
        %v941 = vpop.f32.mrb[0].mxu0
        %v942 = vadd.f32 %v853, %v941
        %v943 = vpop.f32.mrb[0].mxu0
        %944 = vmatprep.mubr.f32.mxu0 %v459
        %945 = vmatmul.mubr.f32.gmra.mrb[0].mxu0 %v349
        %v946 = vpop.f32.mrb[0].mxu0
        %v947 = vadd.f32 %v853, %v946
        %v948 = vpop.f32.mrb[0].mxu0
        %949 = vmatprep.mubr.f32.mxu0 %v462
        %950 = vmatmul.mubr.f32.gmra.mrb[0].mxu0 %v351
        %v951 = vpop.f32.mrb[0].mxu0
        %v952 = vadd.f32 %v853, %v951
        %v953 = vpop.f32.mrb[0].mxu0
        %954 = vmatprep.mubr.f32.mxu0 %v464
        %955 = vmatmul.mubr.f32.gmra.mrb[0].mxu0 %v352
        %v956 = vpop.f32.mrb[0].mxu0
        %v957 = vadd.f32 %v853, %v956
        %v958 = vpop.f32.mrb[0].mxu0
        %959 = vmatprep.mubr.f32.mxu0 %v467
        %960 = vmatmul.mubr.f32.gmra.mrb[0].mxu0 %v354
        %v961 = vpop.f32.mrb[0].mxu0
        %v962 = vadd.f32 %v853, %v961
        %v963 = vpop.f32.mrb[0].mxu0
        %964 = vmatprep.mubr.f32.mxu0 %v469
        %965 = vmatmul.mubr.f32.gmra.mrb[0].mxu0 %v355
        %v966 = vpop.f32.mrb[0].mxu0
        %v967 = vadd.f32 %v853, %v966
        %v968 = vpop.f32.mrb[0].mxu0
        %969 = vmatprep.mubr.f32.mxu0 %v472
        %970 = vmatmul.mubr.f32.gmra.mrb[0].mxu0 %v357
        %v971 = vpop.f32.mrb[0].mxu0
        %v972 = vadd.f32 %v853, %v971
        %v973 = vpop.f32.mrb[0].mxu0
        %974 = vmatprep.mubr.f32.mxu0 %v474
        %975 = vmatmul.mubr.f32.gmra.mrb[0].mxu0 %v358
        %v976 = vpop.f32.mrb[0].mxu0
        %v977 = vadd.f32 %v853, %v976
        %v978 = vpop.f32.mrb[0].mxu0
        %979 = vmatprep.mubr.f32.mxu0 %v477
        %980 = vmatmul.mubr.f32.gmra.mrb[0].mxu0 %v360
        %v981 = vpop.f32.mrb[0].mxu0
        %v982 = vadd.f32 %v853, %v981
        %v983 = vpop.f32.mrb[0].mxu0
        %984 = vmatprep.mubr.f32.mxu0 %v479
        %985 = vmatmul.mubr.f32.gmra.mrb[0].mxu0 %v361
        %v986 = vpop.f32.mrb[0].mxu0
        %v987 = vadd.f32 %v853, %v986
        %v988 = vpop.f32.mrb[0].mxu0
        %989 = vmatprep.mubr.f32.mxu0 %v482
        %990 = vmatmul.mubr.f32.gmra.mrb[0].mxu0 %v363
        %v991 = vpop.f32.mrb[0].mxu0
        %v992 = vadd.f32 %v853, %v991
        %v993 = vpop.f32.mrb[0].mxu0
        %994 = vmatprep.mubr.f32.mxu0 %v484
        %995 = vmatmul.mubr.f32.gmra.mrb[0].mxu0 %v364
        %v996 = vpop.f32.mrb[0].mxu0
        %v997 = vadd.f32 %v853, %v996
        %v998 = vpop.f32.mrb[0].mxu0
        %999 = vmatprep.mubr.f32.mxu0 %v487
        %1000 = vmatmul.mubr.f32.gmra.mrb[0].mxu0 %v366
        %v1001 = vpop.f32.mrb[0].mxu0
        %v1002 = vadd.f32 %v853, %v1001
        %v1003 = vpop.f32.mrb[0].mxu0
        %1004 = vmatprep.mubr.f32.mxu0 %v489
        %1005 = vmatmul.mubr.f32.gmra.mrb[0].mxu0 %v367
        %v1006 = vpop.f32.mrb[0].mxu0
        %v1007 = vadd.f32 %v853, %v1006
        %v1008 = vpop.f32.mrb[0].mxu0
        %1009 = vmatprep.mubr.f32.mxu0 %v492
        %1010 = vmatmul.mubr.f32.gmra.mrb[0].mxu0 %v369
        %v1011 = vpop.f32.mrb[0].mxu0
        %v1012 = vadd.f32 %v853, %v1011
        %v1013 = vpop.f32.mrb[0].mxu0
        %1014 = vmatprep.mubr.f32.mxu0 %v494
        %1015 = vmatmul.mubr.f32.gmra.mrb[0].mxu0 %v370
        %v1016 = vpop.f32.mrb[0].mxu0
        %v1017 = vadd.f32 %v853, %v1016
        %v1018 = vpop.f32.mrb[0].mxu0
        %1019 = vmatprep.mubr.f32.mxu0 %v497
        %1020 = vmatmul.mubr.f32.gmra.mrb[0].mxu0 %v372
        %v1021 = vpop.f32.mrb[0].mxu0
        %v1022 = vadd.f32 %v853, %v1021
        %v1023 = vpop.f32.mrb[0].mxu0
        %1024 = vmatprep.mubr.f32.mxu0 %v499
        %1025 = vmatmul.mubr.f32.gmra.mrb[0].mxu0 %v373
        %v1026 = vpop.f32.mrb[0].mxu0
        %v1027 = vadd.f32 %v853, %v1026
        %v1028 = vpop.f32.mrb[0].mxu0
        %1029 = vmatprep.mubr.f32.mxu0 %v502
        %1030 = vmatmul.mubr.f32.gmra.mrb[0].mxu0 %v375
        %v1031 = vpop.f32.mrb[0].mxu0
        %v1032 = vadd.f32 %v853, %v1031
        %v1033 = vpop.f32.mrb[0].mxu0
        %1034 = vmatprep.mubr.f32.mxu0 %v504
        %1035 = vmatmul.mubr.f32.gmra.mrb[0].mxu0 %v376
        %v1036 = vpop.f32.mrb[0].mxu0
        %v1037 = vadd.f32 %v853, %v1036
        %v1038 = vpop.f32.mrb[0].mxu0
        %1039 = vmatprep.mubr.f32.mxu0 %v507
        %1040 = vmatmul.mubr.f32.gmra.mrb[0].mxu0 %v378
        %v1041 = vpop.f32.mrb[0].mxu0
        %v1042 = vadd.f32 %v853, %v1041
        %v1043 = vpop.f32.mrb[0].mxu0
        %1044 = vmatprep.mubr.f32.mxu0 %v509
        %1045 = vmatmul.mubr.f32.gmra.mrb[0].mxu0 %v379
        %v1046 = vpop.f32.mrb[0].mxu0
        %v1047 = vadd.f32 %v853, %v1046
        %v1048 = vpop.f32.mrb[0].mxu0
        %1049 = vmatprep.mubr.f32.mxu0 %v512
        %1050 = vmatmul.mubr.f32.gmra.mrb[0].mxu0 %v381
        %v1051 = vpop.f32.mrb[0].mxu0
        %v1052 = vadd.f32 %v853, %v1051
        %v1053 = vpop.f32.mrb[0].mxu0
        %1054 = vmatprep.mubr.f32.mxu0 %v514
        %1055 = vmatmul.mubr.f32.gmra.mrb[0].mxu0 %v382
        %v1056 = vpop.f32.mrb[0].mxu0
        %v1057 = vadd.f32 %v853, %v1056
        %v1058 = vpop.f32.mrb[0].mxu0
        %1059 = vmatprep.mubr.f32.mxu0 %v517
        %1060 = vmatmul.mubr.f32.gmra.mrb[0].mxu0 %v384
        %v1061 = vpop.f32.mrb[0].mxu0
        %v1062 = vadd.f32 %v853, %v1061
        %v1063 = vpop.f32.mrb[0].mxu0
        %1064 = vmatprep.mubr.f32.mxu0 %v519
        %1065 = vmatmul.mubr.f32.gmra.mrb[0].mxu0 %v385
        %v1066 = vpop.f32.mrb[0].mxu0
        %v1067 = vadd.f32 %v853, %v1066
        %v1068 = vpop.f32.mrb[0].mxu0
        %1069 = vmatprep.mubr.f32.mxu0 %v522
        %1070 = vmatmul.mubr.f32.gmra.mrb[0].mxu0 %v387
        %v1071 = vpop.f32.mrb[0].mxu0
        %v1072 = vadd.f32 %v853, %v1071
        %v1073 = vpop.f32.mrb[0].mxu0
        %1074 = vmatprep.mubr.f32.mxu0 %v524
        %1075 = vmatmul.mubr.f32.gmra.mrb[0].mxu0 %v388
        %v1076 = vpop.f32.mrb[0].mxu0
        %v1077 = vadd.f32 %v853, %v1076
        %v1078 = vpop.f32.mrb[0].mxu0
        %1079 = vdwg.mxu0
        %1080 = vmatprep.subr.mxu0 0.0
        %1081 = vmatpush1.msra.mxu0 %v736
        %1082 = vmatprep.subr.mxu0 0.0
        %1083 = vmatpush1.msra.mxu0 %v737
        %1084 = vmatprep.subr.mxu0 0.0
        %1085 = vmatpush1.msra.mxu0 %v738
        %1086 = vmatprep.subr.mxu0 0.0
        %1087 = vmatpush1.msra.mxu0 %v739
        %1088 = vmatprep.subr.mxu0 0.0
        %1089 = vmatpush1.msra.mxu0 %v740
        %1090 = vmatprep.subr.mxu0 0.0
        %1091 = vmatpush1.msra.mxu0 %v741
        %1092 = vmatprep.subr.mxu0 0.0
        %1093 = vmatpush1.msra.mxu0 %v742
        %1094 = vmatprep.subr.mxu0 0.0
        %1095 = vmatpush1.msra.mxu0 %v743
        %1096 = vmatprep.subr.mxu0 0.0
        %1097 = vmatpush1.msra.mxu0 %v744
        %1098 = vmatprep.subr.mxu0 0.0
        %1099 = vmatpush1.msra.mxu0 %v745
        %1100 = vmatprep.subr.mxu0 0.0
        %1101 = vmatpush1.msra.mxu0 %v746
        %1102 = vmatprep.subr.mxu0 0.0
        %1103 = vmatpush1.msra.mxu0 %v747
        %1104 = vmatprep.subr.mxu0 0.0
        %1105 = vmatpush1.msra.mxu0 %v748
        %1106 = vmatprep.subr.mxu0 0.0
        %1107 = vmatpush1.msra.mxu0 %v749
        %1108 = vmatprep.subr.mxu0 0.0
        %1109 = vmatpush1.msra.mxu0 %v750
        %1110 = vmatprep.subr.mxu0 0.0
        %1111 = vmatpush1.msra.mxu0 %v751
        %1112 = vmatprep.subr.mxu0 0.0
        %1113 = vmatpush1.msra.mxu0 %v752
        %1114 = vmatprep.subr.mxu0 0.0
        %1115 = vmatpush1.msra.mxu0 %v753
        %1116 = vmatprep.subr.mxu0 0.0
        %1117 = vmatpush1.msra.mxu0 %v754
        %1118 = vmatprep.subr.mxu0 0.0
        %1119 = vmatpush1.msra.mxu0 %v755
        %1120 = vmatprep.subr.mxu0 0.0
        %1121 = vmatpush1.msra.mxu0 %v756
        %1122 = vmatprep.subr.mxu0 0.0
        %1123 = vmatpush1.msra.mxu0 %v757
        %1124 = vmatprep.subr.mxu0 0.0
        %1125 = vmatpush1.msra.mxu0 %v758
        %1126 = vmatprep.subr.mxu0 0.0
        %1127 = vmatpush1.msra.mxu0 %v759
        %1128 = vmatprep.subr.mxu0 0.0
        %1129 = vmatpush1.msra.mxu0 %v760
        %1130 = vmatprep.subr.mxu0 0.0
        %1131 = vmatpush1.msra.mxu0 %v761
        %1132 = vmatprep.subr.mxu0 0.0
        %1133 = vmatpush1.msra.mxu0 %v762
        %1134 = vmatprep.subr.mxu0 0.0
        %1135 = vmatpush1.msra.mxu0 %v763
        %1136 = vmatprep.subr.mxu0 0.0
        %1137 = vmatpush1.msra.mxu0 %v764
        %1138 = vmatprep.subr.mxu0 0.0
        %1139 = vmatpush1.msra.mxu0 %v765
        %1140 = vmatprep.subr.mxu0 0.0
        %1141 = vmatpush1.msra.mxu0 %v766
        %1142 = vmatprep.subr.mxu0 0.0
        %1143 = vmatpush1.msra.mxu0 %v767
        %1144 = vmatprep.mubr.f32.mxu0 %v345
        %1145 = vmatmul.mubr.f32.gmra.mrb[0].mxu0 %v560
        %v1146 = vpop.f32.mrb[0].mxu0
        %v1147 = vadd.f32 %v922, %v1146
        %v1148 = vpop.f32.mrb[0].mxu0
        %1149 = vmatprep.mubr.f32.mxu0 %v346
        %1150 = vmatmul.mubr.f32.gmra.mrb[0].mxu0 %v562
        %v1151 = vpop.f32.mrb[0].mxu0
        %v1152 = vadd.f32 %v927, %v1151
        %v1153 = vpop.f32.mrb[0].mxu0
        %1154 = vmatprep.mubr.f32.mxu0 %v348
        %1155 = vmatmul.mubr.f32.gmra.mrb[0].mxu0 %v565
        %v1156 = vpop.f32.mrb[0].mxu0
        %v1157 = vadd.f32 %v932, %v1156
        %v1158 = vpop.f32.mrb[0].mxu0
        %1159 = vmatprep.mubr.f32.mxu0 %v349
        %1160 = vmatmul.mubr.f32.gmra.mrb[0].mxu0 %v567
        %v1161 = vpop.f32.mrb[0].mxu0
        %v1162 = vadd.f32 %v937, %v1161
        %v1163 = vpop.f32.mrb[0].mxu0
        %1164 = vmatprep.mubr.f32.mxu0 %v351
        %1165 = vmatmul.mubr.f32.gmra.mrb[0].mxu0 %v570
        %v1166 = vpop.f32.mrb[0].mxu0
        %v1167 = vadd.f32 %v942, %v1166
        %v1168 = vpop.f32.mrb[0].mxu0
        %1169 = vmatprep.mubr.f32.mxu0 %v352
        %1170 = vmatmul.mubr.f32.gmra.mrb[0].mxu0 %v572
        %v1171 = vpop.f32.mrb[0].mxu0
        %v1172 = vadd.f32 %v947, %v1171
        %v1173 = vpop.f32.mrb[0].mxu0
        %1174 = vmatprep.mubr.f32.mxu0 %v354
        %1175 = vmatmul.mubr.f32.gmra.mrb[0].mxu0 %v575
        %v1176 = vpop.f32.mrb[0].mxu0
        %v1177 = vadd.f32 %v952, %v1176
        %v1178 = vpop.f32.mrb[0].mxu0
        %1179 = vmatprep.mubr.f32.mxu0 %v355
        %1180 = vmatmul.mubr.f32.gmra.mrb[0].mxu0 %v577
        %v1181 = vpop.f32.mrb[0].mxu0
        %v1182 = vadd.f32 %v957, %v1181
        %v1183 = vpop.f32.mrb[0].mxu0
        %1184 = vmatprep.mubr.f32.mxu0 %v357
        %1185 = vmatmul.mubr.f32.gmra.mrb[0].mxu0 %v580
        %v1186 = vpop.f32.mrb[0].mxu0
        %v1187 = vadd.f32 %v962, %v1186
        %v1188 = vpop.f32.mrb[0].mxu0
        %1189 = vmatprep.mubr.f32.mxu0 %v358
        %1190 = vmatmul.mubr.f32.gmra.mrb[0].mxu0 %v582
        %v1191 = vpop.f32.mrb[0].mxu0
        %v1192 = vadd.f32 %v967, %v1191
        %v1193 = vpop.f32.mrb[0].mxu0
        %1194 = vmatprep.mubr.f32.mxu0 %v360
        %1195 = vmatmul.mubr.f32.gmra.mrb[0].mxu0 %v585
        %v1196 = vpop.f32.mrb[0].mxu0
        %v1197 = vadd.f32 %v972, %v1196
        %v1198 = vpop.f32.mrb[0].mxu0
        %1199 = vmatprep.mubr.f32.mxu0 %v361
        %1200 = vmatmul.mubr.f32.gmra.mrb[0].mxu0 %v587
        %v1201 = vpop.f32.mrb[0].mxu0
        %v1202 = vadd.f32 %v977, %v1201
        %v1203 = vpop.f32.mrb[0].mxu0
        %1204 = vmatprep.mubr.f32.mxu0 %v363
        %1205 = vmatmul.mubr.f32.gmra.mrb[0].mxu0 %v590
        %v1206 = vpop.f32.mrb[0].mxu0
        %v1207 = vadd.f32 %v982, %v1206
        %v1208 = vpop.f32.mrb[0].mxu0
        %1209 = vmatprep.mubr.f32.mxu0 %v364
        %1210 = vmatmul.mubr.f32.gmra.mrb[0].mxu0 %v592
        %v1211 = vpop.f32.mrb[0].mxu0
        %v1212 = vadd.f32 %v987, %v1211
        %v1213 = vpop.f32.mrb[0].mxu0
        %1214 = vmatprep.mubr.f32.mxu0 %v366
        %1215 = vmatmul.mubr.f32.gmra.mrb[0].mxu0 %v595
        %v1216 = vpop.f32.mrb[0].mxu0
        %v1217 = vadd.f32 %v992, %v1216
        %v1218 = vpop.f32.mrb[0].mxu0
        %1219 = vmatprep.mubr.f32.mxu0 %v367
        %1220 = vmatmul.mubr.f32.gmra.mrb[0].mxu0 %v597
        %v1221 = vpop.f32.mrb[0].mxu0
        %v1222 = vadd.f32 %v997, %v1221
        %v1223 = vpop.f32.mrb[0].mxu0
        %1224 = vmatprep.mubr.f32.mxu0 %v369
        %1225 = vmatmul.mubr.f32.gmra.mrb[0].mxu0 %v600
        %v1226 = vpop.f32.mrb[0].mxu0
        %v1227 = vadd.f32 %v1002, %v1226
        %v1228 = vpop.f32.mrb[0].mxu0
        %1229 = vmatprep.mubr.f32.mxu0 %v370
        %1230 = vmatmul.mubr.f32.gmra.mrb[0].mxu0 %v602
        %v1231 = vpop.f32.mrb[0].mxu0
        %v1232 = vadd.f32 %v1007, %v1231
        %v1233 = vpop.f32.mrb[0].mxu0
        %1234 = vmatprep.mubr.f32.mxu0 %v372
        %1235 = vmatmul.mubr.f32.gmra.mrb[0].mxu0 %v605
        %v1236 = vpop.f32.mrb[0].mxu0
        %v1237 = vadd.f32 %v1012, %v1236
        %v1238 = vpop.f32.mrb[0].mxu0
        %1239 = vmatprep.mubr.f32.mxu0 %v373
        %1240 = vmatmul.mubr.f32.gmra.mrb[0].mxu0 %v607
        %v1241 = vpop.f32.mrb[0].mxu0
        %v1242 = vadd.f32 %v1017, %v1241
        %v1243 = vpop.f32.mrb[0].mxu0
        %1244 = vmatprep.mubr.f32.mxu0 %v375
        %1245 = vmatmul.mubr.f32.gmra.mrb[0].mxu0 %v610
        %v1246 = vpop.f32.mrb[0].mxu0
        %v1247 = vadd.f32 %v1022, %v1246
        %v1248 = vpop.f32.mrb[0].mxu0
        %1249 = vmatprep.mubr.f32.mxu0 %v376
        %1250 = vmatmul.mubr.f32.gmra.mrb[0].mxu0 %v612
        %v1251 = vpop.f32.mrb[0].mxu0
        %v1252 = vadd.f32 %v1027, %v1251
        %v1253 = vpop.f32.mrb[0].mxu0
        %1254 = vmatprep.mubr.f32.mxu0 %v378
        %1255 = vmatmul.mubr.f32.gmra.mrb[0].mxu0 %v615
        %v1256 = vpop.f32.mrb[0].mxu0
        %v1257 = vadd.f32 %v1032, %v1256
        %v1258 = vpop.f32.mrb[0].mxu0
        %1259 = vmatprep.mubr.f32.mxu0 %v379
        %1260 = vmatmul.mubr.f32.gmra.mrb[0].mxu0 %v617
        %v1261 = vpop.f32.mrb[0].mxu0
        %v1262 = vadd.f32 %v1037, %v1261
        %v1263 = vpop.f32.mrb[0].mxu0
        %1264 = vmatprep.mubr.f32.mxu0 %v381
        %1265 = vmatmul.mubr.f32.gmra.mrb[0].mxu0 %v620
        %v1266 = vpop.f32.mrb[0].mxu0
        %v1267 = vadd.f32 %v1042, %v1266
        %v1268 = vpop.f32.mrb[0].mxu0
        %1269 = vmatprep.mubr.f32.mxu0 %v382
        %1270 = vmatmul.mubr.f32.gmra.mrb[0].mxu0 %v622
        %v1271 = vpop.f32.mrb[0].mxu0
        %v1272 = vadd.f32 %v1047, %v1271
        %v1273 = vpop.f32.mrb[0].mxu0
        %1274 = vmatprep.mubr.f32.mxu0 %v384
        %1275 = vmatmul.mubr.f32.gmra.mrb[0].mxu0 %v625
        %v1276 = vpop.f32.mrb[0].mxu0
        %v1277 = vadd.f32 %v1052, %v1276
        %v1278 = vpop.f32.mrb[0].mxu0
        %1279 = vmatprep.mubr.f32.mxu0 %v385
        %1280 = vmatmul.mubr.f32.gmra.mrb[0].mxu0 %v627
        %v1281 = vpop.f32.mrb[0].mxu0
        %v1282 = vadd.f32 %v1057, %v1281
        %v1283 = vpop.f32.mrb[0].mxu0
        %1284 = vmatprep.mubr.f32.mxu0 %v387
        %1285 = vmatmul.mubr.f32.gmra.mrb[0].mxu0 %v630
        %v1286 = vpop.f32.mrb[0].mxu0
        %v1287 = vadd.f32 %v1062, %v1286
        %v1288 = vpop.f32.mrb[0].mxu0
        %1289 = vmatprep.mubr.f32.mxu0 %v388
        %1290 = vmatmul.mubr.f32.gmra.mrb[0].mxu0 %v632
        %v1291 = vpop.f32.mrb[0].mxu0
        %v1292 = vadd.f32 %v1067, %v1291
        %v1293 = vpop.f32.mrb[0].mxu0
        %1294 = vmatprep.mubr.f32.mxu0 %v390
        %1295 = vmatmul.mubr.f32.gmra.mrb[0].mxu0 %v635
        %v1296 = vpop.f32.mrb[0].mxu0
        %v1297 = vadd.f32 %v1072, %v1296
        %v1298 = vpop.f32.mrb[0].mxu0
        %1299 = vmatprep.mubr.f32.mxu0 %v391
        %1300 = vmatmul.mubr.f32.gmra.mrb[0].mxu0 %v637
        %v1301 = vpop.f32.mrb[0].mxu0
        %v1302 = vadd.f32 %v1077, %v1301
        %v1303 = vpop.f32.mrb[0].mxu0
        %1304 = vdwg.mxu0
        %1305 = vmatprep.subr.mxu0 0.0
        %1306 = vmatpush1.msra.mxu0 %v768
        %1307 = vmatprep.subr.mxu0 0.0
        %1308 = vmatpush1.msra.mxu0 %v769
        %1309 = vmatprep.subr.mxu0 0.0
        %1310 = vmatpush1.msra.mxu0 %v770
        %1311 = vmatprep.subr.mxu0 0.0
        %1312 = vmatpush1.msra.mxu0 %v771
        %1313 = vmatprep.subr.mxu0 0.0
        %1314 = vmatpush1.msra.mxu0 %v772
        %1315 = vmatprep.subr.mxu0 0.0
        %1316 = vmatpush1.msra.mxu0 %v773
        %1317 = vmatprep.subr.mxu0 0.0
        %1318 = vmatpush1.msra.mxu0 %v774
        %1319 = vmatprep.subr.mxu0 0.0
        %1320 = vmatpush1.msra.mxu0 %v775
        %1321 = vmatprep.subr.mxu0 0.0
        %1322 = vmatpush1.msra.mxu0 %v776
        %1323 = vmatprep.subr.mxu0 0.0
        %1324 = vmatpush1.msra.mxu0 %v777
        %1325 = vmatprep.subr.mxu0 0.0
        %1326 = vmatpush1.msra.mxu0 %v778
        %1327 = vmatprep.subr.mxu0 0.0
        %1328 = vmatpush1.msra.mxu0 %v779
        %1329 = vmatprep.subr.mxu0 0.0
        %1330 = vmatpush1.msra.mxu0 %v780
        %1331 = vmatprep.subr.mxu0 0.0
        %1332 = vmatpush1.msra.mxu0 %v781
        %1333 = vmatprep.subr.mxu0 0.0
        %1334 = vmatpush1.msra.mxu0 %v782
        %1335 = vmatprep.subr.mxu0 0.0
        %1336 = vmatpush1.msra.mxu0 %v783
        %1337 = vmatprep.subr.mxu0 0.0
        %1338 = vmatpush1.msra.mxu0 %v784
        %1339 = vmatprep.subr.mxu0 0.0
        %1340 = vmatpush1.msra.mxu0 %v785
        %1341 = vmatprep.subr.mxu0 0.0
        %1342 = vmatpush1.msra.mxu0 %v786
        %1343 = vmatprep.subr.mxu0 0.0
        %1344 = vmatpush1.msra.mxu0 %v787
        %1345 = vmatprep.subr.mxu0 0.0
        %1346 = vmatpush1.msra.mxu0 %v788
        %1347 = vmatprep.subr.mxu0 0.0
        %1348 = vmatpush1.msra.mxu0 %v789
        %1349 = vmatprep.subr.mxu0 0.0
        %1350 = vmatpush1.msra.mxu0 %v790
        %1351 = vmatprep.subr.mxu0 0.0
        %1352 = vmatpush1.msra.mxu0 %v791
        %1353 = vmatprep.subr.mxu0 0.0
        %1354 = vmatpush1.msra.mxu0 %v792
        %1355 = vmatprep.subr.mxu0 0.0
        %1356 = vmatpush1.msra.mxu0 %v793
        %1357 = vmatprep.subr.mxu0 0.0
        %1358 = vmatpush1.msra.mxu0 %v794
        %1359 = vmatprep.subr.mxu0 0.0
        %1360 = vmatpush1.msra.mxu0 %v795
        %1361 = vmatprep.subr.mxu0 0.0
        %1362 = vmatpush1.msra.mxu0 %v796
        %1363 = vmatprep.subr.mxu0 0.0
        %1364 = vmatpush1.msra.mxu0 %v797
        %1365 = vmatprep.subr.mxu0 0.0
        %1366 = vmatpush1.msra.mxu0 %v798
        %1367 = vmatprep.subr.mxu0 0.0
        %1368 = vmatpush1.msra.mxu0 %v799
        %1369 = vmatprep.mubr.f32.mxu0 %v565
        %1370 = vmatmul.mubr.f32.gmra.mrb[0].mxu0 %v452
        %v1371 = vpop.f32.mrb[0].mxu0
        %v1372 = vadd.f32 %v1147, %v1371
        %v1373 = vpop.f32.mrb[0].mxu0
        %1374 = vmatprep.mubr.f32.mxu0 %v567
        %1375 = vmatmul.mubr.f32.gmra.mrb[0].mxu0 %v454
        %v1376 = vpop.f32.mrb[0].mxu0
        %v1377 = vadd.f32 %v1152, %v1376
        %v1378 = vpop.f32.mrb[0].mxu0
        %1379 = vmatprep.mubr.f32.mxu0 %v570
        %1380 = vmatmul.mubr.f32.gmra.mrb[0].mxu0 %v457
        %v1381 = vpop.f32.mrb[0].mxu0
        %v1382 = vadd.f32 %v1157, %v1381
        %v1383 = vpop.f32.mrb[0].mxu0
        %1384 = vmatprep.mubr.f32.mxu0 %v572
        %1385 = vmatmul.mubr.f32.gmra.mrb[0].mxu0 %v459
        %v1386 = vpop.f32.mrb[0].mxu0
        %v1387 = vadd.f32 %v1162, %v1386
        %v1388 = vpop.f32.mrb[0].mxu0
        %1389 = vmatprep.mubr.f32.mxu0 %v575
        %1390 = vmatmul.mubr.f32.gmra.mrb[0].mxu0 %v462
        %v1391 = vpop.f32.mrb[0].mxu0
        %v1392 = vadd.f32 %v1167, %v1391
        %v1393 = vpop.f32.mrb[0].mxu0
        %1394 = vmatprep.mubr.f32.mxu0 %v577
        %1395 = vmatmul.mubr.f32.gmra.mrb[0].mxu0 %v464
        %v1396 = vpop.f32.mrb[0].mxu0
        %v1397 = vadd.f32 %v1172, %v1396
        %v1398 = vpop.f32.mrb[0].mxu0
        %1399 = vmatprep.mubr.f32.mxu0 %v580
        %1400 = vmatmul.mubr.f32.gmra.mrb[0].mxu0 %v467
        %v1401 = vpop.f32.mrb[0].mxu0
        %v1402 = vadd.f32 %v1177, %v1401
        %v1403 = vpop.f32.mrb[0].mxu0
        %1404 = vmatprep.mubr.f32.mxu0 %v582
        %1405 = vmatmul.mubr.f32.gmra.mrb[0].mxu0 %v469
        %v1406 = vpop.f32.mrb[0].mxu0
        %v1407 = vadd.f32 %v1182, %v1406
        %v1408 = vpop.f32.mrb[0].mxu0
        %1409 = vmatprep.mubr.f32.mxu0 %v585
        %1410 = vmatmul.mubr.f32.gmra.mrb[0].mxu0 %v472
        %v1411 = vpop.f32.mrb[0].mxu0
        %v1412 = vadd.f32 %v1187, %v1411
        %v1413 = vpop.f32.mrb[0].mxu0
        %1414 = vmatprep.mubr.f32.mxu0 %v587
        %1415 = vmatmul.mubr.f32.gmra.mrb[0].mxu0 %v474
        %v1416 = vpop.f32.mrb[0].mxu0
        %v1417 = vadd.f32 %v1192, %v1416
        %v1418 = vpop.f32.mrb[0].mxu0
        %1419 = vmatprep.mubr.f32.mxu0 %v590
        %1420 = vmatmul.mubr.f32.gmra.mrb[0].mxu0 %v477
        %v1421 = vpop.f32.mrb[0].mxu0
        %v1422 = vadd.f32 %v1197, %v1421
        %v1423 = vpop.f32.mrb[0].mxu0
        %1424 = vmatprep.mubr.f32.mxu0 %v592
        %1425 = vmatmul.mubr.f32.gmra.mrb[0].mxu0 %v479
        %v1426 = vpop.f32.mrb[0].mxu0
        %v1427 = vadd.f32 %v1202, %v1426
        %v1428 = vpop.f32.mrb[0].mxu0
        %1429 = vmatprep.mubr.f32.mxu0 %v595
        %1430 = vmatmul.mubr.f32.gmra.mrb[0].mxu0 %v482
        %v1431 = vpop.f32.mrb[0].mxu0
        %v1432 = vadd.f32 %v1207, %v1431
        %v1433 = vpop.f32.mrb[0].mxu0
        %1434 = vmatprep.mubr.f32.mxu0 %v597
        %1435 = vmatmul.mubr.f32.gmra.mrb[0].mxu0 %v484
        %v1436 = vpop.f32.mrb[0].mxu0
        %v1437 = vadd.f32 %v1212, %v1436
        %v1438 = vpop.f32.mrb[0].mxu0
        %1439 = vmatprep.mubr.f32.mxu0 %v600
        %1440 = vmatmul.mubr.f32.gmra.mrb[0].mxu0 %v487
        %v1441 = vpop.f32.mrb[0].mxu0
        %v1442 = vadd.f32 %v1217, %v1441
        %v1443 = vpop.f32.mrb[0].mxu0
        %1444 = vmatprep.mubr.f32.mxu0 %v602
        %1445 = vmatmul.mubr.f32.gmra.mrb[0].mxu0 %v489
        %v1446 = vpop.f32.mrb[0].mxu0
        %v1447 = vadd.f32 %v1222, %v1446
        %v1448 = vpop.f32.mrb[0].mxu0
        %1449 = vmatprep.mubr.f32.mxu0 %v605
        %1450 = vmatmul.mubr.f32.gmra.mrb[0].mxu0 %v492
        %v1451 = vpop.f32.mrb[0].mxu0
        %v1452 = vadd.f32 %v1227, %v1451
        %v1453 = vpop.f32.mrb[0].mxu0
        %1454 = vmatprep.mubr.f32.mxu0 %v607
        %1455 = vmatmul.mubr.f32.gmra.mrb[0].mxu0 %v494
        %v1456 = vpop.f32.mrb[0].mxu0
        %v1457 = vadd.f32 %v1232, %v1456
        %v1458 = vpop.f32.mrb[0].mxu0
        %1459 = vmatprep.mubr.f32.mxu0 %v610
        %1460 = vmatmul.mubr.f32.gmra.mrb[0].mxu0 %v497
        %v1461 = vpop.f32.mrb[0].mxu0
        %v1462 = vadd.f32 %v1237, %v1461
        %v1463 = vpop.f32.mrb[0].mxu0
        %1464 = vmatprep.mubr.f32.mxu0 %v612
        %1465 = vmatmul.mubr.f32.gmra.mrb[0].mxu0 %v499
        %v1466 = vpop.f32.mrb[0].mxu0
        %v1467 = vadd.f32 %v1242, %v1466
        %v1468 = vpop.f32.mrb[0].mxu0
        %1469 = vmatprep.mubr.f32.mxu0 %v615
        %1470 = vmatmul.mubr.f32.gmra.mrb[0].mxu0 %v502
        %v1471 = vpop.f32.mrb[0].mxu0
        %v1472 = vadd.f32 %v1247, %v1471
        %v1473 = vpop.f32.mrb[0].mxu0
        %1474 = vmatprep.mubr.f32.mxu0 %v617
        %1475 = vmatmul.mubr.f32.gmra.mrb[0].mxu0 %v504
        %v1476 = vpop.f32.mrb[0].mxu0
        %v1477 = vadd.f32 %v1252, %v1476
        %v1478 = vpop.f32.mrb[0].mxu0
        %1479 = vmatprep.mubr.f32.mxu0 %v620
        %1480 = vmatmul.mubr.f32.gmra.mrb[0].mxu0 %v507
        %v1481 = vpop.f32.mrb[0].mxu0
        %v1482 = vadd.f32 %v1257, %v1481
        %v1483 = vpop.f32.mrb[0].mxu0
        %1484 = vmatprep.mubr.f32.mxu0 %v622
        %1485 = vmatmul.mubr.f32.gmra.mrb[0].mxu0 %v509
        %v1486 = vpop.f32.mrb[0].mxu0
        %v1487 = vadd.f32 %v1262, %v1486
        %v1488 = vpop.f32.mrb[0].mxu0
        %1489 = vmatprep.mubr.f32.mxu0 %v625
        %1490 = vmatmul.mubr.f32.gmra.mrb[0].mxu0 %v512
        %v1491 = vpop.f32.mrb[0].mxu0
        %v1492 = vadd.f32 %v1267, %v1491
        %v1493 = vpop.f32.mrb[0].mxu0
        %1494 = vmatprep.mubr.f32.mxu0 %v627
        %1495 = vmatmul.mubr.f32.gmra.mrb[0].mxu0 %v514
        %v1496 = vpop.f32.mrb[0].mxu0
        %v1497 = vadd.f32 %v1272, %v1496
        %v1498 = vpop.f32.mrb[0].mxu0
        %1499 = vmatprep.mubr.f32.mxu0 %v630
        %1500 = vmatmul.mubr.f32.gmra.mrb[0].mxu0 %v517
        %v1501 = vpop.f32.mrb[0].mxu0
        %v1502 = vadd.f32 %v1277, %v1501
        %v1503 = vpop.f32.mrb[0].mxu0
        %1504 = vmatprep.mubr.f32.mxu0 %v632
        %1505 = vmatmul.mubr.f32.gmra.mrb[0].mxu0 %v519
        %v1506 = vpop.f32.mrb[0].mxu0
        %v1507 = vadd.f32 %v1282, %v1506
        %v1508 = vpop.f32.mrb[0].mxu0
        %1509 = vmatprep.mubr.f32.mxu0 %v635
        %1510 = vmatmul.mubr.f32.gmra.mrb[0].mxu0 %v522
        %v1511 = vpop.f32.mrb[0].mxu0
        %v1512 = vadd.f32 %v1287, %v1511
        %v1513 = vpop.f32.mrb[0].mxu0
        %1514 = vmatprep.mubr.f32.mxu0 %v637
        %1515 = vmatmul.mubr.f32.gmra.mrb[0].mxu0 %v524
        %v1516 = vpop.f32.mrb[0].mxu0
        %v1517 = vadd.f32 %v1292, %v1516
        %v1518 = vpop.f32.mrb[0].mxu0
        %1519 = vmatprep.mubr.f32.mxu0 %v682
        %1520 = vmatmul.mubr.f32.gmra.mrb[0].mxu0 %v675
        %v1521 = vpop.f32.mrb[0].mxu0
        %v1522 = vadd.f32 %v1297, %v1521
        %v1523 = vpop.f32.mrb[0].mxu0
        %1524 = vmatprep.mubr.f32.mxu0 %v684
        %1525 = vmatmul.mubr.f32.gmra.mrb[0].mxu0 %v677
        %v1526 = vpop.f32.mrb[0].mxu0
        %v1527 = vadd.f32 %v1302, %v1526
        %v1528 = vpop.f32.mrb[0].mxu0
        %1529 = vdwg.mxu0
        %1530 = vmatprep.subr.mxu0 0.0
        %1531 = vmatpush1.msra.mxu0 %v800
        %1532 = vmatprep.subr.mxu0 0.0
        %1533 = vmatpush1.msra.mxu0 %v801
        %1534 = vmatprep.subr.mxu0 0.0
        %1535 = vmatpush1.msra.mxu0 %v802
        %1536 = vmatprep.subr.mxu0 0.0
        %1537 = vmatpush1.msra.mxu0 %v803
        %1538 = vmatprep.subr.mxu0 0.0
        %1539 = vmatpush1.msra.mxu0 %v804
        %1540 = vmatprep.subr.mxu0 0.0
        %1541 = vmatpush1.msra.mxu0 %v805
        %1542 = vmatprep.subr.mxu0 0.0
        %1543 = vmatpush1.msra.mxu0 %v806
        %1544 = vmatprep.subr.mxu0 0.0
        %1545 = vmatpush1.msra.mxu0 %v807
        %1546 = vmatprep.subr.mxu0 0.0
        %1547 = vmatpush1.msra.mxu0 %v808
        %1548 = vmatprep.subr.mxu0 0.0
        %1549 = vmatpush1.msra.mxu0 %v809
        %1550 = vmatprep.subr.mxu0 0.0
        %1551 = vmatpush1.msra.mxu0 %v810
        %1552 = vmatprep.subr.mxu0 0.0
        %1553 = vmatpush1.msra.mxu0 %v811
        %1554 = vmatprep.subr.mxu0 0.0
        %1555 = vmatpush1.msra.mxu0 %v812
        %1556 = vmatprep.subr.mxu0 0.0
        %1557 = vmatpush1.msra.mxu0 %v813
        %1558 = vmatprep.subr.mxu0 0.0
        %1559 = vmatpush1.msra.mxu0 %v814
        %1560 = vmatprep.subr.mxu0 0.0
        %1561 = vmatpush1.msra.mxu0 %v815
        %1562 = vmatprep.subr.mxu0 0.0
        %1563 = vmatpush1.msra.mxu0 %v816
        %1564 = vmatprep.subr.mxu0 0.0
        %1565 = vmatpush1.msra.mxu0 %v817
        %1566 = vmatprep.subr.mxu0 0.0
        %1567 = vmatpush1.msra.mxu0 %v818
        %1568 = vmatprep.subr.mxu0 0.0
        %1569 = vmatpush1.msra.mxu0 %v819
        %1570 = vmatprep.subr.mxu0 0.0
        %1571 = vmatpush1.msra.mxu0 %v820
        %1572 = vmatprep.subr.mxu0 0.0
        %1573 = vmatpush1.msra.mxu0 %v821
        %1574 = vmatprep.subr.mxu0 0.0
        %1575 = vmatpush1.msra.mxu0 %v822
        %1576 = vmatprep.subr.mxu0 0.0
        %1577 = vmatpush1.msra.mxu0 %v823
        %1578 = vmatprep.subr.mxu0 0.0
        %1579 = vmatpush1.msra.mxu0 %v824
        %1580 = vmatprep.subr.mxu0 0.0
        %1581 = vmatpush1.msra.mxu0 %v825
        %1582 = vmatprep.subr.mxu0 0.0
        %1583 = vmatpush1.msra.mxu0 %v826
        %1584 = vmatprep.subr.mxu0 0.0
        %1585 = vmatpush1.msra.mxu0 %v827
        %1586 = vmatprep.subr.mxu0 0.0
        %1587 = vmatpush1.msra.mxu0 %v828
        %1588 = vmatprep.subr.mxu0 0.0
        %1589 = vmatpush1.msra.mxu0 %v829
        %1590 = vmatprep.subr.mxu0 0.0
        %1591 = vmatpush1.msra.mxu0 %v830
        %1592 = vmatprep.subr.mxu0 0.0
        %1593 = vmatpush1.msra.mxu0 %v831
        %1594 = vmatprep.mubr.f32.mxu0 %v457
        %1595 = vmatmul.mubr.f32.gmra.mrb[0].mxu0 %v348
        %v1596 = vpop.f32.mrb[0].mxu0
        %v1597 = vadd.f32 %v1372, %v1596
        %v1598 = vpop.f32.mrb[0].mxu0
        %1599 = vmatprep.mubr.f32.mxu0 %v459
        %1600 = vmatmul.mubr.f32.gmra.mrb[0].mxu0 %v349
        %v1601 = vpop.f32.mrb[0].mxu0
        %v1602 = vadd.f32 %v1377, %v1601
        %v1603 = vpop.f32.mrb[0].mxu0
        %1604 = vmatprep.mubr.f32.mxu0 %v462
        %1605 = vmatmul.mubr.f32.gmra.mrb[0].mxu0 %v351
        %v1606 = vpop.f32.mrb[0].mxu0
        %v1607 = vadd.f32 %v1382, %v1606
        %v1608 = vpop.f32.mrb[0].mxu0
        %1609 = vmatprep.mubr.f32.mxu0 %v464
        %1610 = vmatmul.mubr.f32.gmra.mrb[0].mxu0 %v352
        %v1611 = vpop.f32.mrb[0].mxu0
        %v1612 = vadd.f32 %v1387, %v1611
        %v1613 = vpop.f32.mrb[0].mxu0
        %1614 = vmatprep.mubr.f32.mxu0 %v467
        %1615 = vmatmul.mubr.f32.gmra.mrb[0].mxu0 %v354
        %v1616 = vpop.f32.mrb[0].mxu0
        %v1617 = vadd.f32 %v1392, %v1616
        %v1618 = vpop.f32.mrb[0].mxu0
        %1619 = vmatprep.mubr.f32.mxu0 %v469
        %1620 = vmatmul.mubr.f32.gmra.mrb[0].mxu0 %v355
        %v1621 = vpop.f32.mrb[0].mxu0
        %v1622 = vadd.f32 %v1397, %v1621
        %v1623 = vpop.f32.mrb[0].mxu0
        %1624 = vmatprep.mubr.f32.mxu0 %v472
        %1625 = vmatmul.mubr.f32.gmra.mrb[0].mxu0 %v357
        %v1626 = vpop.f32.mrb[0].mxu0
        %v1627 = vadd.f32 %v1402, %v1626
        %v1628 = vpop.f32.mrb[0].mxu0
        %1629 = vmatprep.mubr.f32.mxu0 %v474
        %1630 = vmatmul.mubr.f32.gmra.mrb[0].mxu0 %v358
        %v1631 = vpop.f32.mrb[0].mxu0
        %v1632 = vadd.f32 %v1407, %v1631
        %v1633 = vpop.f32.mrb[0].mxu0
        %1634 = vmatprep.mubr.f32.mxu0 %v477
        %1635 = vmatmul.mubr.f32.gmra.mrb[0].mxu0 %v360
        %v1636 = vpop.f32.mrb[0].mxu0
        %v1637 = vadd.f32 %v1412, %v1636
        %v1638 = vpop.f32.mrb[0].mxu0
        %1639 = vmatprep.mubr.f32.mxu0 %v479
        %1640 = vmatmul.mubr.f32.gmra.mrb[0].mxu0 %v361
        %v1641 = vpop.f32.mrb[0].mxu0
        %v1642 = vadd.f32 %v1417, %v1641
        %v1643 = vpop.f32.mrb[0].mxu0
        %1644 = vmatprep.mubr.f32.mxu0 %v482
        %1645 = vmatmul.mubr.f32.gmra.mrb[0].mxu0 %v363
        %v1646 = vpop.f32.mrb[0].mxu0
        %v1647 = vadd.f32 %v1422, %v1646
        %v1648 = vpop.f32.mrb[0].mxu0
        %1649 = vmatprep.mubr.f32.mxu0 %v484
        %1650 = vmatmul.mubr.f32.gmra.mrb[0].mxu0 %v364
        %v1651 = vpop.f32.mrb[0].mxu0
        %v1652 = vadd.f32 %v1427, %v1651
        %v1653 = vpop.f32.mrb[0].mxu0
        %1654 = vmatprep.mubr.f32.mxu0 %v487
        %1655 = vmatmul.mubr.f32.gmra.mrb[0].mxu0 %v366
        %v1656 = vpop.f32.mrb[0].mxu0
        %v1657 = vadd.f32 %v1432, %v1656
        %v1658 = vpop.f32.mrb[0].mxu0
        %1659 = vmatprep.mubr.f32.mxu0 %v489
        %1660 = vmatmul.mubr.f32.gmra.mrb[0].mxu0 %v367
        %v1661 = vpop.f32.mrb[0].mxu0
        %v1662 = vadd.f32 %v1437, %v1661
        %v1663 = vpop.f32.mrb[0].mxu0
        %1664 = vmatprep.mubr.f32.mxu0 %v492
        %1665 = vmatmul.mubr.f32.gmra.mrb[0].mxu0 %v369
        %v1666 = vpop.f32.mrb[0].mxu0
        %v1667 = vadd.f32 %v1442, %v1666
        %v1668 = vpop.f32.mrb[0].mxu0
        %1669 = vmatprep.mubr.f32.mxu0 %v494
        %1670 = vmatmul.mubr.f32.gmra.mrb[0].mxu0 %v370
        %v1671 = vpop.f32.mrb[0].mxu0
        %v1672 = vadd.f32 %v1447, %v1671
        %v1673 = vpop.f32.mrb[0].mxu0
        %1674 = vmatprep.mubr.f32.mxu0 %v497
        %1675 = vmatmul.mubr.f32.gmra.mrb[0].mxu0 %v372
        %v1676 = vpop.f32.mrb[0].mxu0
        %v1677 = vadd.f32 %v1452, %v1676
        %v1678 = vpop.f32.mrb[0].mxu0
        %1679 = vmatprep.mubr.f32.mxu0 %v499
        %1680 = vmatmul.mubr.f32.gmra.mrb[0].mxu0 %v373
        %v1681 = vpop.f32.mrb[0].mxu0
        %v1682 = vadd.f32 %v1457, %v1681
        %v1683 = vpop.f32.mrb[0].mxu0
        %1684 = vmatprep.mubr.f32.mxu0 %v502
        %1685 = vmatmul.mubr.f32.gmra.mrb[0].mxu0 %v375
        %v1686 = vpop.f32.mrb[0].mxu0
        %v1687 = vadd.f32 %v1462, %v1686
        %v1688 = vpop.f32.mrb[0].mxu0
        %1689 = vmatprep.mubr.f32.mxu0 %v504
        %1690 = vmatmul.mubr.f32.gmra.mrb[0].mxu0 %v376
        %v1691 = vpop.f32.mrb[0].mxu0
        %v1692 = vadd.f32 %v1467, %v1691
        %v1693 = vpop.f32.mrb[0].mxu0
        %1694 = vmatprep.mubr.f32.mxu0 %v507
        %1695 = vmatmul.mubr.f32.gmra.mrb[0].mxu0 %v378
        %v1696 = vpop.f32.mrb[0].mxu0
        %v1697 = vadd.f32 %v1472, %v1696
        %v1698 = vpop.f32.mrb[0].mxu0
        %1699 = vmatprep.mubr.f32.mxu0 %v509
        %1700 = vmatmul.mubr.f32.gmra.mrb[0].mxu0 %v379
        %v1701 = vpop.f32.mrb[0].mxu0
        %v1702 = vadd.f32 %v1477, %v1701
        %v1703 = vpop.f32.mrb[0].mxu0
        %1704 = vmatprep.mubr.f32.mxu0 %v512
        %1705 = vmatmul.mubr.f32.gmra.mrb[0].mxu0 %v381
        %v1706 = vpop.f32.mrb[0].mxu0
        %v1707 = vadd.f32 %v1482, %v1706
        %v1708 = vpop.f32.mrb[0].mxu0
        %1709 = vmatprep.mubr.f32.mxu0 %v514
        %1710 = vmatmul.mubr.f32.gmra.mrb[0].mxu0 %v382
        %v1711 = vpop.f32.mrb[0].mxu0
        %v1712 = vadd.f32 %v1487, %v1711
        %v1713 = vpop.f32.mrb[0].mxu0
        %1714 = vmatprep.mubr.f32.mxu0 %v517
        %1715 = vmatmul.mubr.f32.gmra.mrb[0].mxu0 %v384
        %v1716 = vpop.f32.mrb[0].mxu0
        %v1717 = vadd.f32 %v1492, %v1716
        %v1718 = vpop.f32.mrb[0].mxu0
        %1719 = vmatprep.mubr.f32.mxu0 %v519
        %1720 = vmatmul.mubr.f32.gmra.mrb[0].mxu0 %v385
        %v1721 = vpop.f32.mrb[0].mxu0
        %v1722 = vadd.f32 %v1497, %v1721
        %v1723 = vpop.f32.mrb[0].mxu0
        %1724 = vmatprep.mubr.f32.mxu0 %v522
        %1725 = vmatmul.mubr.f32.gmra.mrb[0].mxu0 %v387
        %v1726 = vpop.f32.mrb[0].mxu0
        %v1727 = vadd.f32 %v1502, %v1726
        %v1728 = vpop.f32.mrb[0].mxu0
        %1729 = vmatprep.mubr.f32.mxu0 %v524
        %1730 = vmatmul.mubr.f32.gmra.mrb[0].mxu0 %v388
        %v1731 = vpop.f32.mrb[0].mxu0
        %v1732 = vadd.f32 %v1507, %v1731
        %v1733 = vpop.f32.mrb[0].mxu0
        %1734 = vmatprep.mubr.f32.mxu0 %v675
        %1735 = vmatmul.mubr.f32.gmra.mrb[0].mxu0 %v390
        %v1736 = vpop.f32.mrb[0].mxu0
        %v1737 = vadd.f32 %v1512, %v1736
        %v1738 = vpop.f32.mrb[0].mxu0
        %1739 = vmatprep.mubr.f32.mxu0 %v677
        %1740 = vmatmul.mubr.f32.gmra.mrb[0].mxu0 %v391
        %v1741 = vpop.f32.mrb[0].mxu0
        %v1742 = vadd.f32 %v1517, %v1741
        %v1743 = vpop.f32.mrb[0].mxu0
        %1744 = vmatprep.mubr.f32.mxu0 %v692
        %1745 = vmatmul.mubr.f32.gmra.mrb[0].mxu0 %v393
        %v1746 = vpop.f32.mrb[0].mxu0
        %v1747 = vadd.f32 %v1522, %v1746
        %v1748 = vpop.f32.mrb[0].mxu0
        %1749 = vmatprep.mubr.f32.mxu0 %v694
        %1750 = vmatmul.mubr.f32.gmra.mrb[0].mxu0 %v394
        %v1751 = vpop.f32.mrb[0].mxu0
        %v1752 = vadd.f32 %v1527, %v1751
        %v1753 = vpop.f32.mrb[0].mxu0
        %1754 = vdwg.mxu0
        %1755 = vmatprep.subr.mxu0 0.0
        %1756 = vmatpush1.msra.mxu0 %v832
        %1757 = vmatprep.subr.mxu0 0.0
        %1758 = vmatpush1.msra.mxu0 %v833
        %1759 = vmatprep.subr.mxu0 0.0
        %1760 = vmatpush1.msra.mxu0 %v834
        %1761 = vmatprep.subr.mxu0 0.0
        %1762 = vmatpush1.msra.mxu0 %v835
        %1763 = vmatprep.subr.mxu0 0.0
        %1764 = vmatpush1.msra.mxu0 %v836
        %1765 = vmatprep.subr.mxu0 0.0
        %1766 = vmatpush1.msra.mxu0 %v837
        %1767 = vmatprep.subr.mxu0 0.0
        %1768 = vmatpush1.msra.mxu0 %v838
        %1769 = vmatprep.subr.mxu0 0.0
        %1770 = vmatpush1.msra.mxu0 %v839
        %1771 = vmatprep.subr.mxu0 0.0
        %1772 = vmatpush1.msra.mxu0 %v840
        %1773 = vmatprep.subr.mxu0 0.0
        %1774 = vmatpush1.msra.mxu0 %v841
        %1775 = vmatprep.subr.mxu0 0.0
        %1776 = vmatpush1.msra.mxu0 %v842
        %1777 = vmatprep.subr.mxu0 0.0
        %1778 = vmatpush1.msra.mxu0 %v843
        %1779 = vmatprep.subr.mxu0 0.0
        %1780 = vmatpush1.msra.mxu0 %v844
        %1781 = vmatprep.subr.mxu0 0.0
        %1782 = vmatpush1.msra.mxu0 %v845
        %1783 = vmatprep.subr.mxu0 0.0
        %1784 = vmatpush1.msra.mxu0 %v846
        %1785 = vmatprep.subr.mxu0 0.0
        %1786 = vmatpush1.msra.mxu0 %v847
        %1787 = vmatprep.subr.mxu0 0.0
        %1788 = vmatpush1.msra.mxu0 0.0
        %1789 = vmatprep.subr.mxu0 0.0
        %1790 = vmatpush1.msra.mxu0 0.0
        %1791 = vmatprep.subr.mxu0 0.0
        %1792 = vmatpush1.msra.mxu0 0.0
        %1793 = vmatprep.subr.mxu0 0.0
        %1794 = vmatpush1.msra.mxu0 0.0
        %1795 = vmatprep.subr.mxu0 0.0
        %1796 = vmatpush1.msra.mxu0 0.0
        %1797 = vmatprep.subr.mxu0 0.0
        %1798 = vmatpush1.msra.mxu0 0.0
        %1799 = vmatprep.subr.mxu0 0.0
        %1800 = vmatpush1.msra.mxu0 0.0
        %1801 = vmatprep.subr.mxu0 0.0
        %1802 = vmatpush1.msra.mxu0 0.0
        %1803 = vmatprep.subr.mxu0 0.0
        %1804 = vmatpush1.msra.mxu0 0.0
        %1805 = vmatprep.subr.mxu0 0.0
        %1806 = vmatpush1.msra.mxu0 0.0
        %1807 = vmatprep.subr.mxu0 0.0
        %1808 = vmatpush1.msra.mxu0 0.0
        %1809 = vmatprep.subr.mxu0 0.0
        %1810 = vmatpush1.msra.mxu0 0.0
        %1811 = vmatprep.subr.mxu0 0.0
        %1812 = vmatpush1.msra.mxu0 0.0
        %1813 = vmatprep.subr.mxu0 0.0
        %1814 = vmatpush1.msra.mxu0 0.0
        %1815 = vmatprep.subr.mxu0 0.0
        %1816 = vmatpush1.msra.mxu0 0.0
        %1817 = vmatprep.subr.mxu0 0.0
        %1818 = vmatpush1.msra.mxu0 0.0
        %1819 = vmatprep.mubr.f32.mxu0 0.0
        %1820 = vmatmul.mubr.f32.gmra.mrb[0].mxu0 %v570
        %v1821 = vpop.f32.mrb[0].mxu0
        %v1822 = vadd.f32 %v1597, %v1821
        %v1823 = vpop.f32.mrb[0].mxu0
        %1824 = vmatprep.mubr.f32.mxu0 0.0
        %1825 = vmatmul.mubr.f32.gmra.mrb[0].mxu0 %v572
        %v1826 = vpop.f32.mrb[0].mxu0
        %v1827 = vadd.f32 %v1602, %v1826
        %v1828 = vpop.f32.mrb[0].mxu0
        %1829 = vmatprep.mubr.f32.mxu0 0.0
        %1830 = vmatmul.mubr.f32.gmra.mrb[0].mxu0 %v575
        %v1831 = vpop.f32.mrb[0].mxu0
        %v1832 = vadd.f32 %v1607, %v1831
        %v1833 = vpop.f32.mrb[0].mxu0
        %1834 = vmatprep.mubr.f32.mxu0 0.0
        %1835 = vmatmul.mubr.f32.gmra.mrb[0].mxu0 %v577
        %v1836 = vpop.f32.mrb[0].mxu0
        %v1837 = vadd.f32 %v1612, %v1836
        %v1838 = vpop.f32.mrb[0].mxu0
        %1839 = vmatprep.mubr.f32.mxu0 0.0
        %1840 = vmatmul.mubr.f32.gmra.mrb[0].mxu0 %v580
        %v1841 = vpop.f32.mrb[0].mxu0
        %v1842 = vadd.f32 %v1617, %v1841
        %v1843 = vpop.f32.mrb[0].mxu0
        %1844 = vmatprep.mubr.f32.mxu0 0.0
        %1845 = vmatmul.mubr.f32.gmra.mrb[0].mxu0 %v582
        %v1846 = vpop.f32.mrb[0].mxu0
        %v1847 = vadd.f32 %v1622, %v1846
        %v1848 = vpop.f32.mrb[0].mxu0
        %1849 = vmatprep.mubr.f32.mxu0 0.0
        %1850 = vmatmul.mubr.f32.gmra.mrb[0].mxu0 %v585
        %v1851 = vpop.f32.mrb[0].mxu0
        %v1852 = vadd.f32 %v1627, %v1851
        %v1853 = vpop.f32.mrb[0].mxu0
        %1854 = vmatprep.mubr.f32.mxu0 0.0
        %1855 = vmatmul.mubr.f32.gmra.mrb[0].mxu0 %v587
        %v1856 = vpop.f32.mrb[0].mxu0
        %v1857 = vadd.f32 %v1632, %v1856
        %v1858 = vpop.f32.mrb[0].mxu0
        %1859 = vmatprep.mubr.f32.mxu0 0.0
        %1860 = vmatmul.mubr.f32.gmra.mrb[0].mxu0 %v590
        %v1861 = vpop.f32.mrb[0].mxu0
        %v1862 = vadd.f32 %v1637, %v1861
        %v1863 = vpop.f32.mrb[0].mxu0
        %1864 = vmatprep.mubr.f32.mxu0 0.0
        %1865 = vmatmul.mubr.f32.gmra.mrb[0].mxu0 %v592
        %v1866 = vpop.f32.mrb[0].mxu0
        %v1867 = vadd.f32 %v1642, %v1866
        %v1868 = vpop.f32.mrb[0].mxu0
        %1869 = vmatprep.mubr.f32.mxu0 0.0
        %1870 = vmatmul.mubr.f32.gmra.mrb[0].mxu0 %v595
        %v1871 = vpop.f32.mrb[0].mxu0
        %v1872 = vadd.f32 %v1647, %v1871
        %v1873 = vpop.f32.mrb[0].mxu0
        %1874 = vmatprep.mubr.f32.mxu0 0.0
        %1875 = vmatmul.mubr.f32.gmra.mrb[0].mxu0 %v597
        %v1876 = vpop.f32.mrb[0].mxu0
        %v1877 = vadd.f32 %v1652, %v1876
        %v1878 = vpop.f32.mrb[0].mxu0
        %1879 = vmatprep.mubr.f32.mxu0 0.0
        %1880 = vmatmul.mubr.f32.gmra.mrb[0].mxu0 %v600
        %v1881 = vpop.f32.mrb[0].mxu0
        %v1882 = vadd.f32 %v1657, %v1881
        %v1883 = vpop.f32.mrb[0].mxu0
        %1884 = vmatprep.mubr.f32.mxu0 0.0
        %1885 = vmatmul.mubr.f32.gmra.mrb[0].mxu0 %v602
        %v1886 = vpop.f32.mrb[0].mxu0
        %v1887 = vadd.f32 %v1662, %v1886
        %v1888 = vpop.f32.mrb[0].mxu0
        %1889 = vmatprep.mubr.f32.mxu0 0.0
        %1890 = vmatmul.mubr.f32.gmra.mrb[0].mxu0 %v605
        %v1891 = vpop.f32.mrb[0].mxu0
        %v1892 = vadd.f32 %v1667, %v1891
        %v1893 = vpop.f32.mrb[0].mxu0
        %1894 = vmatprep.mubr.f32.mxu0 0.0
        %1895 = vmatmul.mubr.f32.gmra.mrb[0].mxu0 %v607
        %v1896 = vpop.f32.mrb[0].mxu0
        %v1897 = vadd.f32 %v1672, %v1896
        %v1898 = vpop.f32.mrb[0].mxu0
        %1899 = vmatprep.mubr.f32.mxu0 0.0
        %1900 = vmatmul.mubr.f32.gmra.mrb[0].mxu0 %v610
        %v1901 = vpop.f32.mrb[0].mxu0
        %v1902 = vadd.f32 %v1677, %v1901
        %v1903 = vpop.f32.mrb[0].mxu0
        %1904 = vmatprep.mubr.f32.mxu0 0.0
        %1905 = vmatmul.mubr.f32.gmra.mrb[0].mxu0 %v612
        %v1906 = vpop.f32.mrb[0].mxu0
        %v1907 = vadd.f32 %v1682, %v1906
        %v1908 = vpop.f32.mrb[0].mxu0
        %1909 = vmatprep.mubr.f32.mxu0 0.0
        %1910 = vmatmul.mubr.f32.gmra.mrb[0].mxu0 %v615
        %v1911 = vpop.f32.mrb[0].mxu0
        %v1912 = vadd.f32 %v1687, %v1911
        %v1913 = vpop.f32.mrb[0].mxu0
        %1914 = vmatprep.mubr.f32.mxu0 0.0
        %1915 = vmatmul.mubr.f32.gmra.mrb[0].mxu0 %v617
        %v1916 = vpop.f32.mrb[0].mxu0
        %v1917 = vadd.f32 %v1692, %v1916
        %v1918 = vpop.f32.mrb[0].mxu0
        %1919 = vmatprep.mubr.f32.mxu0 0.0
        %1920 = vmatmul.mubr.f32.gmra.mrb[0].mxu0 %v620
        %v1921 = vpop.f32.mrb[0].mxu0
        %v1922 = vadd.f32 %v1697, %v1921
        %v1923 = vpop.f32.mrb[0].mxu0
        %1924 = vmatprep.mubr.f32.mxu0 0.0
        %1925 = vmatmul.mubr.f32.gmra.mrb[0].mxu0 %v622
        %v1926 = vpop.f32.mrb[0].mxu0
        %v1927 = vadd.f32 %v1702, %v1926
        %v1928 = vpop.f32.mrb[0].mxu0
        %1929 = vmatprep.mubr.f32.mxu0 0.0
        %1930 = vmatmul.mubr.f32.gmra.mrb[0].mxu0 %v625
        %v1931 = vpop.f32.mrb[0].mxu0
        %v1932 = vadd.f32 %v1707, %v1931
        %v1933 = vpop.f32.mrb[0].mxu0
        %1934 = vmatprep.mubr.f32.mxu0 0.0
        %1935 = vmatmul.mubr.f32.gmra.mrb[0].mxu0 %v627
        %v1936 = vpop.f32.mrb[0].mxu0
        %v1937 = vadd.f32 %v1712, %v1936
        %v1938 = vpop.f32.mrb[0].mxu0
        %1939 = vmatprep.mubr.f32.mxu0 0.0
        %1940 = vmatmul.mubr.f32.gmra.mrb[0].mxu0 %v630
        %v1941 = vpop.f32.mrb[0].mxu0
        %v1942 = vadd.f32 %v1717, %v1941
        %v1943 = vpop.f32.mrb[0].mxu0
        %1944 = vmatprep.mubr.f32.mxu0 0.0
        %1945 = vmatmul.mubr.f32.gmra.mrb[0].mxu0 %v632
        %v1946 = vpop.f32.mrb[0].mxu0
        %v1947 = vadd.f32 %v1722, %v1946
        %v1948 = vpop.f32.mrb[0].mxu0
        %1949 = vmatprep.mubr.f32.mxu0 0.0
        %1950 = vmatmul.mubr.f32.gmra.mrb[0].mxu0 %v635
        %v1951 = vpop.f32.mrb[0].mxu0
        %v1952 = vadd.f32 %v1727, %v1951
        %v1953 = vpop.f32.mrb[0].mxu0
        %1954 = vmatprep.mubr.f32.mxu0 0.0
        %1955 = vmatmul.mubr.f32.gmra.mrb[0].mxu0 %v637
        %v1956 = vpop.f32.mrb[0].mxu0
        %v1957 = vadd.f32 %v1732, %v1956
        %v1958 = vpop.f32.mrb[0].mxu0
        %1959 = vmatprep.mubr.f32.mxu0 0.0
        %1960 = vmatmul.mubr.f32.gmra.mrb[0].mxu0 %v682
        %v1961 = vpop.f32.mrb[0].mxu0
        %v1962 = vadd.f32 %v1737, %v1961
        %v1963 = vpop.f32.mrb[0].mxu0
        %1964 = vmatprep.mubr.f32.mxu0 0.0
        %1965 = vmatmul.mubr.f32.gmra.mrb[0].mxu0 %v684
        %v1966 = vpop.f32.mrb[0].mxu0
        %v1967 = vadd.f32 %v1742, %v1966
        %v1968 = vpop.f32.mrb[0].mxu0
        %1969 = vmatprep.mubr.f32.mxu0 0.0
        %1970 = vmatmul.mubr.f32.gmra.mrb[0].mxu0 %v699
        %v1971 = vpop.f32.mrb[0].mxu0
        %v1972 = vadd.f32 %v1747, %v1971
        %v1973 = vpop.f32.mrb[0].mxu0
        %1974 = vmatprep.mubr.f32.mxu0 0.0
        %1975 = vmatmul.mubr.f32.gmra.mrb[0].mxu0 %v701
        %v1976 = vpop.f32.mrb[0].mxu0
        %v1977 = vadd.f32 %v1752, %v1976
        %v1978 = vpop.f32.mrb[0].mxu0
        %1979 = vdwg.mxu0
        %v1980 = vmax.f32 %v1822, 0.0
        %v1981 = vmax.f32 %v1827, 0.0
        %v1982 = vmax.f32 %v1832, 0.0
        %v1983 = vmax.f32 %v1837, 0.0
        %v1984 = vmax.f32 %v1842, 0.0
        %v1985 = vmax.f32 %v1847, 0.0
        %v1986 = vmax.f32 %v1852, 0.0
        %v1987 = vmax.f32 %v1857, 0.0
        %v1988 = vmax.f32 %v1862, 0.0
        %v1989 = vmax.f32 %v1867, 0.0
        %v1990 = vmax.f32 %v1872, 0.0
        %v1991 = vmax.f32 %v1877, 0.0
        %v1992 = vmax.f32 %v1882, 0.0
        %v1993 = vmax.f32 %v1887, 0.0
        %v1994 = vmax.f32 %v1892, 0.0
        %v1995 = vmax.f32 %v1897, 0.0
        %v1996 = vmax.f32 %v1902, 0.0
        %v1997 = vmax.f32 %v1907, 0.0
        %v1998 = vmax.f32 %v1912, 0.0
        %v1999 = vmax.f32 %v1917, 0.0
        %v2000 = vmax.f32 %v1922, 0.0
        %v2001 = vmax.f32 %v1927, 0.0
        %v2002 = vmax.f32 %v1932, 0.0
        %v2003 = vmax.f32 %v1937, 0.0
        %v2004 = vmax.f32 %v1942, 0.0
        %v2005 = vmax.f32 %v1947, 0.0
        %v2006 = vmax.f32 %v1952, 0.0
        %v2007 = vmax.f32 %v1957, 0.0
        %v2008 = vmax.f32 %v1962, 0.0
        %v2009 = vmax.f32 %v1967, 0.0
        %v2010 = vmax.f32 %v1972, 0.0
        %v2011 = vmax.f32 %v1977, 0.0
        %2012 = vst [vmem:[%s309 + $0x1] sm:$0xff] %v1980
        %2013 = vst [vmem:[%s309 + $0x9] sm:$0xff] %v1981
        %2014 = vst [vmem:[%s309 + $0x19] sm:$0xff] %v1982
        %2015 = vst [vmem:[%s309 + $0x21] sm:$0xff] %v1983
        %2016 = vst [vmem:[%s309 + $0x31] sm:$0xff] %v1984
        %2017 = vst [vmem:[%s309 + $0x39] sm:$0xff] %v1985
        %2018 = vst [vmem:[%s309 + $0x49] sm:$0xff] %v1986
        %2019 = vst [vmem:[%s309 + $0x51] sm:$0xff] %v1987
        %2020 = vst [vmem:[%s309 + $0x61] sm:$0xff] %v1988
        %2021 = vst [vmem:[%s309 + $0x69] sm:$0xff] %v1989
        %2022 = vst [vmem:[%s309 + $0x79] sm:$0xff] %v1990
        %2023 = vst [vmem:[%s309 + $0x81] sm:$0xff] %v1991
        %2024 = vst [vmem:[%s309 + $0x91] sm:$0xff] %v1992
        %2025 = vst [vmem:[%s309 + $0x99] sm:$0xff] %v1993
        %2026 = vst [vmem:[%s309 + $0xa9] sm:$0xff] %v1994
        %2027 = vst [vmem:[%s309 + $0xb1] sm:$0xff] %v1995
        %2028 = vst [vmem:[%s309 + $0xc1] sm:$0xff] %v1996
        %2029 = vst [vmem:[%s309 + $0xc9] sm:$0xff] %v1997
        %2030 = vst [vmem:[%s309 + $0xd9] sm:$0xff] %v1998
        %2031 = vst [vmem:[%s309 + $0xe1] sm:$0xff] %v1999
        %2032 = vst [vmem:[%s309 + $0xf1] sm:$0xff] %v2000
        %2033 = vst [vmem:[%s309 + $0xf9] sm:$0xff] %v2001
        %2034 = vst [vmem:[%s309 + $0x109] sm:$0xff] %v2002
        %2035 = vst [vmem:[%s309 + $0x111] sm:$0xff] %v2003
        %2036 = vst [vmem:[%s309 + $0x121] sm:$0xff] %v2004
        %2037 = vst [vmem:[%s309 + $0x129] sm:$0xff] %v2005
        %2038 = vst [vmem:[%s309 + $0x139] sm:$0xff] %v2006
        %2039 = vst [vmem:[%s309 + $0x141] sm:$0xff] %v2007
        %2040 = vst [vmem:[%s309 + $0x151] sm:$0xff] %v2008
        %2041 = vst [vmem:[%s309 + $0x159] sm:$0xff] %v2009
        %2042 = vst [vmem:[%s309 + $0x169] sm:$0xff] %v2010
        %2043 = vst [vmem:[%s309 + $0x171] sm:$0xff] %v2011
        %v2044 = vld [vmem:[#allocation2] sm:$0xff]
        %v2045 = vld [vmem:[#allocation2 + $0x8] sm:$0xff]
        %v2046 = vld [vmem:[#allocation2 + $0x10] sm:$0x3]
        %v2047 = vld [vmem:[#allocation2 + $0x18] sm:$0xff]
        %v2048 = vld [vmem:[#allocation2 + $0x20] sm:$0xff]
        %v2049 = vld [vmem:[#allocation2 + $0x28] sm:$0x3]
        %v2050 = vld [vmem:[#allocation2 + $0x30] sm:$0xff]
        %v2051 = vld [vmem:[#allocation2 + $0x38] sm:$0xff]
        %v2052 = vld [vmem:[#allocation2 + $0x40] sm:$0x3]
        %v2053 = vld [vmem:[#allocation2 + $0x48] sm:$0xff]
        %v2054 = vld [vmem:[#allocation2 + $0x50] sm:$0xff]
        %v2055 = vld [vmem:[#allocation2 + $0x58] sm:$0x3]
        %v2056 = vld [vmem:[#allocation2 + $0x60] sm:$0xff]
        %v2057 = vld [vmem:[#allocation2 + $0x68] sm:$0xff]
        %v2058 = vld [vmem:[#allocation2 + $0x70] sm:$0x3]
        %v2059 = vld [vmem:[#allocation2 + $0x78] sm:$0xff]
        %v2060 = vld [vmem:[#allocation2 + $0x80] sm:$0xff]
        %v2061 = vld [vmem:[#allocation2 + $0x88] sm:$0x3]
        %v2062 = vld [vmem:[#allocation2 + $0x90] sm:$0xff]
        %v2063 = vld [vmem:[#allocation2 + $0x98] sm:$0xff]
        %v2064 = vld [vmem:[#allocation2 + $0xa0] sm:$0x3]
        %v2065 = vld [vmem:[#allocation2 + $0xa8] sm:$0xff]
        %v2066 = vld [vmem:[#allocation2 + $0xb0] sm:$0xff]
        %v2067 = vld [vmem:[#allocation2 + $0xb8] sm:$0x3]
        %v2068 = vld [vmem:[#allocation2 + $0xc0] sm:$0xff]
        %v2069 = vld [vmem:[#allocation2 + $0xc8] sm:$0xff]
        %v2070 = vld [vmem:[#allocation2 + $0xd0] sm:$0x3]
        %v2071 = vld [vmem:[#allocation2 + $0xd8] sm:$0xff]
        %v2072 = vld [vmem:[#allocation2 + $0xe0] sm:$0xff]
        %v2073 = vld [vmem:[#allocation2 + $0xe8] sm:$0x3]
        %v2074 = vld [vmem:[#allocation2 + $0xf0] sm:$0xff]
        %v2075 = vld [vmem:[#allocation2 + $0xf8] sm:$0xff]
        %v2076 = vld [vmem:[#allocation2 + $0x100] sm:$0x3]
        %v2077 = vld [vmem:[#allocation2 + $0x108] sm:$0xff]
        %v2078 = vld [vmem:[#allocation2 + $0x110] sm:$0xff]
        %v2079 = vld [vmem:[#allocation2 + $0x118] sm:$0x3]
        %v2080 = vld [vmem:[#allocation2 + $0x120] sm:$0xff]
        %v2081 = vld [vmem:[#allocation2 + $0x128] sm:$0xff]
        %v2082 = vld [vmem:[#allocation2 + $0x130] sm:$0x3]
        %v2083 = vld [vmem:[#allocation2 + $0x138] sm:$0xff]
        %v2084 = vld [vmem:[#allocation2 + $0x140] sm:$0xff]
        %v2085 = vld [vmem:[#allocation2 + $0x148] sm:$0x3]
        %v2086 = vld [vmem:[#allocation2 + $0x150] sm:$0xff]
        %v2087 = vld [vmem:[#allocation2 + $0x158] sm:$0xff]
        %v2088 = vld [vmem:[#allocation2 + $0x160] sm:$0x3]
        %v2089 = vld [vmem:[#allocation2 + $0x168] sm:$0xff]
        %v2090 = vld [vmem:[#allocation2 + $0x170] sm:$0xff]
        %v2091 = vld [vmem:[#allocation2 + $0x178] sm:$0x3]
        %v2092 = vld [vmem:[#allocation2 + $0x180] sm:$0xff]
        %v2093 = vld [vmem:[#allocation2 + $0x188] sm:$0xff]
        %v2094 = vld [vmem:[#allocation2 + $0x190] sm:$0x3]
        %v2095 = vld [vmem:[#allocation2 + $0x198] sm:$0xff]
        %v2096 = vld [vmem:[#allocation2 + $0x1a0] sm:$0xff]
        %v2097 = vld [vmem:[#allocation2 + $0x1a8] sm:$0x3]
        %v2146 = vrot.slane %v2044, 1
        %v2147 = vrot.slane %v2045, 1
        %v2148 = vsel %vm444, %v2146, %v2147
        %v2149 = vrot.slane %v2046, 1
        %v2150 = vsel %vm444, %v2147, %v2149
        %v2151 = vrot.slane %v2047, 1
        %v2152 = vrot.slane %v2048, 1
        %v2153 = vsel %vm444, %v2151, %v2152
        %v2154 = vrot.slane %v2049, 1
        %v2155 = vsel %vm444, %v2152, %v2154
        %v2156 = vrot.slane %v2050, 1
        %v2157 = vrot.slane %v2051, 1
        %v2158 = vsel %vm444, %v2156, %v2157
        %v2159 = vrot.slane %v2052, 1
        %v2160 = vsel %vm444, %v2157, %v2159
        %v2161 = vrot.slane %v2053, 1
        %v2162 = vrot.slane %v2054, 1
        %v2163 = vsel %vm444, %v2161, %v2162
        %v2164 = vrot.slane %v2055, 1
        %v2165 = vsel %vm444, %v2162, %v2164
        %v2166 = vrot.slane %v2056, 1
        %v2167 = vrot.slane %v2057, 1
        %v2168 = vsel %vm444, %v2166, %v2167
        %v2169 = vrot.slane %v2058, 1
        %v2170 = vsel %vm444, %v2167, %v2169
        %v2171 = vrot.slane %v2059, 1
        %v2172 = vrot.slane %v2060, 1
        %v2173 = vsel %vm444, %v2171, %v2172
        %v2174 = vrot.slane %v2061, 1
        %v2175 = vsel %vm444, %v2172, %v2174
        %v2176 = vrot.slane %v2062, 1
        %v2177 = vrot.slane %v2063, 1
        %v2178 = vsel %vm444, %v2176, %v2177
        %v2179 = vrot.slane %v2064, 1
        %v2180 = vsel %vm444, %v2177, %v2179
        %v2181 = vrot.slane %v2065, 1
        %v2182 = vrot.slane %v2066, 1
        %v2183 = vsel %vm444, %v2181, %v2182
        %v2184 = vrot.slane %v2067, 1
        %v2185 = vsel %vm444, %v2182, %v2184
        %v2186 = vrot.slane %v2068, 1
        %v2187 = vrot.slane %v2069, 1
        %v2188 = vsel %vm444, %v2186, %v2187
        %v2189 = vrot.slane %v2070, 1
        %v2190 = vsel %vm444, %v2187, %v2189
        %v2191 = vrot.slane %v2071, 1
        %v2192 = vrot.slane %v2072, 1
        %v2193 = vsel %vm444, %v2191, %v2192
        %v2194 = vrot.slane %v2073, 1
        %v2195 = vsel %vm444, %v2192, %v2194
        %v2196 = vrot.slane %v2074, 1
        %v2197 = vrot.slane %v2075, 1
        %v2198 = vsel %vm444, %v2196, %v2197
        %v2199 = vrot.slane %v2076, 1
        %v2200 = vsel %vm444, %v2197, %v2199
        %v2201 = vrot.slane %v2077, 1
        %v2202 = vrot.slane %v2078, 1
        %v2203 = vsel %vm444, %v2201, %v2202
        %v2204 = vrot.slane %v2079, 1
        %v2205 = vsel %vm444, %v2202, %v2204
        %v2206 = vrot.slane %v2080, 1
        %v2207 = vrot.slane %v2081, 1
        %v2208 = vsel %vm444, %v2206, %v2207
        %v2209 = vrot.slane %v2082, 1
        %v2210 = vsel %vm444, %v2207, %v2209
        %v2211 = vrot.slane %v2083, 1
        %v2212 = vrot.slane %v2084, 1
        %v2213 = vsel %vm444, %v2211, %v2212
        %v2214 = vrot.slane %v2085, 1
        %v2215 = vsel %vm444, %v2212, %v2214
        %v2216 = vrot.slane %v2086, 1
        %v2217 = vrot.slane %v2087, 1
        %v2218 = vsel %vm444, %v2216, %v2217
        %v2219 = vrot.slane %v2088, 1
        %v2220 = vsel %vm444, %v2217, %v2219
        %v2221 = vrot.slane %v2089, 1
        %v2222 = vrot.slane %v2090, 1
        %v2223 = vsel %vm444, %v2221, %v2222
        %v2224 = vrot.slane %v2091, 1
        %v2225 = vsel %vm444, %v2222, %v2224
        %v2258 = vrot.slane %v2044, 2
        %v2259 = vrot.slane %v2045, 2
        %v2260 = vsel %vm557, %v2258, %v2259
        %v2261 = vrot.slane %v2046, 2
        %v2262 = vsel %vm557, %v2259, %v2261
        %v2263 = vrot.slane %v2047, 2
        %v2264 = vrot.slane %v2048, 2
        %v2265 = vsel %vm557, %v2263, %v2264
        %v2266 = vrot.slane %v2049, 2
        %v2267 = vsel %vm557, %v2264, %v2266
        %v2268 = vrot.slane %v2050, 2
        %v2269 = vrot.slane %v2051, 2
        %v2270 = vsel %vm557, %v2268, %v2269
        %v2271 = vrot.slane %v2052, 2
        %v2272 = vsel %vm557, %v2269, %v2271
        %v2273 = vrot.slane %v2053, 2
        %v2274 = vrot.slane %v2054, 2
        %v2275 = vsel %vm557, %v2273, %v2274
        %v2276 = vrot.slane %v2055, 2
        %v2277 = vsel %vm557, %v2274, %v2276
        %v2278 = vrot.slane %v2056, 2
        %v2279 = vrot.slane %v2057, 2
        %v2280 = vsel %vm557, %v2278, %v2279
        %v2281 = vrot.slane %v2058, 2
        %v2282 = vsel %vm557, %v2279, %v2281
        %v2283 = vrot.slane %v2059, 2
        %v2284 = vrot.slane %v2060, 2
        %v2285 = vsel %vm557, %v2283, %v2284
        %v2286 = vrot.slane %v2061, 2
        %v2287 = vsel %vm557, %v2284, %v2286
        %v2288 = vrot.slane %v2062, 2
        %v2289 = vrot.slane %v2063, 2
        %v2290 = vsel %vm557, %v2288, %v2289
        %v2291 = vrot.slane %v2064, 2
        %v2292 = vsel %vm557, %v2289, %v2291
        %v2293 = vrot.slane %v2065, 2
        %v2294 = vrot.slane %v2066, 2
        %v2295 = vsel %vm557, %v2293, %v2294
        %v2296 = vrot.slane %v2067, 2
        %v2297 = vsel %vm557, %v2294, %v2296
        %v2298 = vrot.slane %v2068, 2
        %v2299 = vrot.slane %v2069, 2
        %v2300 = vsel %vm557, %v2298, %v2299
        %v2301 = vrot.slane %v2070, 2
        %v2302 = vsel %vm557, %v2299, %v2301
        %v2303 = vrot.slane %v2071, 2
        %v2304 = vrot.slane %v2072, 2
        %v2305 = vsel %vm557, %v2303, %v2304
        %v2306 = vrot.slane %v2073, 2
        %v2307 = vsel %vm557, %v2304, %v2306
        %v2308 = vrot.slane %v2074, 2
        %v2309 = vrot.slane %v2075, 2
        %v2310 = vsel %vm557, %v2308, %v2309
        %v2311 = vrot.slane %v2076, 2
        %v2312 = vsel %vm557, %v2309, %v2311
        %v2313 = vrot.slane %v2077, 2
        %v2314 = vrot.slane %v2078, 2
        %v2315 = vsel %vm557, %v2313, %v2314
        %v2316 = vrot.slane %v2079, 2
        %v2317 = vsel %vm557, %v2314, %v2316
        %v2318 = vrot.slane %v2080, 2
        %v2319 = vrot.slane %v2081, 2
        %v2320 = vsel %vm557, %v2318, %v2319
        %v2321 = vrot.slane %v2082, 2
        %v2322 = vsel %vm557, %v2319, %v2321
        %v2323 = vrot.slane %v2083, 2
        %v2324 = vrot.slane %v2084, 2
        %v2325 = vsel %vm557, %v2323, %v2324
        %v2326 = vrot.slane %v2085, 2
        %v2327 = vsel %vm557, %v2324, %v2326
        %v2328 = vrot.slane %v2086, 2
        %v2329 = vrot.slane %v2087, 2
        %v2330 = vsel %vm557, %v2328, %v2329
        %v2331 = vrot.slane %v2088, 2
        %v2332 = vsel %vm557, %v2329, %v2331
        %v2333 = vrot.slane %v2089, 2
        %v2334 = vrot.slane %v2090, 2
        %v2335 = vsel %vm557, %v2333, %v2334
        %v2336 = vrot.slane %v2091, 2
        %v2337 = vsel %vm557, %v2334, %v2336
        %v2373 = vrot.slane %v2092, 1
        %v2374 = vrot.slane %v2093, 1
        %v2375 = vsel %vm444, %v2373, %v2374
        %v2376 = vrot.slane %v2094, 1
        %v2377 = vsel %vm444, %v2374, %v2376
        %v2380 = vrot.slane %v2092, 2
        %v2381 = vrot.slane %v2093, 2
        %v2382 = vsel %vm557, %v2380, %v2381
        %v2383 = vrot.slane %v2094, 2
        %v2384 = vsel %vm557, %v2381, %v2383
        %v2390 = vrot.slane %v2095, 1
        %v2391 = vrot.slane %v2096, 1
        %v2392 = vsel %vm444, %v2390, %v2391
        %v2393 = vrot.slane %v2097, 1
        %v2394 = vsel %vm444, %v2391, %v2393
        %v2397 = vrot.slane %v2095, 2
        %v2398 = vrot.slane %v2096, 2
        %v2399 = vsel %vm557, %v2397, %v2398
        %v2400 = vrot.slane %v2097, 2
        %v2401 = vsel %vm557, %v2398, %v2400
        %s2404 = scalar_lea.vmem %s1, 1152
        %v2405 = vld [vmem:[%s2404] sm:$0xff]
        %v2406 = vld [vmem:[%s2404 + $0x8] sm:$0xff]
        %v2407 = vld [vmem:[%s2404 + $0x10] sm:$0xff]
        %v2408 = vld [vmem:[%s2404 + $0x18] sm:$0xff]
        %v2409 = vld [vmem:[%s2404 + $0x20] sm:$0xff]
        %v2410 = vld [vmem:[%s2404 + $0x28] sm:$0xff]
        %v2411 = vld [vmem:[%s2404 + $0x30] sm:$0xff]
        %v2412 = vld [vmem:[%s2404 + $0x38] sm:$0xff]
        %v2413 = vld [vmem:[%s2404 + $0x40] sm:$0xff]
        %v2414 = vld [vmem:[%s2404 + $0x48] sm:$0xff]
        %v2415 = vld [vmem:[%s2404 + $0x50] sm:$0xff]
        %v2416 = vld [vmem:[%s2404 + $0x58] sm:$0xff]
        %v2417 = vld [vmem:[%s2404 + $0x60] sm:$0xff]
        %v2418 = vld [vmem:[%s2404 + $0x68] sm:$0xff]
        %v2419 = vld [vmem:[%s2404 + $0x70] sm:$0xff]
        %v2420 = vld [vmem:[%s2404 + $0x78] sm:$0xff]
        %v2421 = vld [vmem:[%s2404 + $0x80] sm:$0xff]
        %v2422 = vld [vmem:[%s2404 + $0x88] sm:$0xff]
        %v2423 = vld [vmem:[%s2404 + $0x90] sm:$0xff]
        %v2424 = vld [vmem:[%s2404 + $0x98] sm:$0xff]
        %v2425 = vld [vmem:[%s2404 + $0xa0] sm:$0xff]
        %v2426 = vld [vmem:[%s2404 + $0xa8] sm:$0xff]
        %v2427 = vld [vmem:[%s2404 + $0xb0] sm:$0xff]
        %v2428 = vld [vmem:[%s2404 + $0xb8] sm:$0xff]
        %v2429 = vld [vmem:[%s2404 + $0xc0] sm:$0xff]
        %v2430 = vld [vmem:[%s2404 + $0xc8] sm:$0xff]
        %v2431 = vld [vmem:[%s2404 + $0xd0] sm:$0xff]
        %v2432 = vld [vmem:[%s2404 + $0xd8] sm:$0xff]
        %v2433 = vld [vmem:[%s2404 + $0xe0] sm:$0xff]
        %v2434 = vld [vmem:[%s2404 + $0xe8] sm:$0xff]
        %v2435 = vld [vmem:[%s2404 + $0xf0] sm:$0xff]
        %v2436 = vld [vmem:[%s2404 + $0xf8] sm:$0xff]
        %v2437 = vld [vmem:[%s2404 + $0x100] sm:$0xff]
        %v2438 = vld [vmem:[%s2404 + $0x108] sm:$0xff]
        %v2439 = vld [vmem:[%s2404 + $0x110] sm:$0xff]
        %v2440 = vld [vmem:[%s2404 + $0x118] sm:$0xff]
        %v2441 = vld [vmem:[%s2404 + $0x120] sm:$0xff]
        %v2442 = vld [vmem:[%s2404 + $0x128] sm:$0xff]
        %v2443 = vld [vmem:[%s2404 + $0x130] sm:$0xff]
        %v2444 = vld [vmem:[%s2404 + $0x138] sm:$0xff]
        %v2445 = vld [vmem:[%s2404 + $0x140] sm:$0xff]
        %v2446 = vld [vmem:[%s2404 + $0x148] sm:$0xff]
        %v2447 = vld [vmem:[%s2404 + $0x150] sm:$0xff]
        %v2448 = vld [vmem:[%s2404 + $0x158] sm:$0xff]
        %v2449 = vld [vmem:[%s2404 + $0x160] sm:$0xff]
        %v2450 = vld [vmem:[%s2404 + $0x168] sm:$0xff]
        %v2451 = vld [vmem:[%s2404 + $0x170] sm:$0xff]
        %v2452 = vld [vmem:[%s2404 + $0x178] sm:$0xff]
        %v2453 = vld [vmem:[%s2404 + $0x180] sm:$0xff]
        %v2454 = vld [vmem:[%s2404 + $0x188] sm:$0xff]
        %v2455 = vld [vmem:[%s2404 + $0x190] sm:$0xff]
        %v2456 = vld [vmem:[%s2404 + $0x198] sm:$0xff]
        %v2457 = vld [vmem:[%s2404 + $0x1a0] sm:$0xff]
        %v2458 = vld [vmem:[%s2404 + $0x1a8] sm:$0xff]
        %v2459 = vld [vmem:[%s2404 + $0x1b0] sm:$0xff]
        %v2460 = vld [vmem:[%s2404 + $0x1b8] sm:$0xff]
        %v2461 = vld [vmem:[%s2404 + $0x1c0] sm:$0xff]
        %v2462 = vld [vmem:[%s2404 + $0x1c8] sm:$0xff]
        %v2463 = vld [vmem:[%s2404 + $0x1d0] sm:$0xff]
        %v2464 = vld [vmem:[%s2404 + $0x1d8] sm:$0xff]
        %v2465 = vld [vmem:[%s2404 + $0x1e0] sm:$0xff]
        %v2466 = vld [vmem:[%s2404 + $0x1e8] sm:$0xff]
        %v2467 = vld [vmem:[%s2404 + $0x1f0] sm:$0xff]
        %v2468 = vld [vmem:[%s2404 + $0x1f8] sm:$0xff]
        %v2469 = vld [vmem:[%s2404 + $0x200] sm:$0xff]
        %v2470 = vld [vmem:[%s2404 + $0x208] sm:$0xff]
        %v2471 = vld [vmem:[%s2404 + $0x210] sm:$0xff]
        %v2472 = vld [vmem:[%s2404 + $0x218] sm:$0xff]
        %v2473 = vld [vmem:[%s2404 + $0x220] sm:$0xff]
        %v2474 = vld [vmem:[%s2404 + $0x228] sm:$0xff]
        %v2475 = vld [vmem:[%s2404 + $0x230] sm:$0xff]
        %v2476 = vld [vmem:[%s2404 + $0x238] sm:$0xff]
        %v2477 = vld [vmem:[%s2404 + $0x240] sm:$0xff]
        %v2478 = vld [vmem:[%s2404 + $0x248] sm:$0xff]
        %v2479 = vld [vmem:[%s2404 + $0x250] sm:$0xff]
        %v2480 = vld [vmem:[%s2404 + $0x258] sm:$0xff]
        %v2481 = vld [vmem:[%s2404 + $0x260] sm:$0xff]
        %v2482 = vld [vmem:[%s2404 + $0x268] sm:$0xff]
        %v2483 = vld [vmem:[%s2404 + $0x270] sm:$0xff]
        %v2484 = vld [vmem:[%s2404 + $0x278] sm:$0xff]
        %v2485 = vld [vmem:[%s2404 + $0x280] sm:$0xff]
        %v2486 = vld [vmem:[%s2404 + $0x288] sm:$0xff]
        %v2487 = vld [vmem:[%s2404 + $0x290] sm:$0xff]
        %v2488 = vld [vmem:[%s2404 + $0x298] sm:$0xff]
        %v2489 = vld [vmem:[%s2404 + $0x2a0] sm:$0xff]
        %v2490 = vld [vmem:[%s2404 + $0x2a8] sm:$0xff]
        %v2491 = vld [vmem:[%s2404 + $0x2b0] sm:$0xff]
        %v2492 = vld [vmem:[%s2404 + $0x2b8] sm:$0xff]
        %v2493 = vld [vmem:[%s2404 + $0x2c0] sm:$0xff]
        %v2494 = vld [vmem:[%s2404 + $0x2c8] sm:$0xff]
        %v2495 = vld [vmem:[%s2404 + $0x2d0] sm:$0xff]
        %v2496 = vld [vmem:[%s2404 + $0x2d8] sm:$0xff]
        %v2497 = vld [vmem:[%s2404 + $0x2e0] sm:$0xff]
        %v2498 = vld [vmem:[%s2404 + $0x2e8] sm:$0xff]
        %v2499 = vld [vmem:[%s2404 + $0x2f0] sm:$0xff]
        %v2500 = vld [vmem:[%s2404 + $0x2f8] sm:$0xff]
        %v2501 = vld [vmem:[%s2404 + $0x300] sm:$0xff]
        %v2502 = vld [vmem:[%s2404 + $0x308] sm:$0xff]
        %v2503 = vld [vmem:[%s2404 + $0x310] sm:$0xff]
        %v2504 = vld [vmem:[%s2404 + $0x318] sm:$0xff]
        %v2505 = vld [vmem:[%s2404 + $0x320] sm:$0xff]
        %v2506 = vld [vmem:[%s2404 + $0x328] sm:$0xff]
        %v2507 = vld [vmem:[%s2404 + $0x330] sm:$0xff]
        %v2508 = vld [vmem:[%s2404 + $0x338] sm:$0xff]
        %v2509 = vld [vmem:[%s2404 + $0x340] sm:$0xff]
        %v2510 = vld [vmem:[%s2404 + $0x348] sm:$0xff]
        %v2511 = vld [vmem:[%s2404 + $0x350] sm:$0xff]
        %v2512 = vld [vmem:[%s2404 + $0x358] sm:$0xff]
        %v2513 = vld [vmem:[%s2404 + $0x360] sm:$0xff]
        %v2514 = vld [vmem:[%s2404 + $0x368] sm:$0xff]
        %v2515 = vld [vmem:[%s2404 + $0x370] sm:$0xff]
        %v2516 = vld [vmem:[%s2404 + $0x378] sm:$0xff]
        %v2517 = vld [vmem:[%s2404 + $0x380] sm:$0xff]
        %v2518 = vld [vmem:[%s2404 + $0x388] sm:$0xff]
        %v2519 = vld [vmem:[%s2404 + $0x390] sm:$0xff]
        %v2520 = vld [vmem:[%s2404 + $0x398] sm:$0xff]
        %v2521 = vld [vmem:[%s2404 + $0x3a0] sm:$0xff]
        %v2522 = vld [vmem:[%s2404 + $0x3a8] sm:$0xff]
        %v2523 = vld [vmem:[%s2404 + $0x3b0] sm:$0xff]
        %v2524 = vld [vmem:[%s2404 + $0x3b8] sm:$0xff]
        %v2525 = vld [vmem:[%s2404 + $0x3c0] sm:$0xff]
        %v2526 = vld [vmem:[%s2404 + $0x3c8] sm:$0xff]
        %v2527 = vld [vmem:[%s2404 + $0x3d0] sm:$0xff]
        %v2528 = vld [vmem:[%s2404 + $0x3d8] sm:$0xff]
        %v2529 = vld [vmem:[%s2404 + $0x3e0] sm:$0xff]
        %v2530 = vld [vmem:[%s2404 + $0x3e8] sm:$0xff]
        %v2531 = vld [vmem:[%s2404 + $0x3f0] sm:$0xff]
        %v2532 = vld [vmem:[%s2404 + $0x3f8] sm:$0xff]
        %v2533 = vld [vmem:[%s2404 + $0x400] sm:$0xff]
        %v2534 = vld [vmem:[%s2404 + $0x408] sm:$0xff]
        %v2535 = vld [vmem:[%s2404 + $0x410] sm:$0xff]
        %v2536 = vld [vmem:[%s2404 + $0x418] sm:$0xff]
        %v2537 = vld [vmem:[%s2404 + $0x420] sm:$0xff]
        %v2538 = vld [vmem:[%s2404 + $0x428] sm:$0xff]
        %v2539 = vld [vmem:[%s2404 + $0x430] sm:$0xff]
        %v2540 = vld [vmem:[%s2404 + $0x438] sm:$0xff]
        %v2541 = vld [vmem:[%s2404 + $0x440] sm:$0xff]
        %v2542 = vld [vmem:[%s2404 + $0x448] sm:$0xff]
        %v2543 = vld [vmem:[%s2404 + $0x450] sm:$0xff]
        %v2544 = vld [vmem:[%s2404 + $0x458] sm:$0xff]
        %v2545 = vld [vmem:[%s2404 + $0x460] sm:$0xff]
        %v2546 = vld [vmem:[%s2404 + $0x468] sm:$0xff]
        %v2547 = vld [vmem:[%s2404 + $0x470] sm:$0xff]
        %v2548 = vld [vmem:[%s2404 + $0x478] sm:$0xff]
        %s2549 = scalar_lea.vmem %s2, 1
        %v2550 = vld [vmem:[%s2549] sm:$0x1]
        %v2552 = vlaneseq
        %v2553 = vshrl.u32 %v2552, 7
        %v2554 = vsub.s32 0, %v2553
        %v2555 = vrot.slane %v2550, %v2554
        %2557 = vmatprep.subr.mxu0 0.0
        %2558 = vmatpush1.msra.mxu0 %v2405
        %2559 = vmatprep.subr.mxu0 0.0
        %2560 = vmatpush1.msra.mxu0 %v2406
        %2561 = vmatprep.subr.mxu0 0.0
        %2562 = vmatpush1.msra.mxu0 %v2407
        %2563 = vmatprep.subr.mxu0 0.0
        %2564 = vmatpush1.msra.mxu0 %v2408
        %2565 = vmatprep.subr.mxu0 0.0
        %2566 = vmatpush1.msra.mxu0 %v2409
        %2567 = vmatprep.subr.mxu0 0.0
        %2568 = vmatpush1.msra.mxu0 %v2410
        %2569 = vmatprep.subr.mxu0 0.0
        %2570 = vmatpush1.msra.mxu0 %v2411
        %2571 = vmatprep.subr.mxu0 0.0
        %2572 = vmatpush1.msra.mxu0 %v2412
        %2573 = vmatprep.subr.mxu0 0.0
        %2574 = vmatpush1.msra.mxu0 %v2413
        %2575 = vmatprep.subr.mxu0 0.0
        %2576 = vmatpush1.msra.mxu0 %v2414
        %2577 = vmatprep.subr.mxu0 0.0
        %2578 = vmatpush1.msra.mxu0 %v2415
        %2579 = vmatprep.subr.mxu0 0.0
        %2580 = vmatpush1.msra.mxu0 %v2416
        %2581 = vmatprep.subr.mxu0 0.0
        %2582 = vmatpush1.msra.mxu0 %v2417
        %2583 = vmatprep.subr.mxu0 0.0
        %2584 = vmatpush1.msra.mxu0 %v2418
        %2585 = vmatprep.subr.mxu0 0.0
        %2586 = vmatpush1.msra.mxu0 %v2419
        %2587 = vmatprep.subr.mxu0 0.0
        %2588 = vmatpush1.msra.mxu0 %v2420
        %2589 = vmatprep.subr.mxu0 0.0
        %2590 = vmatpush1.msra.mxu0 %v2421
        %2591 = vmatprep.subr.mxu0 0.0
        %2592 = vmatpush1.msra.mxu0 %v2422
        %2593 = vmatprep.subr.mxu0 0.0
        %2594 = vmatpush1.msra.mxu0 %v2423
        %2595 = vmatprep.subr.mxu0 0.0
        %2596 = vmatpush1.msra.mxu0 %v2424
        %2597 = vmatprep.subr.mxu0 0.0
        %2598 = vmatpush1.msra.mxu0 %v2425
        %2599 = vmatprep.subr.mxu0 0.0
        %2600 = vmatpush1.msra.mxu0 %v2426
        %2601 = vmatprep.subr.mxu0 0.0
        %2602 = vmatpush1.msra.mxu0 %v2427
        %2603 = vmatprep.subr.mxu0 0.0
        %2604 = vmatpush1.msra.mxu0 %v2428
        %2605 = vmatprep.subr.mxu0 0.0
        %2606 = vmatpush1.msra.mxu0 %v2429
        %2607 = vmatprep.subr.mxu0 0.0
        %2608 = vmatpush1.msra.mxu0 %v2430
        %2609 = vmatprep.subr.mxu0 0.0
        %2610 = vmatpush1.msra.mxu0 %v2431
        %2611 = vmatprep.subr.mxu0 0.0
        %2612 = vmatpush1.msra.mxu0 %v2432
        %2613 = vmatprep.subr.mxu0 0.0
        %2614 = vmatpush1.msra.mxu0 %v2433
        %2615 = vmatprep.subr.mxu0 0.0
        %2616 = vmatpush1.msra.mxu0 %v2434
        %2617 = vmatprep.subr.mxu0 0.0
        %2618 = vmatpush1.msra.mxu0 %v2435
        %2619 = vmatprep.subr.mxu0 0.0
        %2620 = vmatpush1.msra.mxu0 %v2436
        %2621 = vmatprep.mubr.f32.mxu0 %v2148
        %2622 = vmatmul.mubr.f32.gmra.mrb[0].mxu0 %v2044
        %v2623 = vpop.f32.mrb[0].mxu0
        %v2624 = vadd.f32 %v2555, %v2623
        %v2625 = vpop.f32.mrb[0].mxu0
        %2626 = vmatprep.mubr.f32.mxu0 %v2150
        %2627 = vmatmul.mubr.f32.gmra.mrb[0].mxu0 %v2045
        %v2628 = vpop.f32.mrb[0].mxu0
        %v2629 = vadd.f32 %v2555, %v2628
        %v2630 = vpop.f32.mrb[0].mxu0
        %2631 = vmatprep.mubr.f32.mxu0 %v2153
        %2632 = vmatmul.mubr.f32.gmra.mrb[0].mxu0 %v2047
        %v2633 = vpop.f32.mrb[0].mxu0
        %v2634 = vadd.f32 %v2555, %v2633
        %v2635 = vpop.f32.mrb[0].mxu0
        %2636 = vmatprep.mubr.f32.mxu0 %v2155
        %2637 = vmatmul.mubr.f32.gmra.mrb[0].mxu0 %v2048
        %v2638 = vpop.f32.mrb[0].mxu0
        %v2639 = vadd.f32 %v2555, %v2638
        %v2640 = vpop.f32.mrb[0].mxu0
        %2641 = vmatprep.mubr.f32.mxu0 %v2158
        %2642 = vmatmul.mubr.f32.gmra.mrb[0].mxu0 %v2050
        %v2643 = vpop.f32.mrb[0].mxu0
        %v2644 = vadd.f32 %v2555, %v2643
        %v2645 = vpop.f32.mrb[0].mxu0
        %2646 = vmatprep.mubr.f32.mxu0 %v2160
        %2647 = vmatmul.mubr.f32.gmra.mrb[0].mxu0 %v2051
        %v2648 = vpop.f32.mrb[0].mxu0
        %v2649 = vadd.f32 %v2555, %v2648
        %v2650 = vpop.f32.mrb[0].mxu0
        %2651 = vmatprep.mubr.f32.mxu0 %v2163
        %2652 = vmatmul.mubr.f32.gmra.mrb[0].mxu0 %v2053
        %v2653 = vpop.f32.mrb[0].mxu0
        %v2654 = vadd.f32 %v2555, %v2653
        %v2655 = vpop.f32.mrb[0].mxu0
        %2656 = vmatprep.mubr.f32.mxu0 %v2165
        %2657 = vmatmul.mubr.f32.gmra.mrb[0].mxu0 %v2054
        %v2658 = vpop.f32.mrb[0].mxu0
        %v2659 = vadd.f32 %v2555, %v2658
        %v2660 = vpop.f32.mrb[0].mxu0
        %2661 = vmatprep.mubr.f32.mxu0 %v2168
        %2662 = vmatmul.mubr.f32.gmra.mrb[0].mxu0 %v2056
        %v2663 = vpop.f32.mrb[0].mxu0
        %v2664 = vadd.f32 %v2555, %v2663
        %v2665 = vpop.f32.mrb[0].mxu0
        %2666 = vmatprep.mubr.f32.mxu0 %v2170
        %2667 = vmatmul.mubr.f32.gmra.mrb[0].mxu0 %v2057
        %v2668 = vpop.f32.mrb[0].mxu0
        %v2669 = vadd.f32 %v2555, %v2668
        %v2670 = vpop.f32.mrb[0].mxu0
        %2671 = vmatprep.mubr.f32.mxu0 %v2173
        %2672 = vmatmul.mubr.f32.gmra.mrb[0].mxu0 %v2059
        %v2673 = vpop.f32.mrb[0].mxu0
        %v2674 = vadd.f32 %v2555, %v2673
        %v2675 = vpop.f32.mrb[0].mxu0
        %2676 = vmatprep.mubr.f32.mxu0 %v2175
        %2677 = vmatmul.mubr.f32.gmra.mrb[0].mxu0 %v2060
        %v2678 = vpop.f32.mrb[0].mxu0
        %v2679 = vadd.f32 %v2555, %v2678
        %v2680 = vpop.f32.mrb[0].mxu0
        %2681 = vmatprep.mubr.f32.mxu0 %v2178
        %2682 = vmatmul.mubr.f32.gmra.mrb[0].mxu0 %v2062
        %v2683 = vpop.f32.mrb[0].mxu0
        %v2684 = vadd.f32 %v2555, %v2683
        %v2685 = vpop.f32.mrb[0].mxu0
        %2686 = vmatprep.mubr.f32.mxu0 %v2180
        %2687 = vmatmul.mubr.f32.gmra.mrb[0].mxu0 %v2063
        %v2688 = vpop.f32.mrb[0].mxu0
        %v2689 = vadd.f32 %v2555, %v2688
        %v2690 = vpop.f32.mrb[0].mxu0
        %2691 = vmatprep.mubr.f32.mxu0 %v2183
        %2692 = vmatmul.mubr.f32.gmra.mrb[0].mxu0 %v2065
        %v2693 = vpop.f32.mrb[0].mxu0
        %v2694 = vadd.f32 %v2555, %v2693
        %v2695 = vpop.f32.mrb[0].mxu0
        %2696 = vmatprep.mubr.f32.mxu0 %v2185
        %2697 = vmatmul.mubr.f32.gmra.mrb[0].mxu0 %v2066
        %v2698 = vpop.f32.mrb[0].mxu0
        %v2699 = vadd.f32 %v2555, %v2698
        %v2700 = vpop.f32.mrb[0].mxu0
        %2701 = vmatprep.mubr.f32.mxu0 %v2188
        %2702 = vmatmul.mubr.f32.gmra.mrb[0].mxu0 %v2068
        %v2703 = vpop.f32.mrb[0].mxu0
        %v2704 = vadd.f32 %v2555, %v2703
        %v2705 = vpop.f32.mrb[0].mxu0
        %2706 = vmatprep.mubr.f32.mxu0 %v2190
        %2707 = vmatmul.mubr.f32.gmra.mrb[0].mxu0 %v2069
        %v2708 = vpop.f32.mrb[0].mxu0
        %v2709 = vadd.f32 %v2555, %v2708
        %v2710 = vpop.f32.mrb[0].mxu0
        %2711 = vmatprep.mubr.f32.mxu0 %v2193
        %2712 = vmatmul.mubr.f32.gmra.mrb[0].mxu0 %v2071
        %v2713 = vpop.f32.mrb[0].mxu0
        %v2714 = vadd.f32 %v2555, %v2713
        %v2715 = vpop.f32.mrb[0].mxu0
        %2716 = vmatprep.mubr.f32.mxu0 %v2195
        %2717 = vmatmul.mubr.f32.gmra.mrb[0].mxu0 %v2072
        %v2718 = vpop.f32.mrb[0].mxu0
        %v2719 = vadd.f32 %v2555, %v2718
        %v2720 = vpop.f32.mrb[0].mxu0
        %2721 = vmatprep.mubr.f32.mxu0 %v2198
        %2722 = vmatmul.mubr.f32.gmra.mrb[0].mxu0 %v2074
        %v2723 = vpop.f32.mrb[0].mxu0
        %v2724 = vadd.f32 %v2555, %v2723
        %v2725 = vpop.f32.mrb[0].mxu0
        %2726 = vmatprep.mubr.f32.mxu0 %v2200
        %2727 = vmatmul.mubr.f32.gmra.mrb[0].mxu0 %v2075
        %v2728 = vpop.f32.mrb[0].mxu0
        %v2729 = vadd.f32 %v2555, %v2728
        %v2730 = vpop.f32.mrb[0].mxu0
        %2731 = vmatprep.mubr.f32.mxu0 %v2203
        %2732 = vmatmul.mubr.f32.gmra.mrb[0].mxu0 %v2077
        %v2733 = vpop.f32.mrb[0].mxu0
        %v2734 = vadd.f32 %v2555, %v2733
        %v2735 = vpop.f32.mrb[0].mxu0
        %2736 = vmatprep.mubr.f32.mxu0 %v2205
        %2737 = vmatmul.mubr.f32.gmra.mrb[0].mxu0 %v2078
        %v2738 = vpop.f32.mrb[0].mxu0
        %v2739 = vadd.f32 %v2555, %v2738
        %v2740 = vpop.f32.mrb[0].mxu0
        %2741 = vmatprep.mubr.f32.mxu0 %v2208
        %2742 = vmatmul.mubr.f32.gmra.mrb[0].mxu0 %v2080
        %v2743 = vpop.f32.mrb[0].mxu0
        %v2744 = vadd.f32 %v2555, %v2743
        %v2745 = vpop.f32.mrb[0].mxu0
        %2746 = vmatprep.mubr.f32.mxu0 %v2210
        %2747 = vmatmul.mubr.f32.gmra.mrb[0].mxu0 %v2081
        %v2748 = vpop.f32.mrb[0].mxu0
        %v2749 = vadd.f32 %v2555, %v2748
        %v2750 = vpop.f32.mrb[0].mxu0
        %2751 = vmatprep.mubr.f32.mxu0 %v2213
        %2752 = vmatmul.mubr.f32.gmra.mrb[0].mxu0 %v2083
        %v2753 = vpop.f32.mrb[0].mxu0
        %v2754 = vadd.f32 %v2555, %v2753
        %v2755 = vpop.f32.mrb[0].mxu0
        %2756 = vmatprep.mubr.f32.mxu0 %v2215
        %2757 = vmatmul.mubr.f32.gmra.mrb[0].mxu0 %v2084
        %v2758 = vpop.f32.mrb[0].mxu0
        %v2759 = vadd.f32 %v2555, %v2758
        %v2760 = vpop.f32.mrb[0].mxu0
        %2761 = vmatprep.mubr.f32.mxu0 %v2218
        %2762 = vmatmul.mubr.f32.gmra.mrb[0].mxu0 %v2086
        %v2763 = vpop.f32.mrb[0].mxu0
        %v2764 = vadd.f32 %v2555, %v2763
        %v2765 = vpop.f32.mrb[0].mxu0
        %2766 = vmatprep.mubr.f32.mxu0 %v2220
        %2767 = vmatmul.mubr.f32.gmra.mrb[0].mxu0 %v2087
        %v2768 = vpop.f32.mrb[0].mxu0
        %v2769 = vadd.f32 %v2555, %v2768
        %v2770 = vpop.f32.mrb[0].mxu0
        %2771 = vmatprep.mubr.f32.mxu0 %v2223
        %2772 = vmatmul.mubr.f32.gmra.mrb[0].mxu0 %v2089
        %v2773 = vpop.f32.mrb[0].mxu0
        %v2774 = vadd.f32 %v2555, %v2773
        %v2775 = vpop.f32.mrb[0].mxu0
        %2776 = vmatprep.mubr.f32.mxu0 %v2225
        %2777 = vmatmul.mubr.f32.gmra.mrb[0].mxu0 %v2090
        %v2778 = vpop.f32.mrb[0].mxu0
        %v2779 = vadd.f32 %v2555, %v2778
        %v2780 = vpop.f32.mrb[0].mxu0
        %2781 = vdwg.mxu0
        %2782 = vmatprep.subr.mxu0 0.0
        %2783 = vmatpush1.msra.mxu0 %v2437
        %2784 = vmatprep.subr.mxu0 0.0
        %2785 = vmatpush1.msra.mxu0 %v2438
        %2786 = vmatprep.subr.mxu0 0.0
        %2787 = vmatpush1.msra.mxu0 %v2439
        %2788 = vmatprep.subr.mxu0 0.0
        %2789 = vmatpush1.msra.mxu0 %v2440
        %2790 = vmatprep.subr.mxu0 0.0
        %2791 = vmatpush1.msra.mxu0 %v2441
        %2792 = vmatprep.subr.mxu0 0.0
        %2793 = vmatpush1.msra.mxu0 %v2442
        %2794 = vmatprep.subr.mxu0 0.0
        %2795 = vmatpush1.msra.mxu0 %v2443
        %2796 = vmatprep.subr.mxu0 0.0
        %2797 = vmatpush1.msra.mxu0 %v2444
        %2798 = vmatprep.subr.mxu0 0.0
        %2799 = vmatpush1.msra.mxu0 %v2445
        %2800 = vmatprep.subr.mxu0 0.0
        %2801 = vmatpush1.msra.mxu0 %v2446
        %2802 = vmatprep.subr.mxu0 0.0
        %2803 = vmatpush1.msra.mxu0 %v2447
        %2804 = vmatprep.subr.mxu0 0.0
        %2805 = vmatpush1.msra.mxu0 %v2448
        %2806 = vmatprep.subr.mxu0 0.0
        %2807 = vmatpush1.msra.mxu0 %v2449
        %2808 = vmatprep.subr.mxu0 0.0
        %2809 = vmatpush1.msra.mxu0 %v2450
        %2810 = vmatprep.subr.mxu0 0.0
        %2811 = vmatpush1.msra.mxu0 %v2451
        %2812 = vmatprep.subr.mxu0 0.0
        %2813 = vmatpush1.msra.mxu0 %v2452
        %2814 = vmatprep.subr.mxu0 0.0
        %2815 = vmatpush1.msra.mxu0 %v2453
        %2816 = vmatprep.subr.mxu0 0.0
        %2817 = vmatpush1.msra.mxu0 %v2454
        %2818 = vmatprep.subr.mxu0 0.0
        %2819 = vmatpush1.msra.mxu0 %v2455
        %2820 = vmatprep.subr.mxu0 0.0
        %2821 = vmatpush1.msra.mxu0 %v2456
        %2822 = vmatprep.subr.mxu0 0.0
        %2823 = vmatpush1.msra.mxu0 %v2457
        %2824 = vmatprep.subr.mxu0 0.0
        %2825 = vmatpush1.msra.mxu0 %v2458
        %2826 = vmatprep.subr.mxu0 0.0
        %2827 = vmatpush1.msra.mxu0 %v2459
        %2828 = vmatprep.subr.mxu0 0.0
        %2829 = vmatpush1.msra.mxu0 %v2460
        %2830 = vmatprep.subr.mxu0 0.0
        %2831 = vmatpush1.msra.mxu0 %v2461
        %2832 = vmatprep.subr.mxu0 0.0
        %2833 = vmatpush1.msra.mxu0 %v2462
        %2834 = vmatprep.subr.mxu0 0.0
        %2835 = vmatpush1.msra.mxu0 %v2463
        %2836 = vmatprep.subr.mxu0 0.0
        %2837 = vmatpush1.msra.mxu0 %v2464
        %2838 = vmatprep.subr.mxu0 0.0
        %2839 = vmatpush1.msra.mxu0 %v2465
        %2840 = vmatprep.subr.mxu0 0.0
        %2841 = vmatpush1.msra.mxu0 %v2466
        %2842 = vmatprep.subr.mxu0 0.0
        %2843 = vmatpush1.msra.mxu0 %v2467
        %2844 = vmatprep.subr.mxu0 0.0
        %2845 = vmatpush1.msra.mxu0 %v2468
        %2846 = vmatprep.mubr.f32.mxu0 %v2047
        %2847 = vmatmul.mubr.f32.gmra.mrb[0].mxu0 %v2260
        %v2848 = vpop.f32.mrb[0].mxu0
        %v2849 = vadd.f32 %v2624, %v2848
        %v2850 = vpop.f32.mrb[0].mxu0
        %2851 = vmatprep.mubr.f32.mxu0 %v2048
        %2852 = vmatmul.mubr.f32.gmra.mrb[0].mxu0 %v2262
        %v2853 = vpop.f32.mrb[0].mxu0
        %v2854 = vadd.f32 %v2629, %v2853
        %v2855 = vpop.f32.mrb[0].mxu0
        %2856 = vmatprep.mubr.f32.mxu0 %v2050
        %2857 = vmatmul.mubr.f32.gmra.mrb[0].mxu0 %v2265
        %v2858 = vpop.f32.mrb[0].mxu0
        %v2859 = vadd.f32 %v2634, %v2858
        %v2860 = vpop.f32.mrb[0].mxu0
        %2861 = vmatprep.mubr.f32.mxu0 %v2051
        %2862 = vmatmul.mubr.f32.gmra.mrb[0].mxu0 %v2267
        %v2863 = vpop.f32.mrb[0].mxu0
        %v2864 = vadd.f32 %v2639, %v2863
        %v2865 = vpop.f32.mrb[0].mxu0
        %2866 = vmatprep.mubr.f32.mxu0 %v2053
        %2867 = vmatmul.mubr.f32.gmra.mrb[0].mxu0 %v2270
        %v2868 = vpop.f32.mrb[0].mxu0
        %v2869 = vadd.f32 %v2644, %v2868
        %v2870 = vpop.f32.mrb[0].mxu0
        %2871 = vmatprep.mubr.f32.mxu0 %v2054
        %2872 = vmatmul.mubr.f32.gmra.mrb[0].mxu0 %v2272
        %v2873 = vpop.f32.mrb[0].mxu0
        %v2874 = vadd.f32 %v2649, %v2873
        %v2875 = vpop.f32.mrb[0].mxu0
        %2876 = vmatprep.mubr.f32.mxu0 %v2056
        %2877 = vmatmul.mubr.f32.gmra.mrb[0].mxu0 %v2275
        %v2878 = vpop.f32.mrb[0].mxu0
        %v2879 = vadd.f32 %v2654, %v2878
        %v2880 = vpop.f32.mrb[0].mxu0
        %2881 = vmatprep.mubr.f32.mxu0 %v2057
        %2882 = vmatmul.mubr.f32.gmra.mrb[0].mxu0 %v2277
        %v2883 = vpop.f32.mrb[0].mxu0
        %v2884 = vadd.f32 %v2659, %v2883
        %v2885 = vpop.f32.mrb[0].mxu0
        %2886 = vmatprep.mubr.f32.mxu0 %v2059
        %2887 = vmatmul.mubr.f32.gmra.mrb[0].mxu0 %v2280
        %v2888 = vpop.f32.mrb[0].mxu0
        %v2889 = vadd.f32 %v2664, %v2888
        %v2890 = vpop.f32.mrb[0].mxu0
        %2891 = vmatprep.mubr.f32.mxu0 %v2060
        %2892 = vmatmul.mubr.f32.gmra.mrb[0].mxu0 %v2282
        %v2893 = vpop.f32.mrb[0].mxu0
        %v2894 = vadd.f32 %v2669, %v2893
        %v2895 = vpop.f32.mrb[0].mxu0
        %2896 = vmatprep.mubr.f32.mxu0 %v2062
        %2897 = vmatmul.mubr.f32.gmra.mrb[0].mxu0 %v2285
        %v2898 = vpop.f32.mrb[0].mxu0
        %v2899 = vadd.f32 %v2674, %v2898
        %v2900 = vpop.f32.mrb[0].mxu0
        %2901 = vmatprep.mubr.f32.mxu0 %v2063
        %2902 = vmatmul.mubr.f32.gmra.mrb[0].mxu0 %v2287
        %v2903 = vpop.f32.mrb[0].mxu0
        %v2904 = vadd.f32 %v2679, %v2903
        %v2905 = vpop.f32.mrb[0].mxu0
        %2906 = vmatprep.mubr.f32.mxu0 %v2065
        %2907 = vmatmul.mubr.f32.gmra.mrb[0].mxu0 %v2290
        %v2908 = vpop.f32.mrb[0].mxu0
        %v2909 = vadd.f32 %v2684, %v2908
        %v2910 = vpop.f32.mrb[0].mxu0
        %2911 = vmatprep.mubr.f32.mxu0 %v2066
        %2912 = vmatmul.mubr.f32.gmra.mrb[0].mxu0 %v2292
        %v2913 = vpop.f32.mrb[0].mxu0
        %v2914 = vadd.f32 %v2689, %v2913
        %v2915 = vpop.f32.mrb[0].mxu0
        %2916 = vmatprep.mubr.f32.mxu0 %v2068
        %2917 = vmatmul.mubr.f32.gmra.mrb[0].mxu0 %v2295
        %v2918 = vpop.f32.mrb[0].mxu0
        %v2919 = vadd.f32 %v2694, %v2918
        %v2920 = vpop.f32.mrb[0].mxu0
        %2921 = vmatprep.mubr.f32.mxu0 %v2069
        %2922 = vmatmul.mubr.f32.gmra.mrb[0].mxu0 %v2297
        %v2923 = vpop.f32.mrb[0].mxu0
        %v2924 = vadd.f32 %v2699, %v2923
        %v2925 = vpop.f32.mrb[0].mxu0
        %2926 = vmatprep.mubr.f32.mxu0 %v2071
        %2927 = vmatmul.mubr.f32.gmra.mrb[0].mxu0 %v2300
        %v2928 = vpop.f32.mrb[0].mxu0
        %v2929 = vadd.f32 %v2704, %v2928
        %v2930 = vpop.f32.mrb[0].mxu0
        %2931 = vmatprep.mubr.f32.mxu0 %v2072
        %2932 = vmatmul.mubr.f32.gmra.mrb[0].mxu0 %v2302
        %v2933 = vpop.f32.mrb[0].mxu0
        %v2934 = vadd.f32 %v2709, %v2933
        %v2935 = vpop.f32.mrb[0].mxu0
        %2936 = vmatprep.mubr.f32.mxu0 %v2074
        %2937 = vmatmul.mubr.f32.gmra.mrb[0].mxu0 %v2305
        %v2938 = vpop.f32.mrb[0].mxu0
        %v2939 = vadd.f32 %v2714, %v2938
        %v2940 = vpop.f32.mrb[0].mxu0
        %2941 = vmatprep.mubr.f32.mxu0 %v2075
        %2942 = vmatmul.mubr.f32.gmra.mrb[0].mxu0 %v2307
        %v2943 = vpop.f32.mrb[0].mxu0
        %v2944 = vadd.f32 %v2719, %v2943
        %v2945 = vpop.f32.mrb[0].mxu0
        %2946 = vmatprep.mubr.f32.mxu0 %v2077
        %2947 = vmatmul.mubr.f32.gmra.mrb[0].mxu0 %v2310
        %v2948 = vpop.f32.mrb[0].mxu0
        %v2949 = vadd.f32 %v2724, %v2948
        %v2950 = vpop.f32.mrb[0].mxu0
        %2951 = vmatprep.mubr.f32.mxu0 %v2078
        %2952 = vmatmul.mubr.f32.gmra.mrb[0].mxu0 %v2312
        %v2953 = vpop.f32.mrb[0].mxu0
        %v2954 = vadd.f32 %v2729, %v2953
        %v2955 = vpop.f32.mrb[0].mxu0
        %2956 = vmatprep.mubr.f32.mxu0 %v2080
        %2957 = vmatmul.mubr.f32.gmra.mrb[0].mxu0 %v2315
        %v2958 = vpop.f32.mrb[0].mxu0
        %v2959 = vadd.f32 %v2734, %v2958
        %v2960 = vpop.f32.mrb[0].mxu0
        %2961 = vmatprep.mubr.f32.mxu0 %v2081
        %2962 = vmatmul.mubr.f32.gmra.mrb[0].mxu0 %v2317
        %v2963 = vpop.f32.mrb[0].mxu0
        %v2964 = vadd.f32 %v2739, %v2963
        %v2965 = vpop.f32.mrb[0].mxu0
        %2966 = vmatprep.mubr.f32.mxu0 %v2083
        %2967 = vmatmul.mubr.f32.gmra.mrb[0].mxu0 %v2320
        %v2968 = vpop.f32.mrb[0].mxu0
        %v2969 = vadd.f32 %v2744, %v2968
        %v2970 = vpop.f32.mrb[0].mxu0
        %2971 = vmatprep.mubr.f32.mxu0 %v2084
        %2972 = vmatmul.mubr.f32.gmra.mrb[0].mxu0 %v2322
        %v2973 = vpop.f32.mrb[0].mxu0
        %v2974 = vadd.f32 %v2749, %v2973
        %v2975 = vpop.f32.mrb[0].mxu0
        %2976 = vmatprep.mubr.f32.mxu0 %v2086
        %2977 = vmatmul.mubr.f32.gmra.mrb[0].mxu0 %v2325
        %v2978 = vpop.f32.mrb[0].mxu0
        %v2979 = vadd.f32 %v2754, %v2978
        %v2980 = vpop.f32.mrb[0].mxu0
        %2981 = vmatprep.mubr.f32.mxu0 %v2087
        %2982 = vmatmul.mubr.f32.gmra.mrb[0].mxu0 %v2327
        %v2983 = vpop.f32.mrb[0].mxu0
        %v2984 = vadd.f32 %v2759, %v2983
        %v2985 = vpop.f32.mrb[0].mxu0
        %2986 = vmatprep.mubr.f32.mxu0 %v2089
        %2987 = vmatmul.mubr.f32.gmra.mrb[0].mxu0 %v2330
        %v2988 = vpop.f32.mrb[0].mxu0
        %v2989 = vadd.f32 %v2764, %v2988
        %v2990 = vpop.f32.mrb[0].mxu0
        %2991 = vmatprep.mubr.f32.mxu0 %v2090
        %2992 = vmatmul.mubr.f32.gmra.mrb[0].mxu0 %v2332
        %v2993 = vpop.f32.mrb[0].mxu0
        %v2994 = vadd.f32 %v2769, %v2993
        %v2995 = vpop.f32.mrb[0].mxu0
        %2996 = vmatprep.mubr.f32.mxu0 %v2092
        %2997 = vmatmul.mubr.f32.gmra.mrb[0].mxu0 %v2335
        %v2998 = vpop.f32.mrb[0].mxu0
        %v2999 = vadd.f32 %v2774, %v2998
        %v3000 = vpop.f32.mrb[0].mxu0
        %3001 = vmatprep.mubr.f32.mxu0 %v2093
        %3002 = vmatmul.mubr.f32.gmra.mrb[0].mxu0 %v2337
        %v3003 = vpop.f32.mrb[0].mxu0
        %v3004 = vadd.f32 %v2779, %v3003
        %v3005 = vpop.f32.mrb[0].mxu0
        %3006 = vdwg.mxu0
        %3007 = vmatprep.subr.mxu0 0.0
        %3008 = vmatpush1.msra.mxu0 %v2469
        %3009 = vmatprep.subr.mxu0 0.0
        %3010 = vmatpush1.msra.mxu0 %v2470
        %3011 = vmatprep.subr.mxu0 0.0
        %3012 = vmatpush1.msra.mxu0 %v2471
        %3013 = vmatprep.subr.mxu0 0.0
        %3014 = vmatpush1.msra.mxu0 %v2472
        %3015 = vmatprep.subr.mxu0 0.0
        %3016 = vmatpush1.msra.mxu0 %v2473
        %3017 = vmatprep.subr.mxu0 0.0
        %3018 = vmatpush1.msra.mxu0 %v2474
        %3019 = vmatprep.subr.mxu0 0.0
        %3020 = vmatpush1.msra.mxu0 %v2475
        %3021 = vmatprep.subr.mxu0 0.0
        %3022 = vmatpush1.msra.mxu0 %v2476
        %3023 = vmatprep.subr.mxu0 0.0
        %3024 = vmatpush1.msra.mxu0 %v2477
        %3025 = vmatprep.subr.mxu0 0.0
        %3026 = vmatpush1.msra.mxu0 %v2478
        %3027 = vmatprep.subr.mxu0 0.0
        %3028 = vmatpush1.msra.mxu0 %v2479
        %3029 = vmatprep.subr.mxu0 0.0
        %3030 = vmatpush1.msra.mxu0 %v2480
        %3031 = vmatprep.subr.mxu0 0.0
        %3032 = vmatpush1.msra.mxu0 %v2481
        %3033 = vmatprep.subr.mxu0 0.0
        %3034 = vmatpush1.msra.mxu0 %v2482
        %3035 = vmatprep.subr.mxu0 0.0
        %3036 = vmatpush1.msra.mxu0 %v2483
        %3037 = vmatprep.subr.mxu0 0.0
        %3038 = vmatpush1.msra.mxu0 %v2484
        %3039 = vmatprep.subr.mxu0 0.0
        %3040 = vmatpush1.msra.mxu0 %v2485
        %3041 = vmatprep.subr.mxu0 0.0
        %3042 = vmatpush1.msra.mxu0 %v2486
        %3043 = vmatprep.subr.mxu0 0.0
        %3044 = vmatpush1.msra.mxu0 %v2487
        %3045 = vmatprep.subr.mxu0 0.0
        %3046 = vmatpush1.msra.mxu0 %v2488
        %3047 = vmatprep.subr.mxu0 0.0
        %3048 = vmatpush1.msra.mxu0 %v2489
        %3049 = vmatprep.subr.mxu0 0.0
        %3050 = vmatpush1.msra.mxu0 %v2490
        %3051 = vmatprep.subr.mxu0 0.0
        %3052 = vmatpush1.msra.mxu0 %v2491
        %3053 = vmatprep.subr.mxu0 0.0
        %3054 = vmatpush1.msra.mxu0 %v2492
        %3055 = vmatprep.subr.mxu0 0.0
        %3056 = vmatpush1.msra.mxu0 %v2493
        %3057 = vmatprep.subr.mxu0 0.0
        %3058 = vmatpush1.msra.mxu0 %v2494
        %3059 = vmatprep.subr.mxu0 0.0
        %3060 = vmatpush1.msra.mxu0 %v2495
        %3061 = vmatprep.subr.mxu0 0.0
        %3062 = vmatpush1.msra.mxu0 %v2496
        %3063 = vmatprep.subr.mxu0 0.0
        %3064 = vmatpush1.msra.mxu0 %v2497
        %3065 = vmatprep.subr.mxu0 0.0
        %3066 = vmatpush1.msra.mxu0 %v2498
        %3067 = vmatprep.subr.mxu0 0.0
        %3068 = vmatpush1.msra.mxu0 %v2499
        %3069 = vmatprep.subr.mxu0 0.0
        %3070 = vmatpush1.msra.mxu0 %v2500
        %3071 = vmatprep.mubr.f32.mxu0 %v2265
        %3072 = vmatmul.mubr.f32.gmra.mrb[0].mxu0 %v2153
        %v3073 = vpop.f32.mrb[0].mxu0
        %v3074 = vadd.f32 %v2849, %v3073
        %v3075 = vpop.f32.mrb[0].mxu0
        %3076 = vmatprep.mubr.f32.mxu0 %v2267
        %3077 = vmatmul.mubr.f32.gmra.mrb[0].mxu0 %v2155
        %v3078 = vpop.f32.mrb[0].mxu0
        %v3079 = vadd.f32 %v2854, %v3078
        %v3080 = vpop.f32.mrb[0].mxu0
        %3081 = vmatprep.mubr.f32.mxu0 %v2270
        %3082 = vmatmul.mubr.f32.gmra.mrb[0].mxu0 %v2158
        %v3083 = vpop.f32.mrb[0].mxu0
        %v3084 = vadd.f32 %v2859, %v3083
        %v3085 = vpop.f32.mrb[0].mxu0
        %3086 = vmatprep.mubr.f32.mxu0 %v2272
        %3087 = vmatmul.mubr.f32.gmra.mrb[0].mxu0 %v2160
        %v3088 = vpop.f32.mrb[0].mxu0
        %v3089 = vadd.f32 %v2864, %v3088
        %v3090 = vpop.f32.mrb[0].mxu0
        %3091 = vmatprep.mubr.f32.mxu0 %v2275
        %3092 = vmatmul.mubr.f32.gmra.mrb[0].mxu0 %v2163
        %v3093 = vpop.f32.mrb[0].mxu0
        %v3094 = vadd.f32 %v2869, %v3093
        %v3095 = vpop.f32.mrb[0].mxu0
        %3096 = vmatprep.mubr.f32.mxu0 %v2277
        %3097 = vmatmul.mubr.f32.gmra.mrb[0].mxu0 %v2165
        %v3098 = vpop.f32.mrb[0].mxu0
        %v3099 = vadd.f32 %v2874, %v3098
        %v3100 = vpop.f32.mrb[0].mxu0
        %3101 = vmatprep.mubr.f32.mxu0 %v2280
        %3102 = vmatmul.mubr.f32.gmra.mrb[0].mxu0 %v2168
        %v3103 = vpop.f32.mrb[0].mxu0
        %v3104 = vadd.f32 %v2879, %v3103
        %v3105 = vpop.f32.mrb[0].mxu0
        %3106 = vmatprep.mubr.f32.mxu0 %v2282
        %3107 = vmatmul.mubr.f32.gmra.mrb[0].mxu0 %v2170
        %v3108 = vpop.f32.mrb[0].mxu0
        %v3109 = vadd.f32 %v2884, %v3108
        %v3110 = vpop.f32.mrb[0].mxu0
        %3111 = vmatprep.mubr.f32.mxu0 %v2285
        %3112 = vmatmul.mubr.f32.gmra.mrb[0].mxu0 %v2173
        %v3113 = vpop.f32.mrb[0].mxu0
        %v3114 = vadd.f32 %v2889, %v3113
        %v3115 = vpop.f32.mrb[0].mxu0
        %3116 = vmatprep.mubr.f32.mxu0 %v2287
        %3117 = vmatmul.mubr.f32.gmra.mrb[0].mxu0 %v2175
        %v3118 = vpop.f32.mrb[0].mxu0
        %v3119 = vadd.f32 %v2894, %v3118
        %v3120 = vpop.f32.mrb[0].mxu0
        %3121 = vmatprep.mubr.f32.mxu0 %v2290
        %3122 = vmatmul.mubr.f32.gmra.mrb[0].mxu0 %v2178
        %v3123 = vpop.f32.mrb[0].mxu0
        %v3124 = vadd.f32 %v2899, %v3123
        %v3125 = vpop.f32.mrb[0].mxu0
        %3126 = vmatprep.mubr.f32.mxu0 %v2292
        %3127 = vmatmul.mubr.f32.gmra.mrb[0].mxu0 %v2180
        %v3128 = vpop.f32.mrb[0].mxu0
        %v3129 = vadd.f32 %v2904, %v3128
        %v3130 = vpop.f32.mrb[0].mxu0
        %3131 = vmatprep.mubr.f32.mxu0 %v2295
        %3132 = vmatmul.mubr.f32.gmra.mrb[0].mxu0 %v2183
        %v3133 = vpop.f32.mrb[0].mxu0
        %v3134 = vadd.f32 %v2909, %v3133
        %v3135 = vpop.f32.mrb[0].mxu0
        %3136 = vmatprep.mubr.f32.mxu0 %v2297
        %3137 = vmatmul.mubr.f32.gmra.mrb[0].mxu0 %v2185
        %v3138 = vpop.f32.mrb[0].mxu0
        %v3139 = vadd.f32 %v2914, %v3138
        %v3140 = vpop.f32.mrb[0].mxu0
        %3141 = vmatprep.mubr.f32.mxu0 %v2300
        %3142 = vmatmul.mubr.f32.gmra.mrb[0].mxu0 %v2188
        %v3143 = vpop.f32.mrb[0].mxu0
        %v3144 = vadd.f32 %v2919, %v3143
        %v3145 = vpop.f32.mrb[0].mxu0
        %3146 = vmatprep.mubr.f32.mxu0 %v2302
        %3147 = vmatmul.mubr.f32.gmra.mrb[0].mxu0 %v2190
        %v3148 = vpop.f32.mrb[0].mxu0
        %v3149 = vadd.f32 %v2924, %v3148
        %v3150 = vpop.f32.mrb[0].mxu0
        %3151 = vmatprep.mubr.f32.mxu0 %v2305
        %3152 = vmatmul.mubr.f32.gmra.mrb[0].mxu0 %v2193
        %v3153 = vpop.f32.mrb[0].mxu0
        %v3154 = vadd.f32 %v2929, %v3153
        %v3155 = vpop.f32.mrb[0].mxu0
        %3156 = vmatprep.mubr.f32.mxu0 %v2307
        %3157 = vmatmul.mubr.f32.gmra.mrb[0].mxu0 %v2195
        %v3158 = vpop.f32.mrb[0].mxu0
        %v3159 = vadd.f32 %v2934, %v3158
        %v3160 = vpop.f32.mrb[0].mxu0
        %3161 = vmatprep.mubr.f32.mxu0 %v2310
        %3162 = vmatmul.mubr.f32.gmra.mrb[0].mxu0 %v2198
        %v3163 = vpop.f32.mrb[0].mxu0
        %v3164 = vadd.f32 %v2939, %v3163
        %v3165 = vpop.f32.mrb[0].mxu0
        %3166 = vmatprep.mubr.f32.mxu0 %v2312
        %3167 = vmatmul.mubr.f32.gmra.mrb[0].mxu0 %v2200
        %v3168 = vpop.f32.mrb[0].mxu0
        %v3169 = vadd.f32 %v2944, %v3168
        %v3170 = vpop.f32.mrb[0].mxu0
        %3171 = vmatprep.mubr.f32.mxu0 %v2315
        %3172 = vmatmul.mubr.f32.gmra.mrb[0].mxu0 %v2203
        %v3173 = vpop.f32.mrb[0].mxu0
        %v3174 = vadd.f32 %v2949, %v3173
        %v3175 = vpop.f32.mrb[0].mxu0
        %3176 = vmatprep.mubr.f32.mxu0 %v2317
        %3177 = vmatmul.mubr.f32.gmra.mrb[0].mxu0 %v2205
        %v3178 = vpop.f32.mrb[0].mxu0
        %v3179 = vadd.f32 %v2954, %v3178
        %v3180 = vpop.f32.mrb[0].mxu0
        %3181 = vmatprep.mubr.f32.mxu0 %v2320
        %3182 = vmatmul.mubr.f32.gmra.mrb[0].mxu0 %v2208
        %v3183 = vpop.f32.mrb[0].mxu0
        %v3184 = vadd.f32 %v2959, %v3183
        %v3185 = vpop.f32.mrb[0].mxu0
        %3186 = vmatprep.mubr.f32.mxu0 %v2322
        %3187 = vmatmul.mubr.f32.gmra.mrb[0].mxu0 %v2210
        %v3188 = vpop.f32.mrb[0].mxu0
        %v3189 = vadd.f32 %v2964, %v3188
        %v3190 = vpop.f32.mrb[0].mxu0
        %3191 = vmatprep.mubr.f32.mxu0 %v2325
        %3192 = vmatmul.mubr.f32.gmra.mrb[0].mxu0 %v2213
        %v3193 = vpop.f32.mrb[0].mxu0
        %v3194 = vadd.f32 %v2969, %v3193
        %v3195 = vpop.f32.mrb[0].mxu0
        %3196 = vmatprep.mubr.f32.mxu0 %v2327
        %3197 = vmatmul.mubr.f32.gmra.mrb[0].mxu0 %v2215
        %v3198 = vpop.f32.mrb[0].mxu0
        %v3199 = vadd.f32 %v2974, %v3198
        %v3200 = vpop.f32.mrb[0].mxu0
        %3201 = vmatprep.mubr.f32.mxu0 %v2330
        %3202 = vmatmul.mubr.f32.gmra.mrb[0].mxu0 %v2218
        %v3203 = vpop.f32.mrb[0].mxu0
        %v3204 = vadd.f32 %v2979, %v3203
        %v3205 = vpop.f32.mrb[0].mxu0
        %3206 = vmatprep.mubr.f32.mxu0 %v2332
        %3207 = vmatmul.mubr.f32.gmra.mrb[0].mxu0 %v2220
        %v3208 = vpop.f32.mrb[0].mxu0
        %v3209 = vadd.f32 %v2984, %v3208
        %v3210 = vpop.f32.mrb[0].mxu0
        %3211 = vmatprep.mubr.f32.mxu0 %v2335
        %3212 = vmatmul.mubr.f32.gmra.mrb[0].mxu0 %v2223
        %v3213 = vpop.f32.mrb[0].mxu0
        %v3214 = vadd.f32 %v2989, %v3213
        %v3215 = vpop.f32.mrb[0].mxu0
        %3216 = vmatprep.mubr.f32.mxu0 %v2337
        %3217 = vmatmul.mubr.f32.gmra.mrb[0].mxu0 %v2225
        %v3218 = vpop.f32.mrb[0].mxu0
        %v3219 = vadd.f32 %v2994, %v3218
        %v3220 = vpop.f32.mrb[0].mxu0
        %3221 = vmatprep.mubr.f32.mxu0 %v2382
        %3222 = vmatmul.mubr.f32.gmra.mrb[0].mxu0 %v2375
        %v3223 = vpop.f32.mrb[0].mxu0
        %v3224 = vadd.f32 %v2999, %v3223
        %v3225 = vpop.f32.mrb[0].mxu0
        %3226 = vmatprep.mubr.f32.mxu0 %v2384
        %3227 = vmatmul.mubr.f32.gmra.mrb[0].mxu0 %v2377
        %v3228 = vpop.f32.mrb[0].mxu0
        %v3229 = vadd.f32 %v3004, %v3228
        %v3230 = vpop.f32.mrb[0].mxu0
        %3231 = vdwg.mxu0
        %3232 = vmatprep.subr.mxu0 0.0
        %3233 = vmatpush1.msra.mxu0 %v2501
        %3234 = vmatprep.subr.mxu0 0.0
        %3235 = vmatpush1.msra.mxu0 %v2502
        %3236 = vmatprep.subr.mxu0 0.0
        %3237 = vmatpush1.msra.mxu0 %v2503
        %3238 = vmatprep.subr.mxu0 0.0
        %3239 = vmatpush1.msra.mxu0 %v2504
        %3240 = vmatprep.subr.mxu0 0.0
        %3241 = vmatpush1.msra.mxu0 %v2505
        %3242 = vmatprep.subr.mxu0 0.0
        %3243 = vmatpush1.msra.mxu0 %v2506
        %3244 = vmatprep.subr.mxu0 0.0
        %3245 = vmatpush1.msra.mxu0 %v2507
        %3246 = vmatprep.subr.mxu0 0.0
        %3247 = vmatpush1.msra.mxu0 %v2508
        %3248 = vmatprep.subr.mxu0 0.0
        %3249 = vmatpush1.msra.mxu0 %v2509
        %3250 = vmatprep.subr.mxu0 0.0
        %3251 = vmatpush1.msra.mxu0 %v2510
        %3252 = vmatprep.subr.mxu0 0.0
        %3253 = vmatpush1.msra.mxu0 %v2511
        %3254 = vmatprep.subr.mxu0 0.0
        %3255 = vmatpush1.msra.mxu0 %v2512
        %3256 = vmatprep.subr.mxu0 0.0
        %3257 = vmatpush1.msra.mxu0 %v2513
        %3258 = vmatprep.subr.mxu0 0.0
        %3259 = vmatpush1.msra.mxu0 %v2514
        %3260 = vmatprep.subr.mxu0 0.0
        %3261 = vmatpush1.msra.mxu0 %v2515
        %3262 = vmatprep.subr.mxu0 0.0
        %3263 = vmatpush1.msra.mxu0 %v2516
        %3264 = vmatprep.subr.mxu0 0.0
        %3265 = vmatpush1.msra.mxu0 %v2517
        %3266 = vmatprep.subr.mxu0 0.0
        %3267 = vmatpush1.msra.mxu0 %v2518
        %3268 = vmatprep.subr.mxu0 0.0
        %3269 = vmatpush1.msra.mxu0 %v2519
        %3270 = vmatprep.subr.mxu0 0.0
        %3271 = vmatpush1.msra.mxu0 %v2520
        %3272 = vmatprep.subr.mxu0 0.0
        %3273 = vmatpush1.msra.mxu0 %v2521
        %3274 = vmatprep.subr.mxu0 0.0
        %3275 = vmatpush1.msra.mxu0 %v2522
        %3276 = vmatprep.subr.mxu0 0.0
        %3277 = vmatpush1.msra.mxu0 %v2523
        %3278 = vmatprep.subr.mxu0 0.0
        %3279 = vmatpush1.msra.mxu0 %v2524
        %3280 = vmatprep.subr.mxu0 0.0
        %3281 = vmatpush1.msra.mxu0 %v2525
        %3282 = vmatprep.subr.mxu0 0.0
        %3283 = vmatpush1.msra.mxu0 %v2526
        %3284 = vmatprep.subr.mxu0 0.0
        %3285 = vmatpush1.msra.mxu0 %v2527
        %3286 = vmatprep.subr.mxu0 0.0
        %3287 = vmatpush1.msra.mxu0 %v2528
        %3288 = vmatprep.subr.mxu0 0.0
        %3289 = vmatpush1.msra.mxu0 %v2529
        %3290 = vmatprep.subr.mxu0 0.0
        %3291 = vmatpush1.msra.mxu0 %v2530
        %3292 = vmatprep.subr.mxu0 0.0
        %3293 = vmatpush1.msra.mxu0 %v2531
        %3294 = vmatprep.subr.mxu0 0.0
        %3295 = vmatpush1.msra.mxu0 %v2532
        %3296 = vmatprep.mubr.f32.mxu0 %v2158
        %3297 = vmatmul.mubr.f32.gmra.mrb[0].mxu0 %v2050
        %v3298 = vpop.f32.mrb[0].mxu0
        %v3299 = vadd.f32 %v3074, %v3298
        %v3300 = vpop.f32.mrb[0].mxu0
        %3301 = vmatprep.mubr.f32.mxu0 %v2160
        %3302 = vmatmul.mubr.f32.gmra.mrb[0].mxu0 %v2051
        %v3303 = vpop.f32.mrb[0].mxu0
        %v3304 = vadd.f32 %v3079, %v3303
        %v3305 = vpop.f32.mrb[0].mxu0
        %3306 = vmatprep.mubr.f32.mxu0 %v2163
        %3307 = vmatmul.mubr.f32.gmra.mrb[0].mxu0 %v2053
        %v3308 = vpop.f32.mrb[0].mxu0
        %v3309 = vadd.f32 %v3084, %v3308
        %v3310 = vpop.f32.mrb[0].mxu0
        %3311 = vmatprep.mubr.f32.mxu0 %v2165
        %3312 = vmatmul.mubr.f32.gmra.mrb[0].mxu0 %v2054
        %v3313 = vpop.f32.mrb[0].mxu0
        %v3314 = vadd.f32 %v3089, %v3313
        %v3315 = vpop.f32.mrb[0].mxu0
        %3316 = vmatprep.mubr.f32.mxu0 %v2168
        %3317 = vmatmul.mubr.f32.gmra.mrb[0].mxu0 %v2056
        %v3318 = vpop.f32.mrb[0].mxu0
        %v3319 = vadd.f32 %v3094, %v3318
        %v3320 = vpop.f32.mrb[0].mxu0
        %3321 = vmatprep.mubr.f32.mxu0 %v2170
        %3322 = vmatmul.mubr.f32.gmra.mrb[0].mxu0 %v2057
        %v3323 = vpop.f32.mrb[0].mxu0
        %v3324 = vadd.f32 %v3099, %v3323
        %v3325 = vpop.f32.mrb[0].mxu0
        %3326 = vmatprep.mubr.f32.mxu0 %v2173
        %3327 = vmatmul.mubr.f32.gmra.mrb[0].mxu0 %v2059
        %v3328 = vpop.f32.mrb[0].mxu0
        %v3329 = vadd.f32 %v3104, %v3328
        %v3330 = vpop.f32.mrb[0].mxu0
        %3331 = vmatprep.mubr.f32.mxu0 %v2175
        %3332 = vmatmul.mubr.f32.gmra.mrb[0].mxu0 %v2060
        %v3333 = vpop.f32.mrb[0].mxu0
        %v3334 = vadd.f32 %v3109, %v3333
        %v3335 = vpop.f32.mrb[0].mxu0
        %3336 = vmatprep.mubr.f32.mxu0 %v2178
        %3337 = vmatmul.mubr.f32.gmra.mrb[0].mxu0 %v2062
        %v3338 = vpop.f32.mrb[0].mxu0
        %v3339 = vadd.f32 %v3114, %v3338
        %v3340 = vpop.f32.mrb[0].mxu0
        %3341 = vmatprep.mubr.f32.mxu0 %v2180
        %3342 = vmatmul.mubr.f32.gmra.mrb[0].mxu0 %v2063
        %v3343 = vpop.f32.mrb[0].mxu0
        %v3344 = vadd.f32 %v3119, %v3343
        %v3345 = vpop.f32.mrb[0].mxu0
        %3346 = vmatprep.mubr.f32.mxu0 %v2183
        %3347 = vmatmul.mubr.f32.gmra.mrb[0].mxu0 %v2065
        %v3348 = vpop.f32.mrb[0].mxu0
        %v3349 = vadd.f32 %v3124, %v3348
        %v3350 = vpop.f32.mrb[0].mxu0
        %3351 = vmatprep.mubr.f32.mxu0 %v2185
        %3352 = vmatmul.mubr.f32.gmra.mrb[0].mxu0 %v2066
        %v3353 = vpop.f32.mrb[0].mxu0
        %v3354 = vadd.f32 %v3129, %v3353
        %v3355 = vpop.f32.mrb[0].mxu0
        %3356 = vmatprep.mubr.f32.mxu0 %v2188
        %3357 = vmatmul.mubr.f32.gmra.mrb[0].mxu0 %v2068
        %v3358 = vpop.f32.mrb[0].mxu0
        %v3359 = vadd.f32 %v3134, %v3358
        %v3360 = vpop.f32.mrb[0].mxu0
        %3361 = vmatprep.mubr.f32.mxu0 %v2190
        %3362 = vmatmul.mubr.f32.gmra.mrb[0].mxu0 %v2069
        %v3363 = vpop.f32.mrb[0].mxu0
        %v3364 = vadd.f32 %v3139, %v3363
        %v3365 = vpop.f32.mrb[0].mxu0
        %3366 = vmatprep.mubr.f32.mxu0 %v2193
        %3367 = vmatmul.mubr.f32.gmra.mrb[0].mxu0 %v2071
        %v3368 = vpop.f32.mrb[0].mxu0
        %v3369 = vadd.f32 %v3144, %v3368
        %v3370 = vpop.f32.mrb[0].mxu0
        %3371 = vmatprep.mubr.f32.mxu0 %v2195
        %3372 = vmatmul.mubr.f32.gmra.mrb[0].mxu0 %v2072
        %v3373 = vpop.f32.mrb[0].mxu0
        %v3374 = vadd.f32 %v3149, %v3373
        %v3375 = vpop.f32.mrb[0].mxu0
        %3376 = vmatprep.mubr.f32.mxu0 %v2198
        %3377 = vmatmul.mubr.f32.gmra.mrb[0].mxu0 %v2074
        %v3378 = vpop.f32.mrb[0].mxu0
        %v3379 = vadd.f32 %v3154, %v3378
        %v3380 = vpop.f32.mrb[0].mxu0
        %3381 = vmatprep.mubr.f32.mxu0 %v2200
        %3382 = vmatmul.mubr.f32.gmra.mrb[0].mxu0 %v2075
        %v3383 = vpop.f32.mrb[0].mxu0
        %v3384 = vadd.f32 %v3159, %v3383
        %v3385 = vpop.f32.mrb[0].mxu0
        %3386 = vmatprep.mubr.f32.mxu0 %v2203
        %3387 = vmatmul.mubr.f32.gmra.mrb[0].mxu0 %v2077
        %v3388 = vpop.f32.mrb[0].mxu0
        %v3389 = vadd.f32 %v3164, %v3388
        %v3390 = vpop.f32.mrb[0].mxu0
        %3391 = vmatprep.mubr.f32.mxu0 %v2205
        %3392 = vmatmul.mubr.f32.gmra.mrb[0].mxu0 %v2078
        %v3393 = vpop.f32.mrb[0].mxu0
        %v3394 = vadd.f32 %v3169, %v3393
        %v3395 = vpop.f32.mrb[0].mxu0
        %3396 = vmatprep.mubr.f32.mxu0 %v2208
        %3397 = vmatmul.mubr.f32.gmra.mrb[0].mxu0 %v2080
        %v3398 = vpop.f32.mrb[0].mxu0
        %v3399 = vadd.f32 %v3174, %v3398
        %v3400 = vpop.f32.mrb[0].mxu0
        %3401 = vmatprep.mubr.f32.mxu0 %v2210
        %3402 = vmatmul.mubr.f32.gmra.mrb[0].mxu0 %v2081
        %v3403 = vpop.f32.mrb[0].mxu0
        %v3404 = vadd.f32 %v3179, %v3403
        %v3405 = vpop.f32.mrb[0].mxu0
        %3406 = vmatprep.mubr.f32.mxu0 %v2213
        %3407 = vmatmul.mubr.f32.gmra.mrb[0].mxu0 %v2083
        %v3408 = vpop.f32.mrb[0].mxu0
        %v3409 = vadd.f32 %v3184, %v3408
        %v3410 = vpop.f32.mrb[0].mxu0
        %3411 = vmatprep.mubr.f32.mxu0 %v2215
        %3412 = vmatmul.mubr.f32.gmra.mrb[0].mxu0 %v2084
        %v3413 = vpop.f32.mrb[0].mxu0
        %v3414 = vadd.f32 %v3189, %v3413
        %v3415 = vpop.f32.mrb[0].mxu0
        %3416 = vmatprep.mubr.f32.mxu0 %v2218
        %3417 = vmatmul.mubr.f32.gmra.mrb[0].mxu0 %v2086
        %v3418 = vpop.f32.mrb[0].mxu0
        %v3419 = vadd.f32 %v3194, %v3418
        %v3420 = vpop.f32.mrb[0].mxu0
        %3421 = vmatprep.mubr.f32.mxu0 %v2220
        %3422 = vmatmul.mubr.f32.gmra.mrb[0].mxu0 %v2087
        %v3423 = vpop.f32.mrb[0].mxu0
        %v3424 = vadd.f32 %v3199, %v3423
        %v3425 = vpop.f32.mrb[0].mxu0
        %3426 = vmatprep.mubr.f32.mxu0 %v2223
        %3427 = vmatmul.mubr.f32.gmra.mrb[0].mxu0 %v2089
        %v3428 = vpop.f32.mrb[0].mxu0
        %v3429 = vadd.f32 %v3204, %v3428
        %v3430 = vpop.f32.mrb[0].mxu0
        %3431 = vmatprep.mubr.f32.mxu0 %v2225
        %3432 = vmatmul.mubr.f32.gmra.mrb[0].mxu0 %v2090
        %v3433 = vpop.f32.mrb[0].mxu0
        %v3434 = vadd.f32 %v3209, %v3433
        %v3435 = vpop.f32.mrb[0].mxu0
        %3436 = vmatprep.mubr.f32.mxu0 %v2375
        %3437 = vmatmul.mubr.f32.gmra.mrb[0].mxu0 %v2092
        %v3438 = vpop.f32.mrb[0].mxu0
        %v3439 = vadd.f32 %v3214, %v3438
        %v3440 = vpop.f32.mrb[0].mxu0
        %3441 = vmatprep.mubr.f32.mxu0 %v2377
        %3442 = vmatmul.mubr.f32.gmra.mrb[0].mxu0 %v2093
        %v3443 = vpop.f32.mrb[0].mxu0
        %v3444 = vadd.f32 %v3219, %v3443
        %v3445 = vpop.f32.mrb[0].mxu0
        %3446 = vmatprep.mubr.f32.mxu0 %v2392
        %3447 = vmatmul.mubr.f32.gmra.mrb[0].mxu0 %v2095
        %v3448 = vpop.f32.mrb[0].mxu0
        %v3449 = vadd.f32 %v3224, %v3448
        %v3450 = vpop.f32.mrb[0].mxu0
        %3451 = vmatprep.mubr.f32.mxu0 %v2394
        %3452 = vmatmul.mubr.f32.gmra.mrb[0].mxu0 %v2096
        %v3453 = vpop.f32.mrb[0].mxu0
        %v3454 = vadd.f32 %v3229, %v3453
        %v3455 = vpop.f32.mrb[0].mxu0
        %3456 = vdwg.mxu0
        %3457 = vmatprep.subr.mxu0 0.0
        %3458 = vmatpush1.msra.mxu0 %v2533
        %3459 = vmatprep.subr.mxu0 0.0
        %3460 = vmatpush1.msra.mxu0 %v2534
        %3461 = vmatprep.subr.mxu0 0.0
        %3462 = vmatpush1.msra.mxu0 %v2535
        %3463 = vmatprep.subr.mxu0 0.0
        %3464 = vmatpush1.msra.mxu0 %v2536
        %3465 = vmatprep.subr.mxu0 0.0
        %3466 = vmatpush1.msra.mxu0 %v2537
        %3467 = vmatprep.subr.mxu0 0.0
        %3468 = vmatpush1.msra.mxu0 %v2538
        %3469 = vmatprep.subr.mxu0 0.0
        %3470 = vmatpush1.msra.mxu0 %v2539
        %3471 = vmatprep.subr.mxu0 0.0
        %3472 = vmatpush1.msra.mxu0 %v2540
        %3473 = vmatprep.subr.mxu0 0.0
        %3474 = vmatpush1.msra.mxu0 %v2541
        %3475 = vmatprep.subr.mxu0 0.0
        %3476 = vmatpush1.msra.mxu0 %v2542
        %3477 = vmatprep.subr.mxu0 0.0
        %3478 = vmatpush1.msra.mxu0 %v2543
        %3479 = vmatprep.subr.mxu0 0.0
        %3480 = vmatpush1.msra.mxu0 %v2544
        %3481 = vmatprep.subr.mxu0 0.0
        %3482 = vmatpush1.msra.mxu0 %v2545
        %3483 = vmatprep.subr.mxu0 0.0
        %3484 = vmatpush1.msra.mxu0 %v2546
        %3485 = vmatprep.subr.mxu0 0.0
        %3486 = vmatpush1.msra.mxu0 %v2547
        %3487 = vmatprep.subr.mxu0 0.0
        %3488 = vmatpush1.msra.mxu0 %v2548
        %3489 = vmatprep.subr.mxu0 0.0
        %3490 = vmatpush1.msra.mxu0 0.0
        %3491 = vmatprep.subr.mxu0 0.0
        %3492 = vmatpush1.msra.mxu0 0.0
        %3493 = vmatprep.subr.mxu0 0.0
        %3494 = vmatpush1.msra.mxu0 0.0
        %3495 = vmatprep.subr.mxu0 0.0
        %3496 = vmatpush1.msra.mxu0 0.0
        %3497 = vmatprep.subr.mxu0 0.0
        %3498 = vmatpush1.msra.mxu0 0.0
        %3499 = vmatprep.subr.mxu0 0.0
        %3500 = vmatpush1.msra.mxu0 0.0
        %3501 = vmatprep.subr.mxu0 0.0
        %3502 = vmatpush1.msra.mxu0 0.0
        %3503 = vmatprep.subr.mxu0 0.0
        %3504 = vmatpush1.msra.mxu0 0.0
        %3505 = vmatprep.subr.mxu0 0.0
        %3506 = vmatpush1.msra.mxu0 0.0
        %3507 = vmatprep.subr.mxu0 0.0
        %3508 = vmatpush1.msra.mxu0 0.0
        %3509 = vmatprep.subr.mxu0 0.0
        %3510 = vmatpush1.msra.mxu0 0.0
        %3511 = vmatprep.subr.mxu0 0.0
        %3512 = vmatpush1.msra.mxu0 0.0
        %3513 = vmatprep.subr.mxu0 0.0
        %3514 = vmatpush1.msra.mxu0 0.0
        %3515 = vmatprep.subr.mxu0 0.0
        %3516 = vmatpush1.msra.mxu0 0.0
        %3517 = vmatprep.subr.mxu0 0.0
        %3518 = vmatpush1.msra.mxu0 0.0
        %3519 = vmatprep.subr.mxu0 0.0
        %3520 = vmatpush1.msra.mxu0 0.0
        %3521 = vmatprep.mubr.f32.mxu0 0.0
        %3522 = vmatmul.mubr.f32.gmra.mrb[0].mxu0 %v2270
        %v3523 = vpop.f32.mrb[0].mxu0
        %v3524 = vadd.f32 %v3299, %v3523
        %v3525 = vpop.f32.mrb[0].mxu0
        %3526 = vmatprep.mubr.f32.mxu0 0.0
        %3527 = vmatmul.mubr.f32.gmra.mrb[0].mxu0 %v2272
        %v3528 = vpop.f32.mrb[0].mxu0
        %v3529 = vadd.f32 %v3304, %v3528
        %v3530 = vpop.f32.mrb[0].mxu0
        %3531 = vmatprep.mubr.f32.mxu0 0.0
        %3532 = vmatmul.mubr.f32.gmra.mrb[0].mxu0 %v2275
        %v3533 = vpop.f32.mrb[0].mxu0
        %v3534 = vadd.f32 %v3309, %v3533
        %v3535 = vpop.f32.mrb[0].mxu0
        %3536 = vmatprep.mubr.f32.mxu0 0.0
        %3537 = vmatmul.mubr.f32.gmra.mrb[0].mxu0 %v2277
        %v3538 = vpop.f32.mrb[0].mxu0
        %v3539 = vadd.f32 %v3314, %v3538
        %v3540 = vpop.f32.mrb[0].mxu0
        %3541 = vmatprep.mubr.f32.mxu0 0.0
        %3542 = vmatmul.mubr.f32.gmra.mrb[0].mxu0 %v2280
        %v3543 = vpop.f32.mrb[0].mxu0
        %v3544 = vadd.f32 %v3319, %v3543
        %v3545 = vpop.f32.mrb[0].mxu0
        %3546 = vmatprep.mubr.f32.mxu0 0.0
        %3547 = vmatmul.mubr.f32.gmra.mrb[0].mxu0 %v2282
        %v3548 = vpop.f32.mrb[0].mxu0
        %v3549 = vadd.f32 %v3324, %v3548
        %v3550 = vpop.f32.mrb[0].mxu0
        %3551 = vmatprep.mubr.f32.mxu0 0.0
        %3552 = vmatmul.mubr.f32.gmra.mrb[0].mxu0 %v2285
        %v3553 = vpop.f32.mrb[0].mxu0
        %v3554 = vadd.f32 %v3329, %v3553
        %v3555 = vpop.f32.mrb[0].mxu0
        %3556 = vmatprep.mubr.f32.mxu0 0.0
        %3557 = vmatmul.mubr.f32.gmra.mrb[0].mxu0 %v2287
        %v3558 = vpop.f32.mrb[0].mxu0
        %v3559 = vadd.f32 %v3334, %v3558
        %v3560 = vpop.f32.mrb[0].mxu0
        %3561 = vmatprep.mubr.f32.mxu0 0.0
        %3562 = vmatmul.mubr.f32.gmra.mrb[0].mxu0 %v2290
        %v3563 = vpop.f32.mrb[0].mxu0
        %v3564 = vadd.f32 %v3339, %v3563
        %v3565 = vpop.f32.mrb[0].mxu0
        %3566 = vmatprep.mubr.f32.mxu0 0.0
        %3567 = vmatmul.mubr.f32.gmra.mrb[0].mxu0 %v2292
        %v3568 = vpop.f32.mrb[0].mxu0
        %v3569 = vadd.f32 %v3344, %v3568
        %v3570 = vpop.f32.mrb[0].mxu0
        %3571 = vmatprep.mubr.f32.mxu0 0.0
        %3572 = vmatmul.mubr.f32.gmra.mrb[0].mxu0 %v2295
        %v3573 = vpop.f32.mrb[0].mxu0
        %v3574 = vadd.f32 %v3349, %v3573
        %v3575 = vpop.f32.mrb[0].mxu0
        %3576 = vmatprep.mubr.f32.mxu0 0.0
        %3577 = vmatmul.mubr.f32.gmra.mrb[0].mxu0 %v2297
        %v3578 = vpop.f32.mrb[0].mxu0
        %v3579 = vadd.f32 %v3354, %v3578
        %v3580 = vpop.f32.mrb[0].mxu0
        %3581 = vmatprep.mubr.f32.mxu0 0.0
        %3582 = vmatmul.mubr.f32.gmra.mrb[0].mxu0 %v2300
        %v3583 = vpop.f32.mrb[0].mxu0
        %v3584 = vadd.f32 %v3359, %v3583
        %v3585 = vpop.f32.mrb[0].mxu0
        %3586 = vmatprep.mubr.f32.mxu0 0.0
        %3587 = vmatmul.mubr.f32.gmra.mrb[0].mxu0 %v2302
        %v3588 = vpop.f32.mrb[0].mxu0
        %v3589 = vadd.f32 %v3364, %v3588
        %v3590 = vpop.f32.mrb[0].mxu0
        %3591 = vmatprep.mubr.f32.mxu0 0.0
        %3592 = vmatmul.mubr.f32.gmra.mrb[0].mxu0 %v2305
        %v3593 = vpop.f32.mrb[0].mxu0
        %v3594 = vadd.f32 %v3369, %v3593
        %v3595 = vpop.f32.mrb[0].mxu0
        %3596 = vmatprep.mubr.f32.mxu0 0.0
        %3597 = vmatmul.mubr.f32.gmra.mrb[0].mxu0 %v2307
        %v3598 = vpop.f32.mrb[0].mxu0
        %v3599 = vadd.f32 %v3374, %v3598
        %v3600 = vpop.f32.mrb[0].mxu0
        %3601 = vmatprep.mubr.f32.mxu0 0.0
        %3602 = vmatmul.mubr.f32.gmra.mrb[0].mxu0 %v2310
        %v3603 = vpop.f32.mrb[0].mxu0
        %v3604 = vadd.f32 %v3379, %v3603
        %v3605 = vpop.f32.mrb[0].mxu0
        %3606 = vmatprep.mubr.f32.mxu0 0.0
        %3607 = vmatmul.mubr.f32.gmra.mrb[0].mxu0 %v2312
        %v3608 = vpop.f32.mrb[0].mxu0
        %v3609 = vadd.f32 %v3384, %v3608
        %v3610 = vpop.f32.mrb[0].mxu0
        %3611 = vmatprep.mubr.f32.mxu0 0.0
        %3612 = vmatmul.mubr.f32.gmra.mrb[0].mxu0 %v2315
        %v3613 = vpop.f32.mrb[0].mxu0
        %v3614 = vadd.f32 %v3389, %v3613
        %v3615 = vpop.f32.mrb[0].mxu0
        %3616 = vmatprep.mubr.f32.mxu0 0.0
        %3617 = vmatmul.mubr.f32.gmra.mrb[0].mxu0 %v2317
        %v3618 = vpop.f32.mrb[0].mxu0
        %v3619 = vadd.f32 %v3394, %v3618
        %v3620 = vpop.f32.mrb[0].mxu0
        %3621 = vmatprep.mubr.f32.mxu0 0.0
        %3622 = vmatmul.mubr.f32.gmra.mrb[0].mxu0 %v2320
        %v3623 = vpop.f32.mrb[0].mxu0
        %v3624 = vadd.f32 %v3399, %v3623
        %v3625 = vpop.f32.mrb[0].mxu0
        %3626 = vmatprep.mubr.f32.mxu0 0.0
        %3627 = vmatmul.mubr.f32.gmra.mrb[0].mxu0 %v2322
        %v3628 = vpop.f32.mrb[0].mxu0
        %v3629 = vadd.f32 %v3404, %v3628
        %v3630 = vpop.f32.mrb[0].mxu0
        %3631 = vmatprep.mubr.f32.mxu0 0.0
        %3632 = vmatmul.mubr.f32.gmra.mrb[0].mxu0 %v2325
        %v3633 = vpop.f32.mrb[0].mxu0
        %v3634 = vadd.f32 %v3409, %v3633
        %v3635 = vpop.f32.mrb[0].mxu0
        %3636 = vmatprep.mubr.f32.mxu0 0.0
        %3637 = vmatmul.mubr.f32.gmra.mrb[0].mxu0 %v2327
        %v3638 = vpop.f32.mrb[0].mxu0
        %v3639 = vadd.f32 %v3414, %v3638
        %v3640 = vpop.f32.mrb[0].mxu0
        %3641 = vmatprep.mubr.f32.mxu0 0.0
        %3642 = vmatmul.mubr.f32.gmra.mrb[0].mxu0 %v2330
        %v3643 = vpop.f32.mrb[0].mxu0
        %v3644 = vadd.f32 %v3419, %v3643
        %v3645 = vpop.f32.mrb[0].mxu0
        %3646 = vmatprep.mubr.f32.mxu0 0.0
        %3647 = vmatmul.mubr.f32.gmra.mrb[0].mxu0 %v2332
        %v3648 = vpop.f32.mrb[0].mxu0
        %v3649 = vadd.f32 %v3424, %v3648
        %v3650 = vpop.f32.mrb[0].mxu0
        %3651 = vmatprep.mubr.f32.mxu0 0.0
        %3652 = vmatmul.mubr.f32.gmra.mrb[0].mxu0 %v2335
        %v3653 = vpop.f32.mrb[0].mxu0
        %v3654 = vadd.f32 %v3429, %v3653
        %v3655 = vpop.f32.mrb[0].mxu0
        %3656 = vmatprep.mubr.f32.mxu0 0.0
        %3657 = vmatmul.mubr.f32.gmra.mrb[0].mxu0 %v2337
        %v3658 = vpop.f32.mrb[0].mxu0
        %v3659 = vadd.f32 %v3434, %v3658
        %v3660 = vpop.f32.mrb[0].mxu0
        %3661 = vmatprep.mubr.f32.mxu0 0.0
        %3662 = vmatmul.mubr.f32.gmra.mrb[0].mxu0 %v2382
        %v3663 = vpop.f32.mrb[0].mxu0
        %v3664 = vadd.f32 %v3439, %v3663
        %v3665 = vpop.f32.mrb[0].mxu0
        %3666 = vmatprep.mubr.f32.mxu0 0.0
        %3667 = vmatmul.mubr.f32.gmra.mrb[0].mxu0 %v2384
        %v3668 = vpop.f32.mrb[0].mxu0
        %v3669 = vadd.f32 %v3444, %v3668
        %v3670 = vpop.f32.mrb[0].mxu0
        %3671 = vmatprep.mubr.f32.mxu0 0.0
        %3672 = vmatmul.mubr.f32.gmra.mrb[0].mxu0 %v2399
        %v3673 = vpop.f32.mrb[0].mxu0
        %v3674 = vadd.f32 %v3449, %v3673
        %v3675 = vpop.f32.mrb[0].mxu0
        %3676 = vmatprep.mubr.f32.mxu0 0.0
        %3677 = vmatmul.mubr.f32.gmra.mrb[0].mxu0 %v2401
        %v3678 = vpop.f32.mrb[0].mxu0
        %v3679 = vadd.f32 %v3454, %v3678
        %v3680 = vpop.f32.mrb[0].mxu0
        %3681 = vdwg.mxu0
        %v3682 = vmax.f32 %v3524, 0.0
        %v3683 = vmax.f32 %v3529, 0.0
        %v3684 = vmax.f32 %v3534, 0.0
        %v3685 = vmax.f32 %v3539, 0.0
        %v3686 = vmax.f32 %v3544, 0.0
        %v3687 = vmax.f32 %v3549, 0.0
        %v3688 = vmax.f32 %v3554, 0.0
        %v3689 = vmax.f32 %v3559, 0.0
        %v3690 = vmax.f32 %v3564, 0.0
        %v3691 = vmax.f32 %v3569, 0.0
        %v3692 = vmax.f32 %v3574, 0.0
        %v3693 = vmax.f32 %v3579, 0.0
        %v3694 = vmax.f32 %v3584, 0.0
        %v3695 = vmax.f32 %v3589, 0.0
        %v3696 = vmax.f32 %v3594, 0.0
        %v3697 = vmax.f32 %v3599, 0.0
        %v3698 = vmax.f32 %v3604, 0.0
        %v3699 = vmax.f32 %v3609, 0.0
        %v3700 = vmax.f32 %v3614, 0.0
        %v3701 = vmax.f32 %v3619, 0.0
        %v3702 = vmax.f32 %v3624, 0.0
        %v3703 = vmax.f32 %v3629, 0.0
        %v3704 = vmax.f32 %v3634, 0.0
        %v3705 = vmax.f32 %v3639, 0.0
        %v3706 = vmax.f32 %v3644, 0.0
        %v3707 = vmax.f32 %v3649, 0.0
        %v3708 = vmax.f32 %v3654, 0.0
        %v3709 = vmax.f32 %v3659, 0.0
        %v3710 = vmax.f32 %v3664, 0.0
        %v3711 = vmax.f32 %v3669, 0.0
        %v3712 = vmax.f32 %v3674, 0.0
        %v3713 = vmax.f32 %v3679, 0.0
        %3714 = vst [vmem:[%s309 + $0x1] sm:$0xff] %v3682
        %3715 = vst [vmem:[%s309 + $0x9] sm:$0xff] %v3683
        %3716 = vst [vmem:[%s309 + $0x19] sm:$0xff] %v3684
        %3717 = vst [vmem:[%s309 + $0x21] sm:$0xff] %v3685
        %3718 = vst [vmem:[%s309 + $0x31] sm:$0xff] %v3686
        %3719 = vst [vmem:[%s309 + $0x39] sm:$0xff] %v3687
        %3720 = vst [vmem:[%s309 + $0x49] sm:$0xff] %v3688
        %3721 = vst [vmem:[%s309 + $0x51] sm:$0xff] %v3689
        %3722 = vst [vmem:[%s309 + $0x61] sm:$0xff] %v3690
        %3723 = vst [vmem:[%s309 + $0x69] sm:$0xff] %v3691
        %3724 = vst [vmem:[%s309 + $0x79] sm:$0xff] %v3692
        %3725 = vst [vmem:[%s309 + $0x81] sm:$0xff] %v3693
        %3726 = vst [vmem:[%s309 + $0x91] sm:$0xff] %v3694
        %3727 = vst [vmem:[%s309 + $0x99] sm:$0xff] %v3695
        %3728 = vst [vmem:[%s309 + $0xa9] sm:$0xff] %v3696
        %3729 = vst [vmem:[%s309 + $0xb1] sm:$0xff] %v3697
        %3730 = vst [vmem:[%s309 + $0xc1] sm:$0xff] %v3698
        %3731 = vst [vmem:[%s309 + $0xc9] sm:$0xff] %v3699
        %3732 = vst [vmem:[%s309 + $0xd9] sm:$0xff] %v3700
        %3733 = vst [vmem:[%s309 + $0xe1] sm:$0xff] %v3701
        %3734 = vst [vmem:[%s309 + $0xf1] sm:$0xff] %v3702
        %3735 = vst [vmem:[%s309 + $0xf9] sm:$0xff] %v3703
        %3736 = vst [vmem:[%s309 + $0x109] sm:$0xff] %v3704
        %3737 = vst [vmem:[%s309 + $0x111] sm:$0xff] %v3705
        %3738 = vst [vmem:[%s309 + $0x121] sm:$0xff] %v3706
        %3739 = vst [vmem:[%s309 + $0x129] sm:$0xff] %v3707
        %3740 = vst [vmem:[%s309 + $0x139] sm:$0xff] %v3708
        %3741 = vst [vmem:[%s309 + $0x141] sm:$0xff] %v3709
        %3742 = vst [vmem:[%s309 + $0x151] sm:$0xff] %v3710
        %3743 = vst [vmem:[%s309 + $0x159] sm:$0xff] %v3711
        %3744 = vst [vmem:[%s309 + $0x169] sm:$0xff] %v3712
        %3745 = vst [vmem:[%s309 + $0x171] sm:$0xff] %v3713
        %v3746 = vld [vmem:[#allocation2] sm:$0xff]
        %v3747 = vld [vmem:[#allocation2 + $0x8] sm:$0xff]
        %v3748 = vld [vmem:[#allocation2 + $0x10] sm:$0x3]
        %v3749 = vld [vmem:[#allocation2 + $0x18] sm:$0xff]
        %v3750 = vld [vmem:[#allocation2 + $0x20] sm:$0xff]
        %v3751 = vld [vmem:[#allocation2 + $0x28] sm:$0x3]
        %v3752 = vld [vmem:[#allocation2 + $0x30] sm:$0xff]
        %v3753 = vld [vmem:[#allocation2 + $0x38] sm:$0xff]
        %v3754 = vld [vmem:[#allocation2 + $0x40] sm:$0x3]
        %v3755 = vld [vmem:[#allocation2 + $0x48] sm:$0xff]
        %v3756 = vld [vmem:[#allocation2 + $0x50] sm:$0xff]
        %v3757 = vld [vmem:[#allocation2 + $0x58] sm:$0x3]
        %v3758 = vld [vmem:[#allocation2 + $0x60] sm:$0xff]
        %v3759 = vld [vmem:[#allocation2 + $0x68] sm:$0xff]
        %v3760 = vld [vmem:[#allocation2 + $0x70] sm:$0x3]
        %v3761 = vld [vmem:[#allocation2 + $0x78] sm:$0xff]
        %v3762 = vld [vmem:[#allocation2 + $0x80] sm:$0xff]
        %v3763 = vld [vmem:[#allocation2 + $0x88] sm:$0x3]
        %v3764 = vld [vmem:[#allocation2 + $0x90] sm:$0xff]
        %v3765 = vld [vmem:[#allocation2 + $0x98] sm:$0xff]
        %v3766 = vld [vmem:[#allocation2 + $0xa0] sm:$0x3]
        %v3767 = vld [vmem:[#allocation2 + $0xa8] sm:$0xff]
        %v3768 = vld [vmem:[#allocation2 + $0xb0] sm:$0xff]
        %v3769 = vld [vmem:[#allocation2 + $0xb8] sm:$0x3]
        %v3770 = vld [vmem:[#allocation2 + $0xc0] sm:$0xff]
        %v3771 = vld [vmem:[#allocation2 + $0xc8] sm:$0xff]
        %v3772 = vld [vmem:[#allocation2 + $0xd0] sm:$0x3]
        %v3773 = vld [vmem:[#allocation2 + $0xd8] sm:$0xff]
        %v3774 = vld [vmem:[#allocation2 + $0xe0] sm:$0xff]
        %v3775 = vld [vmem:[#allocation2 + $0xe8] sm:$0x3]
        %v3776 = vld [vmem:[#allocation2 + $0xf0] sm:$0xff]
        %v3777 = vld [vmem:[#allocation2 + $0xf8] sm:$0xff]
        %v3778 = vld [vmem:[#allocation2 + $0x100] sm:$0x3]
        %v3779 = vld [vmem:[#allocation2 + $0x108] sm:$0xff]
        %v3780 = vld [vmem:[#allocation2 + $0x110] sm:$0xff]
        %v3781 = vld [vmem:[#allocation2 + $0x118] sm:$0x3]
        %v3782 = vld [vmem:[#allocation2 + $0x120] sm:$0xff]
        %v3783 = vld [vmem:[#allocation2 + $0x128] sm:$0xff]
        %v3784 = vld [vmem:[#allocation2 + $0x130] sm:$0x3]
        %v3785 = vld [vmem:[#allocation2 + $0x138] sm:$0xff]
        %v3786 = vld [vmem:[#allocation2 + $0x140] sm:$0xff]
        %v3787 = vld [vmem:[#allocation2 + $0x148] sm:$0x3]
        %v3788 = vld [vmem:[#allocation2 + $0x150] sm:$0xff]
        %v3789 = vld [vmem:[#allocation2 + $0x158] sm:$0xff]
        %v3790 = vld [vmem:[#allocation2 + $0x160] sm:$0x3]
        %v3791 = vld [vmem:[#allocation2 + $0x168] sm:$0xff]
        %v3792 = vld [vmem:[#allocation2 + $0x170] sm:$0xff]
        %v3793 = vld [vmem:[#allocation2 + $0x178] sm:$0x3]
        %v3794 = vld [vmem:[#allocation2 + $0x180] sm:$0xff]
        %v3795 = vld [vmem:[#allocation2 + $0x188] sm:$0xff]
        %v3796 = vld [vmem:[#allocation2 + $0x190] sm:$0x3]
        %v3797 = vld [vmem:[#allocation2 + $0x198] sm:$0xff]
        %v3798 = vld [vmem:[#allocation2 + $0x1a0] sm:$0xff]
        %v3799 = vld [vmem:[#allocation2 + $0x1a8] sm:$0x3]
        %v3848 = vrot.slane %v3746, 1
        %v3849 = vrot.slane %v3747, 1
        %v3850 = vsel %vm444, %v3848, %v3849
        %v3851 = vrot.slane %v3748, 1
        %v3852 = vsel %vm444, %v3849, %v3851
        %v3853 = vrot.slane %v3749, 1
        %v3854 = vrot.slane %v3750, 1
        %v3855 = vsel %vm444, %v3853, %v3854
        %v3856 = vrot.slane %v3751, 1
        %v3857 = vsel %vm444, %v3854, %v3856
        %v3858 = vrot.slane %v3752, 1
        %v3859 = vrot.slane %v3753, 1
        %v3860 = vsel %vm444, %v3858, %v3859
        %v3861 = vrot.slane %v3754, 1
        %v3862 = vsel %vm444, %v3859, %v3861
        %v3863 = vrot.slane %v3755, 1
        %v3864 = vrot.slane %v3756, 1
        %v3865 = vsel %vm444, %v3863, %v3864
        %v3866 = vrot.slane %v3757, 1
        %v3867 = vsel %vm444, %v3864, %v3866
        %v3868 = vrot.slane %v3758, 1
        %v3869 = vrot.slane %v3759, 1
        %v3870 = vsel %vm444, %v3868, %v3869
        %v3871 = vrot.slane %v3760, 1
        %v3872 = vsel %vm444, %v3869, %v3871
        %v3873 = vrot.slane %v3761, 1
        %v3874 = vrot.slane %v3762, 1
        %v3875 = vsel %vm444, %v3873, %v3874
        %v3876 = vrot.slane %v3763, 1
        %v3877 = vsel %vm444, %v3874, %v3876
        %v3878 = vrot.slane %v3764, 1
        %v3879 = vrot.slane %v3765, 1
        %v3880 = vsel %vm444, %v3878, %v3879
        %v3881 = vrot.slane %v3766, 1
        %v3882 = vsel %vm444, %v3879, %v3881
        %v3883 = vrot.slane %v3767, 1
        %v3884 = vrot.slane %v3768, 1
        %v3885 = vsel %vm444, %v3883, %v3884
        %v3886 = vrot.slane %v3769, 1
        %v3887 = vsel %vm444, %v3884, %v3886
        %v3888 = vrot.slane %v3770, 1
        %v3889 = vrot.slane %v3771, 1
        %v3890 = vsel %vm444, %v3888, %v3889
        %v3891 = vrot.slane %v3772, 1
        %v3892 = vsel %vm444, %v3889, %v3891
        %v3893 = vrot.slane %v3773, 1
        %v3894 = vrot.slane %v3774, 1
        %v3895 = vsel %vm444, %v3893, %v3894
        %v3896 = vrot.slane %v3775, 1
        %v3897 = vsel %vm444, %v3894, %v3896
        %v3898 = vrot.slane %v3776, 1
        %v3899 = vrot.slane %v3777, 1
        %v3900 = vsel %vm444, %v3898, %v3899
        %v3901 = vrot.slane %v3778, 1
        %v3902 = vsel %vm444, %v3899, %v3901
        %v3903 = vrot.slane %v3779, 1
        %v3904 = vrot.slane %v3780, 1
        %v3905 = vsel %vm444, %v3903, %v3904
        %v3906 = vrot.slane %v3781, 1
        %v3907 = vsel %vm444, %v3904, %v3906
        %v3908 = vrot.slane %v3782, 1
        %v3909 = vrot.slane %v3783, 1
        %v3910 = vsel %vm444, %v3908, %v3909
        %v3911 = vrot.slane %v3784, 1
        %v3912 = vsel %vm444, %v3909, %v3911
        %v3913 = vrot.slane %v3785, 1
        %v3914 = vrot.slane %v3786, 1
        %v3915 = vsel %vm444, %v3913, %v3914
        %v3916 = vrot.slane %v3787, 1
        %v3917 = vsel %vm444, %v3914, %v3916
        %v3918 = vrot.slane %v3788, 1
        %v3919 = vrot.slane %v3789, 1
        %v3920 = vsel %vm444, %v3918, %v3919
        %v3921 = vrot.slane %v3790, 1
        %v3922 = vsel %vm444, %v3919, %v3921
        %v3923 = vrot.slane %v3791, 1
        %v3924 = vrot.slane %v3792, 1
        %v3925 = vsel %vm444, %v3923, %v3924
        %v3926 = vrot.slane %v3793, 1
        %v3927 = vsel %vm444, %v3924, %v3926
        %v3960 = vrot.slane %v3746, 2
        %v3961 = vrot.slane %v3747, 2
        %v3962 = vsel %vm557, %v3960, %v3961
        %v3963 = vrot.slane %v3748, 2
        %v3964 = vsel %vm557, %v3961, %v3963
        %v3965 = vrot.slane %v3749, 2
        %v3966 = vrot.slane %v3750, 2
        %v3967 = vsel %vm557, %v3965, %v3966
        %v3968 = vrot.slane %v3751, 2
        %v3969 = vsel %vm557, %v3966, %v3968
        %v3970 = vrot.slane %v3752, 2
        %v3971 = vrot.slane %v3753, 2
        %v3972 = vsel %vm557, %v3970, %v3971
        %v3973 = vrot.slane %v3754, 2
        %v3974 = vsel %vm557, %v3971, %v3973
        %v3975 = vrot.slane %v3755, 2
        %v3976 = vrot.slane %v3756, 2
        %v3977 = vsel %vm557, %v3975, %v3976
        %v3978 = vrot.slane %v3757, 2
        %v3979 = vsel %vm557, %v3976, %v3978
        %v3980 = vrot.slane %v3758, 2
        %v3981 = vrot.slane %v3759, 2
        %v3982 = vsel %vm557, %v3980, %v3981
        %v3983 = vrot.slane %v3760, 2
        %v3984 = vsel %vm557, %v3981, %v3983
        %v3985 = vrot.slane %v3761, 2
        %v3986 = vrot.slane %v3762, 2
        %v3987 = vsel %vm557, %v3985, %v3986
        %v3988 = vrot.slane %v3763, 2
        %v3989 = vsel %vm557, %v3986, %v3988
        %v3990 = vrot.slane %v3764, 2
        %v3991 = vrot.slane %v3765, 2
        %v3992 = vsel %vm557, %v3990, %v3991
        %v3993 = vrot.slane %v3766, 2
        %v3994 = vsel %vm557, %v3991, %v3993
        %v3995 = vrot.slane %v3767, 2
        %v3996 = vrot.slane %v3768, 2
        %v3997 = vsel %vm557, %v3995, %v3996
        %v3998 = vrot.slane %v3769, 2
        %v3999 = vsel %vm557, %v3996, %v3998
        %v4000 = vrot.slane %v3770, 2
        %v4001 = vrot.slane %v3771, 2
        %v4002 = vsel %vm557, %v4000, %v4001
        %v4003 = vrot.slane %v3772, 2
        %v4004 = vsel %vm557, %v4001, %v4003
        %v4005 = vrot.slane %v3773, 2
        %v4006 = vrot.slane %v3774, 2
        %v4007 = vsel %vm557, %v4005, %v4006
        %v4008 = vrot.slane %v3775, 2
        %v4009 = vsel %vm557, %v4006, %v4008
        %v4010 = vrot.slane %v3776, 2
        %v4011 = vrot.slane %v3777, 2
        %v4012 = vsel %vm557, %v4010, %v4011
        %v4013 = vrot.slane %v3778, 2
        %v4014 = vsel %vm557, %v4011, %v4013
        %v4015 = vrot.slane %v3779, 2
        %v4016 = vrot.slane %v3780, 2
        %v4017 = vsel %vm557, %v4015, %v4016
        %v4018 = vrot.slane %v3781, 2
        %v4019 = vsel %vm557, %v4016, %v4018
        %v4020 = vrot.slane %v3782, 2
        %v4021 = vrot.slane %v3783, 2
        %v4022 = vsel %vm557, %v4020, %v4021
        %v4023 = vrot.slane %v3784, 2
        %v4024 = vsel %vm557, %v4021, %v4023
        %v4025 = vrot.slane %v3785, 2
        %v4026 = vrot.slane %v3786, 2
        %v4027 = vsel %vm557, %v4025, %v4026
        %v4028 = vrot.slane %v3787, 2
        %v4029 = vsel %vm557, %v4026, %v4028
        %v4030 = vrot.slane %v3788, 2
        %v4031 = vrot.slane %v3789, 2
        %v4032 = vsel %vm557, %v4030, %v4031
        %v4033 = vrot.slane %v3790, 2
        %v4034 = vsel %vm557, %v4031, %v4033
        %v4035 = vrot.slane %v3791, 2
        %v4036 = vrot.slane %v3792, 2
        %v4037 = vsel %vm557, %v4035, %v4036
        %v4038 = vrot.slane %v3793, 2
        %v4039 = vsel %vm557, %v4036, %v4038
        %v4075 = vrot.slane %v3794, 1
        %v4076 = vrot.slane %v3795, 1
        %v4077 = vsel %vm444, %v4075, %v4076
        %v4078 = vrot.slane %v3796, 1
        %v4079 = vsel %vm444, %v4076, %v4078
        %v4082 = vrot.slane %v3794, 2
        %v4083 = vrot.slane %v3795, 2
        %v4084 = vsel %vm557, %v4082, %v4083
        %v4085 = vrot.slane %v3796, 2
        %v4086 = vsel %vm557, %v4083, %v4085
        %v4092 = vrot.slane %v3797, 1
        %v4093 = vrot.slane %v3798, 1
        %v4094 = vsel %vm444, %v4092, %v4093
        %v4095 = vrot.slane %v3799, 1
        %v4096 = vsel %vm444, %v4093, %v4095
        %v4099 = vrot.slane %v3797, 2
        %v4100 = vrot.slane %v3798, 2
        %v4101 = vsel %vm557, %v4099, %v4100
        %v4102 = vrot.slane %v3799, 2
        %v4103 = vsel %vm557, %v4100, %v4102
        %s4106 = scalar_lea.vmem %s1, 2304
        %v4107 = vld [vmem:[%s4106] sm:$0xff]
        %v4108 = vld [vmem:[%s4106 + $0x8] sm:$0xff]
        %v4109 = vld [vmem:[%s4106 + $0x10] sm:$0xff]
        %v4110 = vld [vmem:[%s4106 + $0x18] sm:$0xff]
        %v4111 = vld [vmem:[%s4106 + $0x20] sm:$0xff]
        %v4112 = vld [vmem:[%s4106 + $0x28] sm:$0xff]
        %v4113 = vld [vmem:[%s4106 + $0x30] sm:$0xff]
        %v4114 = vld [vmem:[%s4106 + $0x38] sm:$0xff]
        %v4115 = vld [vmem:[%s4106 + $0x40] sm:$0xff]
        %v4116 = vld [vmem:[%s4106 + $0x48] sm:$0xff]
        %v4117 = vld [vmem:[%s4106 + $0x50] sm:$0xff]
        %v4118 = vld [vmem:[%s4106 + $0x58] sm:$0xff]
        %v4119 = vld [vmem:[%s4106 + $0x60] sm:$0xff]
        %v4120 = vld [vmem:[%s4106 + $0x68] sm:$0xff]
        %v4121 = vld [vmem:[%s4106 + $0x70] sm:$0xff]
        %v4122 = vld [vmem:[%s4106 + $0x78] sm:$0xff]
        %v4123 = vld [vmem:[%s4106 + $0x80] sm:$0xff]
        %v4124 = vld [vmem:[%s4106 + $0x88] sm:$0xff]
        %v4125 = vld [vmem:[%s4106 + $0x90] sm:$0xff]
        %v4126 = vld [vmem:[%s4106 + $0x98] sm:$0xff]
        %v4127 = vld [vmem:[%s4106 + $0xa0] sm:$0xff]
        %v4128 = vld [vmem:[%s4106 + $0xa8] sm:$0xff]
        %v4129 = vld [vmem:[%s4106 + $0xb0] sm:$0xff]
        %v4130 = vld [vmem:[%s4106 + $0xb8] sm:$0xff]
        %v4131 = vld [vmem:[%s4106 + $0xc0] sm:$0xff]
        %v4132 = vld [vmem:[%s4106 + $0xc8] sm:$0xff]
        %v4133 = vld [vmem:[%s4106 + $0xd0] sm:$0xff]
        %v4134 = vld [vmem:[%s4106 + $0xd8] sm:$0xff]
        %v4135 = vld [vmem:[%s4106 + $0xe0] sm:$0xff]
        %v4136 = vld [vmem:[%s4106 + $0xe8] sm:$0xff]
        %v4137 = vld [vmem:[%s4106 + $0xf0] sm:$0xff]
        %v4138 = vld [vmem:[%s4106 + $0xf8] sm:$0xff]
        %v4139 = vld [vmem:[%s4106 + $0x100] sm:$0xff]
        %v4140 = vld [vmem:[%s4106 + $0x108] sm:$0xff]
        %v4141 = vld [vmem:[%s4106 + $0x110] sm:$0xff]
        %v4142 = vld [vmem:[%s4106 + $0x118] sm:$0xff]
        %v4143 = vld [vmem:[%s4106 + $0x120] sm:$0xff]
        %v4144 = vld [vmem:[%s4106 + $0x128] sm:$0xff]
        %v4145 = vld [vmem:[%s4106 + $0x130] sm:$0xff]
        %v4146 = vld [vmem:[%s4106 + $0x138] sm:$0xff]
        %v4147 = vld [vmem:[%s4106 + $0x140] sm:$0xff]
        %v4148 = vld [vmem:[%s4106 + $0x148] sm:$0xff]
        %v4149 = vld [vmem:[%s4106 + $0x150] sm:$0xff]
        %v4150 = vld [vmem:[%s4106 + $0x158] sm:$0xff]
        %v4151 = vld [vmem:[%s4106 + $0x160] sm:$0xff]
        %v4152 = vld [vmem:[%s4106 + $0x168] sm:$0xff]
        %v4153 = vld [vmem:[%s4106 + $0x170] sm:$0xff]
        %v4154 = vld [vmem:[%s4106 + $0x178] sm:$0xff]
        %v4155 = vld [vmem:[%s4106 + $0x180] sm:$0xff]
        %v4156 = vld [vmem:[%s4106 + $0x188] sm:$0xff]
        %v4157 = vld [vmem:[%s4106 + $0x190] sm:$0xff]
        %v4158 = vld [vmem:[%s4106 + $0x198] sm:$0xff]
        %v4159 = vld [vmem:[%s4106 + $0x1a0] sm:$0xff]
        %v4160 = vld [vmem:[%s4106 + $0x1a8] sm:$0xff]
        %v4161 = vld [vmem:[%s4106 + $0x1b0] sm:$0xff]
        %v4162 = vld [vmem:[%s4106 + $0x1b8] sm:$0xff]
        %v4163 = vld [vmem:[%s4106 + $0x1c0] sm:$0xff]
        %v4164 = vld [vmem:[%s4106 + $0x1c8] sm:$0xff]
        %v4165 = vld [vmem:[%s4106 + $0x1d0] sm:$0xff]
        %v4166 = vld [vmem:[%s4106 + $0x1d8] sm:$0xff]
        %v4167 = vld [vmem:[%s4106 + $0x1e0] sm:$0xff]
        %v4168 = vld [vmem:[%s4106 + $0x1e8] sm:$0xff]
        %v4169 = vld [vmem:[%s4106 + $0x1f0] sm:$0xff]
        %v4170 = vld [vmem:[%s4106 + $0x1f8] sm:$0xff]
        %v4171 = vld [vmem:[%s4106 + $0x200] sm:$0xff]
        %v4172 = vld [vmem:[%s4106 + $0x208] sm:$0xff]
        %v4173 = vld [vmem:[%s4106 + $0x210] sm:$0xff]
        %v4174 = vld [vmem:[%s4106 + $0x218] sm:$0xff]
        %v4175 = vld [vmem:[%s4106 + $0x220] sm:$0xff]
        %v4176 = vld [vmem:[%s4106 + $0x228] sm:$0xff]
        %v4177 = vld [vmem:[%s4106 + $0x230] sm:$0xff]
        %v4178 = vld [vmem:[%s4106 + $0x238] sm:$0xff]
        %v4179 = vld [vmem:[%s4106 + $0x240] sm:$0xff]
        %v4180 = vld [vmem:[%s4106 + $0x248] sm:$0xff]
        %v4181 = vld [vmem:[%s4106 + $0x250] sm:$0xff]
        %v4182 = vld [vmem:[%s4106 + $0x258] sm:$0xff]
        %v4183 = vld [vmem:[%s4106 + $0x260] sm:$0xff]
        %v4184 = vld [vmem:[%s4106 + $0x268] sm:$0xff]
        %v4185 = vld [vmem:[%s4106 + $0x270] sm:$0xff]
        %v4186 = vld [vmem:[%s4106 + $0x278] sm:$0xff]
        %v4187 = vld [vmem:[%s4106 + $0x280] sm:$0xff]
        %v4188 = vld [vmem:[%s4106 + $0x288] sm:$0xff]
        %v4189 = vld [vmem:[%s4106 + $0x290] sm:$0xff]
        %v4190 = vld [vmem:[%s4106 + $0x298] sm:$0xff]
        %v4191 = vld [vmem:[%s4106 + $0x2a0] sm:$0xff]
        %v4192 = vld [vmem:[%s4106 + $0x2a8] sm:$0xff]
        %v4193 = vld [vmem:[%s4106 + $0x2b0] sm:$0xff]
        %v4194 = vld [vmem:[%s4106 + $0x2b8] sm:$0xff]
        %v4195 = vld [vmem:[%s4106 + $0x2c0] sm:$0xff]
        %v4196 = vld [vmem:[%s4106 + $0x2c8] sm:$0xff]
        %v4197 = vld [vmem:[%s4106 + $0x2d0] sm:$0xff]
        %v4198 = vld [vmem:[%s4106 + $0x2d8] sm:$0xff]
        %v4199 = vld [vmem:[%s4106 + $0x2e0] sm:$0xff]
        %v4200 = vld [vmem:[%s4106 + $0x2e8] sm:$0xff]
        %v4201 = vld [vmem:[%s4106 + $0x2f0] sm:$0xff]
        %v4202 = vld [vmem:[%s4106 + $0x2f8] sm:$0xff]
        %v4203 = vld [vmem:[%s4106 + $0x300] sm:$0xff]
        %v4204 = vld [vmem:[%s4106 + $0x308] sm:$0xff]
        %v4205 = vld [vmem:[%s4106 + $0x310] sm:$0xff]
        %v4206 = vld [vmem:[%s4106 + $0x318] sm:$0xff]
        %v4207 = vld [vmem:[%s4106 + $0x320] sm:$0xff]
        %v4208 = vld [vmem:[%s4106 + $0x328] sm:$0xff]
        %v4209 = vld [vmem:[%s4106 + $0x330] sm:$0xff]
        %v4210 = vld [vmem:[%s4106 + $0x338] sm:$0xff]
        %v4211 = vld [vmem:[%s4106 + $0x340] sm:$0xff]
        %v4212 = vld [vmem:[%s4106 + $0x348] sm:$0xff]
        %v4213 = vld [vmem:[%s4106 + $0x350] sm:$0xff]
        %v4214 = vld [vmem:[%s4106 + $0x358] sm:$0xff]
        %v4215 = vld [vmem:[%s4106 + $0x360] sm:$0xff]
        %v4216 = vld [vmem:[%s4106 + $0x368] sm:$0xff]
        %v4217 = vld [vmem:[%s4106 + $0x370] sm:$0xff]
        %v4218 = vld [vmem:[%s4106 + $0x378] sm:$0xff]
        %v4219 = vld [vmem:[%s4106 + $0x380] sm:$0xff]
        %v4220 = vld [vmem:[%s4106 + $0x388] sm:$0xff]
        %v4221 = vld [vmem:[%s4106 + $0x390] sm:$0xff]
        %v4222 = vld [vmem:[%s4106 + $0x398] sm:$0xff]
        %v4223 = vld [vmem:[%s4106 + $0x3a0] sm:$0xff]
        %v4224 = vld [vmem:[%s4106 + $0x3a8] sm:$0xff]
        %v4225 = vld [vmem:[%s4106 + $0x3b0] sm:$0xff]
        %v4226 = vld [vmem:[%s4106 + $0x3b8] sm:$0xff]
        %v4227 = vld [vmem:[%s4106 + $0x3c0] sm:$0xff]
        %v4228 = vld [vmem:[%s4106 + $0x3c8] sm:$0xff]
        %v4229 = vld [vmem:[%s4106 + $0x3d0] sm:$0xff]
        %v4230 = vld [vmem:[%s4106 + $0x3d8] sm:$0xff]
        %v4231 = vld [vmem:[%s4106 + $0x3e0] sm:$0xff]
        %v4232 = vld [vmem:[%s4106 + $0x3e8] sm:$0xff]
        %v4233 = vld [vmem:[%s4106 + $0x3f0] sm:$0xff]
        %v4234 = vld [vmem:[%s4106 + $0x3f8] sm:$0xff]
        %v4235 = vld [vmem:[%s4106 + $0x400] sm:$0xff]
        %v4236 = vld [vmem:[%s4106 + $0x408] sm:$0xff]
        %v4237 = vld [vmem:[%s4106 + $0x410] sm:$0xff]
        %v4238 = vld [vmem:[%s4106 + $0x418] sm:$0xff]
        %v4239 = vld [vmem:[%s4106 + $0x420] sm:$0xff]
        %v4240 = vld [vmem:[%s4106 + $0x428] sm:$0xff]
        %v4241 = vld [vmem:[%s4106 + $0x430] sm:$0xff]
        %v4242 = vld [vmem:[%s4106 + $0x438] sm:$0xff]
        %v4243 = vld [vmem:[%s4106 + $0x440] sm:$0xff]
        %v4244 = vld [vmem:[%s4106 + $0x448] sm:$0xff]
        %v4245 = vld [vmem:[%s4106 + $0x450] sm:$0xff]
        %v4246 = vld [vmem:[%s4106 + $0x458] sm:$0xff]
        %v4247 = vld [vmem:[%s4106 + $0x460] sm:$0xff]
        %v4248 = vld [vmem:[%s4106 + $0x468] sm:$0xff]
        %v4249 = vld [vmem:[%s4106 + $0x470] sm:$0xff]
        %v4250 = vld [vmem:[%s4106 + $0x478] sm:$0xff]
        %s4251 = scalar_lea.vmem %s2, 2
        %v4252 = vld [vmem:[%s4251] sm:$0x1]
        %v4254 = vlaneseq
        %v4255 = vshrl.u32 %v4254, 7
        %v4256 = vsub.s32 0, %v4255
        %v4257 = vrot.slane %v4252, %v4256
        %4259 = vmatprep.subr.mxu0 0.0
        %4260 = vmatpush1.msra.mxu0 %v4107
        %4261 = vmatprep.subr.mxu0 0.0
        %4262 = vmatpush1.msra.mxu0 %v4108
        %4263 = vmatprep.subr.mxu0 0.0
        %4264 = vmatpush1.msra.mxu0 %v4109
        %4265 = vmatprep.subr.mxu0 0.0
        %4266 = vmatpush1.msra.mxu0 %v4110
        %4267 = vmatprep.subr.mxu0 0.0
        %4268 = vmatpush1.msra.mxu0 %v4111
        %4269 = vmatprep.subr.mxu0 0.0
        %4270 = vmatpush1.msra.mxu0 %v4112
        %4271 = vmatprep.subr.mxu0 0.0
        %4272 = vmatpush1.msra.mxu0 %v4113
        %4273 = vmatprep.subr.mxu0 0.0
        %4274 = vmatpush1.msra.mxu0 %v4114
        %4275 = vmatprep.subr.mxu0 0.0
        %4276 = vmatpush1.msra.mxu0 %v4115
        %4277 = vmatprep.subr.mxu0 0.0
        %4278 = vmatpush1.msra.mxu0 %v4116
        %4279 = vmatprep.subr.mxu0 0.0
        %4280 = vmatpush1.msra.mxu0 %v4117
        %4281 = vmatprep.subr.mxu0 0.0
        %4282 = vmatpush1.msra.mxu0 %v4118
        %4283 = vmatprep.subr.mxu0 0.0
        %4284 = vmatpush1.msra.mxu0 %v4119
        %4285 = vmatprep.subr.mxu0 0.0
        %4286 = vmatpush1.msra.mxu0 %v4120
        %4287 = vmatprep.subr.mxu0 0.0
        %4288 = vmatpush1.msra.mxu0 %v4121
        %4289 = vmatprep.subr.mxu0 0.0
        %4290 = vmatpush1.msra.mxu0 %v4122
        %4291 = vmatprep.subr.mxu0 0.0
        %4292 = vmatpush1.msra.mxu0 %v4123
        %4293 = vmatprep.subr.mxu0 0.0
        %4294 = vmatpush1.msra.mxu0 %v4124
        %4295 = vmatprep.subr.mxu0 0.0
        %4296 = vmatpush1.msra.mxu0 %v4125
        %4297 = vmatprep.subr.mxu0 0.0
        %4298 = vmatpush1.msra.mxu0 %v4126
        %4299 = vmatprep.subr.mxu0 0.0
        %4300 = vmatpush1.msra.mxu0 %v4127
        %4301 = vmatprep.subr.mxu0 0.0
        %4302 = vmatpush1.msra.mxu0 %v4128
        %4303 = vmatprep.subr.mxu0 0.0
        %4304 = vmatpush1.msra.mxu0 %v4129
        %4305 = vmatprep.subr.mxu0 0.0
        %4306 = vmatpush1.msra.mxu0 %v4130
        %4307 = vmatprep.subr.mxu0 0.0
        %4308 = vmatpush1.msra.mxu0 %v4131
        %4309 = vmatprep.subr.mxu0 0.0
        %4310 = vmatpush1.msra.mxu0 %v4132
        %4311 = vmatprep.subr.mxu0 0.0
        %4312 = vmatpush1.msra.mxu0 %v4133
        %4313 = vmatprep.subr.mxu0 0.0
        %4314 = vmatpush1.msra.mxu0 %v4134
        %4315 = vmatprep.subr.mxu0 0.0
        %4316 = vmatpush1.msra.mxu0 %v4135
        %4317 = vmatprep.subr.mxu0 0.0
        %4318 = vmatpush1.msra.mxu0 %v4136
        %4319 = vmatprep.subr.mxu0 0.0
        %4320 = vmatpush1.msra.mxu0 %v4137
        %4321 = vmatprep.subr.mxu0 0.0
        %4322 = vmatpush1.msra.mxu0 %v4138
        %4323 = vmatprep.mubr.f32.mxu0 %v3850
        %4324 = vmatmul.mubr.f32.gmra.mrb[0].mxu0 %v3746
        %v4325 = vpop.f32.mrb[0].mxu0
        %v4326 = vadd.f32 %v4257, %v4325
        %v4327 = vpop.f32.mrb[0].mxu0
        %4328 = vmatprep.mubr.f32.mxu0 %v3852
        %4329 = vmatmul.mubr.f32.gmra.mrb[0].mxu0 %v3747
        %v4330 = vpop.f32.mrb[0].mxu0
        %v4331 = vadd.f32 %v4257, %v4330
        %v4332 = vpop.f32.mrb[0].mxu0
        %4333 = vmatprep.mubr.f32.mxu0 %v3855
        %4334 = vmatmul.mubr.f32.gmra.mrb[0].mxu0 %v3749
        %v4335 = vpop.f32.mrb[0].mxu0
        %v4336 = vadd.f32 %v4257, %v4335
        %v4337 = vpop.f32.mrb[0].mxu0
        %4338 = vmatprep.mubr.f32.mxu0 %v3857
        %4339 = vmatmul.mubr.f32.gmra.mrb[0].mxu0 %v3750
        %v4340 = vpop.f32.mrb[0].mxu0
        %v4341 = vadd.f32 %v4257, %v4340
        %v4342 = vpop.f32.mrb[0].mxu0
        %4343 = vmatprep.mubr.f32.mxu0 %v3860
        %4344 = vmatmul.mubr.f32.gmra.mrb[0].mxu0 %v3752
        %v4345 = vpop.f32.mrb[0].mxu0
        %v4346 = vadd.f32 %v4257, %v4345
        %v4347 = vpop.f32.mrb[0].mxu0
        %4348 = vmatprep.mubr.f32.mxu0 %v3862
        %4349 = vmatmul.mubr.f32.gmra.mrb[0].mxu0 %v3753
        %v4350 = vpop.f32.mrb[0].mxu0
        %v4351 = vadd.f32 %v4257, %v4350
        %v4352 = vpop.f32.mrb[0].mxu0
        %4353 = vmatprep.mubr.f32.mxu0 %v3865
        %4354 = vmatmul.mubr.f32.gmra.mrb[0].mxu0 %v3755
        %v4355 = vpop.f32.mrb[0].mxu0
        %v4356 = vadd.f32 %v4257, %v4355
        %v4357 = vpop.f32.mrb[0].mxu0
        %4358 = vmatprep.mubr.f32.mxu0 %v3867
        %4359 = vmatmul.mubr.f32.gmra.mrb[0].mxu0 %v3756
        %v4360 = vpop.f32.mrb[0].mxu0
        %v4361 = vadd.f32 %v4257, %v4360
        %v4362 = vpop.f32.mrb[0].mxu0
        %4363 = vmatprep.mubr.f32.mxu0 %v3870
        %4364 = vmatmul.mubr.f32.gmra.mrb[0].mxu0 %v3758
        %v4365 = vpop.f32.mrb[0].mxu0
        %v4366 = vadd.f32 %v4257, %v4365
        %v4367 = vpop.f32.mrb[0].mxu0
        %4368 = vmatprep.mubr.f32.mxu0 %v3872
        %4369 = vmatmul.mubr.f32.gmra.mrb[0].mxu0 %v3759
        %v4370 = vpop.f32.mrb[0].mxu0
        %v4371 = vadd.f32 %v4257, %v4370
        %v4372 = vpop.f32.mrb[0].mxu0
        %4373 = vmatprep.mubr.f32.mxu0 %v3875
        %4374 = vmatmul.mubr.f32.gmra.mrb[0].mxu0 %v3761
        %v4375 = vpop.f32.mrb[0].mxu0
        %v4376 = vadd.f32 %v4257, %v4375
        %v4377 = vpop.f32.mrb[0].mxu0
        %4378 = vmatprep.mubr.f32.mxu0 %v3877
        %4379 = vmatmul.mubr.f32.gmra.mrb[0].mxu0 %v3762
        %v4380 = vpop.f32.mrb[0].mxu0
        %v4381 = vadd.f32 %v4257, %v4380
        %v4382 = vpop.f32.mrb[0].mxu0
        %4383 = vmatprep.mubr.f32.mxu0 %v3880
        %4384 = vmatmul.mubr.f32.gmra.mrb[0].mxu0 %v3764
        %v4385 = vpop.f32.mrb[0].mxu0
        %v4386 = vadd.f32 %v4257, %v4385
        %v4387 = vpop.f32.mrb[0].mxu0
        %4388 = vmatprep.mubr.f32.mxu0 %v3882
        %4389 = vmatmul.mubr.f32.gmra.mrb[0].mxu0 %v3765
        %v4390 = vpop.f32.mrb[0].mxu0
        %v4391 = vadd.f32 %v4257, %v4390
        %v4392 = vpop.f32.mrb[0].mxu0
        %4393 = vmatprep.mubr.f32.mxu0 %v3885
        %4394 = vmatmul.mubr.f32.gmra.mrb[0].mxu0 %v3767
        %v4395 = vpop.f32.mrb[0].mxu0
        %v4396 = vadd.f32 %v4257, %v4395
        %v4397 = vpop.f32.mrb[0].mxu0
        %4398 = vmatprep.mubr.f32.mxu0 %v3887
        %4399 = vmatmul.mubr.f32.gmra.mrb[0].mxu0 %v3768
        %v4400 = vpop.f32.mrb[0].mxu0
        %v4401 = vadd.f32 %v4257, %v4400
        %v4402 = vpop.f32.mrb[0].mxu0
        %4403 = vmatprep.mubr.f32.mxu0 %v3890
        %4404 = vmatmul.mubr.f32.gmra.mrb[0].mxu0 %v3770
        %v4405 = vpop.f32.mrb[0].mxu0
        %v4406 = vadd.f32 %v4257, %v4405
        %v4407 = vpop.f32.mrb[0].mxu0
        %4408 = vmatprep.mubr.f32.mxu0 %v3892
        %4409 = vmatmul.mubr.f32.gmra.mrb[0].mxu0 %v3771
        %v4410 = vpop.f32.mrb[0].mxu0
        %v4411 = vadd.f32 %v4257, %v4410
        %v4412 = vpop.f32.mrb[0].mxu0
        %4413 = vmatprep.mubr.f32.mxu0 %v3895
        %4414 = vmatmul.mubr.f32.gmra.mrb[0].mxu0 %v3773
        %v4415 = vpop.f32.mrb[0].mxu0
        %v4416 = vadd.f32 %v4257, %v4415
        %v4417 = vpop.f32.mrb[0].mxu0
        %4418 = vmatprep.mubr.f32.mxu0 %v3897
        %4419 = vmatmul.mubr.f32.gmra.mrb[0].mxu0 %v3774
        %v4420 = vpop.f32.mrb[0].mxu0
        %v4421 = vadd.f32 %v4257, %v4420
        %v4422 = vpop.f32.mrb[0].mxu0
        %4423 = vmatprep.mubr.f32.mxu0 %v3900
        %4424 = vmatmul.mubr.f32.gmra.mrb[0].mxu0 %v3776
        %v4425 = vpop.f32.mrb[0].mxu0
        %v4426 = vadd.f32 %v4257, %v4425
        %v4427 = vpop.f32.mrb[0].mxu0
        %4428 = vmatprep.mubr.f32.mxu0 %v3902
        %4429 = vmatmul.mubr.f32.gmra.mrb[0].mxu0 %v3777
        %v4430 = vpop.f32.mrb[0].mxu0
        %v4431 = vadd.f32 %v4257, %v4430
        %v4432 = vpop.f32.mrb[0].mxu0
        %4433 = vmatprep.mubr.f32.mxu0 %v3905
        %4434 = vmatmul.mubr.f32.gmra.mrb[0].mxu0 %v3779
        %v4435 = vpop.f32.mrb[0].mxu0
        %v4436 = vadd.f32 %v4257, %v4435
        %v4437 = vpop.f32.mrb[0].mxu0
        %4438 = vmatprep.mubr.f32.mxu0 %v3907
        %4439 = vmatmul.mubr.f32.gmra.mrb[0].mxu0 %v3780
        %v4440 = vpop.f32.mrb[0].mxu0
        %v4441 = vadd.f32 %v4257, %v4440
        %v4442 = vpop.f32.mrb[0].mxu0
        %4443 = vmatprep.mubr.f32.mxu0 %v3910
        %4444 = vmatmul.mubr.f32.gmra.mrb[0].mxu0 %v3782
        %v4445 = vpop.f32.mrb[0].mxu0
        %v4446 = vadd.f32 %v4257, %v4445
        %v4447 = vpop.f32.mrb[0].mxu0
        %4448 = vmatprep.mubr.f32.mxu0 %v3912
        %4449 = vmatmul.mubr.f32.gmra.mrb[0].mxu0 %v3783
        %v4450 = vpop.f32.mrb[0].mxu0
        %v4451 = vadd.f32 %v4257, %v4450
        %v4452 = vpop.f32.mrb[0].mxu0
        %4453 = vmatprep.mubr.f32.mxu0 %v3915
        %4454 = vmatmul.mubr.f32.gmra.mrb[0].mxu0 %v3785
        %v4455 = vpop.f32.mrb[0].mxu0
        %v4456 = vadd.f32 %v4257, %v4455
        %v4457 = vpop.f32.mrb[0].mxu0
        %4458 = vmatprep.mubr.f32.mxu0 %v3917
        %4459 = vmatmul.mubr.f32.gmra.mrb[0].mxu0 %v3786
        %v4460 = vpop.f32.mrb[0].mxu0
        %v4461 = vadd.f32 %v4257, %v4460
        %v4462 = vpop.f32.mrb[0].mxu0
        %4463 = vmatprep.mubr.f32.mxu0 %v3920
        %4464 = vmatmul.mubr.f32.gmra.mrb[0].mxu0 %v3788
        %v4465 = vpop.f32.mrb[0].mxu0
        %v4466 = vadd.f32 %v4257, %v4465
        %v4467 = vpop.f32.mrb[0].mxu0
        %4468 = vmatprep.mubr.f32.mxu0 %v3922
        %4469 = vmatmul.mubr.f32.gmra.mrb[0].mxu0 %v3789
        %v4470 = vpop.f32.mrb[0].mxu0
        %v4471 = vadd.f32 %v4257, %v4470
        %v4472 = vpop.f32.mrb[0].mxu0
        %4473 = vmatprep.mubr.f32.mxu0 %v3925
        %4474 = vmatmul.mubr.f32.gmra.mrb[0].mxu0 %v3791
        %v4475 = vpop.f32.mrb[0].mxu0
        %v4476 = vadd.f32 %v4257, %v4475
        %v4477 = vpop.f32.mrb[0].mxu0
        %4478 = vmatprep.mubr.f32.mxu0 %v3927
        %4479 = vmatmul.mubr.f32.gmra.mrb[0].mxu0 %v3792
        %v4480 = vpop.f32.mrb[0].mxu0
        %v4481 = vadd.f32 %v4257, %v4480
        %v4482 = vpop.f32.mrb[0].mxu0
        %4483 = vdwg.mxu0
        %4484 = vmatprep.subr.mxu0 0.0
        %4485 = vmatpush1.msra.mxu0 %v4139
        %4486 = vmatprep.subr.mxu0 0.0
        %4487 = vmatpush1.msra.mxu0 %v4140
        %4488 = vmatprep.subr.mxu0 0.0
        %4489 = vmatpush1.msra.mxu0 %v4141
        %4490 = vmatprep.subr.mxu0 0.0
        %4491 = vmatpush1.msra.mxu0 %v4142
        %4492 = vmatprep.subr.mxu0 0.0
        %4493 = vmatpush1.msra.mxu0 %v4143
        %4494 = vmatprep.subr.mxu0 0.0
        %4495 = vmatpush1.msra.mxu0 %v4144
        %4496 = vmatprep.subr.mxu0 0.0
        %4497 = vmatpush1.msra.mxu0 %v4145
        %4498 = vmatprep.subr.mxu0 0.0
        %4499 = vmatpush1.msra.mxu0 %v4146
        %4500 = vmatprep.subr.mxu0 0.0
        %4501 = vmatpush1.msra.mxu0 %v4147
        %4502 = vmatprep.subr.mxu0 0.0
        %4503 = vmatpush1.msra.mxu0 %v4148
        %4504 = vmatprep.subr.mxu0 0.0
        %4505 = vmatpush1.msra.mxu0 %v4149
        %4506 = vmatprep.subr.mxu0 0.0
        %4507 = vmatpush1.msra.mxu0 %v4150
        %4508 = vmatprep.subr.mxu0 0.0
        %4509 = vmatpush1.msra.mxu0 %v4151
        %4510 = vmatprep.subr.mxu0 0.0
        %4511 = vmatpush1.msra.mxu0 %v4152
        %4512 = vmatprep.subr.mxu0 0.0
        %4513 = vmatpush1.msra.mxu0 %v4153
        %4514 = vmatprep.subr.mxu0 0.0
        %4515 = vmatpush1.msra.mxu0 %v4154
        %4516 = vmatprep.subr.mxu0 0.0
        %4517 = vmatpush1.msra.mxu0 %v4155
        %4518 = vmatprep.subr.mxu0 0.0
        %4519 = vmatpush1.msra.mxu0 %v4156
        %4520 = vmatprep.subr.mxu0 0.0
        %4521 = vmatpush1.msra.mxu0 %v4157
        %4522 = vmatprep.subr.mxu0 0.0
        %4523 = vmatpush1.msra.mxu0 %v4158
        %4524 = vmatprep.subr.mxu0 0.0
        %4525 = vmatpush1.msra.mxu0 %v4159
        %4526 = vmatprep.subr.mxu0 0.0
        %4527 = vmatpush1.msra.mxu0 %v4160
        %4528 = vmatprep.subr.mxu0 0.0
        %4529 = vmatpush1.msra.mxu0 %v4161
        %4530 = vmatprep.subr.mxu0 0.0
        %4531 = vmatpush1.msra.mxu0 %v4162
        %4532 = vmatprep.subr.mxu0 0.0
        %4533 = vmatpush1.msra.mxu0 %v4163
        %4534 = vmatprep.subr.mxu0 0.0
        %4535 = vmatpush1.msra.mxu0 %v4164
        %4536 = vmatprep.subr.mxu0 0.0
        %4537 = vmatpush1.msra.mxu0 %v4165
        %4538 = vmatprep.subr.mxu0 0.0
        %4539 = vmatpush1.msra.mxu0 %v4166
        %4540 = vmatprep.subr.mxu0 0.0
        %4541 = vmatpush1.msra.mxu0 %v4167
        %4542 = vmatprep.subr.mxu0 0.0
        %4543 = vmatpush1.msra.mxu0 %v4168
        %4544 = vmatprep.subr.mxu0 0.0
        %4545 = vmatpush1.msra.mxu0 %v4169
        %4546 = vmatprep.subr.mxu0 0.0
        %4547 = vmatpush1.msra.mxu0 %v4170
        %4548 = vmatprep.mubr.f32.mxu0 %v3749
        %4549 = vmatmul.mubr.f32.gmra.mrb[0].mxu0 %v3962
        %v4550 = vpop.f32.mrb[0].mxu0
        %v4551 = vadd.f32 %v4326, %v4550
        %v4552 = vpop.f32.mrb[0].mxu0
        %4553 = vmatprep.mubr.f32.mxu0 %v3750
        %4554 = vmatmul.mubr.f32.gmra.mrb[0].mxu0 %v3964
        %v4555 = vpop.f32.mrb[0].mxu0
        %v4556 = vadd.f32 %v4331, %v4555
        %v4557 = vpop.f32.mrb[0].mxu0
        %4558 = vmatprep.mubr.f32.mxu0 %v3752
        %4559 = vmatmul.mubr.f32.gmra.mrb[0].mxu0 %v3967
        %v4560 = vpop.f32.mrb[0].mxu0
        %v4561 = vadd.f32 %v4336, %v4560
        %v4562 = vpop.f32.mrb[0].mxu0
        %4563 = vmatprep.mubr.f32.mxu0 %v3753
        %4564 = vmatmul.mubr.f32.gmra.mrb[0].mxu0 %v3969
        %v4565 = vpop.f32.mrb[0].mxu0
        %v4566 = vadd.f32 %v4341, %v4565
        %v4567 = vpop.f32.mrb[0].mxu0
        %4568 = vmatprep.mubr.f32.mxu0 %v3755
        %4569 = vmatmul.mubr.f32.gmra.mrb[0].mxu0 %v3972
        %v4570 = vpop.f32.mrb[0].mxu0
        %v4571 = vadd.f32 %v4346, %v4570
        %v4572 = vpop.f32.mrb[0].mxu0
        %4573 = vmatprep.mubr.f32.mxu0 %v3756
        %4574 = vmatmul.mubr.f32.gmra.mrb[0].mxu0 %v3974
        %v4575 = vpop.f32.mrb[0].mxu0
        %v4576 = vadd.f32 %v4351, %v4575
        %v4577 = vpop.f32.mrb[0].mxu0
        %4578 = vmatprep.mubr.f32.mxu0 %v3758
        %4579 = vmatmul.mubr.f32.gmra.mrb[0].mxu0 %v3977
        %v4580 = vpop.f32.mrb[0].mxu0
        %v4581 = vadd.f32 %v4356, %v4580
        %v4582 = vpop.f32.mrb[0].mxu0
        %4583 = vmatprep.mubr.f32.mxu0 %v3759
        %4584 = vmatmul.mubr.f32.gmra.mrb[0].mxu0 %v3979
        %v4585 = vpop.f32.mrb[0].mxu0
        %v4586 = vadd.f32 %v4361, %v4585
        %v4587 = vpop.f32.mrb[0].mxu0
        %4588 = vmatprep.mubr.f32.mxu0 %v3761
        %4589 = vmatmul.mubr.f32.gmra.mrb[0].mxu0 %v3982
        %v4590 = vpop.f32.mrb[0].mxu0
        %v4591 = vadd.f32 %v4366, %v4590
        %v4592 = vpop.f32.mrb[0].mxu0
        %4593 = vmatprep.mubr.f32.mxu0 %v3762
        %4594 = vmatmul.mubr.f32.gmra.mrb[0].mxu0 %v3984
        %v4595 = vpop.f32.mrb[0].mxu0
        %v4596 = vadd.f32 %v4371, %v4595
        %v4597 = vpop.f32.mrb[0].mxu0
        %4598 = vmatprep.mubr.f32.mxu0 %v3764
        %4599 = vmatmul.mubr.f32.gmra.mrb[0].mxu0 %v3987
        %v4600 = vpop.f32.mrb[0].mxu0
        %v4601 = vadd.f32 %v4376, %v4600
        %v4602 = vpop.f32.mrb[0].mxu0
        %4603 = vmatprep.mubr.f32.mxu0 %v3765
        %4604 = vmatmul.mubr.f32.gmra.mrb[0].mxu0 %v3989
        %v4605 = vpop.f32.mrb[0].mxu0
        %v4606 = vadd.f32 %v4381, %v4605
        %v4607 = vpop.f32.mrb[0].mxu0
        %4608 = vmatprep.mubr.f32.mxu0 %v3767
        %4609 = vmatmul.mubr.f32.gmra.mrb[0].mxu0 %v3992
        %v4610 = vpop.f32.mrb[0].mxu0
        %v4611 = vadd.f32 %v4386, %v4610
        %v4612 = vpop.f32.mrb[0].mxu0
        %4613 = vmatprep.mubr.f32.mxu0 %v3768
        %4614 = vmatmul.mubr.f32.gmra.mrb[0].mxu0 %v3994
        %v4615 = vpop.f32.mrb[0].mxu0
        %v4616 = vadd.f32 %v4391, %v4615
        %v4617 = vpop.f32.mrb[0].mxu0
        %4618 = vmatprep.mubr.f32.mxu0 %v3770
        %4619 = vmatmul.mubr.f32.gmra.mrb[0].mxu0 %v3997
        %v4620 = vpop.f32.mrb[0].mxu0
        %v4621 = vadd.f32 %v4396, %v4620
        %v4622 = vpop.f32.mrb[0].mxu0
        %4623 = vmatprep.mubr.f32.mxu0 %v3771
        %4624 = vmatmul.mubr.f32.gmra.mrb[0].mxu0 %v3999
        %v4625 = vpop.f32.mrb[0].mxu0
        %v4626 = vadd.f32 %v4401, %v4625
        %v4627 = vpop.f32.mrb[0].mxu0
        %4628 = vmatprep.mubr.f32.mxu0 %v3773
        %4629 = vmatmul.mubr.f32.gmra.mrb[0].mxu0 %v4002
        %v4630 = vpop.f32.mrb[0].mxu0
        %v4631 = vadd.f32 %v4406, %v4630
        %v4632 = vpop.f32.mrb[0].mxu0
        %4633 = vmatprep.mubr.f32.mxu0 %v3774
        %4634 = vmatmul.mubr.f32.gmra.mrb[0].mxu0 %v4004
        %v4635 = vpop.f32.mrb[0].mxu0
        %v4636 = vadd.f32 %v4411, %v4635
        %v4637 = vpop.f32.mrb[0].mxu0
        %4638 = vmatprep.mubr.f32.mxu0 %v3776
        %4639 = vmatmul.mubr.f32.gmra.mrb[0].mxu0 %v4007
        %v4640 = vpop.f32.mrb[0].mxu0
        %v4641 = vadd.f32 %v4416, %v4640
        %v4642 = vpop.f32.mrb[0].mxu0
        %4643 = vmatprep.mubr.f32.mxu0 %v3777
        %4644 = vmatmul.mubr.f32.gmra.mrb[0].mxu0 %v4009
        %v4645 = vpop.f32.mrb[0].mxu0
        %v4646 = vadd.f32 %v4421, %v4645
        %v4647 = vpop.f32.mrb[0].mxu0
        %4648 = vmatprep.mubr.f32.mxu0 %v3779
        %4649 = vmatmul.mubr.f32.gmra.mrb[0].mxu0 %v4012
        %v4650 = vpop.f32.mrb[0].mxu0
        %v4651 = vadd.f32 %v4426, %v4650
        %v4652 = vpop.f32.mrb[0].mxu0
        %4653 = vmatprep.mubr.f32.mxu0 %v3780
        %4654 = vmatmul.mubr.f32.gmra.mrb[0].mxu0 %v4014
        %v4655 = vpop.f32.mrb[0].mxu0
        %v4656 = vadd.f32 %v4431, %v4655
        %v4657 = vpop.f32.mrb[0].mxu0
        %4658 = vmatprep.mubr.f32.mxu0 %v3782
        %4659 = vmatmul.mubr.f32.gmra.mrb[0].mxu0 %v4017
        %v4660 = vpop.f32.mrb[0].mxu0
        %v4661 = vadd.f32 %v4436, %v4660
        %v4662 = vpop.f32.mrb[0].mxu0
        %4663 = vmatprep.mubr.f32.mxu0 %v3783
        %4664 = vmatmul.mubr.f32.gmra.mrb[0].mxu0 %v4019
        %v4665 = vpop.f32.mrb[0].mxu0
        %v4666 = vadd.f32 %v4441, %v4665
        %v4667 = vpop.f32.mrb[0].mxu0
        %4668 = vmatprep.mubr.f32.mxu0 %v3785
        %4669 = vmatmul.mubr.f32.gmra.mrb[0].mxu0 %v4022
        %v4670 = vpop.f32.mrb[0].mxu0
        %v4671 = vadd.f32 %v4446, %v4670
        %v4672 = vpop.f32.mrb[0].mxu0
        %4673 = vmatprep.mubr.f32.mxu0 %v3786
        %4674 = vmatmul.mubr.f32.gmra.mrb[0].mxu0 %v4024
        %v4675 = vpop.f32.mrb[0].mxu0
        %v4676 = vadd.f32 %v4451, %v4675
        %v4677 = vpop.f32.mrb[0].mxu0
        %4678 = vmatprep.mubr.f32.mxu0 %v3788
        %4679 = vmatmul.mubr.f32.gmra.mrb[0].mxu0 %v4027
        %v4680 = vpop.f32.mrb[0].mxu0
        %v4681 = vadd.f32 %v4456, %v4680
        %v4682 = vpop.f32.mrb[0].mxu0
        %4683 = vmatprep.mubr.f32.mxu0 %v3789
        %4684 = vmatmul.mubr.f32.gmra.mrb[0].mxu0 %v4029
        %v4685 = vpop.f32.mrb[0].mxu0
        %v4686 = vadd.f32 %v4461, %v4685
        %v4687 = vpop.f32.mrb[0].mxu0
        %4688 = vmatprep.mubr.f32.mxu0 %v3791
        %4689 = vmatmul.mubr.f32.gmra.mrb[0].mxu0 %v4032
        %v4690 = vpop.f32.mrb[0].mxu0
        %v4691 = vadd.f32 %v4466, %v4690
        %v4692 = vpop.f32.mrb[0].mxu0
        %4693 = vmatprep.mubr.f32.mxu0 %v3792
        %4694 = vmatmul.mubr.f32.gmra.mrb[0].mxu0 %v4034
        %v4695 = vpop.f32.mrb[0].mxu0
        %v4696 = vadd.f32 %v4471, %v4695
        %v4697 = vpop.f32.mrb[0].mxu0
        %4698 = vmatprep.mubr.f32.mxu0 %v3794
        %4699 = vmatmul.mubr.f32.gmra.mrb[0].mxu0 %v4037
        %v4700 = vpop.f32.mrb[0].mxu0
        %v4701 = vadd.f32 %v4476, %v4700
        %v4702 = vpop.f32.mrb[0].mxu0
        %4703 = vmatprep.mubr.f32.mxu0 %v3795
        %4704 = vmatmul.mubr.f32.gmra.mrb[0].mxu0 %v4039
        %v4705 = vpop.f32.mrb[0].mxu0
        %v4706 = vadd.f32 %v4481, %v4705
        %v4707 = vpop.f32.mrb[0].mxu0
        %4708 = vdwg.mxu0
        %4709 = vmatprep.subr.mxu0 0.0
        %4710 = vmatpush1.msra.mxu0 %v4171
        %4711 = vmatprep.subr.mxu0 0.0
        %4712 = vmatpush1.msra.mxu0 %v4172
        %4713 = vmatprep.subr.mxu0 0.0
        %4714 = vmatpush1.msra.mxu0 %v4173
        %4715 = vmatprep.subr.mxu0 0.0
        %4716 = vmatpush1.msra.mxu0 %v4174
        %4717 = vmatprep.subr.mxu0 0.0
        %4718 = vmatpush1.msra.mxu0 %v4175
        %4719 = vmatprep.subr.mxu0 0.0
        %4720 = vmatpush1.msra.mxu0 %v4176
        %4721 = vmatprep.subr.mxu0 0.0
        %4722 = vmatpush1.msra.mxu0 %v4177
        %4723 = vmatprep.subr.mxu0 0.0
        %4724 = vmatpush1.msra.mxu0 %v4178
        %4725 = vmatprep.subr.mxu0 0.0
        %4726 = vmatpush1.msra.mxu0 %v4179
        %4727 = vmatprep.subr.mxu0 0.0
        %4728 = vmatpush1.msra.mxu0 %v4180
        %4729 = vmatprep.subr.mxu0 0.0
        %4730 = vmatpush1.msra.mxu0 %v4181
        %4731 = vmatprep.subr.mxu0 0.0
        %4732 = vmatpush1.msra.mxu0 %v4182
        %4733 = vmatprep.subr.mxu0 0.0
        %4734 = vmatpush1.msra.mxu0 %v4183
        %4735 = vmatprep.subr.mxu0 0.0
        %4736 = vmatpush1.msra.mxu0 %v4184
        %4737 = vmatprep.subr.mxu0 0.0
        %4738 = vmatpush1.msra.mxu0 %v4185
        %4739 = vmatprep.subr.mxu0 0.0
        %4740 = vmatpush1.msra.mxu0 %v4186
        %4741 = vmatprep.subr.mxu0 0.0
        %4742 = vmatpush1.msra.mxu0 %v4187
        %4743 = vmatprep.subr.mxu0 0.0
        %4744 = vmatpush1.msra.mxu0 %v4188
        %4745 = vmatprep.subr.mxu0 0.0
        %4746 = vmatpush1.msra.mxu0 %v4189
        %4747 = vmatprep.subr.mxu0 0.0
        %4748 = vmatpush1.msra.mxu0 %v4190
        %4749 = vmatprep.subr.mxu0 0.0
        %4750 = vmatpush1.msra.mxu0 %v4191
        %4751 = vmatprep.subr.mxu0 0.0
        %4752 = vmatpush1.msra.mxu0 %v4192
        %4753 = vmatprep.subr.mxu0 0.0
        %4754 = vmatpush1.msra.mxu0 %v4193
        %4755 = vmatprep.subr.mxu0 0.0
        %4756 = vmatpush1.msra.mxu0 %v4194
        %4757 = vmatprep.subr.mxu0 0.0
        %4758 = vmatpush1.msra.mxu0 %v4195
        %4759 = vmatprep.subr.mxu0 0.0
        %4760 = vmatpush1.msra.mxu0 %v4196
        %4761 = vmatprep.subr.mxu0 0.0
        %4762 = vmatpush1.msra.mxu0 %v4197
        %4763 = vmatprep.subr.mxu0 0.0
        %4764 = vmatpush1.msra.mxu0 %v4198
        %4765 = vmatprep.subr.mxu0 0.0
        %4766 = vmatpush1.msra.mxu0 %v4199
        %4767 = vmatprep.subr.mxu0 0.0
        %4768 = vmatpush1.msra.mxu0 %v4200
        %4769 = vmatprep.subr.mxu0 0.0
        %4770 = vmatpush1.msra.mxu0 %v4201
        %4771 = vmatprep.subr.mxu0 0.0
        %4772 = vmatpush1.msra.mxu0 %v4202
        %4773 = vmatprep.mubr.f32.mxu0 %v3967
        %4774 = vmatmul.mubr.f32.gmra.mrb[0].mxu0 %v3855
        %v4775 = vpop.f32.mrb[0].mxu0
        %v4776 = vadd.f32 %v4551, %v4775
        %v4777 = vpop.f32.mrb[0].mxu0
        %4778 = vmatprep.mubr.f32.mxu0 %v3969
        %4779 = vmatmul.mubr.f32.gmra.mrb[0].mxu0 %v3857
        %v4780 = vpop.f32.mrb[0].mxu0
        %v4781 = vadd.f32 %v4556, %v4780
        %v4782 = vpop.f32.mrb[0].mxu0
        %4783 = vmatprep.mubr.f32.mxu0 %v3972
        %4784 = vmatmul.mubr.f32.gmra.mrb[0].mxu0 %v3860
        %v4785 = vpop.f32.mrb[0].mxu0
        %v4786 = vadd.f32 %v4561, %v4785
        %v4787 = vpop.f32.mrb[0].mxu0
        %4788 = vmatprep.mubr.f32.mxu0 %v3974
        %4789 = vmatmul.mubr.f32.gmra.mrb[0].mxu0 %v3862
        %v4790 = vpop.f32.mrb[0].mxu0
        %v4791 = vadd.f32 %v4566, %v4790
        %v4792 = vpop.f32.mrb[0].mxu0
        %4793 = vmatprep.mubr.f32.mxu0 %v3977
        %4794 = vmatmul.mubr.f32.gmra.mrb[0].mxu0 %v3865
        %v4795 = vpop.f32.mrb[0].mxu0
        %v4796 = vadd.f32 %v4571, %v4795
        %v4797 = vpop.f32.mrb[0].mxu0
        %4798 = vmatprep.mubr.f32.mxu0 %v3979
        %4799 = vmatmul.mubr.f32.gmra.mrb[0].mxu0 %v3867
        %v4800 = vpop.f32.mrb[0].mxu0
        %v4801 = vadd.f32 %v4576, %v4800
        %v4802 = vpop.f32.mrb[0].mxu0
        %4803 = vmatprep.mubr.f32.mxu0 %v3982
        %4804 = vmatmul.mubr.f32.gmra.mrb[0].mxu0 %v3870
        %v4805 = vpop.f32.mrb[0].mxu0
        %v4806 = vadd.f32 %v4581, %v4805
        %v4807 = vpop.f32.mrb[0].mxu0
        %4808 = vmatprep.mubr.f32.mxu0 %v3984
        %4809 = vmatmul.mubr.f32.gmra.mrb[0].mxu0 %v3872
        %v4810 = vpop.f32.mrb[0].mxu0
        %v4811 = vadd.f32 %v4586, %v4810
        %v4812 = vpop.f32.mrb[0].mxu0
        %4813 = vmatprep.mubr.f32.mxu0 %v3987
        %4814 = vmatmul.mubr.f32.gmra.mrb[0].mxu0 %v3875
        %v4815 = vpop.f32.mrb[0].mxu0
        %v4816 = vadd.f32 %v4591, %v4815
        %v4817 = vpop.f32.mrb[0].mxu0
        %4818 = vmatprep.mubr.f32.mxu0 %v3989
        %4819 = vmatmul.mubr.f32.gmra.mrb[0].mxu0 %v3877
        %v4820 = vpop.f32.mrb[0].mxu0
        %v4821 = vadd.f32 %v4596, %v4820
        %v4822 = vpop.f32.mrb[0].mxu0
        %4823 = vmatprep.mubr.f32.mxu0 %v3992
        %4824 = vmatmul.mubr.f32.gmra.mrb[0].mxu0 %v3880
        %v4825 = vpop.f32.mrb[0].mxu0
        %v4826 = vadd.f32 %v4601, %v4825
        %v4827 = vpop.f32.mrb[0].mxu0
        %4828 = vmatprep.mubr.f32.mxu0 %v3994
        %4829 = vmatmul.mubr.f32.gmra.mrb[0].mxu0 %v3882
        %v4830 = vpop.f32.mrb[0].mxu0
        %v4831 = vadd.f32 %v4606, %v4830
        %v4832 = vpop.f32.mrb[0].mxu0
        %4833 = vmatprep.mubr.f32.mxu0 %v3997
        %4834 = vmatmul.mubr.f32.gmra.mrb[0].mxu0 %v3885
        %v4835 = vpop.f32.mrb[0].mxu0
        %v4836 = vadd.f32 %v4611, %v4835
        %v4837 = vpop.f32.mrb[0].mxu0
        %4838 = vmatprep.mubr.f32.mxu0 %v3999
        %4839 = vmatmul.mubr.f32.gmra.mrb[0].mxu0 %v3887
        %v4840 = vpop.f32.mrb[0].mxu0
        %v4841 = vadd.f32 %v4616, %v4840
        %v4842 = vpop.f32.mrb[0].mxu0
        %4843 = vmatprep.mubr.f32.mxu0 %v4002
        %4844 = vmatmul.mubr.f32.gmra.mrb[0].mxu0 %v3890
        %v4845 = vpop.f32.mrb[0].mxu0
        %v4846 = vadd.f32 %v4621, %v4845
        %v4847 = vpop.f32.mrb[0].mxu0
        %4848 = vmatprep.mubr.f32.mxu0 %v4004
        %4849 = vmatmul.mubr.f32.gmra.mrb[0].mxu0 %v3892
        %v4850 = vpop.f32.mrb[0].mxu0
        %v4851 = vadd.f32 %v4626, %v4850
        %v4852 = vpop.f32.mrb[0].mxu0
        %4853 = vmatprep.mubr.f32.mxu0 %v4007
        %4854 = vmatmul.mubr.f32.gmra.mrb[0].mxu0 %v3895
        %v4855 = vpop.f32.mrb[0].mxu0
        %v4856 = vadd.f32 %v4631, %v4855
        %v4857 = vpop.f32.mrb[0].mxu0
        %4858 = vmatprep.mubr.f32.mxu0 %v4009
        %4859 = vmatmul.mubr.f32.gmra.mrb[0].mxu0 %v3897
        %v4860 = vpop.f32.mrb[0].mxu0
        %v4861 = vadd.f32 %v4636, %v4860
        %v4862 = vpop.f32.mrb[0].mxu0
        %4863 = vmatprep.mubr.f32.mxu0 %v4012
        %4864 = vmatmul.mubr.f32.gmra.mrb[0].mxu0 %v3900
        %v4865 = vpop.f32.mrb[0].mxu0
        %v4866 = vadd.f32 %v4641, %v4865
        %v4867 = vpop.f32.mrb[0].mxu0
        %4868 = vmatprep.mubr.f32.mxu0 %v4014
        %4869 = vmatmul.mubr.f32.gmra.mrb[0].mxu0 %v3902
        %v4870 = vpop.f32.mrb[0].mxu0
        %v4871 = vadd.f32 %v4646, %v4870
        %v4872 = vpop.f32.mrb[0].mxu0
        %4873 = vmatprep.mubr.f32.mxu0 %v4017
        %4874 = vmatmul.mubr.f32.gmra.mrb[0].mxu0 %v3905
        %v4875 = vpop.f32.mrb[0].mxu0
        %v4876 = vadd.f32 %v4651, %v4875
        %v4877 = vpop.f32.mrb[0].mxu0
        %4878 = vmatprep.mubr.f32.mxu0 %v4019
        %4879 = vmatmul.mubr.f32.gmra.mrb[0].mxu0 %v3907
        %v4880 = vpop.f32.mrb[0].mxu0
        %v4881 = vadd.f32 %v4656, %v4880
        %v4882 = vpop.f32.mrb[0].mxu0
        %4883 = vmatprep.mubr.f32.mxu0 %v4022
        %4884 = vmatmul.mubr.f32.gmra.mrb[0].mxu0 %v3910
        %v4885 = vpop.f32.mrb[0].mxu0
        %v4886 = vadd.f32 %v4661, %v4885
        %v4887 = vpop.f32.mrb[0].mxu0
        %4888 = vmatprep.mubr.f32.mxu0 %v4024
        %4889 = vmatmul.mubr.f32.gmra.mrb[0].mxu0 %v3912
        %v4890 = vpop.f32.mrb[0].mxu0
        %v4891 = vadd.f32 %v4666, %v4890
        %v4892 = vpop.f32.mrb[0].mxu0
        %4893 = vmatprep.mubr.f32.mxu0 %v4027
        %4894 = vmatmul.mubr.f32.gmra.mrb[0].mxu0 %v3915
        %v4895 = vpop.f32.mrb[0].mxu0
        %v4896 = vadd.f32 %v4671, %v4895
        %v4897 = vpop.f32.mrb[0].mxu0
        %4898 = vmatprep.mubr.f32.mxu0 %v4029
        %4899 = vmatmul.mubr.f32.gmra.mrb[0].mxu0 %v3917
        %v4900 = vpop.f32.mrb[0].mxu0
        %v4901 = vadd.f32 %v4676, %v4900
        %v4902 = vpop.f32.mrb[0].mxu0
        %4903 = vmatprep.mubr.f32.mxu0 %v4032
        %4904 = vmatmul.mubr.f32.gmra.mrb[0].mxu0 %v3920
        %v4905 = vpop.f32.mrb[0].mxu0
        %v4906 = vadd.f32 %v4681, %v4905
        %v4907 = vpop.f32.mrb[0].mxu0
        %4908 = vmatprep.mubr.f32.mxu0 %v4034
        %4909 = vmatmul.mubr.f32.gmra.mrb[0].mxu0 %v3922
        %v4910 = vpop.f32.mrb[0].mxu0
        %v4911 = vadd.f32 %v4686, %v4910
        %v4912 = vpop.f32.mrb[0].mxu0
        %4913 = vmatprep.mubr.f32.mxu0 %v4037
        %4914 = vmatmul.mubr.f32.gmra.mrb[0].mxu0 %v3925
        %v4915 = vpop.f32.mrb[0].mxu0
        %v4916 = vadd.f32 %v4691, %v4915
        %v4917 = vpop.f32.mrb[0].mxu0
        %4918 = vmatprep.mubr.f32.mxu0 %v4039
        %4919 = vmatmul.mubr.f32.gmra.mrb[0].mxu0 %v3927
        %v4920 = vpop.f32.mrb[0].mxu0
        %v4921 = vadd.f32 %v4696, %v4920
        %v4922 = vpop.f32.mrb[0].mxu0
        %4923 = vmatprep.mubr.f32.mxu0 %v4084
        %4924 = vmatmul.mubr.f32.gmra.mrb[0].mxu0 %v4077
        %v4925 = vpop.f32.mrb[0].mxu0
        %v4926 = vadd.f32 %v4701, %v4925
        %v4927 = vpop.f32.mrb[0].mxu0
        %4928 = vmatprep.mubr.f32.mxu0 %v4086
        %4929 = vmatmul.mubr.f32.gmra.mrb[0].mxu0 %v4079
        %v4930 = vpop.f32.mrb[0].mxu0
        %v4931 = vadd.f32 %v4706, %v4930
        %v4932 = vpop.f32.mrb[0].mxu0
        %4933 = vdwg.mxu0
        %4934 = vmatprep.subr.mxu0 0.0
        %4935 = vmatpush1.msra.mxu0 %v4203
        %4936 = vmatprep.subr.mxu0 0.0
        %4937 = vmatpush1.msra.mxu0 %v4204
        %4938 = vmatprep.subr.mxu0 0.0
        %4939 = vmatpush1.msra.mxu0 %v4205
        %4940 = vmatprep.subr.mxu0 0.0
        %4941 = vmatpush1.msra.mxu0 %v4206
        %4942 = vmatprep.subr.mxu0 0.0
        %4943 = vmatpush1.msra.mxu0 %v4207
        %4944 = vmatprep.subr.mxu0 0.0
        %4945 = vmatpush1.msra.mxu0 %v4208
        %4946 = vmatprep.subr.mxu0 0.0
        %4947 = vmatpush1.msra.mxu0 %v4209
        %4948 = vmatprep.subr.mxu0 0.0
        %4949 = vmatpush1.msra.mxu0 %v4210
        %4950 = vmatprep.subr.mxu0 0.0
        %4951 = vmatpush1.msra.mxu0 %v4211
        %4952 = vmatprep.subr.mxu0 0.0
        %4953 = vmatpush1.msra.mxu0 %v4212
        %4954 = vmatprep.subr.mxu0 0.0
        %4955 = vmatpush1.msra.mxu0 %v4213
        %4956 = vmatprep.subr.mxu0 0.0
        %4957 = vmatpush1.msra.mxu0 %v4214
        %4958 = vmatprep.subr.mxu0 0.0
        %4959 = vmatpush1.msra.mxu0 %v4215
        %4960 = vmatprep.subr.mxu0 0.0
        %4961 = vmatpush1.msra.mxu0 %v4216
        %4962 = vmatprep.subr.mxu0 0.0
        %4963 = vmatpush1.msra.mxu0 %v4217
        %4964 = vmatprep.subr.mxu0 0.0
        %4965 = vmatpush1.msra.mxu0 %v4218
        %4966 = vmatprep.subr.mxu0 0.0
        %4967 = vmatpush1.msra.mxu0 %v4219
        %4968 = vmatprep.subr.mxu0 0.0
        %4969 = vmatpush1.msra.mxu0 %v4220
        %4970 = vmatprep.subr.mxu0 0.0
        %4971 = vmatpush1.msra.mxu0 %v4221
        %4972 = vmatprep.subr.mxu0 0.0
        %4973 = vmatpush1.msra.mxu0 %v4222
        %4974 = vmatprep.subr.mxu0 0.0
        %4975 = vmatpush1.msra.mxu0 %v4223
        %4976 = vmatprep.subr.mxu0 0.0
        %4977 = vmatpush1.msra.mxu0 %v4224
        %4978 = vmatprep.subr.mxu0 0.0
        %4979 = vmatpush1.msra.mxu0 %v4225
        %4980 = vmatprep.subr.mxu0 0.0
        %4981 = vmatpush1.msra.mxu0 %v4226
        %4982 = vmatprep.subr.mxu0 0.0
        %4983 = vmatpush1.msra.mxu0 %v4227
        %4984 = vmatprep.subr.mxu0 0.0
        %4985 = vmatpush1.msra.mxu0 %v4228
        %4986 = vmatprep.subr.mxu0 0.0
        %4987 = vmatpush1.msra.mxu0 %v4229
        %4988 = vmatprep.subr.mxu0 0.0
        %4989 = vmatpush1.msra.mxu0 %v4230
        %4990 = vmatprep.subr.mxu0 0.0
        %4991 = vmatpush1.msra.mxu0 %v4231
        %4992 = vmatprep.subr.mxu0 0.0
        %4993 = vmatpush1.msra.mxu0 %v4232
        %4994 = vmatprep.subr.mxu0 0.0
        %4995 = vmatpush1.msra.mxu0 %v4233
        %4996 = vmatprep.subr.mxu0 0.0
        %4997 = vmatpush1.msra.mxu0 %v4234
        %4998 = vmatprep.mubr.f32.mxu0 %v3860
        %4999 = vmatmul.mubr.f32.gmra.mrb[0].mxu0 %v3752
        %v5000 = vpop.f32.mrb[0].mxu0
        %v5001 = vadd.f32 %v4776, %v5000
        %v5002 = vpop.f32.mrb[0].mxu0
        %5003 = vmatprep.mubr.f32.mxu0 %v3862
        %5004 = vmatmul.mubr.f32.gmra.mrb[0].mxu0 %v3753
        %v5005 = vpop.f32.mrb[0].mxu0
        %v5006 = vadd.f32 %v4781, %v5005
        %v5007 = vpop.f32.mrb[0].mxu0
        %5008 = vmatprep.mubr.f32.mxu0 %v3865
        %5009 = vmatmul.mubr.f32.gmra.mrb[0].mxu0 %v3755
        %v5010 = vpop.f32.mrb[0].mxu0
        %v5011 = vadd.f32 %v4786, %v5010
        %v5012 = vpop.f32.mrb[0].mxu0
        %5013 = vmatprep.mubr.f32.mxu0 %v3867
        %5014 = vmatmul.mubr.f32.gmra.mrb[0].mxu0 %v3756
        %v5015 = vpop.f32.mrb[0].mxu0
        %v5016 = vadd.f32 %v4791, %v5015
        %v5017 = vpop.f32.mrb[0].mxu0
        %5018 = vmatprep.mubr.f32.mxu0 %v3870
        %5019 = vmatmul.mubr.f32.gmra.mrb[0].mxu0 %v3758
        %v5020 = vpop.f32.mrb[0].mxu0
        %v5021 = vadd.f32 %v4796, %v5020
        %v5022 = vpop.f32.mrb[0].mxu0
        %5023 = vmatprep.mubr.f32.mxu0 %v3872
        %5024 = vmatmul.mubr.f32.gmra.mrb[0].mxu0 %v3759
        %v5025 = vpop.f32.mrb[0].mxu0
        %v5026 = vadd.f32 %v4801, %v5025
        %v5027 = vpop.f32.mrb[0].mxu0
        %5028 = vmatprep.mubr.f32.mxu0 %v3875
        %5029 = vmatmul.mubr.f32.gmra.mrb[0].mxu0 %v3761
        %v5030 = vpop.f32.mrb[0].mxu0
        %v5031 = vadd.f32 %v4806, %v5030
        %v5032 = vpop.f32.mrb[0].mxu0
        %5033 = vmatprep.mubr.f32.mxu0 %v3877
        %5034 = vmatmul.mubr.f32.gmra.mrb[0].mxu0 %v3762
        %v5035 = vpop.f32.mrb[0].mxu0
        %v5036 = vadd.f32 %v4811, %v5035
        %v5037 = vpop.f32.mrb[0].mxu0
        %5038 = vmatprep.mubr.f32.mxu0 %v3880
        %5039 = vmatmul.mubr.f32.gmra.mrb[0].mxu0 %v3764
        %v5040 = vpop.f32.mrb[0].mxu0
        %v5041 = vadd.f32 %v4816, %v5040
        %v5042 = vpop.f32.mrb[0].mxu0
        %5043 = vmatprep.mubr.f32.mxu0 %v3882
        %5044 = vmatmul.mubr.f32.gmra.mrb[0].mxu0 %v3765
        %v5045 = vpop.f32.mrb[0].mxu0
        %v5046 = vadd.f32 %v4821, %v5045
        %v5047 = vpop.f32.mrb[0].mxu0
        %5048 = vmatprep.mubr.f32.mxu0 %v3885
        %5049 = vmatmul.mubr.f32.gmra.mrb[0].mxu0 %v3767
        %v5050 = vpop.f32.mrb[0].mxu0
        %v5051 = vadd.f32 %v4826, %v5050
        %v5052 = vpop.f32.mrb[0].mxu0
        %5053 = vmatprep.mubr.f32.mxu0 %v3887
        %5054 = vmatmul.mubr.f32.gmra.mrb[0].mxu0 %v3768
        %v5055 = vpop.f32.mrb[0].mxu0
        %v5056 = vadd.f32 %v4831, %v5055
        %v5057 = vpop.f32.mrb[0].mxu0
        %5058 = vmatprep.mubr.f32.mxu0 %v3890
        %5059 = vmatmul.mubr.f32.gmra.mrb[0].mxu0 %v3770
        %v5060 = vpop.f32.mrb[0].mxu0
        %v5061 = vadd.f32 %v4836, %v5060
        %v5062 = vpop.f32.mrb[0].mxu0
        %5063 = vmatprep.mubr.f32.mxu0 %v3892
        %5064 = vmatmul.mubr.f32.gmra.mrb[0].mxu0 %v3771
        %v5065 = vpop.f32.mrb[0].mxu0
        %v5066 = vadd.f32 %v4841, %v5065
        %v5067 = vpop.f32.mrb[0].mxu0
        %5068 = vmatprep.mubr.f32.mxu0 %v3895
        %5069 = vmatmul.mubr.f32.gmra.mrb[0].mxu0 %v3773
        %v5070 = vpop.f32.mrb[0].mxu0
        %v5071 = vadd.f32 %v4846, %v5070
        %v5072 = vpop.f32.mrb[0].mxu0
        %5073 = vmatprep.mubr.f32.mxu0 %v3897
        %5074 = vmatmul.mubr.f32.gmra.mrb[0].mxu0 %v3774
        %v5075 = vpop.f32.mrb[0].mxu0
        %v5076 = vadd.f32 %v4851, %v5075
        %v5077 = vpop.f32.mrb[0].mxu0
        %5078 = vmatprep.mubr.f32.mxu0 %v3900
        %5079 = vmatmul.mubr.f32.gmra.mrb[0].mxu0 %v3776
        %v5080 = vpop.f32.mrb[0].mxu0
        %v5081 = vadd.f32 %v4856, %v5080
        %v5082 = vpop.f32.mrb[0].mxu0
        %5083 = vmatprep.mubr.f32.mxu0 %v3902
        %5084 = vmatmul.mubr.f32.gmra.mrb[0].mxu0 %v3777
        %v5085 = vpop.f32.mrb[0].mxu0
        %v5086 = vadd.f32 %v4861, %v5085
        %v5087 = vpop.f32.mrb[0].mxu0
        %5088 = vmatprep.mubr.f32.mxu0 %v3905
        %5089 = vmatmul.mubr.f32.gmra.mrb[0].mxu0 %v3779
        %v5090 = vpop.f32.mrb[0].mxu0
        %v5091 = vadd.f32 %v4866, %v5090
        %v5092 = vpop.f32.mrb[0].mxu0
        %5093 = vmatprep.mubr.f32.mxu0 %v3907
        %5094 = vmatmul.mubr.f32.gmra.mrb[0].mxu0 %v3780
        %v5095 = vpop.f32.mrb[0].mxu0
        %v5096 = vadd.f32 %v4871, %v5095
        %v5097 = vpop.f32.mrb[0].mxu0
        %5098 = vmatprep.mubr.f32.mxu0 %v3910
        %5099 = vmatmul.mubr.f32.gmra.mrb[0].mxu0 %v3782
        %v5100 = vpop.f32.mrb[0].mxu0
        %v5101 = vadd.f32 %v4876, %v5100
        %v5102 = vpop.f32.mrb[0].mxu0
        %5103 = vmatprep.mubr.f32.mxu0 %v3912
        %5104 = vmatmul.mubr.f32.gmra.mrb[0].mxu0 %v3783
        %v5105 = vpop.f32.mrb[0].mxu0
        %v5106 = vadd.f32 %v4881, %v5105
        %v5107 = vpop.f32.mrb[0].mxu0
        %5108 = vmatprep.mubr.f32.mxu0 %v3915
        %5109 = vmatmul.mubr.f32.gmra.mrb[0].mxu0 %v3785
        %v5110 = vpop.f32.mrb[0].mxu0
        %v5111 = vadd.f32 %v4886, %v5110
        %v5112 = vpop.f32.mrb[0].mxu0
        %5113 = vmatprep.mubr.f32.mxu0 %v3917
        %5114 = vmatmul.mubr.f32.gmra.mrb[0].mxu0 %v3786
        %v5115 = vpop.f32.mrb[0].mxu0
        %v5116 = vadd.f32 %v4891, %v5115
        %v5117 = vpop.f32.mrb[0].mxu0
        %5118 = vmatprep.mubr.f32.mxu0 %v3920
        %5119 = vmatmul.mubr.f32.gmra.mrb[0].mxu0 %v3788
        %v5120 = vpop.f32.mrb[0].mxu0
        %v5121 = vadd.f32 %v4896, %v5120
        %v5122 = vpop.f32.mrb[0].mxu0
        %5123 = vmatprep.mubr.f32.mxu0 %v3922
        %5124 = vmatmul.mubr.f32.gmra.mrb[0].mxu0 %v3789
        %v5125 = vpop.f32.mrb[0].mxu0
        %v5126 = vadd.f32 %v4901, %v5125
        %v5127 = vpop.f32.mrb[0].mxu0
        %5128 = vmatprep.mubr.f32.mxu0 %v3925
        %5129 = vmatmul.mubr.f32.gmra.mrb[0].mxu0 %v3791
        %v5130 = vpop.f32.mrb[0].mxu0
        %v5131 = vadd.f32 %v4906, %v5130
        %v5132 = vpop.f32.mrb[0].mxu0
        %5133 = vmatprep.mubr.f32.mxu0 %v3927
        %5134 = vmatmul.mubr.f32.gmra.mrb[0].mxu0 %v3792
        %v5135 = vpop.f32.mrb[0].mxu0
        %v5136 = vadd.f32 %v4911, %v5135
        %v5137 = vpop.f32.mrb[0].mxu0
        %5138 = vmatprep.mubr.f32.mxu0 %v4077
        %5139 = vmatmul.mubr.f32.gmra.mrb[0].mxu0 %v3794
        %v5140 = vpop.f32.mrb[0].mxu0
        %v5141 = vadd.f32 %v4916, %v5140
        %v5142 = vpop.f32.mrb[0].mxu0
        %5143 = vmatprep.mubr.f32.mxu0 %v4079
        %5144 = vmatmul.mubr.f32.gmra.mrb[0].mxu0 %v3795
        %v5145 = vpop.f32.mrb[0].mxu0
        %v5146 = vadd.f32 %v4921, %v5145
        %v5147 = vpop.f32.mrb[0].mxu0
        %5148 = vmatprep.mubr.f32.mxu0 %v4094
        %5149 = vmatmul.mubr.f32.gmra.mrb[0].mxu0 %v3797
        %v5150 = vpop.f32.mrb[0].mxu0
        %v5151 = vadd.f32 %v4926, %v5150
        %v5152 = vpop.f32.mrb[0].mxu0
        %5153 = vmatprep.mubr.f32.mxu0 %v4096
        %5154 = vmatmul.mubr.f32.gmra.mrb[0].mxu0 %v3798
        %v5155 = vpop.f32.mrb[0].mxu0
        %v5156 = vadd.f32 %v4931, %v5155
        %v5157 = vpop.f32.mrb[0].mxu0
        %5158 = vdwg.mxu0
        %5159 = vmatprep.subr.mxu0 0.0
        %5160 = vmatpush1.msra.mxu0 %v4235
        %5161 = vmatprep.subr.mxu0 0.0
        %5162 = vmatpush1.msra.mxu0 %v4236
        %5163 = vmatprep.subr.mxu0 0.0
        %5164 = vmatpush1.msra.mxu0 %v4237
        %5165 = vmatprep.subr.mxu0 0.0
        %5166 = vmatpush1.msra.mxu0 %v4238
        %5167 = vmatprep.subr.mxu0 0.0
        %5168 = vmatpush1.msra.mxu0 %v4239
        %5169 = vmatprep.subr.mxu0 0.0
        %5170 = vmatpush1.msra.mxu0 %v4240
        %5171 = vmatprep.subr.mxu0 0.0
        %5172 = vmatpush1.msra.mxu0 %v4241
        %5173 = vmatprep.subr.mxu0 0.0
        %5174 = vmatpush1.msra.mxu0 %v4242
        %5175 = vmatprep.subr.mxu0 0.0
        %5176 = vmatpush1.msra.mxu0 %v4243
        %5177 = vmatprep.subr.mxu0 0.0
        %5178 = vmatpush1.msra.mxu0 %v4244
        %5179 = vmatprep.subr.mxu0 0.0
        %5180 = vmatpush1.msra.mxu0 %v4245
        %5181 = vmatprep.subr.mxu0 0.0
        %5182 = vmatpush1.msra.mxu0 %v4246
        %5183 = vmatprep.subr.mxu0 0.0
        %5184 = vmatpush1.msra.mxu0 %v4247
        %5185 = vmatprep.subr.mxu0 0.0
        %5186 = vmatpush1.msra.mxu0 %v4248
        %5187 = vmatprep.subr.mxu0 0.0
        %5188 = vmatpush1.msra.mxu0 %v4249
        %5189 = vmatprep.subr.mxu0 0.0
        %5190 = vmatpush1.msra.mxu0 %v4250
        %5191 = vmatprep.subr.mxu0 0.0
        %5192 = vmatpush1.msra.mxu0 0.0
        %5193 = vmatprep.subr.mxu0 0.0
        %5194 = vmatpush1.msra.mxu0 0.0
        %5195 = vmatprep.subr.mxu0 0.0
        %5196 = vmatpush1.msra.mxu0 0.0
        %5197 = vmatprep.subr.mxu0 0.0
        %5198 = vmatpush1.msra.mxu0 0.0
        %5199 = vmatprep.subr.mxu0 0.0
        %5200 = vmatpush1.msra.mxu0 0.0
        %5201 = vmatprep.subr.mxu0 0.0
        %5202 = vmatpush1.msra.mxu0 0.0
        %5203 = vmatprep.subr.mxu0 0.0
        %5204 = vmatpush1.msra.mxu0 0.0
        %5205 = vmatprep.subr.mxu0 0.0
        %5206 = vmatpush1.msra.mxu0 0.0
        %5207 = vmatprep.subr.mxu0 0.0
        %5208 = vmatpush1.msra.mxu0 0.0
        %5209 = vmatprep.subr.mxu0 0.0
        %5210 = vmatpush1.msra.mxu0 0.0
        %5211 = vmatprep.subr.mxu0 0.0
        %5212 = vmatpush1.msra.mxu0 0.0
        %5213 = vmatprep.subr.mxu0 0.0
        %5214 = vmatpush1.msra.mxu0 0.0
        %5215 = vmatprep.subr.mxu0 0.0
        %5216 = vmatpush1.msra.mxu0 0.0
        %5217 = vmatprep.subr.mxu0 0.0
        %5218 = vmatpush1.msra.mxu0 0.0
        %5219 = vmatprep.subr.mxu0 0.0
        %5220 = vmatpush1.msra.mxu0 0.0
        %5221 = vmatprep.subr.mxu0 0.0
        %5222 = vmatpush1.msra.mxu0 0.0
        %5223 = vmatprep.mubr.f32.mxu0 0.0
        %5224 = vmatmul.mubr.f32.gmra.mrb[0].mxu0 %v3972
        %v5225 = vpop.f32.mrb[0].mxu0
        %v5226 = vadd.f32 %v5001, %v5225
        %v5227 = vpop.f32.mrb[0].mxu0
        %5228 = vmatprep.mubr.f32.mxu0 0.0
        %5229 = vmatmul.mubr.f32.gmra.mrb[0].mxu0 %v3974
        %v5230 = vpop.f32.mrb[0].mxu0
        %v5231 = vadd.f32 %v5006, %v5230
        %v5232 = vpop.f32.mrb[0].mxu0
        %5233 = vmatprep.mubr.f32.mxu0 0.0
        %5234 = vmatmul.mubr.f32.gmra.mrb[0].mxu0 %v3977
        %v5235 = vpop.f32.mrb[0].mxu0
        %v5236 = vadd.f32 %v5011, %v5235
        %v5237 = vpop.f32.mrb[0].mxu0
        %5238 = vmatprep.mubr.f32.mxu0 0.0
        %5239 = vmatmul.mubr.f32.gmra.mrb[0].mxu0 %v3979
        %v5240 = vpop.f32.mrb[0].mxu0
        %v5241 = vadd.f32 %v5016, %v5240
        %v5242 = vpop.f32.mrb[0].mxu0
        %5243 = vmatprep.mubr.f32.mxu0 0.0
        %5244 = vmatmul.mubr.f32.gmra.mrb[0].mxu0 %v3982
        %v5245 = vpop.f32.mrb[0].mxu0
        %v5246 = vadd.f32 %v5021, %v5245
        %v5247 = vpop.f32.mrb[0].mxu0
        %5248 = vmatprep.mubr.f32.mxu0 0.0
        %5249 = vmatmul.mubr.f32.gmra.mrb[0].mxu0 %v3984
        %v5250 = vpop.f32.mrb[0].mxu0
        %v5251 = vadd.f32 %v5026, %v5250
        %v5252 = vpop.f32.mrb[0].mxu0
        %5253 = vmatprep.mubr.f32.mxu0 0.0
        %5254 = vmatmul.mubr.f32.gmra.mrb[0].mxu0 %v3987
        %v5255 = vpop.f32.mrb[0].mxu0
        %v5256 = vadd.f32 %v5031, %v5255
        %v5257 = vpop.f32.mrb[0].mxu0
        %5258 = vmatprep.mubr.f32.mxu0 0.0
        %5259 = vmatmul.mubr.f32.gmra.mrb[0].mxu0 %v3989
        %v5260 = vpop.f32.mrb[0].mxu0
        %v5261 = vadd.f32 %v5036, %v5260
        %v5262 = vpop.f32.mrb[0].mxu0
        %5263 = vmatprep.mubr.f32.mxu0 0.0
        %5264 = vmatmul.mubr.f32.gmra.mrb[0].mxu0 %v3992
        %v5265 = vpop.f32.mrb[0].mxu0
        %v5266 = vadd.f32 %v5041, %v5265
        %v5267 = vpop.f32.mrb[0].mxu0
        %5268 = vmatprep.mubr.f32.mxu0 0.0
        %5269 = vmatmul.mubr.f32.gmra.mrb[0].mxu0 %v3994
        %v5270 = vpop.f32.mrb[0].mxu0
        %v5271 = vadd.f32 %v5046, %v5270
        %v5272 = vpop.f32.mrb[0].mxu0
        %5273 = vmatprep.mubr.f32.mxu0 0.0
        %5274 = vmatmul.mubr.f32.gmra.mrb[0].mxu0 %v3997
        %v5275 = vpop.f32.mrb[0].mxu0
        %v5276 = vadd.f32 %v5051, %v5275
        %v5277 = vpop.f32.mrb[0].mxu0
        %5278 = vmatprep.mubr.f32.mxu0 0.0
        %5279 = vmatmul.mubr.f32.gmra.mrb[0].mxu0 %v3999
        %v5280 = vpop.f32.mrb[0].mxu0
        %v5281 = vadd.f32 %v5056, %v5280
        %v5282 = vpop.f32.mrb[0].mxu0
        %5283 = vmatprep.mubr.f32.mxu0 0.0
        %5284 = vmatmul.mubr.f32.gmra.mrb[0].mxu0 %v4002
        %v5285 = vpop.f32.mrb[0].mxu0
        %v5286 = vadd.f32 %v5061, %v5285
        %v5287 = vpop.f32.mrb[0].mxu0
        %5288 = vmatprep.mubr.f32.mxu0 0.0
        %5289 = vmatmul.mubr.f32.gmra.mrb[0].mxu0 %v4004
        %v5290 = vpop.f32.mrb[0].mxu0
        %v5291 = vadd.f32 %v5066, %v5290
        %v5292 = vpop.f32.mrb[0].mxu0
        %5293 = vmatprep.mubr.f32.mxu0 0.0
        %5294 = vmatmul.mubr.f32.gmra.mrb[0].mxu0 %v4007
        %v5295 = vpop.f32.mrb[0].mxu0
        %v5296 = vadd.f32 %v5071, %v5295
        %v5297 = vpop.f32.mrb[0].mxu0
        %5298 = vmatprep.mubr.f32.mxu0 0.0
        %5299 = vmatmul.mubr.f32.gmra.mrb[0].mxu0 %v4009
        %v5300 = vpop.f32.mrb[0].mxu0
        %v5301 = vadd.f32 %v5076, %v5300
        %v5302 = vpop.f32.mrb[0].mxu0
        %5303 = vmatprep.mubr.f32.mxu0 0.0
        %5304 = vmatmul.mubr.f32.gmra.mrb[0].mxu0 %v4012
        %v5305 = vpop.f32.mrb[0].mxu0
        %v5306 = vadd.f32 %v5081, %v5305
        %v5307 = vpop.f32.mrb[0].mxu0
        %5308 = vmatprep.mubr.f32.mxu0 0.0
        %5309 = vmatmul.mubr.f32.gmra.mrb[0].mxu0 %v4014
        %v5310 = vpop.f32.mrb[0].mxu0
        %v5311 = vadd.f32 %v5086, %v5310
        %v5312 = vpop.f32.mrb[0].mxu0
        %5313 = vmatprep.mubr.f32.mxu0 0.0
        %5314 = vmatmul.mubr.f32.gmra.mrb[0].mxu0 %v4017
        %v5315 = vpop.f32.mrb[0].mxu0
        %v5316 = vadd.f32 %v5091, %v5315
        %v5317 = vpop.f32.mrb[0].mxu0
        %5318 = vmatprep.mubr.f32.mxu0 0.0
        %5319 = vmatmul.mubr.f32.gmra.mrb[0].mxu0 %v4019
        %v5320 = vpop.f32.mrb[0].mxu0
        %v5321 = vadd.f32 %v5096, %v5320
        %v5322 = vpop.f32.mrb[0].mxu0
        %5323 = vmatprep.mubr.f32.mxu0 0.0
        %5324 = vmatmul.mubr.f32.gmra.mrb[0].mxu0 %v4022
        %v5325 = vpop.f32.mrb[0].mxu0
        %v5326 = vadd.f32 %v5101, %v5325
        %v5327 = vpop.f32.mrb[0].mxu0
        %5328 = vmatprep.mubr.f32.mxu0 0.0
        %5329 = vmatmul.mubr.f32.gmra.mrb[0].mxu0 %v4024
        %v5330 = vpop.f32.mrb[0].mxu0
        %v5331 = vadd.f32 %v5106, %v5330
        %v5332 = vpop.f32.mrb[0].mxu0
        %5333 = vmatprep.mubr.f32.mxu0 0.0
        %5334 = vmatmul.mubr.f32.gmra.mrb[0].mxu0 %v4027
        %v5335 = vpop.f32.mrb[0].mxu0
        %v5336 = vadd.f32 %v5111, %v5335
        %v5337 = vpop.f32.mrb[0].mxu0
        %5338 = vmatprep.mubr.f32.mxu0 0.0
        %5339 = vmatmul.mubr.f32.gmra.mrb[0].mxu0 %v4029
        %v5340 = vpop.f32.mrb[0].mxu0
        %v5341 = vadd.f32 %v5116, %v5340
        %v5342 = vpop.f32.mrb[0].mxu0
        %5343 = vmatprep.mubr.f32.mxu0 0.0
        %5344 = vmatmul.mubr.f32.gmra.mrb[0].mxu0 %v4032
        %v5345 = vpop.f32.mrb[0].mxu0
        %v5346 = vadd.f32 %v5121, %v5345
        %v5347 = vpop.f32.mrb[0].mxu0
        %5348 = vmatprep.mubr.f32.mxu0 0.0
        %5349 = vmatmul.mubr.f32.gmra.mrb[0].mxu0 %v4034
        %v5350 = vpop.f32.mrb[0].mxu0
        %v5351 = vadd.f32 %v5126, %v5350
        %v5352 = vpop.f32.mrb[0].mxu0
        %5353 = vmatprep.mubr.f32.mxu0 0.0
        %5354 = vmatmul.mubr.f32.gmra.mrb[0].mxu0 %v4037
        %v5355 = vpop.f32.mrb[0].mxu0
        %v5356 = vadd.f32 %v5131, %v5355
        %v5357 = vpop.f32.mrb[0].mxu0
        %5358 = vmatprep.mubr.f32.mxu0 0.0
        %5359 = vmatmul.mubr.f32.gmra.mrb[0].mxu0 %v4039
        %v5360 = vpop.f32.mrb[0].mxu0
        %v5361 = vadd.f32 %v5136, %v5360
        %v5362 = vpop.f32.mrb[0].mxu0
        %5363 = vmatprep.mubr.f32.mxu0 0.0
        %5364 = vmatmul.mubr.f32.gmra.mrb[0].mxu0 %v4084
        %v5365 = vpop.f32.mrb[0].mxu0
        %v5366 = vadd.f32 %v5141, %v5365
        %v5367 = vpop.f32.mrb[0].mxu0
        %5368 = vmatprep.mubr.f32.mxu0 0.0
        %5369 = vmatmul.mubr.f32.gmra.mrb[0].mxu0 %v4086
        %v5370 = vpop.f32.mrb[0].mxu0
        %v5371 = vadd.f32 %v5146, %v5370
        %v5372 = vpop.f32.mrb[0].mxu0
        %5373 = vmatprep.mubr.f32.mxu0 0.0
        %5374 = vmatmul.mubr.f32.gmra.mrb[0].mxu0 %v4101
        %v5375 = vpop.f32.mrb[0].mxu0
        %v5376 = vadd.f32 %v5151, %v5375
        %v5377 = vpop.f32.mrb[0].mxu0
        %5378 = vmatprep.mubr.f32.mxu0 0.0
        %5379 = vmatmul.mubr.f32.gmra.mrb[0].mxu0 %v4103
        %v5380 = vpop.f32.mrb[0].mxu0
        %v5381 = vadd.f32 %v5156, %v5380
        %v5382 = vpop.f32.mrb[0].mxu0
        %5383 = vdwg.mxu0
        %v5384 = vmax.f32 %v5226, 0.0
        %v5385 = vmax.f32 %v5231, 0.0
        %v5386 = vmax.f32 %v5236, 0.0
        %v5387 = vmax.f32 %v5241, 0.0
        %v5388 = vmax.f32 %v5246, 0.0
        %v5389 = vmax.f32 %v5251, 0.0
        %v5390 = vmax.f32 %v5256, 0.0
        %v5391 = vmax.f32 %v5261, 0.0
        %v5392 = vmax.f32 %v5266, 0.0
        %v5393 = vmax.f32 %v5271, 0.0
        %v5394 = vmax.f32 %v5276, 0.0
        %v5395 = vmax.f32 %v5281, 0.0
        %v5396 = vmax.f32 %v5286, 0.0
        %v5397 = vmax.f32 %v5291, 0.0
        %v5398 = vmax.f32 %v5296, 0.0
        %v5399 = vmax.f32 %v5301, 0.0
        %v5400 = vmax.f32 %v5306, 0.0
        %v5401 = vmax.f32 %v5311, 0.0
        %v5402 = vmax.f32 %v5316, 0.0
        %v5403 = vmax.f32 %v5321, 0.0
        %v5404 = vmax.f32 %v5326, 0.0
        %v5405 = vmax.f32 %v5331, 0.0
        %v5406 = vmax.f32 %v5336, 0.0
        %v5407 = vmax.f32 %v5341, 0.0
        %v5408 = vmax.f32 %v5346, 0.0
        %v5409 = vmax.f32 %v5351, 0.0
        %v5410 = vmax.f32 %v5356, 0.0
        %v5411 = vmax.f32 %v5361, 0.0
        %v5412 = vmax.f32 %v5366, 0.0
        %v5413 = vmax.f32 %v5371, 0.0
        %v5414 = vmax.f32 %v5376, 0.0
        %v5415 = vmax.f32 %v5381, 0.0
        %5416 = vst [vmem:[%s309 + $0x1] sm:$0xff] %v5384
        %5417 = vst [vmem:[%s309 + $0x9] sm:$0xff] %v5385
        %5418 = vst [vmem:[%s309 + $0x19] sm:$0xff] %v5386
        %5419 = vst [vmem:[%s309 + $0x21] sm:$0xff] %v5387
        %5420 = vst [vmem:[%s309 + $0x31] sm:$0xff] %v5388
        %5421 = vst [vmem:[%s309 + $0x39] sm:$0xff] %v5389
        %5422 = vst [vmem:[%s309 + $0x49] sm:$0xff] %v5390
        %5423 = vst [vmem:[%s309 + $0x51] sm:$0xff] %v5391
        %5424 = vst [vmem:[%s309 + $0x61] sm:$0xff] %v5392
        %5425 = vst [vmem:[%s309 + $0x69] sm:$0xff] %v5393
        %5426 = vst [vmem:[%s309 + $0x79] sm:$0xff] %v5394
        %5427 = vst [vmem:[%s309 + $0x81] sm:$0xff] %v5395
        %5428 = vst [vmem:[%s309 + $0x91] sm:$0xff] %v5396
        %5429 = vst [vmem:[%s309 + $0x99] sm:$0xff] %v5397
        %5430 = vst [vmem:[%s309 + $0xa9] sm:$0xff] %v5398
        %5431 = vst [vmem:[%s309 + $0xb1] sm:$0xff] %v5399
        %5432 = vst [vmem:[%s309 + $0xc1] sm:$0xff] %v5400
        %5433 = vst [vmem:[%s309 + $0xc9] sm:$0xff] %v5401
        %5434 = vst [vmem:[%s309 + $0xd9] sm:$0xff] %v5402
        %5435 = vst [vmem:[%s309 + $0xe1] sm:$0xff] %v5403
        %5436 = vst [vmem:[%s309 + $0xf1] sm:$0xff] %v5404
        %5437 = vst [vmem:[%s309 + $0xf9] sm:$0xff] %v5405
        %5438 = vst [vmem:[%s309 + $0x109] sm:$0xff] %v5406
        %5439 = vst [vmem:[%s309 + $0x111] sm:$0xff] %v5407
        %5440 = vst [vmem:[%s309 + $0x121] sm:$0xff] %v5408
        %5441 = vst [vmem:[%s309 + $0x129] sm:$0xff] %v5409
        %5442 = vst [vmem:[%s309 + $0x139] sm:$0xff] %v5410
        %5443 = vst [vmem:[%s309 + $0x141] sm:$0xff] %v5411
        %5444 = vst [vmem:[%s309 + $0x151] sm:$0xff] %v5412
        %5445 = vst [vmem:[%s309 + $0x159] sm:$0xff] %v5413
        %5446 = vst [vmem:[%s309 + $0x169] sm:$0xff] %v5414
        %5447 = vst [vmem:[%s309 + $0x171] sm:$0xff] %v5415
        %v5448 = vld [vmem:[#allocation2] sm:$0xff]
        %v5449 = vld [vmem:[#allocation2 + $0x8] sm:$0xff]
        %v5450 = vld [vmem:[#allocation2 + $0x10] sm:$0x3]
        %v5451 = vld [vmem:[#allocation2 + $0x18] sm:$0xff]
        %v5452 = vld [vmem:[#allocation2 + $0x20] sm:$0xff]
        %v5453 = vld [vmem:[#allocation2 + $0x28] sm:$0x3]
        %v5454 = vld [vmem:[#allocation2 + $0x30] sm:$0xff]
        %v5455 = vld [vmem:[#allocation2 + $0x38] sm:$0xff]
        %v5456 = vld [vmem:[#allocation2 + $0x40] sm:$0x3]
        %v5457 = vld [vmem:[#allocation2 + $0x48] sm:$0xff]
        %v5458 = vld [vmem:[#allocation2 + $0x50] sm:$0xff]
        %v5459 = vld [vmem:[#allocation2 + $0x58] sm:$0x3]
        %v5460 = vld [vmem:[#allocation2 + $0x60] sm:$0xff]
        %v5461 = vld [vmem:[#allocation2 + $0x68] sm:$0xff]
        %v5462 = vld [vmem:[#allocation2 + $0x70] sm:$0x3]
        %v5463 = vld [vmem:[#allocation2 + $0x78] sm:$0xff]
        %v5464 = vld [vmem:[#allocation2 + $0x80] sm:$0xff]
        %v5465 = vld [vmem:[#allocation2 + $0x88] sm:$0x3]
        %v5466 = vld [vmem:[#allocation2 + $0x90] sm:$0xff]
        %v5467 = vld [vmem:[#allocation2 + $0x98] sm:$0xff]
        %v5468 = vld [vmem:[#allocation2 + $0xa0] sm:$0x3]
        %v5469 = vld [vmem:[#allocation2 + $0xa8] sm:$0xff]
        %v5470 = vld [vmem:[#allocation2 + $0xb0] sm:$0xff]
        %v5471 = vld [vmem:[#allocation2 + $0xb8] sm:$0x3]
        %v5472 = vld [vmem:[#allocation2 + $0xc0] sm:$0xff]
        %v5473 = vld [vmem:[#allocation2 + $0xc8] sm:$0xff]
        %v5474 = vld [vmem:[#allocation2 + $0xd0] sm:$0x3]
        %v5475 = vld [vmem:[#allocation2 + $0xd8] sm:$0xff]
        %v5476 = vld [vmem:[#allocation2 + $0xe0] sm:$0xff]
        %v5477 = vld [vmem:[#allocation2 + $0xe8] sm:$0x3]
        %v5478 = vld [vmem:[#allocation2 + $0xf0] sm:$0xff]
        %v5479 = vld [vmem:[#allocation2 + $0xf8] sm:$0xff]
        %v5480 = vld [vmem:[#allocation2 + $0x100] sm:$0x3]
        %v5481 = vld [vmem:[#allocation2 + $0x108] sm:$0xff]
        %v5482 = vld [vmem:[#allocation2 + $0x110] sm:$0xff]
        %v5483 = vld [vmem:[#allocation2 + $0x118] sm:$0x3]
        %v5484 = vld [vmem:[#allocation2 + $0x120] sm:$0xff]
        %v5485 = vld [vmem:[#allocation2 + $0x128] sm:$0xff]
        %v5486 = vld [vmem:[#allocation2 + $0x130] sm:$0x3]
        %v5487 = vld [vmem:[#allocation2 + $0x138] sm:$0xff]
        %v5488 = vld [vmem:[#allocation2 + $0x140] sm:$0xff]
        %v5489 = vld [vmem:[#allocation2 + $0x148] sm:$0x3]
        %v5490 = vld [vmem:[#allocation2 + $0x150] sm:$0xff]
        %v5491 = vld [vmem:[#allocation2 + $0x158] sm:$0xff]
        %v5492 = vld [vmem:[#allocation2 + $0x160] sm:$0x3]
        %v5493 = vld [vmem:[#allocation2 + $0x168] sm:$0xff]
        %v5494 = vld [vmem:[#allocation2 + $0x170] sm:$0xff]
        %v5495 = vld [vmem:[#allocation2 + $0x178] sm:$0x3]
        %v5496 = vld [vmem:[#allocation2 + $0x180] sm:$0xff]
        %v5497 = vld [vmem:[#allocation2 + $0x188] sm:$0xff]
        %v5498 = vld [vmem:[#allocation2 + $0x190] sm:$0x3]
        %v5499 = vld [vmem:[#allocation2 + $0x198] sm:$0xff]
        %v5500 = vld [vmem:[#allocation2 + $0x1a0] sm:$0xff]
        %v5501 = vld [vmem:[#allocation2 + $0x1a8] sm:$0x3]
        %v5550 = vrot.slane %v5448, 1
        %v5551 = vrot.slane %v5449, 1
        %v5552 = vsel %vm444, %v5550, %v5551
        %v5553 = vrot.slane %v5450, 1
        %v5554 = vsel %vm444, %v5551, %v5553
        %v5555 = vrot.slane %v5451, 1
        %v5556 = vrot.slane %v5452, 1
        %v5557 = vsel %vm444, %v5555, %v5556
        %v5558 = vrot.slane %v5453, 1
        %v5559 = vsel %vm444, %v5556, %v5558
        %v5560 = vrot.slane %v5454, 1
        %v5561 = vrot.slane %v5455, 1
        %v5562 = vsel %vm444, %v5560, %v5561
        %v5563 = vrot.slane %v5456, 1
        %v5564 = vsel %vm444, %v5561, %v5563
        %v5565 = vrot.slane %v5457, 1
        %v5566 = vrot.slane %v5458, 1
        %v5567 = vsel %vm444, %v5565, %v5566
        %v5568 = vrot.slane %v5459, 1
        %v5569 = vsel %vm444, %v5566, %v5568
        %v5570 = vrot.slane %v5460, 1
        %v5571 = vrot.slane %v5461, 1
        %v5572 = vsel %vm444, %v5570, %v5571
        %v5573 = vrot.slane %v5462, 1
        %v5574 = vsel %vm444, %v5571, %v5573
        %v5575 = vrot.slane %v5463, 1
        %v5576 = vrot.slane %v5464, 1
        %v5577 = vsel %vm444, %v5575, %v5576
        %v5578 = vrot.slane %v5465, 1
        %v5579 = vsel %vm444, %v5576, %v5578
        %v5580 = vrot.slane %v5466, 1
        %v5581 = vrot.slane %v5467, 1
        %v5582 = vsel %vm444, %v5580, %v5581
        %v5583 = vrot.slane %v5468, 1
        %v5584 = vsel %vm444, %v5581, %v5583
        %v5585 = vrot.slane %v5469, 1
        %v5586 = vrot.slane %v5470, 1
        %v5587 = vsel %vm444, %v5585, %v5586
        %v5588 = vrot.slane %v5471, 1
        %v5589 = vsel %vm444, %v5586, %v5588
        %v5590 = vrot.slane %v5472, 1
        %v5591 = vrot.slane %v5473, 1
        %v5592 = vsel %vm444, %v5590, %v5591
        %v5593 = vrot.slane %v5474, 1
        %v5594 = vsel %vm444, %v5591, %v5593
        %v5595 = vrot.slane %v5475, 1
        %v5596 = vrot.slane %v5476, 1
        %v5597 = vsel %vm444, %v5595, %v5596
        %v5598 = vrot.slane %v5477, 1
        %v5599 = vsel %vm444, %v5596, %v5598
        %v5600 = vrot.slane %v5478, 1
        %v5601 = vrot.slane %v5479, 1
        %v5602 = vsel %vm444, %v5600, %v5601
        %v5603 = vrot.slane %v5480, 1
        %v5604 = vsel %vm444, %v5601, %v5603
        %v5605 = vrot.slane %v5481, 1
        %v5606 = vrot.slane %v5482, 1
        %v5607 = vsel %vm444, %v5605, %v5606
        %v5608 = vrot.slane %v5483, 1
        %v5609 = vsel %vm444, %v5606, %v5608
        %v5610 = vrot.slane %v5484, 1
        %v5611 = vrot.slane %v5485, 1
        %v5612 = vsel %vm444, %v5610, %v5611
        %v5613 = vrot.slane %v5486, 1
        %v5614 = vsel %vm444, %v5611, %v5613
        %v5615 = vrot.slane %v5487, 1
        %v5616 = vrot.slane %v5488, 1
        %v5617 = vsel %vm444, %v5615, %v5616
        %v5618 = vrot.slane %v5489, 1
        %v5619 = vsel %vm444, %v5616, %v5618
        %v5620 = vrot.slane %v5490, 1
        %v5621 = vrot.slane %v5491, 1
        %v5622 = vsel %vm444, %v5620, %v5621
        %v5623 = vrot.slane %v5492, 1
        %v5624 = vsel %vm444, %v5621, %v5623
        %v5625 = vrot.slane %v5493, 1
        %v5626 = vrot.slane %v5494, 1
        %v5627 = vsel %vm444, %v5625, %v5626
        %v5628 = vrot.slane %v5495, 1
        %v5629 = vsel %vm444, %v5626, %v5628
        %v5662 = vrot.slane %v5448, 2
        %v5663 = vrot.slane %v5449, 2
        %v5664 = vsel %vm557, %v5662, %v5663
        %v5665 = vrot.slane %v5450, 2
        %v5666 = vsel %vm557, %v5663, %v5665
        %v5667 = vrot.slane %v5451, 2
        %v5668 = vrot.slane %v5452, 2
        %v5669 = vsel %vm557, %v5667, %v5668
        %v5670 = vrot.slane %v5453, 2
        %v5671 = vsel %vm557, %v5668, %v5670
        %v5672 = vrot.slane %v5454, 2
        %v5673 = vrot.slane %v5455, 2
        %v5674 = vsel %vm557, %v5672, %v5673
        %v5675 = vrot.slane %v5456, 2
        %v5676 = vsel %vm557, %v5673, %v5675
        %v5677 = vrot.slane %v5457, 2
        %v5678 = vrot.slane %v5458, 2
        %v5679 = vsel %vm557, %v5677, %v5678
        %v5680 = vrot.slane %v5459, 2
        %v5681 = vsel %vm557, %v5678, %v5680
        %v5682 = vrot.slane %v5460, 2
        %v5683 = vrot.slane %v5461, 2
        %v5684 = vsel %vm557, %v5682, %v5683
        %v5685 = vrot.slane %v5462, 2
        %v5686 = vsel %vm557, %v5683, %v5685
        %v5687 = vrot.slane %v5463, 2
        %v5688 = vrot.slane %v5464, 2
        %v5689 = vsel %vm557, %v5687, %v5688
        %v5690 = vrot.slane %v5465, 2
        %v5691 = vsel %vm557, %v5688, %v5690
        %v5692 = vrot.slane %v5466, 2
        %v5693 = vrot.slane %v5467, 2
        %v5694 = vsel %vm557, %v5692, %v5693
        %v5695 = vrot.slane %v5468, 2
        %v5696 = vsel %vm557, %v5693, %v5695
        %v5697 = vrot.slane %v5469, 2
        %v5698 = vrot.slane %v5470, 2
        %v5699 = vsel %vm557, %v5697, %v5698
        %v5700 = vrot.slane %v5471, 2
        %v5701 = vsel %vm557, %v5698, %v5700
        %v5702 = vrot.slane %v5472, 2
        %v5703 = vrot.slane %v5473, 2
        %v5704 = vsel %vm557, %v5702, %v5703
        %v5705 = vrot.slane %v5474, 2
        %v5706 = vsel %vm557, %v5703, %v5705
        %v5707 = vrot.slane %v5475, 2
        %v5708 = vrot.slane %v5476, 2
        %v5709 = vsel %vm557, %v5707, %v5708
        %v5710 = vrot.slane %v5477, 2
        %v5711 = vsel %vm557, %v5708, %v5710
        %v5712 = vrot.slane %v5478, 2
        %v5713 = vrot.slane %v5479, 2
        %v5714 = vsel %vm557, %v5712, %v5713
        %v5715 = vrot.slane %v5480, 2
        %v5716 = vsel %vm557, %v5713, %v5715
        %v5717 = vrot.slane %v5481, 2
        %v5718 = vrot.slane %v5482, 2
        %v5719 = vsel %vm557, %v5717, %v5718
        %v5720 = vrot.slane %v5483, 2
        %v5721 = vsel %vm557, %v5718, %v5720
        %v5722 = vrot.slane %v5484, 2
        %v5723 = vrot.slane %v5485, 2
        %v5724 = vsel %vm557, %v5722, %v5723
        %v5725 = vrot.slane %v5486, 2
        %v5726 = vsel %vm557, %v5723, %v5725
        %v5727 = vrot.slane %v5487, 2
        %v5728 = vrot.slane %v5488, 2
        %v5729 = vsel %vm557, %v5727, %v5728
        %v5730 = vrot.slane %v5489, 2
        %v5731 = vsel %vm557, %v5728, %v5730
        %v5732 = vrot.slane %v5490, 2
        %v5733 = vrot.slane %v5491, 2
        %v5734 = vsel %vm557, %v5732, %v5733
        %v5735 = vrot.slane %v5492, 2
        %v5736 = vsel %vm557, %v5733, %v5735
        %v5737 = vrot.slane %v5493, 2
        %v5738 = vrot.slane %v5494, 2
        %v5739 = vsel %vm557, %v5737, %v5738
        %v5740 = vrot.slane %v5495, 2
        %v5741 = vsel %vm557, %v5738, %v5740
        %v5777 = vrot.slane %v5496, 1
        %v5778 = vrot.slane %v5497, 1
        %v5779 = vsel %vm444, %v5777, %v5778
        %v5780 = vrot.slane %v5498, 1
        %v5781 = vsel %vm444, %v5778, %v5780
        %v5784 = vrot.slane %v5496, 2
        %v5785 = vrot.slane %v5497, 2
        %v5786 = vsel %vm557, %v5784, %v5785
        %v5787 = vrot.slane %v5498, 2
        %v5788 = vsel %vm557, %v5785, %v5787
        %v5794 = vrot.slane %v5499, 1
        %v5795 = vrot.slane %v5500, 1
        %v5796 = vsel %vm444, %v5794, %v5795
        %v5797 = vrot.slane %v5501, 1
        %v5798 = vsel %vm444, %v5795, %v5797
        %v5801 = vrot.slane %v5499, 2
        %v5802 = vrot.slane %v5500, 2
        %v5803 = vsel %vm557, %v5801, %v5802
        %v5804 = vrot.slane %v5501, 2
        %v5805 = vsel %vm557, %v5802, %v5804
        %s5808 = scalar_lea.vmem %s1, 3456
        %v5809 = vld [vmem:[%s5808] sm:$0xff]
        %v5810 = vld [vmem:[%s5808 + $0x8] sm:$0xff]
        %v5811 = vld [vmem:[%s5808 + $0x10] sm:$0xff]
        %v5812 = vld [vmem:[%s5808 + $0x18] sm:$0xff]
        %v5813 = vld [vmem:[%s5808 + $0x20] sm:$0xff]
        %v5814 = vld [vmem:[%s5808 + $0x28] sm:$0xff]
        %v5815 = vld [vmem:[%s5808 + $0x30] sm:$0xff]
        %v5816 = vld [vmem:[%s5808 + $0x38] sm:$0xff]
        %v5817 = vld [vmem:[%s5808 + $0x40] sm:$0xff]
        %v5818 = vld [vmem:[%s5808 + $0x48] sm:$0xff]
        %v5819 = vld [vmem:[%s5808 + $0x50] sm:$0xff]
        %v5820 = vld [vmem:[%s5808 + $0x58] sm:$0xff]
        %v5821 = vld [vmem:[%s5808 + $0x60] sm:$0xff]
        %v5822 = vld [vmem:[%s5808 + $0x68] sm:$0xff]
        %v5823 = vld [vmem:[%s5808 + $0x70] sm:$0xff]
        %v5824 = vld [vmem:[%s5808 + $0x78] sm:$0xff]
        %v5825 = vld [vmem:[%s5808 + $0x80] sm:$0xff]
        %v5826 = vld [vmem:[%s5808 + $0x88] sm:$0xff]
        %v5827 = vld [vmem:[%s5808 + $0x90] sm:$0xff]
        %v5828 = vld [vmem:[%s5808 + $0x98] sm:$0xff]
        %v5829 = vld [vmem:[%s5808 + $0xa0] sm:$0xff]
        %v5830 = vld [vmem:[%s5808 + $0xa8] sm:$0xff]
        %v5831 = vld [vmem:[%s5808 + $0xb0] sm:$0xff]
        %v5832 = vld [vmem:[%s5808 + $0xb8] sm:$0xff]
        %v5833 = vld [vmem:[%s5808 + $0xc0] sm:$0xff]
        %v5834 = vld [vmem:[%s5808 + $0xc8] sm:$0xff]
        %v5835 = vld [vmem:[%s5808 + $0xd0] sm:$0xff]
        %v5836 = vld [vmem:[%s5808 + $0xd8] sm:$0xff]
        %v5837 = vld [vmem:[%s5808 + $0xe0] sm:$0xff]
        %v5838 = vld [vmem:[%s5808 + $0xe8] sm:$0xff]
        %v5839 = vld [vmem:[%s5808 + $0xf0] sm:$0xff]
        %v5840 = vld [vmem:[%s5808 + $0xf8] sm:$0xff]
        %v5841 = vld [vmem:[%s5808 + $0x100] sm:$0xff]
        %v5842 = vld [vmem:[%s5808 + $0x108] sm:$0xff]
        %v5843 = vld [vmem:[%s5808 + $0x110] sm:$0xff]
        %v5844 = vld [vmem:[%s5808 + $0x118] sm:$0xff]
        %v5845 = vld [vmem:[%s5808 + $0x120] sm:$0xff]
        %v5846 = vld [vmem:[%s5808 + $0x128] sm:$0xff]
        %v5847 = vld [vmem:[%s5808 + $0x130] sm:$0xff]
        %v5848 = vld [vmem:[%s5808 + $0x138] sm:$0xff]
        %v5849 = vld [vmem:[%s5808 + $0x140] sm:$0xff]
        %v5850 = vld [vmem:[%s5808 + $0x148] sm:$0xff]
        %v5851 = vld [vmem:[%s5808 + $0x150] sm:$0xff]
        %v5852 = vld [vmem:[%s5808 + $0x158] sm:$0xff]
        %v5853 = vld [vmem:[%s5808 + $0x160] sm:$0xff]
        %v5854 = vld [vmem:[%s5808 + $0x168] sm:$0xff]
        %v5855 = vld [vmem:[%s5808 + $0x170] sm:$0xff]
        %v5856 = vld [vmem:[%s5808 + $0x178] sm:$0xff]
        %v5857 = vld [vmem:[%s5808 + $0x180] sm:$0xff]
        %v5858 = vld [vmem:[%s5808 + $0x188] sm:$0xff]
        %v5859 = vld [vmem:[%s5808 + $0x190] sm:$0xff]
        %v5860 = vld [vmem:[%s5808 + $0x198] sm:$0xff]
        %v5861 = vld [vmem:[%s5808 + $0x1a0] sm:$0xff]
        %v5862 = vld [vmem:[%s5808 + $0x1a8] sm:$0xff]
        %v5863 = vld [vmem:[%s5808 + $0x1b0] sm:$0xff]
        %v5864 = vld [vmem:[%s5808 + $0x1b8] sm:$0xff]
        %v5865 = vld [vmem:[%s5808 + $0x1c0] sm:$0xff]
        %v5866 = vld [vmem:[%s5808 + $0x1c8] sm:$0xff]
        %v5867 = vld [vmem:[%s5808 + $0x1d0] sm:$0xff]
        %v5868 = vld [vmem:[%s5808 + $0x1d8] sm:$0xff]
        %v5869 = vld [vmem:[%s5808 + $0x1e0] sm:$0xff]
        %v5870 = vld [vmem:[%s5808 + $0x1e8] sm:$0xff]
        %v5871 = vld [vmem:[%s5808 + $0x1f0] sm:$0xff]
        %v5872 = vld [vmem:[%s5808 + $0x1f8] sm:$0xff]
        %v5873 = vld [vmem:[%s5808 + $0x200] sm:$0xff]
        %v5874 = vld [vmem:[%s5808 + $0x208] sm:$0xff]
        %v5875 = vld [vmem:[%s5808 + $0x210] sm:$0xff]
        %v5876 = vld [vmem:[%s5808 + $0x218] sm:$0xff]
        %v5877 = vld [vmem:[%s5808 + $0x220] sm:$0xff]
        %v5878 = vld [vmem:[%s5808 + $0x228] sm:$0xff]
        %v5879 = vld [vmem:[%s5808 + $0x230] sm:$0xff]
        %v5880 = vld [vmem:[%s5808 + $0x238] sm:$0xff]
        %v5881 = vld [vmem:[%s5808 + $0x240] sm:$0xff]
        %v5882 = vld [vmem:[%s5808 + $0x248] sm:$0xff]
        %v5883 = vld [vmem:[%s5808 + $0x250] sm:$0xff]
        %v5884 = vld [vmem:[%s5808 + $0x258] sm:$0xff]
        %v5885 = vld [vmem:[%s5808 + $0x260] sm:$0xff]
        %v5886 = vld [vmem:[%s5808 + $0x268] sm:$0xff]
        %v5887 = vld [vmem:[%s5808 + $0x270] sm:$0xff]
        %v5888 = vld [vmem:[%s5808 + $0x278] sm:$0xff]
        %v5889 = vld [vmem:[%s5808 + $0x280] sm:$0xff]
        %v5890 = vld [vmem:[%s5808 + $0x288] sm:$0xff]
        %v5891 = vld [vmem:[%s5808 + $0x290] sm:$0xff]
        %v5892 = vld [vmem:[%s5808 + $0x298] sm:$0xff]
        %v5893 = vld [vmem:[%s5808 + $0x2a0] sm:$0xff]
        %v5894 = vld [vmem:[%s5808 + $0x2a8] sm:$0xff]
        %v5895 = vld [vmem:[%s5808 + $0x2b0] sm:$0xff]
        %v5896 = vld [vmem:[%s5808 + $0x2b8] sm:$0xff]
        %v5897 = vld [vmem:[%s5808 + $0x2c0] sm:$0xff]
        %v5898 = vld [vmem:[%s5808 + $0x2c8] sm:$0xff]
        %v5899 = vld [vmem:[%s5808 + $0x2d0] sm:$0xff]
        %v5900 = vld [vmem:[%s5808 + $0x2d8] sm:$0xff]
        %v5901 = vld [vmem:[%s5808 + $0x2e0] sm:$0xff]
        %v5902 = vld [vmem:[%s5808 + $0x2e8] sm:$0xff]
        %v5903 = vld [vmem:[%s5808 + $0x2f0] sm:$0xff]
        %v5904 = vld [vmem:[%s5808 + $0x2f8] sm:$0xff]
        %v5905 = vld [vmem:[%s5808 + $0x300] sm:$0xff]
        %v5906 = vld [vmem:[%s5808 + $0x308] sm:$0xff]
        %v5907 = vld [vmem:[%s5808 + $0x310] sm:$0xff]
        %v5908 = vld [vmem:[%s5808 + $0x318] sm:$0xff]
        %v5909 = vld [vmem:[%s5808 + $0x320] sm:$0xff]
        %v5910 = vld [vmem:[%s5808 + $0x328] sm:$0xff]
        %v5911 = vld [vmem:[%s5808 + $0x330] sm:$0xff]
        %v5912 = vld [vmem:[%s5808 + $0x338] sm:$0xff]
        %v5913 = vld [vmem:[%s5808 + $0x340] sm:$0xff]
        %v5914 = vld [vmem:[%s5808 + $0x348] sm:$0xff]
        %v5915 = vld [vmem:[%s5808 + $0x350] sm:$0xff]
        %v5916 = vld [vmem:[%s5808 + $0x358] sm:$0xff]
        %v5917 = vld [vmem:[%s5808 + $0x360] sm:$0xff]
        %v5918 = vld [vmem:[%s5808 + $0x368] sm:$0xff]
        %v5919 = vld [vmem:[%s5808 + $0x370] sm:$0xff]
        %v5920 = vld [vmem:[%s5808 + $0x378] sm:$0xff]
        %v5921 = vld [vmem:[%s5808 + $0x380] sm:$0xff]
        %v5922 = vld [vmem:[%s5808 + $0x388] sm:$0xff]
        %v5923 = vld [vmem:[%s5808 + $0x390] sm:$0xff]
        %v5924 = vld [vmem:[%s5808 + $0x398] sm:$0xff]
        %v5925 = vld [vmem:[%s5808 + $0x3a0] sm:$0xff]
        %v5926 = vld [vmem:[%s5808 + $0x3a8] sm:$0xff]
        %v5927 = vld [vmem:[%s5808 + $0x3b0] sm:$0xff]
        %v5928 = vld [vmem:[%s5808 + $0x3b8] sm:$0xff]
        %v5929 = vld [vmem:[%s5808 + $0x3c0] sm:$0xff]
        %v5930 = vld [vmem:[%s5808 + $0x3c8] sm:$0xff]
        %v5931 = vld [vmem:[%s5808 + $0x3d0] sm:$0xff]
        %v5932 = vld [vmem:[%s5808 + $0x3d8] sm:$0xff]
        %v5933 = vld [vmem:[%s5808 + $0x3e0] sm:$0xff]
        %v5934 = vld [vmem:[%s5808 + $0x3e8] sm:$0xff]
        %v5935 = vld [vmem:[%s5808 + $0x3f0] sm:$0xff]
        %v5936 = vld [vmem:[%s5808 + $0x3f8] sm:$0xff]
        %v5937 = vld [vmem:[%s5808 + $0x400] sm:$0xff]
        %v5938 = vld [vmem:[%s5808 + $0x408] sm:$0xff]
        %v5939 = vld [vmem:[%s5808 + $0x410] sm:$0xff]
        %v5940 = vld [vmem:[%s5808 + $0x418] sm:$0xff]
        %v5941 = vld [vmem:[%s5808 + $0x420] sm:$0xff]
        %v5942 = vld [vmem:[%s5808 + $0x428] sm:$0xff]
        %v5943 = vld [vmem:[%s5808 + $0x430] sm:$0xff]
        %v5944 = vld [vmem:[%s5808 + $0x438] sm:$0xff]
        %v5945 = vld [vmem:[%s5808 + $0x440] sm:$0xff]
        %v5946 = vld [vmem:[%s5808 + $0x448] sm:$0xff]
        %v5947 = vld [vmem:[%s5808 + $0x450] sm:$0xff]
        %v5948 = vld [vmem:[%s5808 + $0x458] sm:$0xff]
        %v5949 = vld [vmem:[%s5808 + $0x460] sm:$0xff]
        %v5950 = vld [vmem:[%s5808 + $0x468] sm:$0xff]
        %v5951 = vld [vmem:[%s5808 + $0x470] sm:$0xff]
        %v5952 = vld [vmem:[%s5808 + $0x478] sm:$0xff]
        %s5953 = scalar_lea.vmem %s2, 3
        %v5954 = vld [vmem:[%s5953] sm:$0x1]
        %v5956 = vlaneseq
        %v5957 = vshrl.u32 %v5956, 7
        %v5958 = vsub.s32 0, %v5957
        %v5959 = vrot.slane %v5954, %v5958
        %5961 = vmatprep.subr.mxu0 0.0
        %5962 = vmatpush1.msra.mxu0 %v5809
        %5963 = vmatprep.subr.mxu0 0.0
        %5964 = vmatpush1.msra.mxu0 %v5810
        %5965 = vmatprep.subr.mxu0 0.0
        %5966 = vmatpush1.msra.mxu0 %v5811
        %5967 = vmatprep.subr.mxu0 0.0
        %5968 = vmatpush1.msra.mxu0 %v5812
        %5969 = vmatprep.subr.mxu0 0.0
        %5970 = vmatpush1.msra.mxu0 %v5813
        %5971 = vmatprep.subr.mxu0 0.0
        %5972 = vmatpush1.msra.mxu0 %v5814
        %5973 = vmatprep.subr.mxu0 0.0
        %5974 = vmatpush1.msra.mxu0 %v5815
        %5975 = vmatprep.subr.mxu0 0.0
        %5976 = vmatpush1.msra.mxu0 %v5816
        %5977 = vmatprep.subr.mxu0 0.0
        %5978 = vmatpush1.msra.mxu0 %v5817
        %5979 = vmatprep.subr.mxu0 0.0
        %5980 = vmatpush1.msra.mxu0 %v5818
        %5981 = vmatprep.subr.mxu0 0.0
        %5982 = vmatpush1.msra.mxu0 %v5819
        %5983 = vmatprep.subr.mxu0 0.0
        %5984 = vmatpush1.msra.mxu0 %v5820
        %5985 = vmatprep.subr.mxu0 0.0
        %5986 = vmatpush1.msra.mxu0 %v5821
        %5987 = vmatprep.subr.mxu0 0.0
        %5988 = vmatpush1.msra.mxu0 %v5822
        %5989 = vmatprep.subr.mxu0 0.0
        %5990 = vmatpush1.msra.mxu0 %v5823
        %5991 = vmatprep.subr.mxu0 0.0
        %5992 = vmatpush1.msra.mxu0 %v5824
        %5993 = vmatprep.subr.mxu0 0.0
        %5994 = vmatpush1.msra.mxu0 %v5825
        %5995 = vmatprep.subr.mxu0 0.0
        %5996 = vmatpush1.msra.mxu0 %v5826
        %5997 = vmatprep.subr.mxu0 0.0
        %5998 = vmatpush1.msra.mxu0 %v5827
        %5999 = vmatprep.subr.mxu0 0.0
        %6000 = vmatpush1.msra.mxu0 %v5828
        %6001 = vmatprep.subr.mxu0 0.0
        %6002 = vmatpush1.msra.mxu0 %v5829
        %6003 = vmatprep.subr.mxu0 0.0
        %6004 = vmatpush1.msra.mxu0 %v5830
        %6005 = vmatprep.subr.mxu0 0.0
        %6006 = vmatpush1.msra.mxu0 %v5831
        %6007 = vmatprep.subr.mxu0 0.0
        %6008 = vmatpush1.msra.mxu0 %v5832
        %6009 = vmatprep.subr.mxu0 0.0
        %6010 = vmatpush1.msra.mxu0 %v5833
        %6011 = vmatprep.subr.mxu0 0.0
        %6012 = vmatpush1.msra.mxu0 %v5834
        %6013 = vmatprep.subr.mxu0 0.0
        %6014 = vmatpush1.msra.mxu0 %v5835
        %6015 = vmatprep.subr.mxu0 0.0
        %6016 = vmatpush1.msra.mxu0 %v5836
        %6017 = vmatprep.subr.mxu0 0.0
        %6018 = vmatpush1.msra.mxu0 %v5837
        %6019 = vmatprep.subr.mxu0 0.0
        %6020 = vmatpush1.msra.mxu0 %v5838
        %6021 = vmatprep.subr.mxu0 0.0
        %6022 = vmatpush1.msra.mxu0 %v5839
        %6023 = vmatprep.subr.mxu0 0.0
        %6024 = vmatpush1.msra.mxu0 %v5840
        %6025 = vmatprep.mubr.f32.mxu0 %v5552
        %6026 = vmatmul.mubr.f32.gmra.mrb[0].mxu0 %v5448
        %v6027 = vpop.f32.mrb[0].mxu0
        %v6028 = vadd.f32 %v5959, %v6027
        %v6029 = vpop.f32.mrb[0].mxu0
        %6030 = vmatprep.mubr.f32.mxu0 %v5554
        %6031 = vmatmul.mubr.f32.gmra.mrb[0].mxu0 %v5449
        %v6032 = vpop.f32.mrb[0].mxu0
        %v6033 = vadd.f32 %v5959, %v6032
        %v6034 = vpop.f32.mrb[0].mxu0
        %6035 = vmatprep.mubr.f32.mxu0 %v5557
        %6036 = vmatmul.mubr.f32.gmra.mrb[0].mxu0 %v5451
        %v6037 = vpop.f32.mrb[0].mxu0
        %v6038 = vadd.f32 %v5959, %v6037
        %v6039 = vpop.f32.mrb[0].mxu0
        %6040 = vmatprep.mubr.f32.mxu0 %v5559
        %6041 = vmatmul.mubr.f32.gmra.mrb[0].mxu0 %v5452
        %v6042 = vpop.f32.mrb[0].mxu0
        %v6043 = vadd.f32 %v5959, %v6042
        %v6044 = vpop.f32.mrb[0].mxu0
        %6045 = vmatprep.mubr.f32.mxu0 %v5562
        %6046 = vmatmul.mubr.f32.gmra.mrb[0].mxu0 %v5454
        %v6047 = vpop.f32.mrb[0].mxu0
        %v6048 = vadd.f32 %v5959, %v6047
        %v6049 = vpop.f32.mrb[0].mxu0
        %6050 = vmatprep.mubr.f32.mxu0 %v5564
        %6051 = vmatmul.mubr.f32.gmra.mrb[0].mxu0 %v5455
        %v6052 = vpop.f32.mrb[0].mxu0
        %v6053 = vadd.f32 %v5959, %v6052
        %v6054 = vpop.f32.mrb[0].mxu0
        %6055 = vmatprep.mubr.f32.mxu0 %v5567
        %6056 = vmatmul.mubr.f32.gmra.mrb[0].mxu0 %v5457
        %v6057 = vpop.f32.mrb[0].mxu0
        %v6058 = vadd.f32 %v5959, %v6057
        %v6059 = vpop.f32.mrb[0].mxu0
        %6060 = vmatprep.mubr.f32.mxu0 %v5569
        %6061 = vmatmul.mubr.f32.gmra.mrb[0].mxu0 %v5458
        %v6062 = vpop.f32.mrb[0].mxu0
        %v6063 = vadd.f32 %v5959, %v6062
        %v6064 = vpop.f32.mrb[0].mxu0
        %6065 = vmatprep.mubr.f32.mxu0 %v5572
        %6066 = vmatmul.mubr.f32.gmra.mrb[0].mxu0 %v5460
        %v6067 = vpop.f32.mrb[0].mxu0
        %v6068 = vadd.f32 %v5959, %v6067
        %v6069 = vpop.f32.mrb[0].mxu0
        %6070 = vmatprep.mubr.f32.mxu0 %v5574
        %6071 = vmatmul.mubr.f32.gmra.mrb[0].mxu0 %v5461
        %v6072 = vpop.f32.mrb[0].mxu0
        %v6073 = vadd.f32 %v5959, %v6072
        %v6074 = vpop.f32.mrb[0].mxu0
        %6075 = vmatprep.mubr.f32.mxu0 %v5577
        %6076 = vmatmul.mubr.f32.gmra.mrb[0].mxu0 %v5463
        %v6077 = vpop.f32.mrb[0].mxu0
        %v6078 = vadd.f32 %v5959, %v6077
        %v6079 = vpop.f32.mrb[0].mxu0
        %6080 = vmatprep.mubr.f32.mxu0 %v5579
        %6081 = vmatmul.mubr.f32.gmra.mrb[0].mxu0 %v5464
        %v6082 = vpop.f32.mrb[0].mxu0
        %v6083 = vadd.f32 %v5959, %v6082
        %v6084 = vpop.f32.mrb[0].mxu0
        %6085 = vmatprep.mubr.f32.mxu0 %v5582
        %6086 = vmatmul.mubr.f32.gmra.mrb[0].mxu0 %v5466
        %v6087 = vpop.f32.mrb[0].mxu0
        %v6088 = vadd.f32 %v5959, %v6087
        %v6089 = vpop.f32.mrb[0].mxu0
        %6090 = vmatprep.mubr.f32.mxu0 %v5584
        %6091 = vmatmul.mubr.f32.gmra.mrb[0].mxu0 %v5467
        %v6092 = vpop.f32.mrb[0].mxu0
        %v6093 = vadd.f32 %v5959, %v6092
        %v6094 = vpop.f32.mrb[0].mxu0
        %6095 = vmatprep.mubr.f32.mxu0 %v5587
        %6096 = vmatmul.mubr.f32.gmra.mrb[0].mxu0 %v5469
        %v6097 = vpop.f32.mrb[0].mxu0
        %v6098 = vadd.f32 %v5959, %v6097
        %v6099 = vpop.f32.mrb[0].mxu0
        %6100 = vmatprep.mubr.f32.mxu0 %v5589
        %6101 = vmatmul.mubr.f32.gmra.mrb[0].mxu0 %v5470
        %v6102 = vpop.f32.mrb[0].mxu0
        %v6103 = vadd.f32 %v5959, %v6102
        %v6104 = vpop.f32.mrb[0].mxu0
        %6105 = vmatprep.mubr.f32.mxu0 %v5592
        %6106 = vmatmul.mubr.f32.gmra.mrb[0].mxu0 %v5472
        %v6107 = vpop.f32.mrb[0].mxu0
        %v6108 = vadd.f32 %v5959, %v6107
        %v6109 = vpop.f32.mrb[0].mxu0
        %6110 = vmatprep.mubr.f32.mxu0 %v5594
        %6111 = vmatmul.mubr.f32.gmra.mrb[0].mxu0 %v5473
        %v6112 = vpop.f32.mrb[0].mxu0
        %v6113 = vadd.f32 %v5959, %v6112
        %v6114 = vpop.f32.mrb[0].mxu0
        %6115 = vmatprep.mubr.f32.mxu0 %v5597
        %6116 = vmatmul.mubr.f32.gmra.mrb[0].mxu0 %v5475
        %v6117 = vpop.f32.mrb[0].mxu0
        %v6118 = vadd.f32 %v5959, %v6117
        %v6119 = vpop.f32.mrb[0].mxu0
        %6120 = vmatprep.mubr.f32.mxu0 %v5599
        %6121 = vmatmul.mubr.f32.gmra.mrb[0].mxu0 %v5476
        %v6122 = vpop.f32.mrb[0].mxu0
        %v6123 = vadd.f32 %v5959, %v6122
        %v6124 = vpop.f32.mrb[0].mxu0
        %6125 = vmatprep.mubr.f32.mxu0 %v5602
        %6126 = vmatmul.mubr.f32.gmra.mrb[0].mxu0 %v5478
        %v6127 = vpop.f32.mrb[0].mxu0
        %v6128 = vadd.f32 %v5959, %v6127
        %v6129 = vpop.f32.mrb[0].mxu0
        %6130 = vmatprep.mubr.f32.mxu0 %v5604
        %6131 = vmatmul.mubr.f32.gmra.mrb[0].mxu0 %v5479
        %v6132 = vpop.f32.mrb[0].mxu0
        %v6133 = vadd.f32 %v5959, %v6132
        %v6134 = vpop.f32.mrb[0].mxu0
        %6135 = vmatprep.mubr.f32.mxu0 %v5607
        %6136 = vmatmul.mubr.f32.gmra.mrb[0].mxu0 %v5481
        %v6137 = vpop.f32.mrb[0].mxu0
        %v6138 = vadd.f32 %v5959, %v6137
        %v6139 = vpop.f32.mrb[0].mxu0
        %6140 = vmatprep.mubr.f32.mxu0 %v5609
        %6141 = vmatmul.mubr.f32.gmra.mrb[0].mxu0 %v5482
        %v6142 = vpop.f32.mrb[0].mxu0
        %v6143 = vadd.f32 %v5959, %v6142
        %v6144 = vpop.f32.mrb[0].mxu0
        %6145 = vmatprep.mubr.f32.mxu0 %v5612
        %6146 = vmatmul.mubr.f32.gmra.mrb[0].mxu0 %v5484
        %v6147 = vpop.f32.mrb[0].mxu0
        %v6148 = vadd.f32 %v5959, %v6147
        %v6149 = vpop.f32.mrb[0].mxu0
        %6150 = vmatprep.mubr.f32.mxu0 %v5614
        %6151 = vmatmul.mubr.f32.gmra.mrb[0].mxu0 %v5485
        %v6152 = vpop.f32.mrb[0].mxu0
        %v6153 = vadd.f32 %v5959, %v6152
        %v6154 = vpop.f32.mrb[0].mxu0
        %6155 = vmatprep.mubr.f32.mxu0 %v5617
        %6156 = vmatmul.mubr.f32.gmra.mrb[0].mxu0 %v5487
        %v6157 = vpop.f32.mrb[0].mxu0
        %v6158 = vadd.f32 %v5959, %v6157
        %v6159 = vpop.f32.mrb[0].mxu0
        %6160 = vmatprep.mubr.f32.mxu0 %v5619
        %6161 = vmatmul.mubr.f32.gmra.mrb[0].mxu0 %v5488
        %v6162 = vpop.f32.mrb[0].mxu0
        %v6163 = vadd.f32 %v5959, %v6162
        %v6164 = vpop.f32.mrb[0].mxu0
        %6165 = vmatprep.mubr.f32.mxu0 %v5622
        %6166 = vmatmul.mubr.f32.gmra.mrb[0].mxu0 %v5490
        %v6167 = vpop.f32.mrb[0].mxu0
        %v6168 = vadd.f32 %v5959, %v6167
        %v6169 = vpop.f32.mrb[0].mxu0
        %6170 = vmatprep.mubr.f32.mxu0 %v5624
        %6171 = vmatmul.mubr.f32.gmra.mrb[0].mxu0 %v5491
        %v6172 = vpop.f32.mrb[0].mxu0
        %v6173 = vadd.f32 %v5959, %v6172
        %v6174 = vpop.f32.mrb[0].mxu0
        %6175 = vmatprep.mubr.f32.mxu0 %v5627
        %6176 = vmatmul.mubr.f32.gmra.mrb[0].mxu0 %v5493
        %v6177 = vpop.f32.mrb[0].mxu0
        %v6178 = vadd.f32 %v5959, %v6177
        %v6179 = vpop.f32.mrb[0].mxu0
        %6180 = vmatprep.mubr.f32.mxu0 %v5629
        %6181 = vmatmul.mubr.f32.gmra.mrb[0].mxu0 %v5494
        %v6182 = vpop.f32.mrb[0].mxu0
        %v6183 = vadd.f32 %v5959, %v6182
        %v6184 = vpop.f32.mrb[0].mxu0
        %6185 = vdwg.mxu0
        %6186 = vmatprep.subr.mxu0 0.0
        %6187 = vmatpush1.msra.mxu0 %v5841
        %6188 = vmatprep.subr.mxu0 0.0
        %6189 = vmatpush1.msra.mxu0 %v5842
        %6190 = vmatprep.subr.mxu0 0.0
        %6191 = vmatpush1.msra.mxu0 %v5843
        %6192 = vmatprep.subr.mxu0 0.0
        %6193 = vmatpush1.msra.mxu0 %v5844
        %6194 = vmatprep.subr.mxu0 0.0
        %6195 = vmatpush1.msra.mxu0 %v5845
        %6196 = vmatprep.subr.mxu0 0.0
        %6197 = vmatpush1.msra.mxu0 %v5846
        %6198 = vmatprep.subr.mxu0 0.0
        %6199 = vmatpush1.msra.mxu0 %v5847
        %6200 = vmatprep.subr.mxu0 0.0
        %6201 = vmatpush1.msra.mxu0 %v5848
        %6202 = vmatprep.subr.mxu0 0.0
        %6203 = vmatpush1.msra.mxu0 %v5849
        %6204 = vmatprep.subr.mxu0 0.0
        %6205 = vmatpush1.msra.mxu0 %v5850
        %6206 = vmatprep.subr.mxu0 0.0
        %6207 = vmatpush1.msra.mxu0 %v5851
        %6208 = vmatprep.subr.mxu0 0.0
        %6209 = vmatpush1.msra.mxu0 %v5852
        %6210 = vmatprep.subr.mxu0 0.0
        %6211 = vmatpush1.msra.mxu0 %v5853
        %6212 = vmatprep.subr.mxu0 0.0
        %6213 = vmatpush1.msra.mxu0 %v5854
        %6214 = vmatprep.subr.mxu0 0.0
        %6215 = vmatpush1.msra.mxu0 %v5855
        %6216 = vmatprep.subr.mxu0 0.0
        %6217 = vmatpush1.msra.mxu0 %v5856
        %6218 = vmatprep.subr.mxu0 0.0
        %6219 = vmatpush1.msra.mxu0 %v5857
        %6220 = vmatprep.subr.mxu0 0.0
        %6221 = vmatpush1.msra.mxu0 %v5858
        %6222 = vmatprep.subr.mxu0 0.0
        %6223 = vmatpush1.msra.mxu0 %v5859
        %6224 = vmatprep.subr.mxu0 0.0
        %6225 = vmatpush1.msra.mxu0 %v5860
        %6226 = vmatprep.subr.mxu0 0.0
        %6227 = vmatpush1.msra.mxu0 %v5861
        %6228 = vmatprep.subr.mxu0 0.0
        %6229 = vmatpush1.msra.mxu0 %v5862
        %6230 = vmatprep.subr.mxu0 0.0
        %6231 = vmatpush1.msra.mxu0 %v5863
        %6232 = vmatprep.subr.mxu0 0.0
        %6233 = vmatpush1.msra.mxu0 %v5864
        %6234 = vmatprep.subr.mxu0 0.0
        %6235 = vmatpush1.msra.mxu0 %v5865
        %6236 = vmatprep.subr.mxu0 0.0
        %6237 = vmatpush1.msra.mxu0 %v5866
        %6238 = vmatprep.subr.mxu0 0.0
        %6239 = vmatpush1.msra.mxu0 %v5867
        %6240 = vmatprep.subr.mxu0 0.0
        %6241 = vmatpush1.msra.mxu0 %v5868
        %6242 = vmatprep.subr.mxu0 0.0
        %6243 = vmatpush1.msra.mxu0 %v5869
        %6244 = vmatprep.subr.mxu0 0.0
        %6245 = vmatpush1.msra.mxu0 %v5870
        %6246 = vmatprep.subr.mxu0 0.0
        %6247 = vmatpush1.msra.mxu0 %v5871
        %6248 = vmatprep.subr.mxu0 0.0
        %6249 = vmatpush1.msra.mxu0 %v5872
        %6250 = vmatprep.mubr.f32.mxu0 %v5451
        %6251 = vmatmul.mubr.f32.gmra.mrb[0].mxu0 %v5664
        %v6252 = vpop.f32.mrb[0].mxu0
        %v6253 = vadd.f32 %v6028, %v6252
        %v6254 = vpop.f32.mrb[0].mxu0
        %6255 = vmatprep.mubr.f32.mxu0 %v5452
        %6256 = vmatmul.mubr.f32.gmra.mrb[0].mxu0 %v5666
        %v6257 = vpop.f32.mrb[0].mxu0
        %v6258 = vadd.f32 %v6033, %v6257
        %v6259 = vpop.f32.mrb[0].mxu0
        %6260 = vmatprep.mubr.f32.mxu0 %v5454
        %6261 = vmatmul.mubr.f32.gmra.mrb[0].mxu0 %v5669
        %v6262 = vpop.f32.mrb[0].mxu0
        %v6263 = vadd.f32 %v6038, %v6262
        %v6264 = vpop.f32.mrb[0].mxu0
        %6265 = vmatprep.mubr.f32.mxu0 %v5455
        %6266 = vmatmul.mubr.f32.gmra.mrb[0].mxu0 %v5671
        %v6267 = vpop.f32.mrb[0].mxu0
        %v6268 = vadd.f32 %v6043, %v6267
        %v6269 = vpop.f32.mrb[0].mxu0
        %6270 = vmatprep.mubr.f32.mxu0 %v5457
        %6271 = vmatmul.mubr.f32.gmra.mrb[0].mxu0 %v5674
        %v6272 = vpop.f32.mrb[0].mxu0
        %v6273 = vadd.f32 %v6048, %v6272
        %v6274 = vpop.f32.mrb[0].mxu0
        %6275 = vmatprep.mubr.f32.mxu0 %v5458
        %6276 = vmatmul.mubr.f32.gmra.mrb[0].mxu0 %v5676
        %v6277 = vpop.f32.mrb[0].mxu0
        %v6278 = vadd.f32 %v6053, %v6277
        %v6279 = vpop.f32.mrb[0].mxu0
        %6280 = vmatprep.mubr.f32.mxu0 %v5460
        %6281 = vmatmul.mubr.f32.gmra.mrb[0].mxu0 %v5679
        %v6282 = vpop.f32.mrb[0].mxu0
        %v6283 = vadd.f32 %v6058, %v6282
        %v6284 = vpop.f32.mrb[0].mxu0
        %6285 = vmatprep.mubr.f32.mxu0 %v5461
        %6286 = vmatmul.mubr.f32.gmra.mrb[0].mxu0 %v5681
        %v6287 = vpop.f32.mrb[0].mxu0
        %v6288 = vadd.f32 %v6063, %v6287
        %v6289 = vpop.f32.mrb[0].mxu0
        %6290 = vmatprep.mubr.f32.mxu0 %v5463
        %6291 = vmatmul.mubr.f32.gmra.mrb[0].mxu0 %v5684
        %v6292 = vpop.f32.mrb[0].mxu0
        %v6293 = vadd.f32 %v6068, %v6292
        %v6294 = vpop.f32.mrb[0].mxu0
        %6295 = vmatprep.mubr.f32.mxu0 %v5464
        %6296 = vmatmul.mubr.f32.gmra.mrb[0].mxu0 %v5686
        %v6297 = vpop.f32.mrb[0].mxu0
        %v6298 = vadd.f32 %v6073, %v6297
        %v6299 = vpop.f32.mrb[0].mxu0
        %6300 = vmatprep.mubr.f32.mxu0 %v5466
        %6301 = vmatmul.mubr.f32.gmra.mrb[0].mxu0 %v5689
        %v6302 = vpop.f32.mrb[0].mxu0
        %v6303 = vadd.f32 %v6078, %v6302
        %v6304 = vpop.f32.mrb[0].mxu0
        %6305 = vmatprep.mubr.f32.mxu0 %v5467
        %6306 = vmatmul.mubr.f32.gmra.mrb[0].mxu0 %v5691
        %v6307 = vpop.f32.mrb[0].mxu0
        %v6308 = vadd.f32 %v6083, %v6307
        %v6309 = vpop.f32.mrb[0].mxu0
        %6310 = vmatprep.mubr.f32.mxu0 %v5469
        %6311 = vmatmul.mubr.f32.gmra.mrb[0].mxu0 %v5694
        %v6312 = vpop.f32.mrb[0].mxu0
        %v6313 = vadd.f32 %v6088, %v6312
        %v6314 = vpop.f32.mrb[0].mxu0
        %6315 = vmatprep.mubr.f32.mxu0 %v5470
        %6316 = vmatmul.mubr.f32.gmra.mrb[0].mxu0 %v5696
        %v6317 = vpop.f32.mrb[0].mxu0
        %v6318 = vadd.f32 %v6093, %v6317
        %v6319 = vpop.f32.mrb[0].mxu0
        %6320 = vmatprep.mubr.f32.mxu0 %v5472
        %6321 = vmatmul.mubr.f32.gmra.mrb[0].mxu0 %v5699
        %v6322 = vpop.f32.mrb[0].mxu0
        %v6323 = vadd.f32 %v6098, %v6322
        %v6324 = vpop.f32.mrb[0].mxu0
        %6325 = vmatprep.mubr.f32.mxu0 %v5473
        %6326 = vmatmul.mubr.f32.gmra.mrb[0].mxu0 %v5701
        %v6327 = vpop.f32.mrb[0].mxu0
        %v6328 = vadd.f32 %v6103, %v6327
        %v6329 = vpop.f32.mrb[0].mxu0
        %6330 = vmatprep.mubr.f32.mxu0 %v5475
        %6331 = vmatmul.mubr.f32.gmra.mrb[0].mxu0 %v5704
        %v6332 = vpop.f32.mrb[0].mxu0
        %v6333 = vadd.f32 %v6108, %v6332
        %v6334 = vpop.f32.mrb[0].mxu0
        %6335 = vmatprep.mubr.f32.mxu0 %v5476
        %6336 = vmatmul.mubr.f32.gmra.mrb[0].mxu0 %v5706
        %v6337 = vpop.f32.mrb[0].mxu0
        %v6338 = vadd.f32 %v6113, %v6337
        %v6339 = vpop.f32.mrb[0].mxu0
        %6340 = vmatprep.mubr.f32.mxu0 %v5478
        %6341 = vmatmul.mubr.f32.gmra.mrb[0].mxu0 %v5709
        %v6342 = vpop.f32.mrb[0].mxu0
        %v6343 = vadd.f32 %v6118, %v6342
        %v6344 = vpop.f32.mrb[0].mxu0
        %6345 = vmatprep.mubr.f32.mxu0 %v5479
        %6346 = vmatmul.mubr.f32.gmra.mrb[0].mxu0 %v5711
        %v6347 = vpop.f32.mrb[0].mxu0
        %v6348 = vadd.f32 %v6123, %v6347
        %v6349 = vpop.f32.mrb[0].mxu0
        %6350 = vmatprep.mubr.f32.mxu0 %v5481
        %6351 = vmatmul.mubr.f32.gmra.mrb[0].mxu0 %v5714
        %v6352 = vpop.f32.mrb[0].mxu0
        %v6353 = vadd.f32 %v6128, %v6352
        %v6354 = vpop.f32.mrb[0].mxu0
        %6355 = vmatprep.mubr.f32.mxu0 %v5482
        %6356 = vmatmul.mubr.f32.gmra.mrb[0].mxu0 %v5716
        %v6357 = vpop.f32.mrb[0].mxu0
        %v6358 = vadd.f32 %v6133, %v6357
        %v6359 = vpop.f32.mrb[0].mxu0
        %6360 = vmatprep.mubr.f32.mxu0 %v5484
        %6361 = vmatmul.mubr.f32.gmra.mrb[0].mxu0 %v5719
        %v6362 = vpop.f32.mrb[0].mxu0
        %v6363 = vadd.f32 %v6138, %v6362
        %v6364 = vpop.f32.mrb[0].mxu0
        %6365 = vmatprep.mubr.f32.mxu0 %v5485
        %6366 = vmatmul.mubr.f32.gmra.mrb[0].mxu0 %v5721
        %v6367 = vpop.f32.mrb[0].mxu0
        %v6368 = vadd.f32 %v6143, %v6367
        %v6369 = vpop.f32.mrb[0].mxu0
        %6370 = vmatprep.mubr.f32.mxu0 %v5487
        %6371 = vmatmul.mubr.f32.gmra.mrb[0].mxu0 %v5724
        %v6372 = vpop.f32.mrb[0].mxu0
        %v6373 = vadd.f32 %v6148, %v6372
        %v6374 = vpop.f32.mrb[0].mxu0
        %6375 = vmatprep.mubr.f32.mxu0 %v5488
        %6376 = vmatmul.mubr.f32.gmra.mrb[0].mxu0 %v5726
        %v6377 = vpop.f32.mrb[0].mxu0
        %v6378 = vadd.f32 %v6153, %v6377
        %v6379 = vpop.f32.mrb[0].mxu0
        %6380 = vmatprep.mubr.f32.mxu0 %v5490
        %6381 = vmatmul.mubr.f32.gmra.mrb[0].mxu0 %v5729
        %v6382 = vpop.f32.mrb[0].mxu0
        %v6383 = vadd.f32 %v6158, %v6382
        %v6384 = vpop.f32.mrb[0].mxu0
        %6385 = vmatprep.mubr.f32.mxu0 %v5491
        %6386 = vmatmul.mubr.f32.gmra.mrb[0].mxu0 %v5731
        %v6387 = vpop.f32.mrb[0].mxu0
        %v6388 = vadd.f32 %v6163, %v6387
        %v6389 = vpop.f32.mrb[0].mxu0
        %6390 = vmatprep.mubr.f32.mxu0 %v5493
        %6391 = vmatmul.mubr.f32.gmra.mrb[0].mxu0 %v5734
        %v6392 = vpop.f32.mrb[0].mxu0
        %v6393 = vadd.f32 %v6168, %v6392
        %v6394 = vpop.f32.mrb[0].mxu0
        %6395 = vmatprep.mubr.f32.mxu0 %v5494
        %6396 = vmatmul.mubr.f32.gmra.mrb[0].mxu0 %v5736
        %v6397 = vpop.f32.mrb[0].mxu0
        %v6398 = vadd.f32 %v6173, %v6397
        %v6399 = vpop.f32.mrb[0].mxu0
        %6400 = vmatprep.mubr.f32.mxu0 %v5496
        %6401 = vmatmul.mubr.f32.gmra.mrb[0].mxu0 %v5739
        %v6402 = vpop.f32.mrb[0].mxu0
        %v6403 = vadd.f32 %v6178, %v6402
        %v6404 = vpop.f32.mrb[0].mxu0
        %6405 = vmatprep.mubr.f32.mxu0 %v5497
        %6406 = vmatmul.mubr.f32.gmra.mrb[0].mxu0 %v5741
        %v6407 = vpop.f32.mrb[0].mxu0
        %v6408 = vadd.f32 %v6183, %v6407
        %v6409 = vpop.f32.mrb[0].mxu0
        %6410 = vdwg.mxu0
        %6411 = vmatprep.subr.mxu0 0.0
        %6412 = vmatpush1.msra.mxu0 %v5873
        %6413 = vmatprep.subr.mxu0 0.0
        %6414 = vmatpush1.msra.mxu0 %v5874
        %6415 = vmatprep.subr.mxu0 0.0
        %6416 = vmatpush1.msra.mxu0 %v5875
        %6417 = vmatprep.subr.mxu0 0.0
        %6418 = vmatpush1.msra.mxu0 %v5876
        %6419 = vmatprep.subr.mxu0 0.0
        %6420 = vmatpush1.msra.mxu0 %v5877
        %6421 = vmatprep.subr.mxu0 0.0
        %6422 = vmatpush1.msra.mxu0 %v5878
        %6423 = vmatprep.subr.mxu0 0.0
        %6424 = vmatpush1.msra.mxu0 %v5879
        %6425 = vmatprep.subr.mxu0 0.0
        %6426 = vmatpush1.msra.mxu0 %v5880
        %6427 = vmatprep.subr.mxu0 0.0
        %6428 = vmatpush1.msra.mxu0 %v5881
        %6429 = vmatprep.subr.mxu0 0.0
        %6430 = vmatpush1.msra.mxu0 %v5882
        %6431 = vmatprep.subr.mxu0 0.0
        %6432 = vmatpush1.msra.mxu0 %v5883
        %6433 = vmatprep.subr.mxu0 0.0
        %6434 = vmatpush1.msra.mxu0 %v5884
        %6435 = vmatprep.subr.mxu0 0.0
        %6436 = vmatpush1.msra.mxu0 %v5885
        %6437 = vmatprep.subr.mxu0 0.0
        %6438 = vmatpush1.msra.mxu0 %v5886
        %6439 = vmatprep.subr.mxu0 0.0
        %6440 = vmatpush1.msra.mxu0 %v5887
        %6441 = vmatprep.subr.mxu0 0.0
        %6442 = vmatpush1.msra.mxu0 %v5888
        %6443 = vmatprep.subr.mxu0 0.0
        %6444 = vmatpush1.msra.mxu0 %v5889
        %6445 = vmatprep.subr.mxu0 0.0
        %6446 = vmatpush1.msra.mxu0 %v5890
        %6447 = vmatprep.subr.mxu0 0.0
        %6448 = vmatpush1.msra.mxu0 %v5891
        %6449 = vmatprep.subr.mxu0 0.0
        %6450 = vmatpush1.msra.mxu0 %v5892
        %6451 = vmatprep.subr.mxu0 0.0
        %6452 = vmatpush1.msra.mxu0 %v5893
        %6453 = vmatprep.subr.mxu0 0.0
        %6454 = vmatpush1.msra.mxu0 %v5894
        %6455 = vmatprep.subr.mxu0 0.0
        %6456 = vmatpush1.msra.mxu0 %v5895
        %6457 = vmatprep.subr.mxu0 0.0
        %6458 = vmatpush1.msra.mxu0 %v5896
        %6459 = vmatprep.subr.mxu0 0.0
        %6460 = vmatpush1.msra.mxu0 %v5897
        %6461 = vmatprep.subr.mxu0 0.0
        %6462 = vmatpush1.msra.mxu0 %v5898
        %6463 = vmatprep.subr.mxu0 0.0
        %6464 = vmatpush1.msra.mxu0 %v5899
        %6465 = vmatprep.subr.mxu0 0.0
        %6466 = vmatpush1.msra.mxu0 %v5900
        %6467 = vmatprep.subr.mxu0 0.0
        %6468 = vmatpush1.msra.mxu0 %v5901
        %6469 = vmatprep.subr.mxu0 0.0
        %6470 = vmatpush1.msra.mxu0 %v5902
        %6471 = vmatprep.subr.mxu0 0.0
        %6472 = vmatpush1.msra.mxu0 %v5903
        %6473 = vmatprep.subr.mxu0 0.0
        %6474 = vmatpush1.msra.mxu0 %v5904
        %6475 = vmatprep.mubr.f32.mxu0 %v5669
        %6476 = vmatmul.mubr.f32.gmra.mrb[0].mxu0 %v5557
        %v6477 = vpop.f32.mrb[0].mxu0
        %v6478 = vadd.f32 %v6253, %v6477
        %v6479 = vpop.f32.mrb[0].mxu0
        %6480 = vmatprep.mubr.f32.mxu0 %v5671
        %6481 = vmatmul.mubr.f32.gmra.mrb[0].mxu0 %v5559
        %v6482 = vpop.f32.mrb[0].mxu0
        %v6483 = vadd.f32 %v6258, %v6482
        %v6484 = vpop.f32.mrb[0].mxu0
        %6485 = vmatprep.mubr.f32.mxu0 %v5674
        %6486 = vmatmul.mubr.f32.gmra.mrb[0].mxu0 %v5562
        %v6487 = vpop.f32.mrb[0].mxu0
        %v6488 = vadd.f32 %v6263, %v6487
        %v6489 = vpop.f32.mrb[0].mxu0
        %6490 = vmatprep.mubr.f32.mxu0 %v5676
        %6491 = vmatmul.mubr.f32.gmra.mrb[0].mxu0 %v5564
        %v6492 = vpop.f32.mrb[0].mxu0
        %v6493 = vadd.f32 %v6268, %v6492
        %v6494 = vpop.f32.mrb[0].mxu0
        %6495 = vmatprep.mubr.f32.mxu0 %v5679
        %6496 = vmatmul.mubr.f32.gmra.mrb[0].mxu0 %v5567
        %v6497 = vpop.f32.mrb[0].mxu0
        %v6498 = vadd.f32 %v6273, %v6497
        %v6499 = vpop.f32.mrb[0].mxu0
        %6500 = vmatprep.mubr.f32.mxu0 %v5681
        %6501 = vmatmul.mubr.f32.gmra.mrb[0].mxu0 %v5569
        %v6502 = vpop.f32.mrb[0].mxu0
        %v6503 = vadd.f32 %v6278, %v6502
        %v6504 = vpop.f32.mrb[0].mxu0
        %6505 = vmatprep.mubr.f32.mxu0 %v5684
        %6506 = vmatmul.mubr.f32.gmra.mrb[0].mxu0 %v5572
        %v6507 = vpop.f32.mrb[0].mxu0
        %v6508 = vadd.f32 %v6283, %v6507
        %v6509 = vpop.f32.mrb[0].mxu0
        %6510 = vmatprep.mubr.f32.mxu0 %v5686
        %6511 = vmatmul.mubr.f32.gmra.mrb[0].mxu0 %v5574
        %v6512 = vpop.f32.mrb[0].mxu0
        %v6513 = vadd.f32 %v6288, %v6512
        %v6514 = vpop.f32.mrb[0].mxu0
        %6515 = vmatprep.mubr.f32.mxu0 %v5689
        %6516 = vmatmul.mubr.f32.gmra.mrb[0].mxu0 %v5577
        %v6517 = vpop.f32.mrb[0].mxu0
        %v6518 = vadd.f32 %v6293, %v6517
        %v6519 = vpop.f32.mrb[0].mxu0
        %6520 = vmatprep.mubr.f32.mxu0 %v5691
        %6521 = vmatmul.mubr.f32.gmra.mrb[0].mxu0 %v5579
        %v6522 = vpop.f32.mrb[0].mxu0
        %v6523 = vadd.f32 %v6298, %v6522
        %v6524 = vpop.f32.mrb[0].mxu0
        %6525 = vmatprep.mubr.f32.mxu0 %v5694
        %6526 = vmatmul.mubr.f32.gmra.mrb[0].mxu0 %v5582
        %v6527 = vpop.f32.mrb[0].mxu0
        %v6528 = vadd.f32 %v6303, %v6527
        %v6529 = vpop.f32.mrb[0].mxu0
        %6530 = vmatprep.mubr.f32.mxu0 %v5696
        %6531 = vmatmul.mubr.f32.gmra.mrb[0].mxu0 %v5584
        %v6532 = vpop.f32.mrb[0].mxu0
        %v6533 = vadd.f32 %v6308, %v6532
        %v6534 = vpop.f32.mrb[0].mxu0
        %6535 = vmatprep.mubr.f32.mxu0 %v5699
        %6536 = vmatmul.mubr.f32.gmra.mrb[0].mxu0 %v5587
        %v6537 = vpop.f32.mrb[0].mxu0
        %v6538 = vadd.f32 %v6313, %v6537
        %v6539 = vpop.f32.mrb[0].mxu0
        %6540 = vmatprep.mubr.f32.mxu0 %v5701
        %6541 = vmatmul.mubr.f32.gmra.mrb[0].mxu0 %v5589
        %v6542 = vpop.f32.mrb[0].mxu0
        %v6543 = vadd.f32 %v6318, %v6542
        %v6544 = vpop.f32.mrb[0].mxu0
        %6545 = vmatprep.mubr.f32.mxu0 %v5704
        %6546 = vmatmul.mubr.f32.gmra.mrb[0].mxu0 %v5592
        %v6547 = vpop.f32.mrb[0].mxu0
        %v6548 = vadd.f32 %v6323, %v6547
        %v6549 = vpop.f32.mrb[0].mxu0
        %6550 = vmatprep.mubr.f32.mxu0 %v5706
        %6551 = vmatmul.mubr.f32.gmra.mrb[0].mxu0 %v5594
        %v6552 = vpop.f32.mrb[0].mxu0
        %v6553 = vadd.f32 %v6328, %v6552
        %v6554 = vpop.f32.mrb[0].mxu0
        %6555 = vmatprep.mubr.f32.mxu0 %v5709
        %6556 = vmatmul.mubr.f32.gmra.mrb[0].mxu0 %v5597
        %v6557 = vpop.f32.mrb[0].mxu0
        %v6558 = vadd.f32 %v6333, %v6557
        %v6559 = vpop.f32.mrb[0].mxu0
        %6560 = vmatprep.mubr.f32.mxu0 %v5711
        %6561 = vmatmul.mubr.f32.gmra.mrb[0].mxu0 %v5599
        %v6562 = vpop.f32.mrb[0].mxu0
        %v6563 = vadd.f32 %v6338, %v6562
        %v6564 = vpop.f32.mrb[0].mxu0
        %6565 = vmatprep.mubr.f32.mxu0 %v5714
        %6566 = vmatmul.mubr.f32.gmra.mrb[0].mxu0 %v5602
        %v6567 = vpop.f32.mrb[0].mxu0
        %v6568 = vadd.f32 %v6343, %v6567
        %v6569 = vpop.f32.mrb[0].mxu0
        %6570 = vmatprep.mubr.f32.mxu0 %v5716
        %6571 = vmatmul.mubr.f32.gmra.mrb[0].mxu0 %v5604
        %v6572 = vpop.f32.mrb[0].mxu0
        %v6573 = vadd.f32 %v6348, %v6572
        %v6574 = vpop.f32.mrb[0].mxu0
        %6575 = vmatprep.mubr.f32.mxu0 %v5719
        %6576 = vmatmul.mubr.f32.gmra.mrb[0].mxu0 %v5607
        %v6577 = vpop.f32.mrb[0].mxu0
        %v6578 = vadd.f32 %v6353, %v6577
        %v6579 = vpop.f32.mrb[0].mxu0
        %6580 = vmatprep.mubr.f32.mxu0 %v5721
        %6581 = vmatmul.mubr.f32.gmra.mrb[0].mxu0 %v5609
        %v6582 = vpop.f32.mrb[0].mxu0
        %v6583 = vadd.f32 %v6358, %v6582
        %v6584 = vpop.f32.mrb[0].mxu0
        %6585 = vmatprep.mubr.f32.mxu0 %v5724
        %6586 = vmatmul.mubr.f32.gmra.mrb[0].mxu0 %v5612
        %v6587 = vpop.f32.mrb[0].mxu0
        %v6588 = vadd.f32 %v6363, %v6587
        %v6589 = vpop.f32.mrb[0].mxu0
        %6590 = vmatprep.mubr.f32.mxu0 %v5726
        %6591 = vmatmul.mubr.f32.gmra.mrb[0].mxu0 %v5614
        %v6592 = vpop.f32.mrb[0].mxu0
        %v6593 = vadd.f32 %v6368, %v6592
        %v6594 = vpop.f32.mrb[0].mxu0
        %6595 = vmatprep.mubr.f32.mxu0 %v5729
        %6596 = vmatmul.mubr.f32.gmra.mrb[0].mxu0 %v5617
        %v6597 = vpop.f32.mrb[0].mxu0
        %v6598 = vadd.f32 %v6373, %v6597
        %v6599 = vpop.f32.mrb[0].mxu0
        %6600 = vmatprep.mubr.f32.mxu0 %v5731
        %6601 = vmatmul.mubr.f32.gmra.mrb[0].mxu0 %v5619
        %v6602 = vpop.f32.mrb[0].mxu0
        %v6603 = vadd.f32 %v6378, %v6602
        %v6604 = vpop.f32.mrb[0].mxu0
        %6605 = vmatprep.mubr.f32.mxu0 %v5734
        %6606 = vmatmul.mubr.f32.gmra.mrb[0].mxu0 %v5622
        %v6607 = vpop.f32.mrb[0].mxu0
        %v6608 = vadd.f32 %v6383, %v6607
        %v6609 = vpop.f32.mrb[0].mxu0
        %6610 = vmatprep.mubr.f32.mxu0 %v5736
        %6611 = vmatmul.mubr.f32.gmra.mrb[0].mxu0 %v5624
        %v6612 = vpop.f32.mrb[0].mxu0
        %v6613 = vadd.f32 %v6388, %v6612
        %v6614 = vpop.f32.mrb[0].mxu0
        %6615 = vmatprep.mubr.f32.mxu0 %v5739
        %6616 = vmatmul.mubr.f32.gmra.mrb[0].mxu0 %v5627
        %v6617 = vpop.f32.mrb[0].mxu0
        %v6618 = vadd.f32 %v6393, %v6617
        %v6619 = vpop.f32.mrb[0].mxu0
        %6620 = vmatprep.mubr.f32.mxu0 %v5741
        %6621 = vmatmul.mubr.f32.gmra.mrb[0].mxu0 %v5629
        %v6622 = vpop.f32.mrb[0].mxu0
        %v6623 = vadd.f32 %v6398, %v6622
        %v6624 = vpop.f32.mrb[0].mxu0
        %6625 = vmatprep.mubr.f32.mxu0 %v5786
        %6626 = vmatmul.mubr.f32.gmra.mrb[0].mxu0 %v5779
        %v6627 = vpop.f32.mrb[0].mxu0
        %v6628 = vadd.f32 %v6403, %v6627
        %v6629 = vpop.f32.mrb[0].mxu0
        %6630 = vmatprep.mubr.f32.mxu0 %v5788
        %6631 = vmatmul.mubr.f32.gmra.mrb[0].mxu0 %v5781
        %v6632 = vpop.f32.mrb[0].mxu0
        %v6633 = vadd.f32 %v6408, %v6632
        %v6634 = vpop.f32.mrb[0].mxu0
        %6635 = vdwg.mxu0
        %6636 = vmatprep.subr.mxu0 0.0
        %6637 = vmatpush1.msra.mxu0 %v5905
        %6638 = vmatprep.subr.mxu0 0.0
        %6639 = vmatpush1.msra.mxu0 %v5906
        %6640 = vmatprep.subr.mxu0 0.0
        %6641 = vmatpush1.msra.mxu0 %v5907
        %6642 = vmatprep.subr.mxu0 0.0
        %6643 = vmatpush1.msra.mxu0 %v5908
        %6644 = vmatprep.subr.mxu0 0.0
        %6645 = vmatpush1.msra.mxu0 %v5909
        %6646 = vmatprep.subr.mxu0 0.0
        %6647 = vmatpush1.msra.mxu0 %v5910
        %6648 = vmatprep.subr.mxu0 0.0
        %6649 = vmatpush1.msra.mxu0 %v5911
        %6650 = vmatprep.subr.mxu0 0.0
        %6651 = vmatpush1.msra.mxu0 %v5912
        %6652 = vmatprep.subr.mxu0 0.0
        %6653 = vmatpush1.msra.mxu0 %v5913
        %6654 = vmatprep.subr.mxu0 0.0
        %6655 = vmatpush1.msra.mxu0 %v5914
        %6656 = vmatprep.subr.mxu0 0.0
        %6657 = vmatpush1.msra.mxu0 %v5915
        %6658 = vmatprep.subr.mxu0 0.0
        %6659 = vmatpush1.msra.mxu0 %v5916
        %6660 = vmatprep.subr.mxu0 0.0
        %6661 = vmatpush1.msra.mxu0 %v5917
        %6662 = vmatprep.subr.mxu0 0.0
        %6663 = vmatpush1.msra.mxu0 %v5918
        %6664 = vmatprep.subr.mxu0 0.0
        %6665 = vmatpush1.msra.mxu0 %v5919
        %6666 = vmatprep.subr.mxu0 0.0
        %6667 = vmatpush1.msra.mxu0 %v5920
        %6668 = vmatprep.subr.mxu0 0.0
        %6669 = vmatpush1.msra.mxu0 %v5921
        %6670 = vmatprep.subr.mxu0 0.0
        %6671 = vmatpush1.msra.mxu0 %v5922
        %6672 = vmatprep.subr.mxu0 0.0
        %6673 = vmatpush1.msra.mxu0 %v5923
        %6674 = vmatprep.subr.mxu0 0.0
        %6675 = vmatpush1.msra.mxu0 %v5924
        %6676 = vmatprep.subr.mxu0 0.0
        %6677 = vmatpush1.msra.mxu0 %v5925
        %6678 = vmatprep.subr.mxu0 0.0
        %6679 = vmatpush1.msra.mxu0 %v5926
        %6680 = vmatprep.subr.mxu0 0.0
        %6681 = vmatpush1.msra.mxu0 %v5927
        %6682 = vmatprep.subr.mxu0 0.0
        %6683 = vmatpush1.msra.mxu0 %v5928
        %6684 = vmatprep.subr.mxu0 0.0
        %6685 = vmatpush1.msra.mxu0 %v5929
        %6686 = vmatprep.subr.mxu0 0.0
        %6687 = vmatpush1.msra.mxu0 %v5930
        %6688 = vmatprep.subr.mxu0 0.0
        %6689 = vmatpush1.msra.mxu0 %v5931
        %6690 = vmatprep.subr.mxu0 0.0
        %6691 = vmatpush1.msra.mxu0 %v5932
        %6692 = vmatprep.subr.mxu0 0.0
        %6693 = vmatpush1.msra.mxu0 %v5933
        %6694 = vmatprep.subr.mxu0 0.0
        %6695 = vmatpush1.msra.mxu0 %v5934
        %6696 = vmatprep.subr.mxu0 0.0
        %6697 = vmatpush1.msra.mxu0 %v5935
        %6698 = vmatprep.subr.mxu0 0.0
        %6699 = vmatpush1.msra.mxu0 %v5936
        %6700 = vmatprep.mubr.f32.mxu0 %v5562
        %6701 = vmatmul.mubr.f32.gmra.mrb[0].mxu0 %v5454
        %v6702 = vpop.f32.mrb[0].mxu0
        %v6703 = vadd.f32 %v6478, %v6702
        %v6704 = vpop.f32.mrb[0].mxu0
        %6705 = vmatprep.mubr.f32.mxu0 %v5564
        %6706 = vmatmul.mubr.f32.gmra.mrb[0].mxu0 %v5455
        %v6707 = vpop.f32.mrb[0].mxu0
        %v6708 = vadd.f32 %v6483, %v6707
        %v6709 = vpop.f32.mrb[0].mxu0
        %6710 = vmatprep.mubr.f32.mxu0 %v5567
        %6711 = vmatmul.mubr.f32.gmra.mrb[0].mxu0 %v5457
        %v6712 = vpop.f32.mrb[0].mxu0
        %v6713 = vadd.f32 %v6488, %v6712
        %v6714 = vpop.f32.mrb[0].mxu0
        %6715 = vmatprep.mubr.f32.mxu0 %v5569
        %6716 = vmatmul.mubr.f32.gmra.mrb[0].mxu0 %v5458
        %v6717 = vpop.f32.mrb[0].mxu0
        %v6718 = vadd.f32 %v6493, %v6717
        %v6719 = vpop.f32.mrb[0].mxu0
        %6720 = vmatprep.mubr.f32.mxu0 %v5572
        %6721 = vmatmul.mubr.f32.gmra.mrb[0].mxu0 %v5460
        %v6722 = vpop.f32.mrb[0].mxu0
        %v6723 = vadd.f32 %v6498, %v6722
        %v6724 = vpop.f32.mrb[0].mxu0
        %6725 = vmatprep.mubr.f32.mxu0 %v5574
        %6726 = vmatmul.mubr.f32.gmra.mrb[0].mxu0 %v5461
        %v6727 = vpop.f32.mrb[0].mxu0
        %v6728 = vadd.f32 %v6503, %v6727
        %v6729 = vpop.f32.mrb[0].mxu0
        %6730 = vmatprep.mubr.f32.mxu0 %v5577
        %6731 = vmatmul.mubr.f32.gmra.mrb[0].mxu0 %v5463
        %v6732 = vpop.f32.mrb[0].mxu0
        %v6733 = vadd.f32 %v6508, %v6732
        %v6734 = vpop.f32.mrb[0].mxu0
        %6735 = vmatprep.mubr.f32.mxu0 %v5579
        %6736 = vmatmul.mubr.f32.gmra.mrb[0].mxu0 %v5464
        %v6737 = vpop.f32.mrb[0].mxu0
        %v6738 = vadd.f32 %v6513, %v6737
        %v6739 = vpop.f32.mrb[0].mxu0
        %6740 = vmatprep.mubr.f32.mxu0 %v5582
        %6741 = vmatmul.mubr.f32.gmra.mrb[0].mxu0 %v5466
        %v6742 = vpop.f32.mrb[0].mxu0
        %v6743 = vadd.f32 %v6518, %v6742
        %v6744 = vpop.f32.mrb[0].mxu0
        %6745 = vmatprep.mubr.f32.mxu0 %v5584
        %6746 = vmatmul.mubr.f32.gmra.mrb[0].mxu0 %v5467
        %v6747 = vpop.f32.mrb[0].mxu0
        %v6748 = vadd.f32 %v6523, %v6747
        %v6749 = vpop.f32.mrb[0].mxu0
        %6750 = vmatprep.mubr.f32.mxu0 %v5587
        %6751 = vmatmul.mubr.f32.gmra.mrb[0].mxu0 %v5469
        %v6752 = vpop.f32.mrb[0].mxu0
        %v6753 = vadd.f32 %v6528, %v6752
        %v6754 = vpop.f32.mrb[0].mxu0
        %6755 = vmatprep.mubr.f32.mxu0 %v5589
        %6756 = vmatmul.mubr.f32.gmra.mrb[0].mxu0 %v5470
        %v6757 = vpop.f32.mrb[0].mxu0
        %v6758 = vadd.f32 %v6533, %v6757
        %v6759 = vpop.f32.mrb[0].mxu0
        %6760 = vmatprep.mubr.f32.mxu0 %v5592
        %6761 = vmatmul.mubr.f32.gmra.mrb[0].mxu0 %v5472
        %v6762 = vpop.f32.mrb[0].mxu0
        %v6763 = vadd.f32 %v6538, %v6762
        %v6764 = vpop.f32.mrb[0].mxu0
        %6765 = vmatprep.mubr.f32.mxu0 %v5594
        %6766 = vmatmul.mubr.f32.gmra.mrb[0].mxu0 %v5473
        %v6767 = vpop.f32.mrb[0].mxu0
        %v6768 = vadd.f32 %v6543, %v6767
        %v6769 = vpop.f32.mrb[0].mxu0
        %6770 = vmatprep.mubr.f32.mxu0 %v5597
        %6771 = vmatmul.mubr.f32.gmra.mrb[0].mxu0 %v5475
        %v6772 = vpop.f32.mrb[0].mxu0
        %v6773 = vadd.f32 %v6548, %v6772
        %v6774 = vpop.f32.mrb[0].mxu0
        %6775 = vmatprep.mubr.f32.mxu0 %v5599
        %6776 = vmatmul.mubr.f32.gmra.mrb[0].mxu0 %v5476
        %v6777 = vpop.f32.mrb[0].mxu0
        %v6778 = vadd.f32 %v6553, %v6777
        %v6779 = vpop.f32.mrb[0].mxu0
        %6780 = vmatprep.mubr.f32.mxu0 %v5602
        %6781 = vmatmul.mubr.f32.gmra.mrb[0].mxu0 %v5478
        %v6782 = vpop.f32.mrb[0].mxu0
        %v6783 = vadd.f32 %v6558, %v6782
        %v6784 = vpop.f32.mrb[0].mxu0
        %6785 = vmatprep.mubr.f32.mxu0 %v5604
        %6786 = vmatmul.mubr.f32.gmra.mrb[0].mxu0 %v5479
        %v6787 = vpop.f32.mrb[0].mxu0
        %v6788 = vadd.f32 %v6563, %v6787
        %v6789 = vpop.f32.mrb[0].mxu0
        %6790 = vmatprep.mubr.f32.mxu0 %v5607
        %6791 = vmatmul.mubr.f32.gmra.mrb[0].mxu0 %v5481
        %v6792 = vpop.f32.mrb[0].mxu0
        %v6793 = vadd.f32 %v6568, %v6792
        %v6794 = vpop.f32.mrb[0].mxu0
        %6795 = vmatprep.mubr.f32.mxu0 %v5609
        %6796 = vmatmul.mubr.f32.gmra.mrb[0].mxu0 %v5482
        %v6797 = vpop.f32.mrb[0].mxu0
        %v6798 = vadd.f32 %v6573, %v6797
        %v6799 = vpop.f32.mrb[0].mxu0
        %6800 = vmatprep.mubr.f32.mxu0 %v5612
        %6801 = vmatmul.mubr.f32.gmra.mrb[0].mxu0 %v5484
        %v6802 = vpop.f32.mrb[0].mxu0
        %v6803 = vadd.f32 %v6578, %v6802
        %v6804 = vpop.f32.mrb[0].mxu0
        %6805 = vmatprep.mubr.f32.mxu0 %v5614
        %6806 = vmatmul.mubr.f32.gmra.mrb[0].mxu0 %v5485
        %v6807 = vpop.f32.mrb[0].mxu0
        %v6808 = vadd.f32 %v6583, %v6807
        %v6809 = vpop.f32.mrb[0].mxu0
        %6810 = vmatprep.mubr.f32.mxu0 %v5617
        %6811 = vmatmul.mubr.f32.gmra.mrb[0].mxu0 %v5487
        %v6812 = vpop.f32.mrb[0].mxu0
        %v6813 = vadd.f32 %v6588, %v6812
        %v6814 = vpop.f32.mrb[0].mxu0
        %6815 = vmatprep.mubr.f32.mxu0 %v5619
        %6816 = vmatmul.mubr.f32.gmra.mrb[0].mxu0 %v5488
        %v6817 = vpop.f32.mrb[0].mxu0
        %v6818 = vadd.f32 %v6593, %v6817
        %v6819 = vpop.f32.mrb[0].mxu0
        %6820 = vmatprep.mubr.f32.mxu0 %v5622
        %6821 = vmatmul.mubr.f32.gmra.mrb[0].mxu0 %v5490
        %v6822 = vpop.f32.mrb[0].mxu0
        %v6823 = vadd.f32 %v6598, %v6822
        %v6824 = vpop.f32.mrb[0].mxu0
        %6825 = vmatprep.mubr.f32.mxu0 %v5624
        %6826 = vmatmul.mubr.f32.gmra.mrb[0].mxu0 %v5491
        %v6827 = vpop.f32.mrb[0].mxu0
        %v6828 = vadd.f32 %v6603, %v6827
        %v6829 = vpop.f32.mrb[0].mxu0
        %6830 = vmatprep.mubr.f32.mxu0 %v5627
        %6831 = vmatmul.mubr.f32.gmra.mrb[0].mxu0 %v5493
        %v6832 = vpop.f32.mrb[0].mxu0
        %v6833 = vadd.f32 %v6608, %v6832
        %v6834 = vpop.f32.mrb[0].mxu0
        %6835 = vmatprep.mubr.f32.mxu0 %v5629
        %6836 = vmatmul.mubr.f32.gmra.mrb[0].mxu0 %v5494
        %v6837 = vpop.f32.mrb[0].mxu0
        %v6838 = vadd.f32 %v6613, %v6837
        %v6839 = vpop.f32.mrb[0].mxu0
        %6840 = vmatprep.mubr.f32.mxu0 %v5779
        %6841 = vmatmul.mubr.f32.gmra.mrb[0].mxu0 %v5496
        %v6842 = vpop.f32.mrb[0].mxu0
        %v6843 = vadd.f32 %v6618, %v6842
        %v6844 = vpop.f32.mrb[0].mxu0
        %6845 = vmatprep.mubr.f32.mxu0 %v5781
        %6846 = vmatmul.mubr.f32.gmra.mrb[0].mxu0 %v5497
        %v6847 = vpop.f32.mrb[0].mxu0
        %v6848 = vadd.f32 %v6623, %v6847
        %v6849 = vpop.f32.mrb[0].mxu0
        %6850 = vmatprep.mubr.f32.mxu0 %v5796
        %6851 = vmatmul.mubr.f32.gmra.mrb[0].mxu0 %v5499
        %v6852 = vpop.f32.mrb[0].mxu0
        %v6853 = vadd.f32 %v6628, %v6852
        %v6854 = vpop.f32.mrb[0].mxu0
        %6855 = vmatprep.mubr.f32.mxu0 %v5798
        %6856 = vmatmul.mubr.f32.gmra.mrb[0].mxu0 %v5500
        %v6857 = vpop.f32.mrb[0].mxu0
        %v6858 = vadd.f32 %v6633, %v6857
        %v6859 = vpop.f32.mrb[0].mxu0
        %6860 = vdwg.mxu0
        %6861 = vmatprep.subr.mxu0 0.0
        %6862 = vmatpush1.msra.mxu0 %v5937
        %6863 = vmatprep.subr.mxu0 0.0
        %6864 = vmatpush1.msra.mxu0 %v5938
        %6865 = vmatprep.subr.mxu0 0.0
        %6866 = vmatpush1.msra.mxu0 %v5939
        %6867 = vmatprep.subr.mxu0 0.0
        %6868 = vmatpush1.msra.mxu0 %v5940
        %6869 = vmatprep.subr.mxu0 0.0
        %6870 = vmatpush1.msra.mxu0 %v5941
        %6871 = vmatprep.subr.mxu0 0.0
        %6872 = vmatpush1.msra.mxu0 %v5942
        %6873 = vmatprep.subr.mxu0 0.0
        %6874 = vmatpush1.msra.mxu0 %v5943
        %6875 = vmatprep.subr.mxu0 0.0
        %6876 = vmatpush1.msra.mxu0 %v5944
        %6877 = vmatprep.subr.mxu0 0.0
        %6878 = vmatpush1.msra.mxu0 %v5945
        %6879 = vmatprep.subr.mxu0 0.0
        %6880 = vmatpush1.msra.mxu0 %v5946
        %6881 = vmatprep.subr.mxu0 0.0
        %6882 = vmatpush1.msra.mxu0 %v5947
        %6883 = vmatprep.subr.mxu0 0.0
        %6884 = vmatpush1.msra.mxu0 %v5948
        %6885 = vmatprep.subr.mxu0 0.0
        %6886 = vmatpush1.msra.mxu0 %v5949
        %6887 = vmatprep.subr.mxu0 0.0
        %6888 = vmatpush1.msra.mxu0 %v5950
        %6889 = vmatprep.subr.mxu0 0.0
        %6890 = vmatpush1.msra.mxu0 %v5951
        %6891 = vmatprep.subr.mxu0 0.0
        %6892 = vmatpush1.msra.mxu0 %v5952
        %6893 = vmatprep.subr.mxu0 0.0
        %6894 = vmatpush1.msra.mxu0 0.0
        %6895 = vmatprep.subr.mxu0 0.0
        %6896 = vmatpush1.msra.mxu0 0.0
        %6897 = vmatprep.subr.mxu0 0.0
        %6898 = vmatpush1.msra.mxu0 0.0
        %6899 = vmatprep.subr.mxu0 0.0
        %6900 = vmatpush1.msra.mxu0 0.0
        %6901 = vmatprep.subr.mxu0 0.0
        %6902 = vmatpush1.msra.mxu0 0.0
        %6903 = vmatprep.subr.mxu0 0.0
        %6904 = vmatpush1.msra.mxu0 0.0
        %6905 = vmatprep.subr.mxu0 0.0
        %6906 = vmatpush1.msra.mxu0 0.0
        %6907 = vmatprep.subr.mxu0 0.0
        %6908 = vmatpush1.msra.mxu0 0.0
        %6909 = vmatprep.subr.mxu0 0.0
        %6910 = vmatpush1.msra.mxu0 0.0
        %6911 = vmatprep.subr.mxu0 0.0
        %6912 = vmatpush1.msra.mxu0 0.0
        %6913 = vmatprep.subr.mxu0 0.0
        %6914 = vmatpush1.msra.mxu0 0.0
        %6915 = vmatprep.subr.mxu0 0.0
        %6916 = vmatpush1.msra.mxu0 0.0
        %6917 = vmatprep.subr.mxu0 0.0
        %6918 = vmatpush1.msra.mxu0 0.0
        %6919 = vmatprep.subr.mxu0 0.0
        %6920 = vmatpush1.msra.mxu0 0.0
        %6921 = vmatprep.subr.mxu0 0.0
        %6922 = vmatpush1.msra.mxu0 0.0
        %6923 = vmatprep.subr.mxu0 0.0
        %6924 = vmatpush1.msra.mxu0 0.0
        %6925 = vmatprep.mubr.f32.mxu0 0.0
        %6926 = vmatmul.mubr.f32.gmra.mrb[0].mxu0 %v5674
        %v6927 = vpop.f32.mrb[0].mxu0
        %v6928 = vadd.f32 %v6703, %v6927
        %v6929 = vpop.f32.mrb[0].mxu0
        %6930 = vmatprep.mubr.f32.mxu0 0.0
        %6931 = vmatmul.mubr.f32.gmra.mrb[0].mxu0 %v5676
        %v6932 = vpop.f32.mrb[0].mxu0
        %v6933 = vadd.f32 %v6708, %v6932
        %v6934 = vpop.f32.mrb[0].mxu0
        %6935 = vmatprep.mubr.f32.mxu0 0.0
        %6936 = vmatmul.mubr.f32.gmra.mrb[0].mxu0 %v5679
        %v6937 = vpop.f32.mrb[0].mxu0
        %v6938 = vadd.f32 %v6713, %v6937
        %v6939 = vpop.f32.mrb[0].mxu0
        %6940 = vmatprep.mubr.f32.mxu0 0.0
        %6941 = vmatmul.mubr.f32.gmra.mrb[0].mxu0 %v5681
        %v6942 = vpop.f32.mrb[0].mxu0
        %v6943 = vadd.f32 %v6718, %v6942
        %v6944 = vpop.f32.mrb[0].mxu0
        %6945 = vmatprep.mubr.f32.mxu0 0.0
        %6946 = vmatmul.mubr.f32.gmra.mrb[0].mxu0 %v5684
        %v6947 = vpop.f32.mrb[0].mxu0
        %v6948 = vadd.f32 %v6723, %v6947
        %v6949 = vpop.f32.mrb[0].mxu0
        %6950 = vmatprep.mubr.f32.mxu0 0.0
        %6951 = vmatmul.mubr.f32.gmra.mrb[0].mxu0 %v5686
        %v6952 = vpop.f32.mrb[0].mxu0
        %v6953 = vadd.f32 %v6728, %v6952
        %v6954 = vpop.f32.mrb[0].mxu0
        %6955 = vmatprep.mubr.f32.mxu0 0.0
        %6956 = vmatmul.mubr.f32.gmra.mrb[0].mxu0 %v5689
        %v6957 = vpop.f32.mrb[0].mxu0
        %v6958 = vadd.f32 %v6733, %v6957
        %v6959 = vpop.f32.mrb[0].mxu0
        %6960 = vmatprep.mubr.f32.mxu0 0.0
        %6961 = vmatmul.mubr.f32.gmra.mrb[0].mxu0 %v5691
        %v6962 = vpop.f32.mrb[0].mxu0
        %v6963 = vadd.f32 %v6738, %v6962
        %v6964 = vpop.f32.mrb[0].mxu0
        %6965 = vmatprep.mubr.f32.mxu0 0.0
        %6966 = vmatmul.mubr.f32.gmra.mrb[0].mxu0 %v5694
        %v6967 = vpop.f32.mrb[0].mxu0
        %v6968 = vadd.f32 %v6743, %v6967
        %v6969 = vpop.f32.mrb[0].mxu0
        %6970 = vmatprep.mubr.f32.mxu0 0.0
        %6971 = vmatmul.mubr.f32.gmra.mrb[0].mxu0 %v5696
        %v6972 = vpop.f32.mrb[0].mxu0
        %v6973 = vadd.f32 %v6748, %v6972
        %v6974 = vpop.f32.mrb[0].mxu0
        %6975 = vmatprep.mubr.f32.mxu0 0.0
        %6976 = vmatmul.mubr.f32.gmra.mrb[0].mxu0 %v5699
        %v6977 = vpop.f32.mrb[0].mxu0
        %v6978 = vadd.f32 %v6753, %v6977
        %v6979 = vpop.f32.mrb[0].mxu0
        %6980 = vmatprep.mubr.f32.mxu0 0.0
        %6981 = vmatmul.mubr.f32.gmra.mrb[0].mxu0 %v5701
        %v6982 = vpop.f32.mrb[0].mxu0
        %v6983 = vadd.f32 %v6758, %v6982
        %v6984 = vpop.f32.mrb[0].mxu0
        %6985 = vmatprep.mubr.f32.mxu0 0.0
        %6986 = vmatmul.mubr.f32.gmra.mrb[0].mxu0 %v5704
        %v6987 = vpop.f32.mrb[0].mxu0
        %v6988 = vadd.f32 %v6763, %v6987
        %v6989 = vpop.f32.mrb[0].mxu0
        %6990 = vmatprep.mubr.f32.mxu0 0.0
        %6991 = vmatmul.mubr.f32.gmra.mrb[0].mxu0 %v5706
        %v6992 = vpop.f32.mrb[0].mxu0
        %v6993 = vadd.f32 %v6768, %v6992
        %v6994 = vpop.f32.mrb[0].mxu0
        %6995 = vmatprep.mubr.f32.mxu0 0.0
        %6996 = vmatmul.mubr.f32.gmra.mrb[0].mxu0 %v5709
        %v6997 = vpop.f32.mrb[0].mxu0
        %v6998 = vadd.f32 %v6773, %v6997
        %v6999 = vpop.f32.mrb[0].mxu0
        %7000 = vmatprep.mubr.f32.mxu0 0.0
        %7001 = vmatmul.mubr.f32.gmra.mrb[0].mxu0 %v5711
        %v7002 = vpop.f32.mrb[0].mxu0
        %v7003 = vadd.f32 %v6778, %v7002
        %v7004 = vpop.f32.mrb[0].mxu0
        %7005 = vmatprep.mubr.f32.mxu0 0.0
        %7006 = vmatmul.mubr.f32.gmra.mrb[0].mxu0 %v5714
        %v7007 = vpop.f32.mrb[0].mxu0
        %v7008 = vadd.f32 %v6783, %v7007
        %v7009 = vpop.f32.mrb[0].mxu0
        %7010 = vmatprep.mubr.f32.mxu0 0.0
        %7011 = vmatmul.mubr.f32.gmra.mrb[0].mxu0 %v5716
        %v7012 = vpop.f32.mrb[0].mxu0
        %v7013 = vadd.f32 %v6788, %v7012
        %v7014 = vpop.f32.mrb[0].mxu0
        %7015 = vmatprep.mubr.f32.mxu0 0.0
        %7016 = vmatmul.mubr.f32.gmra.mrb[0].mxu0 %v5719
        %v7017 = vpop.f32.mrb[0].mxu0
        %v7018 = vadd.f32 %v6793, %v7017
        %v7019 = vpop.f32.mrb[0].mxu0
        %7020 = vmatprep.mubr.f32.mxu0 0.0
        %7021 = vmatmul.mubr.f32.gmra.mrb[0].mxu0 %v5721
        %v7022 = vpop.f32.mrb[0].mxu0
        %v7023 = vadd.f32 %v6798, %v7022
        %v7024 = vpop.f32.mrb[0].mxu0
        %7025 = vmatprep.mubr.f32.mxu0 0.0
        %7026 = vmatmul.mubr.f32.gmra.mrb[0].mxu0 %v5724
        %v7027 = vpop.f32.mrb[0].mxu0
        %v7028 = vadd.f32 %v6803, %v7027
        %v7029 = vpop.f32.mrb[0].mxu0
        %7030 = vmatprep.mubr.f32.mxu0 0.0
        %7031 = vmatmul.mubr.f32.gmra.mrb[0].mxu0 %v5726
        %v7032 = vpop.f32.mrb[0].mxu0
        %v7033 = vadd.f32 %v6808, %v7032
        %v7034 = vpop.f32.mrb[0].mxu0
        %7035 = vmatprep.mubr.f32.mxu0 0.0
        %7036 = vmatmul.mubr.f32.gmra.mrb[0].mxu0 %v5729
        %v7037 = vpop.f32.mrb[0].mxu0
        %v7038 = vadd.f32 %v6813, %v7037
        %v7039 = vpop.f32.mrb[0].mxu0
        %7040 = vmatprep.mubr.f32.mxu0 0.0
        %7041 = vmatmul.mubr.f32.gmra.mrb[0].mxu0 %v5731
        %v7042 = vpop.f32.mrb[0].mxu0
        %v7043 = vadd.f32 %v6818, %v7042
        %v7044 = vpop.f32.mrb[0].mxu0
        %7045 = vmatprep.mubr.f32.mxu0 0.0
        %7046 = vmatmul.mubr.f32.gmra.mrb[0].mxu0 %v5734
        %v7047 = vpop.f32.mrb[0].mxu0
        %v7048 = vadd.f32 %v6823, %v7047
        %v7049 = vpop.f32.mrb[0].mxu0
        %7050 = vmatprep.mubr.f32.mxu0 0.0
        %7051 = vmatmul.mubr.f32.gmra.mrb[0].mxu0 %v5736
        %v7052 = vpop.f32.mrb[0].mxu0
        %v7053 = vadd.f32 %v6828, %v7052
        %v7054 = vpop.f32.mrb[0].mxu0
        %7055 = vmatprep.mubr.f32.mxu0 0.0
        %7056 = vmatmul.mubr.f32.gmra.mrb[0].mxu0 %v5739
        %v7057 = vpop.f32.mrb[0].mxu0
        %v7058 = vadd.f32 %v6833, %v7057
        %v7059 = vpop.f32.mrb[0].mxu0
        %7060 = vmatprep.mubr.f32.mxu0 0.0
        %7061 = vmatmul.mubr.f32.gmra.mrb[0].mxu0 %v5741
        %v7062 = vpop.f32.mrb[0].mxu0
        %v7063 = vadd.f32 %v6838, %v7062
        %v7064 = vpop.f32.mrb[0].mxu0
        %7065 = vmatprep.mubr.f32.mxu0 0.0
        %7066 = vmatmul.mubr.f32.gmra.mrb[0].mxu0 %v5786
        %v7067 = vpop.f32.mrb[0].mxu0
        %v7068 = vadd.f32 %v6843, %v7067
        %v7069 = vpop.f32.mrb[0].mxu0
        %7070 = vmatprep.mubr.f32.mxu0 0.0
        %7071 = vmatmul.mubr.f32.gmra.mrb[0].mxu0 %v5788
        %v7072 = vpop.f32.mrb[0].mxu0
        %v7073 = vadd.f32 %v6848, %v7072
        %v7074 = vpop.f32.mrb[0].mxu0
        %7075 = vmatprep.mubr.f32.mxu0 0.0
        %7076 = vmatmul.mubr.f32.gmra.mrb[0].mxu0 %v5803
        %v7077 = vpop.f32.mrb[0].mxu0
        %v7078 = vadd.f32 %v6853, %v7077
        %v7079 = vpop.f32.mrb[0].mxu0
        %7080 = vmatprep.mubr.f32.mxu0 0.0
        %7081 = vmatmul.mubr.f32.gmra.mrb[0].mxu0 %v5805
        %v7082 = vpop.f32.mrb[0].mxu0
        %v7083 = vadd.f32 %v6858, %v7082
        %v7084 = vpop.f32.mrb[0].mxu0
        %7085 = vdwg.mxu0
        %v7086 = vmax.f32 %v6928, 0.0
        %v7087 = vmax.f32 %v6933, 0.0
        %v7088 = vmax.f32 %v6938, 0.0
        %v7089 = vmax.f32 %v6943, 0.0
        %v7090 = vmax.f32 %v6948, 0.0
        %v7091 = vmax.f32 %v6953, 0.0
        %v7092 = vmax.f32 %v6958, 0.0
        %v7093 = vmax.f32 %v6963, 0.0
        %v7094 = vmax.f32 %v6968, 0.0
        %v7095 = vmax.f32 %v6973, 0.0
        %v7096 = vmax.f32 %v6978, 0.0
        %v7097 = vmax.f32 %v6983, 0.0
        %v7098 = vmax.f32 %v6988, 0.0
        %v7099 = vmax.f32 %v6993, 0.0
        %v7100 = vmax.f32 %v6998, 0.0
        %v7101 = vmax.f32 %v7003, 0.0
        %v7102 = vmax.f32 %v7008, 0.0
        %v7103 = vmax.f32 %v7013, 0.0
        %v7104 = vmax.f32 %v7018, 0.0
        %v7105 = vmax.f32 %v7023, 0.0
        %v7106 = vmax.f32 %v7028, 0.0
        %v7107 = vmax.f32 %v7033, 0.0
        %v7108 = vmax.f32 %v7038, 0.0
        %v7109 = vmax.f32 %v7043, 0.0
        %v7110 = vmax.f32 %v7048, 0.0
        %v7111 = vmax.f32 %v7053, 0.0
        %v7112 = vmax.f32 %v7058, 0.0
        %v7113 = vmax.f32 %v7063, 0.0
        %v7114 = vmax.f32 %v7068, 0.0
        %v7115 = vmax.f32 %v7073, 0.0
        %v7116 = vmax.f32 %v7078, 0.0
        %v7117 = vmax.f32 %v7083, 0.0
        %7118 = vst [vmem:[%s309 + $0x1] sm:$0xff] %v7086
        %7119 = vst [vmem:[%s309 + $0x9] sm:$0xff] %v7087
        %7120 = vst [vmem:[%s309 + $0x19] sm:$0xff] %v7088
        %7121 = vst [vmem:[%s309 + $0x21] sm:$0xff] %v7089
        %7122 = vst [vmem:[%s309 + $0x31] sm:$0xff] %v7090
        %7123 = vst [vmem:[%s309 + $0x39] sm:$0xff] %v7091
        %7124 = vst [vmem:[%s309 + $0x49] sm:$0xff] %v7092
        %7125 = vst [vmem:[%s309 + $0x51] sm:$0xff] %v7093
        %7126 = vst [vmem:[%s309 + $0x61] sm:$0xff] %v7094
        %7127 = vst [vmem:[%s309 + $0x69] sm:$0xff] %v7095
        %7128 = vst [vmem:[%s309 + $0x79] sm:$0xff] %v7096
        %7129 = vst [vmem:[%s309 + $0x81] sm:$0xff] %v7097
        %7130 = vst [vmem:[%s309 + $0x91] sm:$0xff] %v7098
        %7131 = vst [vmem:[%s309 + $0x99] sm:$0xff] %v7099
        %7132 = vst [vmem:[%s309 + $0xa9] sm:$0xff] %v7100
        %7133 = vst [vmem:[%s309 + $0xb1] sm:$0xff] %v7101
        %7134 = vst [vmem:[%s309 + $0xc1] sm:$0xff] %v7102
        %7135 = vst [vmem:[%s309 + $0xc9] sm:$0xff] %v7103
        %7136 = vst [vmem:[%s309 + $0xd9] sm:$0xff] %v7104
        %7137 = vst [vmem:[%s309 + $0xe1] sm:$0xff] %v7105
        %7138 = vst [vmem:[%s309 + $0xf1] sm:$0xff] %v7106
        %7139 = vst [vmem:[%s309 + $0xf9] sm:$0xff] %v7107
        %7140 = vst [vmem:[%s309 + $0x109] sm:$0xff] %v7108
        %7141 = vst [vmem:[%s309 + $0x111] sm:$0xff] %v7109
        %7142 = vst [vmem:[%s309 + $0x121] sm:$0xff] %v7110
        %7143 = vst [vmem:[%s309 + $0x129] sm:$0xff] %v7111
        %7144 = vst [vmem:[%s309 + $0x139] sm:$0xff] %v7112
        %7145 = vst [vmem:[%s309 + $0x141] sm:$0xff] %v7113
        %7146 = vst [vmem:[%s309 + $0x151] sm:$0xff] %v7114
        %7147 = vst [vmem:[%s309 + $0x159] sm:$0xff] %v7115
        %7148 = vst [vmem:[%s309 + $0x169] sm:$0xff] %v7116
        %7149 = vst [vmem:[%s309 + $0x171] sm:$0xff] %v7117
        %v7150 = vld [vmem:[#allocation2] sm:$0xff]
        %v7151 = vld [vmem:[#allocation2 + $0x8] sm:$0xff]
        %v7152 = vld [vmem:[#allocation2 + $0x10] sm:$0x3]
        %v7153 = vld [vmem:[#allocation2 + $0x18] sm:$0xff]
        %v7154 = vld [vmem:[#allocation2 + $0x20] sm:$0xff]
        %v7155 = vld [vmem:[#allocation2 + $0x28] sm:$0x3]
        %v7156 = vld [vmem:[#allocation2 + $0x30] sm:$0xff]
        %v7157 = vld [vmem:[#allocation2 + $0x38] sm:$0xff]
        %v7158 = vld [vmem:[#allocation2 + $0x40] sm:$0x3]
        %v7159 = vld [vmem:[#allocation2 + $0x48] sm:$0xff]
        %v7160 = vld [vmem:[#allocation2 + $0x50] sm:$0xff]
        %v7161 = vld [vmem:[#allocation2 + $0x58] sm:$0x3]
        %v7162 = vld [vmem:[#allocation2 + $0x60] sm:$0xff]
        %v7163 = vld [vmem:[#allocation2 + $0x68] sm:$0xff]
        %v7164 = vld [vmem:[#allocation2 + $0x70] sm:$0x3]
        %v7165 = vld [vmem:[#allocation2 + $0x78] sm:$0xff]
        %v7166 = vld [vmem:[#allocation2 + $0x80] sm:$0xff]
        %v7167 = vld [vmem:[#allocation2 + $0x88] sm:$0x3]
        %v7168 = vld [vmem:[#allocation2 + $0x90] sm:$0xff]
        %v7169 = vld [vmem:[#allocation2 + $0x98] sm:$0xff]
        %v7170 = vld [vmem:[#allocation2 + $0xa0] sm:$0x3]
        %v7171 = vld [vmem:[#allocation2 + $0xa8] sm:$0xff]
        %v7172 = vld [vmem:[#allocation2 + $0xb0] sm:$0xff]
        %v7173 = vld [vmem:[#allocation2 + $0xb8] sm:$0x3]
        %v7174 = vld [vmem:[#allocation2 + $0xc0] sm:$0xff]
        %v7175 = vld [vmem:[#allocation2 + $0xc8] sm:$0xff]
        %v7176 = vld [vmem:[#allocation2 + $0xd0] sm:$0x3]
        %v7177 = vld [vmem:[#allocation2 + $0xd8] sm:$0xff]
        %v7178 = vld [vmem:[#allocation2 + $0xe0] sm:$0xff]
        %v7179 = vld [vmem:[#allocation2 + $0xe8] sm:$0x3]
        %v7180 = vld [vmem:[#allocation2 + $0xf0] sm:$0xff]
        %v7181 = vld [vmem:[#allocation2 + $0xf8] sm:$0xff]
        %v7182 = vld [vmem:[#allocation2 + $0x100] sm:$0x3]
        %v7183 = vld [vmem:[#allocation2 + $0x108] sm:$0xff]
        %v7184 = vld [vmem:[#allocation2 + $0x110] sm:$0xff]
        %v7185 = vld [vmem:[#allocation2 + $0x118] sm:$0x3]
        %v7186 = vld [vmem:[#allocation2 + $0x120] sm:$0xff]
        %v7187 = vld [vmem:[#allocation2 + $0x128] sm:$0xff]
        %v7188 = vld [vmem:[#allocation2 + $0x130] sm:$0x3]
        %v7189 = vld [vmem:[#allocation2 + $0x138] sm:$0xff]
        %v7190 = vld [vmem:[#allocation2 + $0x140] sm:$0xff]
        %v7191 = vld [vmem:[#allocation2 + $0x148] sm:$0x3]
        %v7192 = vld [vmem:[#allocation2 + $0x150] sm:$0xff]
        %v7193 = vld [vmem:[#allocation2 + $0x158] sm:$0xff]
        %v7194 = vld [vmem:[#allocation2 + $0x160] sm:$0x3]
        %v7195 = vld [vmem:[#allocation2 + $0x168] sm:$0xff]
        %v7196 = vld [vmem:[#allocation2 + $0x170] sm:$0xff]
        %v7197 = vld [vmem:[#allocation2 + $0x178] sm:$0x3]
        %v7198 = vld [vmem:[#allocation2 + $0x180] sm:$0xff]
        %v7199 = vld [vmem:[#allocation2 + $0x188] sm:$0xff]
        %v7200 = vld [vmem:[#allocation2 + $0x190] sm:$0x3]
        %v7201 = vld [vmem:[#allocation2 + $0x198] sm:$0xff]
        %v7202 = vld [vmem:[#allocation2 + $0x1a0] sm:$0xff]
        %v7203 = vld [vmem:[#allocation2 + $0x1a8] sm:$0x3]
        %v7252 = vrot.slane %v7150, 1
        %v7253 = vrot.slane %v7151, 1
        %v7254 = vsel %vm444, %v7252, %v7253
        %v7255 = vrot.slane %v7152, 1
        %v7256 = vsel %vm444, %v7253, %v7255
        %v7257 = vrot.slane %v7153, 1
        %v7258 = vrot.slane %v7154, 1
        %v7259 = vsel %vm444, %v7257, %v7258
        %v7260 = vrot.slane %v7155, 1
        %v7261 = vsel %vm444, %v7258, %v7260
        %v7262 = vrot.slane %v7156, 1
        %v7263 = vrot.slane %v7157, 1
        %v7264 = vsel %vm444, %v7262, %v7263
        %v7265 = vrot.slane %v7158, 1
        %v7266 = vsel %vm444, %v7263, %v7265
        %v7267 = vrot.slane %v7159, 1
        %v7268 = vrot.slane %v7160, 1
        %v7269 = vsel %vm444, %v7267, %v7268
        %v7270 = vrot.slane %v7161, 1
        %v7271 = vsel %vm444, %v7268, %v7270
        %v7272 = vrot.slane %v7162, 1
        %v7273 = vrot.slane %v7163, 1
        %v7274 = vsel %vm444, %v7272, %v7273
        %v7275 = vrot.slane %v7164, 1
        %v7276 = vsel %vm444, %v7273, %v7275
        %v7277 = vrot.slane %v7165, 1
        %v7278 = vrot.slane %v7166, 1
        %v7279 = vsel %vm444, %v7277, %v7278
        %v7280 = vrot.slane %v7167, 1
        %v7281 = vsel %vm444, %v7278, %v7280
        %v7282 = vrot.slane %v7168, 1
        %v7283 = vrot.slane %v7169, 1
        %v7284 = vsel %vm444, %v7282, %v7283
        %v7285 = vrot.slane %v7170, 1
        %v7286 = vsel %vm444, %v7283, %v7285
        %v7287 = vrot.slane %v7171, 1
        %v7288 = vrot.slane %v7172, 1
        %v7289 = vsel %vm444, %v7287, %v7288
        %v7290 = vrot.slane %v7173, 1
        %v7291 = vsel %vm444, %v7288, %v7290
        %v7292 = vrot.slane %v7174, 1
        %v7293 = vrot.slane %v7175, 1
        %v7294 = vsel %vm444, %v7292, %v7293
        %v7295 = vrot.slane %v7176, 1
        %v7296 = vsel %vm444, %v7293, %v7295
        %v7297 = vrot.slane %v7177, 1
        %v7298 = vrot.slane %v7178, 1
        %v7299 = vsel %vm444, %v7297, %v7298
        %v7300 = vrot.slane %v7179, 1
        %v7301 = vsel %vm444, %v7298, %v7300
        %v7302 = vrot.slane %v7180, 1
        %v7303 = vrot.slane %v7181, 1
        %v7304 = vsel %vm444, %v7302, %v7303
        %v7305 = vrot.slane %v7182, 1
        %v7306 = vsel %vm444, %v7303, %v7305
        %v7307 = vrot.slane %v7183, 1
        %v7308 = vrot.slane %v7184, 1
        %v7309 = vsel %vm444, %v7307, %v7308
        %v7310 = vrot.slane %v7185, 1
        %v7311 = vsel %vm444, %v7308, %v7310
        %v7312 = vrot.slane %v7186, 1
        %v7313 = vrot.slane %v7187, 1
        %v7314 = vsel %vm444, %v7312, %v7313
        %v7315 = vrot.slane %v7188, 1
        %v7316 = vsel %vm444, %v7313, %v7315
        %v7317 = vrot.slane %v7189, 1
        %v7318 = vrot.slane %v7190, 1
        %v7319 = vsel %vm444, %v7317, %v7318
        %v7320 = vrot.slane %v7191, 1
        %v7321 = vsel %vm444, %v7318, %v7320
        %v7322 = vrot.slane %v7192, 1
        %v7323 = vrot.slane %v7193, 1
        %v7324 = vsel %vm444, %v7322, %v7323
        %v7325 = vrot.slane %v7194, 1
        %v7326 = vsel %vm444, %v7323, %v7325
        %v7327 = vrot.slane %v7195, 1
        %v7328 = vrot.slane %v7196, 1
        %v7329 = vsel %vm444, %v7327, %v7328
        %v7330 = vrot.slane %v7197, 1
        %v7331 = vsel %vm444, %v7328, %v7330
        %v7364 = vrot.slane %v7150, 2
        %v7365 = vrot.slane %v7151, 2
        %v7366 = vsel %vm557, %v7364, %v7365
        %v7367 = vrot.slane %v7152, 2
        %v7368 = vsel %vm557, %v7365, %v7367
        %v7369 = vrot.slane %v7153, 2
        %v7370 = vrot.slane %v7154, 2
        %v7371 = vsel %vm557, %v7369, %v7370
        %v7372 = vrot.slane %v7155, 2
        %v7373 = vsel %vm557, %v7370, %v7372
        %v7374 = vrot.slane %v7156, 2
        %v7375 = vrot.slane %v7157, 2
        %v7376 = vsel %vm557, %v7374, %v7375
        %v7377 = vrot.slane %v7158, 2
        %v7378 = vsel %vm557, %v7375, %v7377
        %v7379 = vrot.slane %v7159, 2
        %v7380 = vrot.slane %v7160, 2
        %v7381 = vsel %vm557, %v7379, %v7380
        %v7382 = vrot.slane %v7161, 2
        %v7383 = vsel %vm557, %v7380, %v7382
        %v7384 = vrot.slane %v7162, 2
        %v7385 = vrot.slane %v7163, 2
        %v7386 = vsel %vm557, %v7384, %v7385
        %v7387 = vrot.slane %v7164, 2
        %v7388 = vsel %vm557, %v7385, %v7387
        %v7389 = vrot.slane %v7165, 2
        %v7390 = vrot.slane %v7166, 2
        %v7391 = vsel %vm557, %v7389, %v7390
        %v7392 = vrot.slane %v7167, 2
        %v7393 = vsel %vm557, %v7390, %v7392
        %v7394 = vrot.slane %v7168, 2
        %v7395 = vrot.slane %v7169, 2
        %v7396 = vsel %vm557, %v7394, %v7395
        %v7397 = vrot.slane %v7170, 2
        %v7398 = vsel %vm557, %v7395, %v7397
        %v7399 = vrot.slane %v7171, 2
        %v7400 = vrot.slane %v7172, 2
        %v7401 = vsel %vm557, %v7399, %v7400
        %v7402 = vrot.slane %v7173, 2
        %v7403 = vsel %vm557, %v7400, %v7402
        %v7404 = vrot.slane %v7174, 2
        %v7405 = vrot.slane %v7175, 2
        %v7406 = vsel %vm557, %v7404, %v7405
        %v7407 = vrot.slane %v7176, 2
        %v7408 = vsel %vm557, %v7405, %v7407
        %v7409 = vrot.slane %v7177, 2
        %v7410 = vrot.slane %v7178, 2
        %v7411 = vsel %vm557, %v7409, %v7410
        %v7412 = vrot.slane %v7179, 2
        %v7413 = vsel %vm557, %v7410, %v7412
        %v7414 = vrot.slane %v7180, 2
        %v7415 = vrot.slane %v7181, 2
        %v7416 = vsel %vm557, %v7414, %v7415
        %v7417 = vrot.slane %v7182, 2
        %v7418 = vsel %vm557, %v7415, %v7417
        %v7419 = vrot.slane %v7183, 2
        %v7420 = vrot.slane %v7184, 2
        %v7421 = vsel %vm557, %v7419, %v7420
        %v7422 = vrot.slane %v7185, 2
        %v7423 = vsel %vm557, %v7420, %v7422
        %v7424 = vrot.slane %v7186, 2
        %v7425 = vrot.slane %v7187, 2
        %v7426 = vsel %vm557, %v7424, %v7425
        %v7427 = vrot.slane %v7188, 2
        %v7428 = vsel %vm557, %v7425, %v7427
        %v7429 = vrot.slane %v7189, 2
        %v7430 = vrot.slane %v7190, 2
        %v7431 = vsel %vm557, %v7429, %v7430
        %v7432 = vrot.slane %v7191, 2
        %v7433 = vsel %vm557, %v7430, %v7432
        %v7434 = vrot.slane %v7192, 2
        %v7435 = vrot.slane %v7193, 2
        %v7436 = vsel %vm557, %v7434, %v7435
        %v7437 = vrot.slane %v7194, 2
        %v7438 = vsel %vm557, %v7435, %v7437
        %v7439 = vrot.slane %v7195, 2
        %v7440 = vrot.slane %v7196, 2
        %v7441 = vsel %vm557, %v7439, %v7440
        %v7442 = vrot.slane %v7197, 2
        %v7443 = vsel %vm557, %v7440, %v7442
        %v7479 = vrot.slane %v7198, 1
        %v7480 = vrot.slane %v7199, 1
        %v7481 = vsel %vm444, %v7479, %v7480
        %v7482 = vrot.slane %v7200, 1
        %v7483 = vsel %vm444, %v7480, %v7482
        %v7486 = vrot.slane %v7198, 2
        %v7487 = vrot.slane %v7199, 2
        %v7488 = vsel %vm557, %v7486, %v7487
        %v7489 = vrot.slane %v7200, 2
        %v7490 = vsel %vm557, %v7487, %v7489
        %v7496 = vrot.slane %v7201, 1
        %v7497 = vrot.slane %v7202, 1
        %v7498 = vsel %vm444, %v7496, %v7497
        %v7499 = vrot.slane %v7203, 1
        %v7500 = vsel %vm444, %v7497, %v7499
        %v7503 = vrot.slane %v7201, 2
        %v7504 = vrot.slane %v7202, 2
        %v7505 = vsel %vm557, %v7503, %v7504
        %v7506 = vrot.slane %v7203, 2
        %v7507 = vsel %vm557, %v7504, %v7506
        %v7510 = vld [vmem:[%s3] sm:$0xff]
        %v7511 = vld [vmem:[%s3 + $0x8] sm:$0xff]
        %v7512 = vld [vmem:[%s3 + $0x10] sm:$0xff]
        %v7513 = vld [vmem:[%s3 + $0x18] sm:$0xff]
        %v7514 = vld [vmem:[%s3 + $0x20] sm:$0xff]
        %v7515 = vld [vmem:[%s3 + $0x28] sm:$0xff]
        %v7516 = vld [vmem:[%s3 + $0x30] sm:$0xff]
        %v7517 = vld [vmem:[%s3 + $0x38] sm:$0xff]
        %v7518 = vld [vmem:[%s3 + $0x40] sm:$0xff]
        %v7519 = vld [vmem:[%s3 + $0x48] sm:$0xff]
        %v7520 = vld [vmem:[%s3 + $0x50] sm:$0xff]
        %v7521 = vld [vmem:[%s3 + $0x58] sm:$0xff]
        %v7522 = vld [vmem:[%s3 + $0x60] sm:$0xff]
        %v7523 = vld [vmem:[%s3 + $0x68] sm:$0xff]
        %v7524 = vld [vmem:[%s3 + $0x70] sm:$0xff]
        %v7525 = vld [vmem:[%s3 + $0x78] sm:$0xff]
        %v7526 = vld [vmem:[%s3 + $0x80] sm:$0xff]
        %v7527 = vld [vmem:[%s3 + $0x88] sm:$0xff]
        %v7528 = vld [vmem:[%s3 + $0x90] sm:$0xff]
        %v7529 = vld [vmem:[%s3 + $0x98] sm:$0xff]
        %v7530 = vld [vmem:[%s3 + $0xa0] sm:$0xff]
        %v7531 = vld [vmem:[%s3 + $0xa8] sm:$0xff]
        %v7532 = vld [vmem:[%s3 + $0xb0] sm:$0xff]
        %v7533 = vld [vmem:[%s3 + $0xb8] sm:$0xff]
        %v7534 = vld [vmem:[%s3 + $0xc0] sm:$0xff]
        %v7535 = vld [vmem:[%s3 + $0xc8] sm:$0xff]
        %v7536 = vld [vmem:[%s3 + $0xd0] sm:$0xff]
        %v7537 = vld [vmem:[%s3 + $0xd8] sm:$0xff]
        %v7538 = vld [vmem:[%s3 + $0xe0] sm:$0xff]
        %v7539 = vld [vmem:[%s3 + $0xe8] sm:$0xff]
        %v7540 = vld [vmem:[%s3 + $0xf0] sm:$0xff]
        %v7541 = vld [vmem:[%s3 + $0xf8] sm:$0xff]
        %v7542 = vld [vmem:[%s3 + $0x100] sm:$0xff]
        %v7543 = vld [vmem:[%s3 + $0x108] sm:$0xff]
        %v7544 = vld [vmem:[%s3 + $0x110] sm:$0xff]
        %v7545 = vld [vmem:[%s3 + $0x118] sm:$0xff]
        %v7546 = vld [vmem:[%s3 + $0x120] sm:$0xff]
        %v7547 = vld [vmem:[%s3 + $0x128] sm:$0xff]
        %v7548 = vld [vmem:[%s3 + $0x130] sm:$0xff]
        %v7549 = vld [vmem:[%s3 + $0x138] sm:$0xff]
        %v7550 = vld [vmem:[%s3 + $0x140] sm:$0xff]
        %v7551 = vld [vmem:[%s3 + $0x148] sm:$0xff]
        %v7552 = vld [vmem:[%s3 + $0x150] sm:$0xff]
        %v7553 = vld [vmem:[%s3 + $0x158] sm:$0xff]
        %v7554 = vld [vmem:[%s3 + $0x160] sm:$0xff]
        %v7555 = vld [vmem:[%s3 + $0x168] sm:$0xff]
        %v7556 = vld [vmem:[%s3 + $0x170] sm:$0xff]
        %v7557 = vld [vmem:[%s3 + $0x178] sm:$0xff]
        %v7558 = vld [vmem:[%s3 + $0x180] sm:$0xff]
        %v7559 = vld [vmem:[%s3 + $0x188] sm:$0xff]
        %v7560 = vld [vmem:[%s3 + $0x190] sm:$0xff]
        %v7561 = vld [vmem:[%s3 + $0x198] sm:$0xff]
        %v7562 = vld [vmem:[%s3 + $0x1a0] sm:$0xff]
        %v7563 = vld [vmem:[%s3 + $0x1a8] sm:$0xff]
        %v7564 = vld [vmem:[%s3 + $0x1b0] sm:$0xff]
        %v7565 = vld [vmem:[%s3 + $0x1b8] sm:$0xff]
        %v7566 = vld [vmem:[%s3 + $0x1c0] sm:$0xff]
        %v7567 = vld [vmem:[%s3 + $0x1c8] sm:$0xff]
        %v7568 = vld [vmem:[%s3 + $0x1d0] sm:$0xff]
        %v7569 = vld [vmem:[%s3 + $0x1d8] sm:$0xff]
        %v7570 = vld [vmem:[%s3 + $0x1e0] sm:$0xff]
        %v7571 = vld [vmem:[%s3 + $0x1e8] sm:$0xff]
        %v7572 = vld [vmem:[%s3 + $0x1f0] sm:$0xff]
        %v7573 = vld [vmem:[%s3 + $0x1f8] sm:$0xff]
        %v7574 = vld [vmem:[%s3 + $0x200] sm:$0xff]
        %v7575 = vld [vmem:[%s3 + $0x208] sm:$0xff]
        %v7576 = vld [vmem:[%s3 + $0x210] sm:$0xff]
        %v7577 = vld [vmem:[%s3 + $0x218] sm:$0xff]
        %v7578 = vld [vmem:[%s3 + $0x220] sm:$0xff]
        %v7579 = vld [vmem:[%s3 + $0x228] sm:$0xff]
        %v7580 = vld [vmem:[%s3 + $0x230] sm:$0xff]
        %v7581 = vld [vmem:[%s3 + $0x238] sm:$0xff]
        %v7582 = vld [vmem:[%s3 + $0x240] sm:$0xff]
        %v7583 = vld [vmem:[%s3 + $0x248] sm:$0xff]
        %v7584 = vld [vmem:[%s3 + $0x250] sm:$0xff]
        %v7585 = vld [vmem:[%s3 + $0x258] sm:$0xff]
        %v7586 = vld [vmem:[%s3 + $0x260] sm:$0xff]
        %v7587 = vld [vmem:[%s3 + $0x268] sm:$0xff]
        %v7588 = vld [vmem:[%s3 + $0x270] sm:$0xff]
        %v7589 = vld [vmem:[%s3 + $0x278] sm:$0xff]
        %v7590 = vld [vmem:[%s3 + $0x280] sm:$0xff]
        %v7591 = vld [vmem:[%s3 + $0x288] sm:$0xff]
        %v7592 = vld [vmem:[%s3 + $0x290] sm:$0xff]
        %v7593 = vld [vmem:[%s3 + $0x298] sm:$0xff]
        %v7594 = vld [vmem:[%s3 + $0x2a0] sm:$0xff]
        %v7595 = vld [vmem:[%s3 + $0x2a8] sm:$0xff]
        %v7596 = vld [vmem:[%s3 + $0x2b0] sm:$0xff]
        %v7597 = vld [vmem:[%s3 + $0x2b8] sm:$0xff]
        %v7598 = vld [vmem:[%s3 + $0x2c0] sm:$0xff]
        %v7599 = vld [vmem:[%s3 + $0x2c8] sm:$0xff]
        %v7600 = vld [vmem:[%s3 + $0x2d0] sm:$0xff]
        %v7601 = vld [vmem:[%s3 + $0x2d8] sm:$0xff]
        %v7602 = vld [vmem:[%s3 + $0x2e0] sm:$0xff]
        %v7603 = vld [vmem:[%s3 + $0x2e8] sm:$0xff]
        %v7604 = vld [vmem:[%s3 + $0x2f0] sm:$0xff]
        %v7605 = vld [vmem:[%s3 + $0x2f8] sm:$0xff]
        %v7606 = vld [vmem:[%s3 + $0x300] sm:$0xff]
        %v7607 = vld [vmem:[%s3 + $0x308] sm:$0xff]
        %v7608 = vld [vmem:[%s3 + $0x310] sm:$0xff]
        %v7609 = vld [vmem:[%s3 + $0x318] sm:$0xff]
        %v7610 = vld [vmem:[%s3 + $0x320] sm:$0xff]
        %v7611 = vld [vmem:[%s3 + $0x328] sm:$0xff]
        %v7612 = vld [vmem:[%s3 + $0x330] sm:$0xff]
        %v7613 = vld [vmem:[%s3 + $0x338] sm:$0xff]
        %v7614 = vld [vmem:[%s3 + $0x340] sm:$0xff]
        %v7615 = vld [vmem:[%s3 + $0x348] sm:$0xff]
        %v7616 = vld [vmem:[%s3 + $0x350] sm:$0xff]
        %v7617 = vld [vmem:[%s3 + $0x358] sm:$0xff]
        %v7618 = vld [vmem:[%s3 + $0x360] sm:$0xff]
        %v7619 = vld [vmem:[%s3 + $0x368] sm:$0xff]
        %v7620 = vld [vmem:[%s3 + $0x370] sm:$0xff]
        %v7621 = vld [vmem:[%s3 + $0x378] sm:$0xff]
        %v7622 = vld [vmem:[%s3 + $0x380] sm:$0xff]
        %v7623 = vld [vmem:[%s3 + $0x388] sm:$0xff]
        %v7624 = vld [vmem:[%s3 + $0x390] sm:$0xff]
        %v7625 = vld [vmem:[%s3 + $0x398] sm:$0xff]
        %v7626 = vld [vmem:[%s3 + $0x3a0] sm:$0xff]
        %v7627 = vld [vmem:[%s3 + $0x3a8] sm:$0xff]
        %v7628 = vld [vmem:[%s3 + $0x3b0] sm:$0xff]
        %v7629 = vld [vmem:[%s3 + $0x3b8] sm:$0xff]
        %v7630 = vld [vmem:[%s3 + $0x3c0] sm:$0xff]
        %v7631 = vld [vmem:[%s3 + $0x3c8] sm:$0xff]
        %v7632 = vld [vmem:[%s3 + $0x3d0] sm:$0xff]
        %v7633 = vld [vmem:[%s3 + $0x3d8] sm:$0xff]
        %v7634 = vld [vmem:[%s3 + $0x3e0] sm:$0xff]
        %v7635 = vld [vmem:[%s3 + $0x3e8] sm:$0xff]
        %v7636 = vld [vmem:[%s3 + $0x3f0] sm:$0xff]
        %v7637 = vld [vmem:[%s3 + $0x3f8] sm:$0xff]
        %v7638 = vld [vmem:[%s3 + $0x400] sm:$0xff]
        %v7639 = vld [vmem:[%s3 + $0x408] sm:$0xff]
        %v7640 = vld [vmem:[%s3 + $0x410] sm:$0xff]
        %v7641 = vld [vmem:[%s3 + $0x418] sm:$0xff]
        %v7642 = vld [vmem:[%s3 + $0x420] sm:$0xff]
        %v7643 = vld [vmem:[%s3 + $0x428] sm:$0xff]
        %v7644 = vld [vmem:[%s3 + $0x430] sm:$0xff]
        %v7645 = vld [vmem:[%s3 + $0x438] sm:$0xff]
        %v7646 = vld [vmem:[%s3 + $0x440] sm:$0xff]
        %v7647 = vld [vmem:[%s3 + $0x448] sm:$0xff]
        %v7648 = vld [vmem:[%s3 + $0x450] sm:$0xff]
        %v7649 = vld [vmem:[%s3 + $0x458] sm:$0xff]
        %v7650 = vld [vmem:[%s3 + $0x460] sm:$0xff]
        %v7651 = vld [vmem:[%s3 + $0x468] sm:$0xff]
        %v7652 = vld [vmem:[%s3 + $0x470] sm:$0xff]
        %v7653 = vld [vmem:[%s3 + $0x478] sm:$0xff]
        %v7654 = vld [vmem:[%s4] sm:$0x1]
        %v7656 = vlaneseq
        %v7657 = vshrl.u32 %v7656, 7
        %v7658 = vsub.s32 0, %v7657
        %v7659 = vrot.slane %v7654, %v7658
        %7661 = vmatprep.subr.mxu0 0.0
        %7662 = vmatpush1.msra.mxu0 %v7510
        %7663 = vmatprep.subr.mxu0 0.0
        %7664 = vmatpush1.msra.mxu0 %v7511
        %7665 = vmatprep.subr.mxu0 0.0
        %7666 = vmatpush1.msra.mxu0 %v7512
        %7667 = vmatprep.subr.mxu0 0.0
        %7668 = vmatpush1.msra.mxu0 %v7513
        %7669 = vmatprep.subr.mxu0 0.0
        %7670 = vmatpush1.msra.mxu0 %v7514
        %7671 = vmatprep.subr.mxu0 0.0
        %7672 = vmatpush1.msra.mxu0 %v7515
        %7673 = vmatprep.subr.mxu0 0.0
        %7674 = vmatpush1.msra.mxu0 %v7516
        %7675 = vmatprep.subr.mxu0 0.0
        %7676 = vmatpush1.msra.mxu0 %v7517
        %7677 = vmatprep.subr.mxu0 0.0
        %7678 = vmatpush1.msra.mxu0 %v7518
        %7679 = vmatprep.subr.mxu0 0.0
        %7680 = vmatpush1.msra.mxu0 %v7519
        %7681 = vmatprep.subr.mxu0 0.0
        %7682 = vmatpush1.msra.mxu0 %v7520
        %7683 = vmatprep.subr.mxu0 0.0
        %7684 = vmatpush1.msra.mxu0 %v7521
        %7685 = vmatprep.subr.mxu0 0.0
        %7686 = vmatpush1.msra.mxu0 %v7522
        %7687 = vmatprep.subr.mxu0 0.0
        %7688 = vmatpush1.msra.mxu0 %v7523
        %7689 = vmatprep.subr.mxu0 0.0
        %7690 = vmatpush1.msra.mxu0 %v7524
        %7691 = vmatprep.subr.mxu0 0.0
        %7692 = vmatpush1.msra.mxu0 %v7525
        %7693 = vmatprep.subr.mxu0 0.0
        %7694 = vmatpush1.msra.mxu0 %v7526
        %7695 = vmatprep.subr.mxu0 0.0
        %7696 = vmatpush1.msra.mxu0 %v7527
        %7697 = vmatprep.subr.mxu0 0.0
        %7698 = vmatpush1.msra.mxu0 %v7528
        %7699 = vmatprep.subr.mxu0 0.0
        %7700 = vmatpush1.msra.mxu0 %v7529
        %7701 = vmatprep.subr.mxu0 0.0
        %7702 = vmatpush1.msra.mxu0 %v7530
        %7703 = vmatprep.subr.mxu0 0.0
        %7704 = vmatpush1.msra.mxu0 %v7531
        %7705 = vmatprep.subr.mxu0 0.0
        %7706 = vmatpush1.msra.mxu0 %v7532
        %7707 = vmatprep.subr.mxu0 0.0
        %7708 = vmatpush1.msra.mxu0 %v7533
        %7709 = vmatprep.subr.mxu0 0.0
        %7710 = vmatpush1.msra.mxu0 %v7534
        %7711 = vmatprep.subr.mxu0 0.0
        %7712 = vmatpush1.msra.mxu0 %v7535
        %7713 = vmatprep.subr.mxu0 0.0
        %7714 = vmatpush1.msra.mxu0 %v7536
        %7715 = vmatprep.subr.mxu0 0.0
        %7716 = vmatpush1.msra.mxu0 %v7537
        %7717 = vmatprep.subr.mxu0 0.0
        %7718 = vmatpush1.msra.mxu0 %v7538
        %7719 = vmatprep.subr.mxu0 0.0
        %7720 = vmatpush1.msra.mxu0 %v7539
        %7721 = vmatprep.subr.mxu0 0.0
        %7722 = vmatpush1.msra.mxu0 %v7540
        %7723 = vmatprep.subr.mxu0 0.0
        %7724 = vmatpush1.msra.mxu0 %v7541
        %7725 = vmatprep.mubr.f32.mxu0 %v7254
        %7726 = vmatmul.mubr.f32.gmra.mrb[0].mxu0 %v7150
        %v7727 = vpop.f32.mrb[0].mxu0
        %v7728 = vadd.f32 %v7659, %v7727
        %v7729 = vpop.f32.mrb[0].mxu0
        %7730 = vmatprep.mubr.f32.mxu0 %v7256
        %7731 = vmatmul.mubr.f32.gmra.mrb[0].mxu0 %v7151
        %v7732 = vpop.f32.mrb[0].mxu0
        %v7733 = vadd.f32 %v7659, %v7732
        %v7734 = vpop.f32.mrb[0].mxu0
        %7735 = vmatprep.mubr.f32.mxu0 %v7259
        %7736 = vmatmul.mubr.f32.gmra.mrb[0].mxu0 %v7153
        %v7737 = vpop.f32.mrb[0].mxu0
        %v7738 = vadd.f32 %v7659, %v7737
        %v7739 = vpop.f32.mrb[0].mxu0
        %7740 = vmatprep.mubr.f32.mxu0 %v7261
        %7741 = vmatmul.mubr.f32.gmra.mrb[0].mxu0 %v7154
        %v7742 = vpop.f32.mrb[0].mxu0
        %v7743 = vadd.f32 %v7659, %v7742
        %v7744 = vpop.f32.mrb[0].mxu0
        %7745 = vmatprep.mubr.f32.mxu0 %v7264
        %7746 = vmatmul.mubr.f32.gmra.mrb[0].mxu0 %v7156
        %v7747 = vpop.f32.mrb[0].mxu0
        %v7748 = vadd.f32 %v7659, %v7747
        %v7749 = vpop.f32.mrb[0].mxu0
        %7750 = vmatprep.mubr.f32.mxu0 %v7266
        %7751 = vmatmul.mubr.f32.gmra.mrb[0].mxu0 %v7157
        %v7752 = vpop.f32.mrb[0].mxu0
        %v7753 = vadd.f32 %v7659, %v7752
        %v7754 = vpop.f32.mrb[0].mxu0
        %7755 = vmatprep.mubr.f32.mxu0 %v7269
        %7756 = vmatmul.mubr.f32.gmra.mrb[0].mxu0 %v7159
        %v7757 = vpop.f32.mrb[0].mxu0
        %v7758 = vadd.f32 %v7659, %v7757
        %v7759 = vpop.f32.mrb[0].mxu0
        %7760 = vmatprep.mubr.f32.mxu0 %v7271
        %7761 = vmatmul.mubr.f32.gmra.mrb[0].mxu0 %v7160
        %v7762 = vpop.f32.mrb[0].mxu0
        %v7763 = vadd.f32 %v7659, %v7762
        %v7764 = vpop.f32.mrb[0].mxu0
        %7765 = vmatprep.mubr.f32.mxu0 %v7274
        %7766 = vmatmul.mubr.f32.gmra.mrb[0].mxu0 %v7162
        %v7767 = vpop.f32.mrb[0].mxu0
        %v7768 = vadd.f32 %v7659, %v7767
        %v7769 = vpop.f32.mrb[0].mxu0
        %7770 = vmatprep.mubr.f32.mxu0 %v7276
        %7771 = vmatmul.mubr.f32.gmra.mrb[0].mxu0 %v7163
        %v7772 = vpop.f32.mrb[0].mxu0
        %v7773 = vadd.f32 %v7659, %v7772
        %v7774 = vpop.f32.mrb[0].mxu0
        %7775 = vmatprep.mubr.f32.mxu0 %v7279
        %7776 = vmatmul.mubr.f32.gmra.mrb[0].mxu0 %v7165
        %v7777 = vpop.f32.mrb[0].mxu0
        %v7778 = vadd.f32 %v7659, %v7777
        %v7779 = vpop.f32.mrb[0].mxu0
        %7780 = vmatprep.mubr.f32.mxu0 %v7281
        %7781 = vmatmul.mubr.f32.gmra.mrb[0].mxu0 %v7166
        %v7782 = vpop.f32.mrb[0].mxu0
        %v7783 = vadd.f32 %v7659, %v7782
        %v7784 = vpop.f32.mrb[0].mxu0
        %7785 = vmatprep.mubr.f32.mxu0 %v7284
        %7786 = vmatmul.mubr.f32.gmra.mrb[0].mxu0 %v7168
        %v7787 = vpop.f32.mrb[0].mxu0
        %v7788 = vadd.f32 %v7659, %v7787
        %v7789 = vpop.f32.mrb[0].mxu0
        %7790 = vmatprep.mubr.f32.mxu0 %v7286
        %7791 = vmatmul.mubr.f32.gmra.mrb[0].mxu0 %v7169
        %v7792 = vpop.f32.mrb[0].mxu0
        %v7793 = vadd.f32 %v7659, %v7792
        %v7794 = vpop.f32.mrb[0].mxu0
        %7795 = vmatprep.mubr.f32.mxu0 %v7289
        %7796 = vmatmul.mubr.f32.gmra.mrb[0].mxu0 %v7171
        %v7797 = vpop.f32.mrb[0].mxu0
        %v7798 = vadd.f32 %v7659, %v7797
        %v7799 = vpop.f32.mrb[0].mxu0
        %7800 = vmatprep.mubr.f32.mxu0 %v7291
        %7801 = vmatmul.mubr.f32.gmra.mrb[0].mxu0 %v7172
        %v7802 = vpop.f32.mrb[0].mxu0
        %v7803 = vadd.f32 %v7659, %v7802
        %v7804 = vpop.f32.mrb[0].mxu0
        %7805 = vmatprep.mubr.f32.mxu0 %v7294
        %7806 = vmatmul.mubr.f32.gmra.mrb[0].mxu0 %v7174
        %v7807 = vpop.f32.mrb[0].mxu0
        %v7808 = vadd.f32 %v7659, %v7807
        %v7809 = vpop.f32.mrb[0].mxu0
        %7810 = vmatprep.mubr.f32.mxu0 %v7296
        %7811 = vmatmul.mubr.f32.gmra.mrb[0].mxu0 %v7175
        %v7812 = vpop.f32.mrb[0].mxu0
        %v7813 = vadd.f32 %v7659, %v7812
        %v7814 = vpop.f32.mrb[0].mxu0
        %7815 = vmatprep.mubr.f32.mxu0 %v7299
        %7816 = vmatmul.mubr.f32.gmra.mrb[0].mxu0 %v7177
        %v7817 = vpop.f32.mrb[0].mxu0
        %v7818 = vadd.f32 %v7659, %v7817
        %v7819 = vpop.f32.mrb[0].mxu0
        %7820 = vmatprep.mubr.f32.mxu0 %v7301
        %7821 = vmatmul.mubr.f32.gmra.mrb[0].mxu0 %v7178
        %v7822 = vpop.f32.mrb[0].mxu0
        %v7823 = vadd.f32 %v7659, %v7822
        %v7824 = vpop.f32.mrb[0].mxu0
        %7825 = vmatprep.mubr.f32.mxu0 %v7304
        %7826 = vmatmul.mubr.f32.gmra.mrb[0].mxu0 %v7180
        %v7827 = vpop.f32.mrb[0].mxu0
        %v7828 = vadd.f32 %v7659, %v7827
        %v7829 = vpop.f32.mrb[0].mxu0
        %7830 = vmatprep.mubr.f32.mxu0 %v7306
        %7831 = vmatmul.mubr.f32.gmra.mrb[0].mxu0 %v7181
        %v7832 = vpop.f32.mrb[0].mxu0
        %v7833 = vadd.f32 %v7659, %v7832
        %v7834 = vpop.f32.mrb[0].mxu0
        %7835 = vmatprep.mubr.f32.mxu0 %v7309
        %7836 = vmatmul.mubr.f32.gmra.mrb[0].mxu0 %v7183
        %v7837 = vpop.f32.mrb[0].mxu0
        %v7838 = vadd.f32 %v7659, %v7837
        %v7839 = vpop.f32.mrb[0].mxu0
        %7840 = vmatprep.mubr.f32.mxu0 %v7311
        %7841 = vmatmul.mubr.f32.gmra.mrb[0].mxu0 %v7184
        %v7842 = vpop.f32.mrb[0].mxu0
        %v7843 = vadd.f32 %v7659, %v7842
        %v7844 = vpop.f32.mrb[0].mxu0
        %7845 = vmatprep.mubr.f32.mxu0 %v7314
        %7846 = vmatmul.mubr.f32.gmra.mrb[0].mxu0 %v7186
        %v7847 = vpop.f32.mrb[0].mxu0
        %v7848 = vadd.f32 %v7659, %v7847
        %v7849 = vpop.f32.mrb[0].mxu0
        %7850 = vmatprep.mubr.f32.mxu0 %v7316
        %7851 = vmatmul.mubr.f32.gmra.mrb[0].mxu0 %v7187
        %v7852 = vpop.f32.mrb[0].mxu0
        %v7853 = vadd.f32 %v7659, %v7852
        %v7854 = vpop.f32.mrb[0].mxu0
        %7855 = vmatprep.mubr.f32.mxu0 %v7319
        %7856 = vmatmul.mubr.f32.gmra.mrb[0].mxu0 %v7189
        %v7857 = vpop.f32.mrb[0].mxu0
        %v7858 = vadd.f32 %v7659, %v7857
        %v7859 = vpop.f32.mrb[0].mxu0
        %7860 = vmatprep.mubr.f32.mxu0 %v7321
        %7861 = vmatmul.mubr.f32.gmra.mrb[0].mxu0 %v7190
        %v7862 = vpop.f32.mrb[0].mxu0
        %v7863 = vadd.f32 %v7659, %v7862
        %v7864 = vpop.f32.mrb[0].mxu0
        %7865 = vmatprep.mubr.f32.mxu0 %v7324
        %7866 = vmatmul.mubr.f32.gmra.mrb[0].mxu0 %v7192
        %v7867 = vpop.f32.mrb[0].mxu0
        %v7868 = vadd.f32 %v7659, %v7867
        %v7869 = vpop.f32.mrb[0].mxu0
        %7870 = vmatprep.mubr.f32.mxu0 %v7326
        %7871 = vmatmul.mubr.f32.gmra.mrb[0].mxu0 %v7193
        %v7872 = vpop.f32.mrb[0].mxu0
        %v7873 = vadd.f32 %v7659, %v7872
        %v7874 = vpop.f32.mrb[0].mxu0
        %7875 = vmatprep.mubr.f32.mxu0 %v7329
        %7876 = vmatmul.mubr.f32.gmra.mrb[0].mxu0 %v7195
        %v7877 = vpop.f32.mrb[0].mxu0
        %v7878 = vadd.f32 %v7659, %v7877
        %v7879 = vpop.f32.mrb[0].mxu0
        %7880 = vmatprep.mubr.f32.mxu0 %v7331
        %7881 = vmatmul.mubr.f32.gmra.mrb[0].mxu0 %v7196
        %v7882 = vpop.f32.mrb[0].mxu0
        %v7883 = vadd.f32 %v7659, %v7882
        %v7884 = vpop.f32.mrb[0].mxu0
        %7885 = vdwg.mxu0
        %7886 = vmatprep.subr.mxu0 0.0
        %7887 = vmatpush1.msra.mxu0 %v7542
        %7888 = vmatprep.subr.mxu0 0.0
        %7889 = vmatpush1.msra.mxu0 %v7543
        %7890 = vmatprep.subr.mxu0 0.0
        %7891 = vmatpush1.msra.mxu0 %v7544
        %7892 = vmatprep.subr.mxu0 0.0
        %7893 = vmatpush1.msra.mxu0 %v7545
        %7894 = vmatprep.subr.mxu0 0.0
        %7895 = vmatpush1.msra.mxu0 %v7546
        %7896 = vmatprep.subr.mxu0 0.0
        %7897 = vmatpush1.msra.mxu0 %v7547
        %7898 = vmatprep.subr.mxu0 0.0
        %7899 = vmatpush1.msra.mxu0 %v7548
        %7900 = vmatprep.subr.mxu0 0.0
        %7901 = vmatpush1.msra.mxu0 %v7549
        %7902 = vmatprep.subr.mxu0 0.0
        %7903 = vmatpush1.msra.mxu0 %v7550
        %7904 = vmatprep.subr.mxu0 0.0
        %7905 = vmatpush1.msra.mxu0 %v7551
        %7906 = vmatprep.subr.mxu0 0.0
        %7907 = vmatpush1.msra.mxu0 %v7552
        %7908 = vmatprep.subr.mxu0 0.0
        %7909 = vmatpush1.msra.mxu0 %v7553
        %7910 = vmatprep.subr.mxu0 0.0
        %7911 = vmatpush1.msra.mxu0 %v7554
        %7912 = vmatprep.subr.mxu0 0.0
        %7913 = vmatpush1.msra.mxu0 %v7555
        %7914 = vmatprep.subr.mxu0 0.0
        %7915 = vmatpush1.msra.mxu0 %v7556
        %7916 = vmatprep.subr.mxu0 0.0
        %7917 = vmatpush1.msra.mxu0 %v7557
        %7918 = vmatprep.subr.mxu0 0.0
        %7919 = vmatpush1.msra.mxu0 %v7558
        %7920 = vmatprep.subr.mxu0 0.0
        %7921 = vmatpush1.msra.mxu0 %v7559
        %7922 = vmatprep.subr.mxu0 0.0
        %7923 = vmatpush1.msra.mxu0 %v7560
        %7924 = vmatprep.subr.mxu0 0.0
        %7925 = vmatpush1.msra.mxu0 %v7561
        %7926 = vmatprep.subr.mxu0 0.0
        %7927 = vmatpush1.msra.mxu0 %v7562
        %7928 = vmatprep.subr.mxu0 0.0
        %7929 = vmatpush1.msra.mxu0 %v7563
        %7930 = vmatprep.subr.mxu0 0.0
        %7931 = vmatpush1.msra.mxu0 %v7564
        %7932 = vmatprep.subr.mxu0 0.0
        %7933 = vmatpush1.msra.mxu0 %v7565
        %7934 = vmatprep.subr.mxu0 0.0
        %7935 = vmatpush1.msra.mxu0 %v7566
        %7936 = vmatprep.subr.mxu0 0.0
        %7937 = vmatpush1.msra.mxu0 %v7567
        %7938 = vmatprep.subr.mxu0 0.0
        %7939 = vmatpush1.msra.mxu0 %v7568
        %7940 = vmatprep.subr.mxu0 0.0
        %7941 = vmatpush1.msra.mxu0 %v7569
        %7942 = vmatprep.subr.mxu0 0.0
        %7943 = vmatpush1.msra.mxu0 %v7570
        %7944 = vmatprep.subr.mxu0 0.0
        %7945 = vmatpush1.msra.mxu0 %v7571
        %7946 = vmatprep.subr.mxu0 0.0
        %7947 = vmatpush1.msra.mxu0 %v7572
        %7948 = vmatprep.subr.mxu0 0.0
        %7949 = vmatpush1.msra.mxu0 %v7573
        %7950 = vmatprep.mubr.f32.mxu0 %v7153
        %7951 = vmatmul.mubr.f32.gmra.mrb[0].mxu0 %v7366
        %v7952 = vpop.f32.mrb[0].mxu0
        %v7953 = vadd.f32 %v7728, %v7952
        %v7954 = vpop.f32.mrb[0].mxu0
        %7955 = vmatprep.mubr.f32.mxu0 %v7154
        %7956 = vmatmul.mubr.f32.gmra.mrb[0].mxu0 %v7368
        %v7957 = vpop.f32.mrb[0].mxu0
        %v7958 = vadd.f32 %v7733, %v7957
        %v7959 = vpop.f32.mrb[0].mxu0
        %7960 = vmatprep.mubr.f32.mxu0 %v7156
        %7961 = vmatmul.mubr.f32.gmra.mrb[0].mxu0 %v7371
        %v7962 = vpop.f32.mrb[0].mxu0
        %v7963 = vadd.f32 %v7738, %v7962
        %v7964 = vpop.f32.mrb[0].mxu0
        %7965 = vmatprep.mubr.f32.mxu0 %v7157
        %7966 = vmatmul.mubr.f32.gmra.mrb[0].mxu0 %v7373
        %v7967 = vpop.f32.mrb[0].mxu0
        %v7968 = vadd.f32 %v7743, %v7967
        %v7969 = vpop.f32.mrb[0].mxu0
        %7970 = vmatprep.mubr.f32.mxu0 %v7159
        %7971 = vmatmul.mubr.f32.gmra.mrb[0].mxu0 %v7376
        %v7972 = vpop.f32.mrb[0].mxu0
        %v7973 = vadd.f32 %v7748, %v7972
        %v7974 = vpop.f32.mrb[0].mxu0
        %7975 = vmatprep.mubr.f32.mxu0 %v7160
        %7976 = vmatmul.mubr.f32.gmra.mrb[0].mxu0 %v7378
        %v7977 = vpop.f32.mrb[0].mxu0
        %v7978 = vadd.f32 %v7753, %v7977
        %v7979 = vpop.f32.mrb[0].mxu0
        %7980 = vmatprep.mubr.f32.mxu0 %v7162
        %7981 = vmatmul.mubr.f32.gmra.mrb[0].mxu0 %v7381
        %v7982 = vpop.f32.mrb[0].mxu0
        %v7983 = vadd.f32 %v7758, %v7982
        %v7984 = vpop.f32.mrb[0].mxu0
        %7985 = vmatprep.mubr.f32.mxu0 %v7163
        %7986 = vmatmul.mubr.f32.gmra.mrb[0].mxu0 %v7383
        %v7987 = vpop.f32.mrb[0].mxu0
        %v7988 = vadd.f32 %v7763, %v7987
        %v7989 = vpop.f32.mrb[0].mxu0
        %7990 = vmatprep.mubr.f32.mxu0 %v7165
        %7991 = vmatmul.mubr.f32.gmra.mrb[0].mxu0 %v7386
        %v7992 = vpop.f32.mrb[0].mxu0
        %v7993 = vadd.f32 %v7768, %v7992
        %v7994 = vpop.f32.mrb[0].mxu0
        %7995 = vmatprep.mubr.f32.mxu0 %v7166
        %7996 = vmatmul.mubr.f32.gmra.mrb[0].mxu0 %v7388
        %v7997 = vpop.f32.mrb[0].mxu0
        %v7998 = vadd.f32 %v7773, %v7997
        %v7999 = vpop.f32.mrb[0].mxu0
        %8000 = vmatprep.mubr.f32.mxu0 %v7168
        %8001 = vmatmul.mubr.f32.gmra.mrb[0].mxu0 %v7391
        %v8002 = vpop.f32.mrb[0].mxu0
        %v8003 = vadd.f32 %v7778, %v8002
        %v8004 = vpop.f32.mrb[0].mxu0
        %8005 = vmatprep.mubr.f32.mxu0 %v7169
        %8006 = vmatmul.mubr.f32.gmra.mrb[0].mxu0 %v7393
        %v8007 = vpop.f32.mrb[0].mxu0
        %v8008 = vadd.f32 %v7783, %v8007
        %v8009 = vpop.f32.mrb[0].mxu0
        %8010 = vmatprep.mubr.f32.mxu0 %v7171
        %8011 = vmatmul.mubr.f32.gmra.mrb[0].mxu0 %v7396
        %v8012 = vpop.f32.mrb[0].mxu0
        %v8013 = vadd.f32 %v7788, %v8012
        %v8014 = vpop.f32.mrb[0].mxu0
        %8015 = vmatprep.mubr.f32.mxu0 %v7172
        %8016 = vmatmul.mubr.f32.gmra.mrb[0].mxu0 %v7398
        %v8017 = vpop.f32.mrb[0].mxu0
        %v8018 = vadd.f32 %v7793, %v8017
        %v8019 = vpop.f32.mrb[0].mxu0
        %8020 = vmatprep.mubr.f32.mxu0 %v7174
        %8021 = vmatmul.mubr.f32.gmra.mrb[0].mxu0 %v7401
        %v8022 = vpop.f32.mrb[0].mxu0
        %v8023 = vadd.f32 %v7798, %v8022
        %v8024 = vpop.f32.mrb[0].mxu0
        %8025 = vmatprep.mubr.f32.mxu0 %v7175
        %8026 = vmatmul.mubr.f32.gmra.mrb[0].mxu0 %v7403
        %v8027 = vpop.f32.mrb[0].mxu0
        %v8028 = vadd.f32 %v7803, %v8027
        %v8029 = vpop.f32.mrb[0].mxu0
        %8030 = vmatprep.mubr.f32.mxu0 %v7177
        %8031 = vmatmul.mubr.f32.gmra.mrb[0].mxu0 %v7406
        %v8032 = vpop.f32.mrb[0].mxu0
        %v8033 = vadd.f32 %v7808, %v8032
        %v8034 = vpop.f32.mrb[0].mxu0
        %8035 = vmatprep.mubr.f32.mxu0 %v7178
        %8036 = vmatmul.mubr.f32.gmra.mrb[0].mxu0 %v7408
        %v8037 = vpop.f32.mrb[0].mxu0
        %v8038 = vadd.f32 %v7813, %v8037
        %v8039 = vpop.f32.mrb[0].mxu0
        %8040 = vmatprep.mubr.f32.mxu0 %v7180
        %8041 = vmatmul.mubr.f32.gmra.mrb[0].mxu0 %v7411
        %v8042 = vpop.f32.mrb[0].mxu0
        %v8043 = vadd.f32 %v7818, %v8042
        %v8044 = vpop.f32.mrb[0].mxu0
        %8045 = vmatprep.mubr.f32.mxu0 %v7181
        %8046 = vmatmul.mubr.f32.gmra.mrb[0].mxu0 %v7413
        %v8047 = vpop.f32.mrb[0].mxu0
        %v8048 = vadd.f32 %v7823, %v8047
        %v8049 = vpop.f32.mrb[0].mxu0
        %8050 = vmatprep.mubr.f32.mxu0 %v7183
        %8051 = vmatmul.mubr.f32.gmra.mrb[0].mxu0 %v7416
        %v8052 = vpop.f32.mrb[0].mxu0
        %v8053 = vadd.f32 %v7828, %v8052
        %v8054 = vpop.f32.mrb[0].mxu0
        %8055 = vmatprep.mubr.f32.mxu0 %v7184
        %8056 = vmatmul.mubr.f32.gmra.mrb[0].mxu0 %v7418
        %v8057 = vpop.f32.mrb[0].mxu0
        %v8058 = vadd.f32 %v7833, %v8057
        %v8059 = vpop.f32.mrb[0].mxu0
        %8060 = vmatprep.mubr.f32.mxu0 %v7186
        %8061 = vmatmul.mubr.f32.gmra.mrb[0].mxu0 %v7421
        %v8062 = vpop.f32.mrb[0].mxu0
        %v8063 = vadd.f32 %v7838, %v8062
        %v8064 = vpop.f32.mrb[0].mxu0
        %8065 = vmatprep.mubr.f32.mxu0 %v7187
        %8066 = vmatmul.mubr.f32.gmra.mrb[0].mxu0 %v7423
        %v8067 = vpop.f32.mrb[0].mxu0
        %v8068 = vadd.f32 %v7843, %v8067
        %v8069 = vpop.f32.mrb[0].mxu0
        %8070 = vmatprep.mubr.f32.mxu0 %v7189
        %8071 = vmatmul.mubr.f32.gmra.mrb[0].mxu0 %v7426
        %v8072 = vpop.f32.mrb[0].mxu0
        %v8073 = vadd.f32 %v7848, %v8072
        %v8074 = vpop.f32.mrb[0].mxu0
        %8075 = vmatprep.mubr.f32.mxu0 %v7190
        %8076 = vmatmul.mubr.f32.gmra.mrb[0].mxu0 %v7428
        %v8077 = vpop.f32.mrb[0].mxu0
        %v8078 = vadd.f32 %v7853, %v8077
        %v8079 = vpop.f32.mrb[0].mxu0
        %8080 = vmatprep.mubr.f32.mxu0 %v7192
        %8081 = vmatmul.mubr.f32.gmra.mrb[0].mxu0 %v7431
        %v8082 = vpop.f32.mrb[0].mxu0
        %v8083 = vadd.f32 %v7858, %v8082
        %v8084 = vpop.f32.mrb[0].mxu0
        %8085 = vmatprep.mubr.f32.mxu0 %v7193
        %8086 = vmatmul.mubr.f32.gmra.mrb[0].mxu0 %v7433
        %v8087 = vpop.f32.mrb[0].mxu0
        %v8088 = vadd.f32 %v7863, %v8087
        %v8089 = vpop.f32.mrb[0].mxu0
        %8090 = vmatprep.mubr.f32.mxu0 %v7195
        %8091 = vmatmul.mubr.f32.gmra.mrb[0].mxu0 %v7436
        %v8092 = vpop.f32.mrb[0].mxu0
        %v8093 = vadd.f32 %v7868, %v8092
        %v8094 = vpop.f32.mrb[0].mxu0
        %8095 = vmatprep.mubr.f32.mxu0 %v7196
        %8096 = vmatmul.mubr.f32.gmra.mrb[0].mxu0 %v7438
        %v8097 = vpop.f32.mrb[0].mxu0
        %v8098 = vadd.f32 %v7873, %v8097
        %v8099 = vpop.f32.mrb[0].mxu0
        %8100 = vmatprep.mubr.f32.mxu0 %v7198
        %8101 = vmatmul.mubr.f32.gmra.mrb[0].mxu0 %v7441
        %v8102 = vpop.f32.mrb[0].mxu0
        %v8103 = vadd.f32 %v7878, %v8102
        %v8104 = vpop.f32.mrb[0].mxu0
        %8105 = vmatprep.mubr.f32.mxu0 %v7199
        %8106 = vmatmul.mubr.f32.gmra.mrb[0].mxu0 %v7443
        %v8107 = vpop.f32.mrb[0].mxu0
        %v8108 = vadd.f32 %v7883, %v8107
        %v8109 = vpop.f32.mrb[0].mxu0
        %8110 = vdwg.mxu0
        %8111 = vmatprep.subr.mxu0 0.0
        %8112 = vmatpush1.msra.mxu0 %v7574
        %8113 = vmatprep.subr.mxu0 0.0
        %8114 = vmatpush1.msra.mxu0 %v7575
        %8115 = vmatprep.subr.mxu0 0.0
        %8116 = vmatpush1.msra.mxu0 %v7576
        %8117 = vmatprep.subr.mxu0 0.0
        %8118 = vmatpush1.msra.mxu0 %v7577
        %8119 = vmatprep.subr.mxu0 0.0
        %8120 = vmatpush1.msra.mxu0 %v7578
        %8121 = vmatprep.subr.mxu0 0.0
        %8122 = vmatpush1.msra.mxu0 %v7579
        %8123 = vmatprep.subr.mxu0 0.0
        %8124 = vmatpush1.msra.mxu0 %v7580
        %8125 = vmatprep.subr.mxu0 0.0
        %8126 = vmatpush1.msra.mxu0 %v7581
        %8127 = vmatprep.subr.mxu0 0.0
        %8128 = vmatpush1.msra.mxu0 %v7582
        %8129 = vmatprep.subr.mxu0 0.0
        %8130 = vmatpush1.msra.mxu0 %v7583
        %8131 = vmatprep.subr.mxu0 0.0
        %8132 = vmatpush1.msra.mxu0 %v7584
        %8133 = vmatprep.subr.mxu0 0.0
        %8134 = vmatpush1.msra.mxu0 %v7585
        %8135 = vmatprep.subr.mxu0 0.0
        %8136 = vmatpush1.msra.mxu0 %v7586
        %8137 = vmatprep.subr.mxu0 0.0
        %8138 = vmatpush1.msra.mxu0 %v7587
        %8139 = vmatprep.subr.mxu0 0.0
        %8140 = vmatpush1.msra.mxu0 %v7588
        %8141 = vmatprep.subr.mxu0 0.0
        %8142 = vmatpush1.msra.mxu0 %v7589
        %8143 = vmatprep.subr.mxu0 0.0
        %8144 = vmatpush1.msra.mxu0 %v7590
        %8145 = vmatprep.subr.mxu0 0.0
        %8146 = vmatpush1.msra.mxu0 %v7591
        %8147 = vmatprep.subr.mxu0 0.0
        %8148 = vmatpush1.msra.mxu0 %v7592
        %8149 = vmatprep.subr.mxu0 0.0
        %8150 = vmatpush1.msra.mxu0 %v7593
        %8151 = vmatprep.subr.mxu0 0.0
        %8152 = vmatpush1.msra.mxu0 %v7594
        %8153 = vmatprep.subr.mxu0 0.0
        %8154 = vmatpush1.msra.mxu0 %v7595
        %8155 = vmatprep.subr.mxu0 0.0
        %8156 = vmatpush1.msra.mxu0 %v7596
        %8157 = vmatprep.subr.mxu0 0.0
        %8158 = vmatpush1.msra.mxu0 %v7597
        %8159 = vmatprep.subr.mxu0 0.0
        %8160 = vmatpush1.msra.mxu0 %v7598
        %8161 = vmatprep.subr.mxu0 0.0
        %8162 = vmatpush1.msra.mxu0 %v7599
        %8163 = vmatprep.subr.mxu0 0.0
        %8164 = vmatpush1.msra.mxu0 %v7600
        %8165 = vmatprep.subr.mxu0 0.0
        %8166 = vmatpush1.msra.mxu0 %v7601
        %8167 = vmatprep.subr.mxu0 0.0
        %8168 = vmatpush1.msra.mxu0 %v7602
        %8169 = vmatprep.subr.mxu0 0.0
        %8170 = vmatpush1.msra.mxu0 %v7603
        %8171 = vmatprep.subr.mxu0 0.0
        %8172 = vmatpush1.msra.mxu0 %v7604
        %8173 = vmatprep.subr.mxu0 0.0
        %8174 = vmatpush1.msra.mxu0 %v7605
        %8175 = vmatprep.mubr.f32.mxu0 %v7371
        %8176 = vmatmul.mubr.f32.gmra.mrb[0].mxu0 %v7259
        %v8177 = vpop.f32.mrb[0].mxu0
        %v8178 = vadd.f32 %v7953, %v8177
        %v8179 = vpop.f32.mrb[0].mxu0
        %8180 = vmatprep.mubr.f32.mxu0 %v7373
        %8181 = vmatmul.mubr.f32.gmra.mrb[0].mxu0 %v7261
        %v8182 = vpop.f32.mrb[0].mxu0
        %v8183 = vadd.f32 %v7958, %v8182
        %v8184 = vpop.f32.mrb[0].mxu0
        %8185 = vmatprep.mubr.f32.mxu0 %v7376
        %8186 = vmatmul.mubr.f32.gmra.mrb[0].mxu0 %v7264
        %v8187 = vpop.f32.mrb[0].mxu0
        %v8188 = vadd.f32 %v7963, %v8187
        %v8189 = vpop.f32.mrb[0].mxu0
        %8190 = vmatprep.mubr.f32.mxu0 %v7378
        %8191 = vmatmul.mubr.f32.gmra.mrb[0].mxu0 %v7266
        %v8192 = vpop.f32.mrb[0].mxu0
        %v8193 = vadd.f32 %v7968, %v8192
        %v8194 = vpop.f32.mrb[0].mxu0
        %8195 = vmatprep.mubr.f32.mxu0 %v7381
        %8196 = vmatmul.mubr.f32.gmra.mrb[0].mxu0 %v7269
        %v8197 = vpop.f32.mrb[0].mxu0
        %v8198 = vadd.f32 %v7973, %v8197
        %v8199 = vpop.f32.mrb[0].mxu0
        %8200 = vmatprep.mubr.f32.mxu0 %v7383
        %8201 = vmatmul.mubr.f32.gmra.mrb[0].mxu0 %v7271
        %v8202 = vpop.f32.mrb[0].mxu0
        %v8203 = vadd.f32 %v7978, %v8202
        %v8204 = vpop.f32.mrb[0].mxu0
        %8205 = vmatprep.mubr.f32.mxu0 %v7386
        %8206 = vmatmul.mubr.f32.gmra.mrb[0].mxu0 %v7274
        %v8207 = vpop.f32.mrb[0].mxu0
        %v8208 = vadd.f32 %v7983, %v8207
        %v8209 = vpop.f32.mrb[0].mxu0
        %8210 = vmatprep.mubr.f32.mxu0 %v7388
        %8211 = vmatmul.mubr.f32.gmra.mrb[0].mxu0 %v7276
        %v8212 = vpop.f32.mrb[0].mxu0
        %v8213 = vadd.f32 %v7988, %v8212
        %v8214 = vpop.f32.mrb[0].mxu0
        %8215 = vmatprep.mubr.f32.mxu0 %v7391
        %8216 = vmatmul.mubr.f32.gmra.mrb[0].mxu0 %v7279
        %v8217 = vpop.f32.mrb[0].mxu0
        %v8218 = vadd.f32 %v7993, %v8217
        %v8219 = vpop.f32.mrb[0].mxu0
        %8220 = vmatprep.mubr.f32.mxu0 %v7393
        %8221 = vmatmul.mubr.f32.gmra.mrb[0].mxu0 %v7281
        %v8222 = vpop.f32.mrb[0].mxu0
        %v8223 = vadd.f32 %v7998, %v8222
        %v8224 = vpop.f32.mrb[0].mxu0
        %8225 = vmatprep.mubr.f32.mxu0 %v7396
        %8226 = vmatmul.mubr.f32.gmra.mrb[0].mxu0 %v7284
        %v8227 = vpop.f32.mrb[0].mxu0
        %v8228 = vadd.f32 %v8003, %v8227
        %v8229 = vpop.f32.mrb[0].mxu0
        %8230 = vmatprep.mubr.f32.mxu0 %v7398
        %8231 = vmatmul.mubr.f32.gmra.mrb[0].mxu0 %v7286
        %v8232 = vpop.f32.mrb[0].mxu0
        %v8233 = vadd.f32 %v8008, %v8232
        %v8234 = vpop.f32.mrb[0].mxu0
        %8235 = vmatprep.mubr.f32.mxu0 %v7401
        %8236 = vmatmul.mubr.f32.gmra.mrb[0].mxu0 %v7289
        %v8237 = vpop.f32.mrb[0].mxu0
        %v8238 = vadd.f32 %v8013, %v8237
        %v8239 = vpop.f32.mrb[0].mxu0
        %8240 = vmatprep.mubr.f32.mxu0 %v7403
        %8241 = vmatmul.mubr.f32.gmra.mrb[0].mxu0 %v7291
        %v8242 = vpop.f32.mrb[0].mxu0
        %v8243 = vadd.f32 %v8018, %v8242
        %v8244 = vpop.f32.mrb[0].mxu0
        %8245 = vmatprep.mubr.f32.mxu0 %v7406
        %8246 = vmatmul.mubr.f32.gmra.mrb[0].mxu0 %v7294
        %v8247 = vpop.f32.mrb[0].mxu0
        %v8248 = vadd.f32 %v8023, %v8247
        %v8249 = vpop.f32.mrb[0].mxu0
        %8250 = vmatprep.mubr.f32.mxu0 %v7408
        %8251 = vmatmul.mubr.f32.gmra.mrb[0].mxu0 %v7296
        %v8252 = vpop.f32.mrb[0].mxu0
        %v8253 = vadd.f32 %v8028, %v8252
        %v8254 = vpop.f32.mrb[0].mxu0
        %8255 = vmatprep.mubr.f32.mxu0 %v7411
        %8256 = vmatmul.mubr.f32.gmra.mrb[0].mxu0 %v7299
        %v8257 = vpop.f32.mrb[0].mxu0
        %v8258 = vadd.f32 %v8033, %v8257
        %v8259 = vpop.f32.mrb[0].mxu0
        %8260 = vmatprep.mubr.f32.mxu0 %v7413
        %8261 = vmatmul.mubr.f32.gmra.mrb[0].mxu0 %v7301
        %v8262 = vpop.f32.mrb[0].mxu0
        %v8263 = vadd.f32 %v8038, %v8262
        %v8264 = vpop.f32.mrb[0].mxu0
        %8265 = vmatprep.mubr.f32.mxu0 %v7416
        %8266 = vmatmul.mubr.f32.gmra.mrb[0].mxu0 %v7304
        %v8267 = vpop.f32.mrb[0].mxu0
        %v8268 = vadd.f32 %v8043, %v8267
        %v8269 = vpop.f32.mrb[0].mxu0
        %8270 = vmatprep.mubr.f32.mxu0 %v7418
        %8271 = vmatmul.mubr.f32.gmra.mrb[0].mxu0 %v7306
        %v8272 = vpop.f32.mrb[0].mxu0
        %v8273 = vadd.f32 %v8048, %v8272
        %v8274 = vpop.f32.mrb[0].mxu0
        %8275 = vmatprep.mubr.f32.mxu0 %v7421
        %8276 = vmatmul.mubr.f32.gmra.mrb[0].mxu0 %v7309
        %v8277 = vpop.f32.mrb[0].mxu0
        %v8278 = vadd.f32 %v8053, %v8277
        %v8279 = vpop.f32.mrb[0].mxu0
        %8280 = vmatprep.mubr.f32.mxu0 %v7423
        %8281 = vmatmul.mubr.f32.gmra.mrb[0].mxu0 %v7311
        %v8282 = vpop.f32.mrb[0].mxu0
        %v8283 = vadd.f32 %v8058, %v8282
        %v8284 = vpop.f32.mrb[0].mxu0
        %8285 = vmatprep.mubr.f32.mxu0 %v7426
        %8286 = vmatmul.mubr.f32.gmra.mrb[0].mxu0 %v7314
        %v8287 = vpop.f32.mrb[0].mxu0
        %v8288 = vadd.f32 %v8063, %v8287
        %v8289 = vpop.f32.mrb[0].mxu0
        %8290 = vmatprep.mubr.f32.mxu0 %v7428
        %8291 = vmatmul.mubr.f32.gmra.mrb[0].mxu0 %v7316
        %v8292 = vpop.f32.mrb[0].mxu0
        %v8293 = vadd.f32 %v8068, %v8292
        %v8294 = vpop.f32.mrb[0].mxu0
        %8295 = vmatprep.mubr.f32.mxu0 %v7431
        %8296 = vmatmul.mubr.f32.gmra.mrb[0].mxu0 %v7319
        %v8297 = vpop.f32.mrb[0].mxu0
        %v8298 = vadd.f32 %v8073, %v8297
        %v8299 = vpop.f32.mrb[0].mxu0
        %8300 = vmatprep.mubr.f32.mxu0 %v7433
        %8301 = vmatmul.mubr.f32.gmra.mrb[0].mxu0 %v7321
        %v8302 = vpop.f32.mrb[0].mxu0
        %v8303 = vadd.f32 %v8078, %v8302
        %v8304 = vpop.f32.mrb[0].mxu0
        %8305 = vmatprep.mubr.f32.mxu0 %v7436
        %8306 = vmatmul.mubr.f32.gmra.mrb[0].mxu0 %v7324
        %v8307 = vpop.f32.mrb[0].mxu0
        %v8308 = vadd.f32 %v8083, %v8307
        %v8309 = vpop.f32.mrb[0].mxu0
        %8310 = vmatprep.mubr.f32.mxu0 %v7438
        %8311 = vmatmul.mubr.f32.gmra.mrb[0].mxu0 %v7326
        %v8312 = vpop.f32.mrb[0].mxu0
        %v8313 = vadd.f32 %v8088, %v8312
        %v8314 = vpop.f32.mrb[0].mxu0
        %8315 = vmatprep.mubr.f32.mxu0 %v7441
        %8316 = vmatmul.mubr.f32.gmra.mrb[0].mxu0 %v7329
        %v8317 = vpop.f32.mrb[0].mxu0
        %v8318 = vadd.f32 %v8093, %v8317
        %v8319 = vpop.f32.mrb[0].mxu0
        %8320 = vmatprep.mubr.f32.mxu0 %v7443
        %8321 = vmatmul.mubr.f32.gmra.mrb[0].mxu0 %v7331
        %v8322 = vpop.f32.mrb[0].mxu0
        %v8323 = vadd.f32 %v8098, %v8322
        %v8324 = vpop.f32.mrb[0].mxu0
        %8325 = vmatprep.mubr.f32.mxu0 %v7488
        %8326 = vmatmul.mubr.f32.gmra.mrb[0].mxu0 %v7481
        %v8327 = vpop.f32.mrb[0].mxu0
        %v8328 = vadd.f32 %v8103, %v8327
        %v8329 = vpop.f32.mrb[0].mxu0
        %8330 = vmatprep.mubr.f32.mxu0 %v7490
        %8331 = vmatmul.mubr.f32.gmra.mrb[0].mxu0 %v7483
        %v8332 = vpop.f32.mrb[0].mxu0
        %v8333 = vadd.f32 %v8108, %v8332
        %v8334 = vpop.f32.mrb[0].mxu0
        %8335 = vdwg.mxu0
        %8336 = vmatprep.subr.mxu0 0.0
        %8337 = vmatpush1.msra.mxu0 %v7606
        %8338 = vmatprep.subr.mxu0 0.0
        %8339 = vmatpush1.msra.mxu0 %v7607
        %8340 = vmatprep.subr.mxu0 0.0
        %8341 = vmatpush1.msra.mxu0 %v7608
        %8342 = vmatprep.subr.mxu0 0.0
        %8343 = vmatpush1.msra.mxu0 %v7609
        %8344 = vmatprep.subr.mxu0 0.0
        %8345 = vmatpush1.msra.mxu0 %v7610
        %8346 = vmatprep.subr.mxu0 0.0
        %8347 = vmatpush1.msra.mxu0 %v7611
        %8348 = vmatprep.subr.mxu0 0.0
        %8349 = vmatpush1.msra.mxu0 %v7612
        %8350 = vmatprep.subr.mxu0 0.0
        %8351 = vmatpush1.msra.mxu0 %v7613
        %8352 = vmatprep.subr.mxu0 0.0
        %8353 = vmatpush1.msra.mxu0 %v7614
        %8354 = vmatprep.subr.mxu0 0.0
        %8355 = vmatpush1.msra.mxu0 %v7615
        %8356 = vmatprep.subr.mxu0 0.0
        %8357 = vmatpush1.msra.mxu0 %v7616
        %8358 = vmatprep.subr.mxu0 0.0
        %8359 = vmatpush1.msra.mxu0 %v7617
        %8360 = vmatprep.subr.mxu0 0.0
        %8361 = vmatpush1.msra.mxu0 %v7618
        %8362 = vmatprep.subr.mxu0 0.0
        %8363 = vmatpush1.msra.mxu0 %v7619
        %8364 = vmatprep.subr.mxu0 0.0
        %8365 = vmatpush1.msra.mxu0 %v7620
        %8366 = vmatprep.subr.mxu0 0.0
        %8367 = vmatpush1.msra.mxu0 %v7621
        %8368 = vmatprep.subr.mxu0 0.0
        %8369 = vmatpush1.msra.mxu0 %v7622
        %8370 = vmatprep.subr.mxu0 0.0
        %8371 = vmatpush1.msra.mxu0 %v7623
        %8372 = vmatprep.subr.mxu0 0.0
        %8373 = vmatpush1.msra.mxu0 %v7624
        %8374 = vmatprep.subr.mxu0 0.0
        %8375 = vmatpush1.msra.mxu0 %v7625
        %8376 = vmatprep.subr.mxu0 0.0
        %8377 = vmatpush1.msra.mxu0 %v7626
        %8378 = vmatprep.subr.mxu0 0.0
        %8379 = vmatpush1.msra.mxu0 %v7627
        %8380 = vmatprep.subr.mxu0 0.0
        %8381 = vmatpush1.msra.mxu0 %v7628
        %8382 = vmatprep.subr.mxu0 0.0
        %8383 = vmatpush1.msra.mxu0 %v7629
        %8384 = vmatprep.subr.mxu0 0.0
        %8385 = vmatpush1.msra.mxu0 %v7630
        %8386 = vmatprep.subr.mxu0 0.0
        %8387 = vmatpush1.msra.mxu0 %v7631
        %8388 = vmatprep.subr.mxu0 0.0
        %8389 = vmatpush1.msra.mxu0 %v7632
        %8390 = vmatprep.subr.mxu0 0.0
        %8391 = vmatpush1.msra.mxu0 %v7633
        %8392 = vmatprep.subr.mxu0 0.0
        %8393 = vmatpush1.msra.mxu0 %v7634
        %8394 = vmatprep.subr.mxu0 0.0
        %8395 = vmatpush1.msra.mxu0 %v7635
        %8396 = vmatprep.subr.mxu0 0.0
        %8397 = vmatpush1.msra.mxu0 %v7636
        %8398 = vmatprep.subr.mxu0 0.0
        %8399 = vmatpush1.msra.mxu0 %v7637
        %8400 = vmatprep.mubr.f32.mxu0 %v7264
        %8401 = vmatmul.mubr.f32.gmra.mrb[0].mxu0 %v7156
        %v8402 = vpop.f32.mrb[0].mxu0
        %v8403 = vadd.f32 %v8178, %v8402
        %v8404 = vpop.f32.mrb[0].mxu0
        %8405 = vmatprep.mubr.f32.mxu0 %v7266
        %8406 = vmatmul.mubr.f32.gmra.mrb[0].mxu0 %v7157
        %v8407 = vpop.f32.mrb[0].mxu0
        %v8408 = vadd.f32 %v8183, %v8407
        %v8409 = vpop.f32.mrb[0].mxu0
        %8410 = vmatprep.mubr.f32.mxu0 %v7269
        %8411 = vmatmul.mubr.f32.gmra.mrb[0].mxu0 %v7159
        %v8412 = vpop.f32.mrb[0].mxu0
        %v8413 = vadd.f32 %v8188, %v8412
        %v8414 = vpop.f32.mrb[0].mxu0
        %8415 = vmatprep.mubr.f32.mxu0 %v7271
        %8416 = vmatmul.mubr.f32.gmra.mrb[0].mxu0 %v7160
        %v8417 = vpop.f32.mrb[0].mxu0
        %v8418 = vadd.f32 %v8193, %v8417
        %v8419 = vpop.f32.mrb[0].mxu0
        %8420 = vmatprep.mubr.f32.mxu0 %v7274
        %8421 = vmatmul.mubr.f32.gmra.mrb[0].mxu0 %v7162
        %v8422 = vpop.f32.mrb[0].mxu0
        %v8423 = vadd.f32 %v8198, %v8422
        %v8424 = vpop.f32.mrb[0].mxu0
        %8425 = vmatprep.mubr.f32.mxu0 %v7276
        %8426 = vmatmul.mubr.f32.gmra.mrb[0].mxu0 %v7163
        %v8427 = vpop.f32.mrb[0].mxu0
        %v8428 = vadd.f32 %v8203, %v8427
        %v8429 = vpop.f32.mrb[0].mxu0
        %8430 = vmatprep.mubr.f32.mxu0 %v7279
        %8431 = vmatmul.mubr.f32.gmra.mrb[0].mxu0 %v7165
        %v8432 = vpop.f32.mrb[0].mxu0
        %v8433 = vadd.f32 %v8208, %v8432
        %v8434 = vpop.f32.mrb[0].mxu0
        %8435 = vmatprep.mubr.f32.mxu0 %v7281
        %8436 = vmatmul.mubr.f32.gmra.mrb[0].mxu0 %v7166
        %v8437 = vpop.f32.mrb[0].mxu0
        %v8438 = vadd.f32 %v8213, %v8437
        %v8439 = vpop.f32.mrb[0].mxu0
        %8440 = vmatprep.mubr.f32.mxu0 %v7284
        %8441 = vmatmul.mubr.f32.gmra.mrb[0].mxu0 %v7168
        %v8442 = vpop.f32.mrb[0].mxu0
        %v8443 = vadd.f32 %v8218, %v8442
        %v8444 = vpop.f32.mrb[0].mxu0
        %8445 = vmatprep.mubr.f32.mxu0 %v7286
        %8446 = vmatmul.mubr.f32.gmra.mrb[0].mxu0 %v7169
        %v8447 = vpop.f32.mrb[0].mxu0
        %v8448 = vadd.f32 %v8223, %v8447
        %v8449 = vpop.f32.mrb[0].mxu0
        %8450 = vmatprep.mubr.f32.mxu0 %v7289
        %8451 = vmatmul.mubr.f32.gmra.mrb[0].mxu0 %v7171
        %v8452 = vpop.f32.mrb[0].mxu0
        %v8453 = vadd.f32 %v8228, %v8452
        %v8454 = vpop.f32.mrb[0].mxu0
        %8455 = vmatprep.mubr.f32.mxu0 %v7291
        %8456 = vmatmul.mubr.f32.gmra.mrb[0].mxu0 %v7172
        %v8457 = vpop.f32.mrb[0].mxu0
        %v8458 = vadd.f32 %v8233, %v8457
        %v8459 = vpop.f32.mrb[0].mxu0
        %8460 = vmatprep.mubr.f32.mxu0 %v7294
        %8461 = vmatmul.mubr.f32.gmra.mrb[0].mxu0 %v7174
        %v8462 = vpop.f32.mrb[0].mxu0
        %v8463 = vadd.f32 %v8238, %v8462
        %v8464 = vpop.f32.mrb[0].mxu0
        %8465 = vmatprep.mubr.f32.mxu0 %v7296
        %8466 = vmatmul.mubr.f32.gmra.mrb[0].mxu0 %v7175
        %v8467 = vpop.f32.mrb[0].mxu0
        %v8468 = vadd.f32 %v8243, %v8467
        %v8469 = vpop.f32.mrb[0].mxu0
        %8470 = vmatprep.mubr.f32.mxu0 %v7299
        %8471 = vmatmul.mubr.f32.gmra.mrb[0].mxu0 %v7177
        %v8472 = vpop.f32.mrb[0].mxu0
        %v8473 = vadd.f32 %v8248, %v8472
        %v8474 = vpop.f32.mrb[0].mxu0
        %8475 = vmatprep.mubr.f32.mxu0 %v7301
        %8476 = vmatmul.mubr.f32.gmra.mrb[0].mxu0 %v7178
        %v8477 = vpop.f32.mrb[0].mxu0
        %v8478 = vadd.f32 %v8253, %v8477
        %v8479 = vpop.f32.mrb[0].mxu0
        %8480 = vmatprep.mubr.f32.mxu0 %v7304
        %8481 = vmatmul.mubr.f32.gmra.mrb[0].mxu0 %v7180
        %v8482 = vpop.f32.mrb[0].mxu0
        %v8483 = vadd.f32 %v8258, %v8482
        %v8484 = vpop.f32.mrb[0].mxu0
        %8485 = vmatprep.mubr.f32.mxu0 %v7306
        %8486 = vmatmul.mubr.f32.gmra.mrb[0].mxu0 %v7181
        %v8487 = vpop.f32.mrb[0].mxu0
        %v8488 = vadd.f32 %v8263, %v8487
        %v8489 = vpop.f32.mrb[0].mxu0
        %8490 = vmatprep.mubr.f32.mxu0 %v7309
        %8491 = vmatmul.mubr.f32.gmra.mrb[0].mxu0 %v7183
        %v8492 = vpop.f32.mrb[0].mxu0
        %v8493 = vadd.f32 %v8268, %v8492
        %v8494 = vpop.f32.mrb[0].mxu0
        %8495 = vmatprep.mubr.f32.mxu0 %v7311
        %8496 = vmatmul.mubr.f32.gmra.mrb[0].mxu0 %v7184
        %v8497 = vpop.f32.mrb[0].mxu0
        %v8498 = vadd.f32 %v8273, %v8497
        %v8499 = vpop.f32.mrb[0].mxu0
        %8500 = vmatprep.mubr.f32.mxu0 %v7314
        %8501 = vmatmul.mubr.f32.gmra.mrb[0].mxu0 %v7186
        %v8502 = vpop.f32.mrb[0].mxu0
        %v8503 = vadd.f32 %v8278, %v8502
        %v8504 = vpop.f32.mrb[0].mxu0
        %8505 = vmatprep.mubr.f32.mxu0 %v7316
        %8506 = vmatmul.mubr.f32.gmra.mrb[0].mxu0 %v7187
        %v8507 = vpop.f32.mrb[0].mxu0
        %v8508 = vadd.f32 %v8283, %v8507
        %v8509 = vpop.f32.mrb[0].mxu0
        %8510 = vmatprep.mubr.f32.mxu0 %v7319
        %8511 = vmatmul.mubr.f32.gmra.mrb[0].mxu0 %v7189
        %v8512 = vpop.f32.mrb[0].mxu0
        %v8513 = vadd.f32 %v8288, %v8512
        %v8514 = vpop.f32.mrb[0].mxu0
        %8515 = vmatprep.mubr.f32.mxu0 %v7321
        %8516 = vmatmul.mubr.f32.gmra.mrb[0].mxu0 %v7190
        %v8517 = vpop.f32.mrb[0].mxu0
        %v8518 = vadd.f32 %v8293, %v8517
        %v8519 = vpop.f32.mrb[0].mxu0
        %8520 = vmatprep.mubr.f32.mxu0 %v7324
        %8521 = vmatmul.mubr.f32.gmra.mrb[0].mxu0 %v7192
        %v8522 = vpop.f32.mrb[0].mxu0
        %v8523 = vadd.f32 %v8298, %v8522
        %v8524 = vpop.f32.mrb[0].mxu0
        %8525 = vmatprep.mubr.f32.mxu0 %v7326
        %8526 = vmatmul.mubr.f32.gmra.mrb[0].mxu0 %v7193
        %v8527 = vpop.f32.mrb[0].mxu0
        %v8528 = vadd.f32 %v8303, %v8527
        %v8529 = vpop.f32.mrb[0].mxu0
        %8530 = vmatprep.mubr.f32.mxu0 %v7329
        %8531 = vmatmul.mubr.f32.gmra.mrb[0].mxu0 %v7195
        %v8532 = vpop.f32.mrb[0].mxu0
        %v8533 = vadd.f32 %v8308, %v8532
        %v8534 = vpop.f32.mrb[0].mxu0
        %8535 = vmatprep.mubr.f32.mxu0 %v7331
        %8536 = vmatmul.mubr.f32.gmra.mrb[0].mxu0 %v7196
        %v8537 = vpop.f32.mrb[0].mxu0
        %v8538 = vadd.f32 %v8313, %v8537
        %v8539 = vpop.f32.mrb[0].mxu0
        %8540 = vmatprep.mubr.f32.mxu0 %v7481
        %8541 = vmatmul.mubr.f32.gmra.mrb[0].mxu0 %v7198
        %v8542 = vpop.f32.mrb[0].mxu0
        %v8543 = vadd.f32 %v8318, %v8542
        %v8544 = vpop.f32.mrb[0].mxu0
        %8545 = vmatprep.mubr.f32.mxu0 %v7483
        %8546 = vmatmul.mubr.f32.gmra.mrb[0].mxu0 %v7199
        %v8547 = vpop.f32.mrb[0].mxu0
        %v8548 = vadd.f32 %v8323, %v8547
        %v8549 = vpop.f32.mrb[0].mxu0
        %8550 = vmatprep.mubr.f32.mxu0 %v7498
        %8551 = vmatmul.mubr.f32.gmra.mrb[0].mxu0 %v7201
        %v8552 = vpop.f32.mrb[0].mxu0
        %v8553 = vadd.f32 %v8328, %v8552
        %v8554 = vpop.f32.mrb[0].mxu0
        %8555 = vmatprep.mubr.f32.mxu0 %v7500
        %8556 = vmatmul.mubr.f32.gmra.mrb[0].mxu0 %v7202
        %v8557 = vpop.f32.mrb[0].mxu0
        %v8558 = vadd.f32 %v8333, %v8557
        %v8559 = vpop.f32.mrb[0].mxu0
        %8560 = vdwg.mxu0
        %8561 = vmatprep.subr.mxu0 0.0
        %8562 = vmatpush1.msra.mxu0 %v7638
        %8563 = vmatprep.subr.mxu0 0.0
        %8564 = vmatpush1.msra.mxu0 %v7639
        %8565 = vmatprep.subr.mxu0 0.0
        %8566 = vmatpush1.msra.mxu0 %v7640
        %8567 = vmatprep.subr.mxu0 0.0
        %8568 = vmatpush1.msra.mxu0 %v7641
        %8569 = vmatprep.subr.mxu0 0.0
        %8570 = vmatpush1.msra.mxu0 %v7642
        %8571 = vmatprep.subr.mxu0 0.0
        %8572 = vmatpush1.msra.mxu0 %v7643
        %8573 = vmatprep.subr.mxu0 0.0
        %8574 = vmatpush1.msra.mxu0 %v7644
        %8575 = vmatprep.subr.mxu0 0.0
        %8576 = vmatpush1.msra.mxu0 %v7645
        %8577 = vmatprep.subr.mxu0 0.0
        %8578 = vmatpush1.msra.mxu0 %v7646
        %8579 = vmatprep.subr.mxu0 0.0
        %8580 = vmatpush1.msra.mxu0 %v7647
        %8581 = vmatprep.subr.mxu0 0.0
        %8582 = vmatpush1.msra.mxu0 %v7648
        %8583 = vmatprep.subr.mxu0 0.0
        %8584 = vmatpush1.msra.mxu0 %v7649
        %8585 = vmatprep.subr.mxu0 0.0
        %8586 = vmatpush1.msra.mxu0 %v7650
        %8587 = vmatprep.subr.mxu0 0.0
        %8588 = vmatpush1.msra.mxu0 %v7651
        %8589 = vmatprep.subr.mxu0 0.0
        %8590 = vmatpush1.msra.mxu0 %v7652
        %8591 = vmatprep.subr.mxu0 0.0
        %8592 = vmatpush1.msra.mxu0 %v7653
        %8593 = vmatprep.subr.mxu0 0.0
        %8594 = vmatpush1.msra.mxu0 0.0
        %8595 = vmatprep.subr.mxu0 0.0
        %8596 = vmatpush1.msra.mxu0 0.0
        %8597 = vmatprep.subr.mxu0 0.0
        %8598 = vmatpush1.msra.mxu0 0.0
        %8599 = vmatprep.subr.mxu0 0.0
        %8600 = vmatpush1.msra.mxu0 0.0
        %8601 = vmatprep.subr.mxu0 0.0
        %8602 = vmatpush1.msra.mxu0 0.0
        %8603 = vmatprep.subr.mxu0 0.0
        %8604 = vmatpush1.msra.mxu0 0.0
        %8605 = vmatprep.subr.mxu0 0.0
        %8606 = vmatpush1.msra.mxu0 0.0
        %8607 = vmatprep.subr.mxu0 0.0
        %8608 = vmatpush1.msra.mxu0 0.0
        %8609 = vmatprep.subr.mxu0 0.0
        %8610 = vmatpush1.msra.mxu0 0.0
        %8611 = vmatprep.subr.mxu0 0.0
        %8612 = vmatpush1.msra.mxu0 0.0
        %8613 = vmatprep.subr.mxu0 0.0
        %8614 = vmatpush1.msra.mxu0 0.0
        %8615 = vmatprep.subr.mxu0 0.0
        %8616 = vmatpush1.msra.mxu0 0.0
        %8617 = vmatprep.subr.mxu0 0.0
        %8618 = vmatpush1.msra.mxu0 0.0
        %8619 = vmatprep.subr.mxu0 0.0
        %8620 = vmatpush1.msra.mxu0 0.0
        %8621 = vmatprep.subr.mxu0 0.0
        %8622 = vmatpush1.msra.mxu0 0.0
        %8623 = vmatprep.subr.mxu0 0.0
        %8624 = vmatpush1.msra.mxu0 0.0
        %8625 = vmatprep.mubr.f32.mxu0 0.0
        %8626 = vmatmul.mubr.f32.gmra.mrb[0].mxu0 %v7376
        %v8627 = vpop.f32.mrb[0].mxu0
        %v8628 = vadd.f32 %v8403, %v8627
        %v8629 = vpop.f32.mrb[0].mxu0
        %8630 = vmatprep.mubr.f32.mxu0 0.0
        %8631 = vmatmul.mubr.f32.gmra.mrb[0].mxu0 %v7378
        %v8632 = vpop.f32.mrb[0].mxu0
        %v8633 = vadd.f32 %v8408, %v8632
        %v8634 = vpop.f32.mrb[0].mxu0
        %8635 = vmatprep.mubr.f32.mxu0 0.0
        %8636 = vmatmul.mubr.f32.gmra.mrb[0].mxu0 %v7381
        %v8637 = vpop.f32.mrb[0].mxu0
        %v8638 = vadd.f32 %v8413, %v8637
        %v8639 = vpop.f32.mrb[0].mxu0
        %8640 = vmatprep.mubr.f32.mxu0 0.0
        %8641 = vmatmul.mubr.f32.gmra.mrb[0].mxu0 %v7383
        %v8642 = vpop.f32.mrb[0].mxu0
        %v8643 = vadd.f32 %v8418, %v8642
        %v8644 = vpop.f32.mrb[0].mxu0
        %8645 = vmatprep.mubr.f32.mxu0 0.0
        %8646 = vmatmul.mubr.f32.gmra.mrb[0].mxu0 %v7386
        %v8647 = vpop.f32.mrb[0].mxu0
        %v8648 = vadd.f32 %v8423, %v8647
        %v8649 = vpop.f32.mrb[0].mxu0
        %8650 = vmatprep.mubr.f32.mxu0 0.0
        %8651 = vmatmul.mubr.f32.gmra.mrb[0].mxu0 %v7388
        %v8652 = vpop.f32.mrb[0].mxu0
        %v8653 = vadd.f32 %v8428, %v8652
        %v8654 = vpop.f32.mrb[0].mxu0
        %8655 = vmatprep.mubr.f32.mxu0 0.0
        %8656 = vmatmul.mubr.f32.gmra.mrb[0].mxu0 %v7391
        %v8657 = vpop.f32.mrb[0].mxu0
        %v8658 = vadd.f32 %v8433, %v8657
        %v8659 = vpop.f32.mrb[0].mxu0
        %8660 = vmatprep.mubr.f32.mxu0 0.0
        %8661 = vmatmul.mubr.f32.gmra.mrb[0].mxu0 %v7393
        %v8662 = vpop.f32.mrb[0].mxu0
        %v8663 = vadd.f32 %v8438, %v8662
        %v8664 = vpop.f32.mrb[0].mxu0
        %8665 = vmatprep.mubr.f32.mxu0 0.0
        %8666 = vmatmul.mubr.f32.gmra.mrb[0].mxu0 %v7396
        %v8667 = vpop.f32.mrb[0].mxu0
        %v8668 = vadd.f32 %v8443, %v8667
        %v8669 = vpop.f32.mrb[0].mxu0
        %8670 = vmatprep.mubr.f32.mxu0 0.0
        %8671 = vmatmul.mubr.f32.gmra.mrb[0].mxu0 %v7398
        %v8672 = vpop.f32.mrb[0].mxu0
        %v8673 = vadd.f32 %v8448, %v8672
        %v8674 = vpop.f32.mrb[0].mxu0
        %8675 = vmatprep.mubr.f32.mxu0 0.0
        %8676 = vmatmul.mubr.f32.gmra.mrb[0].mxu0 %v7401
        %v8677 = vpop.f32.mrb[0].mxu0
        %v8678 = vadd.f32 %v8453, %v8677
        %v8679 = vpop.f32.mrb[0].mxu0
        %8680 = vmatprep.mubr.f32.mxu0 0.0
        %8681 = vmatmul.mubr.f32.gmra.mrb[0].mxu0 %v7403
        %v8682 = vpop.f32.mrb[0].mxu0
        %v8683 = vadd.f32 %v8458, %v8682
        %v8684 = vpop.f32.mrb[0].mxu0
        %8685 = vmatprep.mubr.f32.mxu0 0.0
        %8686 = vmatmul.mubr.f32.gmra.mrb[0].mxu0 %v7406
        %v8687 = vpop.f32.mrb[0].mxu0
        %v8688 = vadd.f32 %v8463, %v8687
        %v8689 = vpop.f32.mrb[0].mxu0
        %8690 = vmatprep.mubr.f32.mxu0 0.0
        %8691 = vmatmul.mubr.f32.gmra.mrb[0].mxu0 %v7408
        %v8692 = vpop.f32.mrb[0].mxu0
        %v8693 = vadd.f32 %v8468, %v8692
        %v8694 = vpop.f32.mrb[0].mxu0
        %8695 = vmatprep.mubr.f32.mxu0 0.0
        %8696 = vmatmul.mubr.f32.gmra.mrb[0].mxu0 %v7411
        %v8697 = vpop.f32.mrb[0].mxu0
        %v8698 = vadd.f32 %v8473, %v8697
        %v8699 = vpop.f32.mrb[0].mxu0
        %8700 = vmatprep.mubr.f32.mxu0 0.0
        %8701 = vmatmul.mubr.f32.gmra.mrb[0].mxu0 %v7413
        %v8702 = vpop.f32.mrb[0].mxu0
        %v8703 = vadd.f32 %v8478, %v8702
        %v8704 = vpop.f32.mrb[0].mxu0
        %8705 = vmatprep.mubr.f32.mxu0 0.0
        %8706 = vmatmul.mubr.f32.gmra.mrb[0].mxu0 %v7416
        %v8707 = vpop.f32.mrb[0].mxu0
        %v8708 = vadd.f32 %v8483, %v8707
        %v8709 = vpop.f32.mrb[0].mxu0
        %8710 = vmatprep.mubr.f32.mxu0 0.0
        %8711 = vmatmul.mubr.f32.gmra.mrb[0].mxu0 %v7418
        %v8712 = vpop.f32.mrb[0].mxu0
        %v8713 = vadd.f32 %v8488, %v8712
        %v8714 = vpop.f32.mrb[0].mxu0
        %8715 = vmatprep.mubr.f32.mxu0 0.0
        %8716 = vmatmul.mubr.f32.gmra.mrb[0].mxu0 %v7421
        %v8717 = vpop.f32.mrb[0].mxu0
        %v8718 = vadd.f32 %v8493, %v8717
        %v8719 = vpop.f32.mrb[0].mxu0
        %8720 = vmatprep.mubr.f32.mxu0 0.0
        %8721 = vmatmul.mubr.f32.gmra.mrb[0].mxu0 %v7423
        %v8722 = vpop.f32.mrb[0].mxu0
        %v8723 = vadd.f32 %v8498, %v8722
        %v8724 = vpop.f32.mrb[0].mxu0
        %8725 = vmatprep.mubr.f32.mxu0 0.0
        %8726 = vmatmul.mubr.f32.gmra.mrb[0].mxu0 %v7426
        %v8727 = vpop.f32.mrb[0].mxu0
        %v8728 = vadd.f32 %v8503, %v8727
        %v8729 = vpop.f32.mrb[0].mxu0
        %8730 = vmatprep.mubr.f32.mxu0 0.0
        %8731 = vmatmul.mubr.f32.gmra.mrb[0].mxu0 %v7428
        %v8732 = vpop.f32.mrb[0].mxu0
        %v8733 = vadd.f32 %v8508, %v8732
        %v8734 = vpop.f32.mrb[0].mxu0
        %8735 = vmatprep.mubr.f32.mxu0 0.0
        %8736 = vmatmul.mubr.f32.gmra.mrb[0].mxu0 %v7431
        %v8737 = vpop.f32.mrb[0].mxu0
        %v8738 = vadd.f32 %v8513, %v8737
        %v8739 = vpop.f32.mrb[0].mxu0
        %8740 = vmatprep.mubr.f32.mxu0 0.0
        %8741 = vmatmul.mubr.f32.gmra.mrb[0].mxu0 %v7433
        %v8742 = vpop.f32.mrb[0].mxu0
        %v8743 = vadd.f32 %v8518, %v8742
        %v8744 = vpop.f32.mrb[0].mxu0
        %8745 = vmatprep.mubr.f32.mxu0 0.0
        %8746 = vmatmul.mubr.f32.gmra.mrb[0].mxu0 %v7436
        %v8747 = vpop.f32.mrb[0].mxu0
        %v8748 = vadd.f32 %v8523, %v8747
        %v8749 = vpop.f32.mrb[0].mxu0
        %8750 = vmatprep.mubr.f32.mxu0 0.0
        %8751 = vmatmul.mubr.f32.gmra.mrb[0].mxu0 %v7438
        %v8752 = vpop.f32.mrb[0].mxu0
        %v8753 = vadd.f32 %v8528, %v8752
        %v8754 = vpop.f32.mrb[0].mxu0
        %8755 = vmatprep.mubr.f32.mxu0 0.0
        %8756 = vmatmul.mubr.f32.gmra.mrb[0].mxu0 %v7441
        %v8757 = vpop.f32.mrb[0].mxu0
        %v8758 = vadd.f32 %v8533, %v8757
        %v8759 = vpop.f32.mrb[0].mxu0
        %8760 = vmatprep.mubr.f32.mxu0 0.0
        %8761 = vmatmul.mubr.f32.gmra.mrb[0].mxu0 %v7443
        %v8762 = vpop.f32.mrb[0].mxu0
        %v8763 = vadd.f32 %v8538, %v8762
        %v8764 = vpop.f32.mrb[0].mxu0
        %8765 = vmatprep.mubr.f32.mxu0 0.0
        %8766 = vmatmul.mubr.f32.gmra.mrb[0].mxu0 %v7488
        %v8767 = vpop.f32.mrb[0].mxu0
        %v8768 = vadd.f32 %v8543, %v8767
        %v8769 = vpop.f32.mrb[0].mxu0
        %8770 = vmatprep.mubr.f32.mxu0 0.0
        %8771 = vmatmul.mubr.f32.gmra.mrb[0].mxu0 %v7490
        %v8772 = vpop.f32.mrb[0].mxu0
        %v8773 = vadd.f32 %v8548, %v8772
        %v8774 = vpop.f32.mrb[0].mxu0
        %8775 = vmatprep.mubr.f32.mxu0 0.0
        %8776 = vmatmul.mubr.f32.gmra.mrb[0].mxu0 %v7505
        %v8777 = vpop.f32.mrb[0].mxu0
        %v8778 = vadd.f32 %v8553, %v8777
        %v8779 = vpop.f32.mrb[0].mxu0
        %8780 = vmatprep.mubr.f32.mxu0 0.0
        %8781 = vmatmul.mubr.f32.gmra.mrb[0].mxu0 %v7507
        %v8782 = vpop.f32.mrb[0].mxu0
        %v8783 = vadd.f32 %v8558, %v8782
        %v8784 = vpop.f32.mrb[0].mxu0
        %8785 = vdwg.mxu0
        %8786 = vst [vmem:[%s217] sm:$0xff] %v8628
        %8787 = vst [vmem:[%s217 + $0x8] sm:$0xff] %v8633
        %8788 = vst [vmem:[%s217 + $0x10] sm:$0xff] %v8638
        %8789 = vst [vmem:[%s217 + $0x18] sm:$0xff] %v8643
        %8790 = vst [vmem:[%s217 + $0x20] sm:$0xff] %v8648
        %8791 = vst [vmem:[%s217 + $0x28] sm:$0xff] %v8653
        %8792 = vst [vmem:[%s217 + $0x30] sm:$0xff] %v8658
        %8793 = vst [vmem:[%s217 + $0x38] sm:$0xff] %v8663
        %8794 = vst [vmem:[%s217 + $0x40] sm:$0xff] %v8668
        %8795 = vst [vmem:[%s217 + $0x48] sm:$0xff] %v8673
        %8796 = vst [vmem:[%s217 + $0x50] sm:$0xff] %v8678
        %8797 = vst [vmem:[%s217 + $0x58] sm:$0xff] %v8683
        %8798 = vst [vmem:[%s217 + $0x60] sm:$0xff] %v8688
        %8799 = vst [vmem:[%s217 + $0x68] sm:$0xff] %v8693
        %8800 = vst [vmem:[%s217 + $0x70] sm:$0xff] %v8698
        %8801 = vst [vmem:[%s217 + $0x78] sm:$0xff] %v8703
        %8802 = vst [vmem:[%s217 + $0x80] sm:$0xff] %v8708
        %8803 = vst [vmem:[%s217 + $0x88] sm:$0xff] %v8713
        %8804 = vst [vmem:[%s217 + $0x90] sm:$0xff] %v8718
        %8805 = vst [vmem:[%s217 + $0x98] sm:$0xff] %v8723
        %8806 = vst [vmem:[%s217 + $0xa0] sm:$0xff] %v8728
        %8807 = vst [vmem:[%s217 + $0xa8] sm:$0xff] %v8733
        %8808 = vst [vmem:[%s217 + $0xb0] sm:$0xff] %v8738
        %8809 = vst [vmem:[%s217 + $0xb8] sm:$0xff] %v8743
        %8810 = vst [vmem:[%s217 + $0xc0] sm:$0xff] %v8748
        %8811 = vst [vmem:[%s217 + $0xc8] sm:$0xff] %v8753
        %8812 = vst [vmem:[%s217 + $0xd0] sm:$0xff] %v8758
        %8813 = vst [vmem:[%s217 + $0xd8] sm:$0xff] %v8763
        %8814 = vst [vmem:[%s217 + $0xe0] sm:$0xff] %v8768
        %8815 = vst [vmem:[%s217 + $0xe8] sm:$0xff] %v8773
        %8816 = vst [vmem:[%s217 + $0xf0] sm:$0xff] %v8778
        %8817 = vst [vmem:[%s217 + $0xf8] sm:$0xff] %v8783
        %s8818 = sand.u32 %s137, 1
        %s8819 = scalar_lea.sflag [#allocation4], %s8818
        %s8820 = sand.u32 %s137, 1
        %s8821 = smul.addr %s8820, 256
        %s8822 = scalar_lea.vmem [#allocation3], %s8821
        // Predicated region
        $region41: #{fcos_cls_head_forward.1} parent=39 // pred_check
          %p8823 = pneg %p147
        $region42: #{fcos_cls_head_forward.1} parent=39 // pred_check_branch
          %8825 = sbr.rel (%p8823) target = $region44
        $region43: #{fcos_cls_head_forward.1} parent=39 // pred_region
          %s8827 = ssub.s32 4096, 4096
          %8828 = vsyncadd %s8819, %s8827
          %s8829 = smul.addr %s19, 32
          %s8830 = smul.addr %s8829, 128
          %s8831 = scalar_lea.hbm %s5, %s8830
          %s8832 = sshll.u32 %s8822, 4
          %s8833 = int_to_ptr.vmem [resolvable:$true] %s8832
          %8838 = dma.vmem_to_hbm [thread:$0]  %s8833, 4096, %s8831, %s8819, 128, 128, 8
        $region44: #{fcos_cls_head_forward.1} parent=39 // pred_fallthru
          _
      $region40: #{fcos_cls_head_forward.1} parent=5 // pred_fallthru
        _
      %p8839 = scmp.le.s32.totalorder 2, %s14
      // Predicated region
      $region45: #{fcos_cls_head_forward.1} parent=5 // pred_check
        %p8840 = pneg %p8839
      $region46: #{fcos_cls_head_forward.1} parent=5 // pred_check_branch
        %8842 = sbr.rel (%p8840) target = $region48
      $region47: #{fcos_cls_head_forward.1} parent=5 // pred_region
        %s8843 = ssub.s32 %s14, 2
        // Predicated region
        $region49: #{fcos_cls_head_forward.1} parent=47 // pred_check
          %p8844 = pneg %p153
        $region50: #{fcos_cls_head_forward.1} parent=47 // pred_check_branch
          %8846 = sbr.rel (%p8844) target = $region52
        $region51: #{fcos_cls_head_forward.1} parent=47 // pred_region
          %s8847 = sand.u32 %s138, 1
          %s8848 = scalar_lea.sflag [#allocation4], %s8847
          %s8849 = sand.u32 %s138, 1
          %s8850 = smul.addr %s8849, 256
          %s8851 = scalar_lea.vmem [#allocation3], %s8850
          %8852 = dma.done %s8848, 4096
        $region52: #{fcos_cls_head_forward.1} parent=47 // pred_fallthru
          _
      $region48: #{fcos_cls_head_forward.1} parent=5 // pred_fallthru
        _
    $region6: #{fcos_cls_head_forward.1} parent=1 // loop_footer
      %s18 = sadd.s32 1, %s14
    $region7: #{fcos_cls_head_forward.1} parent=1 // loop_footer_branch
      %13 = sbr.rel target = $region3
    $region8: #{fcos_cls_head_forward.1} parent=1 // loop_exit
      _
    %8853 = vsyncpa [#allocation4], 1
    %s8854 = scalar_lea.sflag [#allocation4], 1
    %8855 = vsyncpa %s8854, 1

</llo_original>
